<compile_context>
chip_gen: v7x
topology: tpu7x:2x2x1
jax: 0.10.0
libtpu: 0.0.40
codegen_flags: <defaults>
</compile_context>

<pallas_src>
import functools

import numpy as np

import jax
import jax.numpy as jnp
from jax.experimental import pallas as pl
from jax.experimental.pallas import tpu as pltpu


# ----------------------------------------------------------------------------
# Kernel A: conv-as-matmul (lane-dense) + bias + ReLU + 2x2 maxpool, fused.
# ----------------------------------------------------------------------------
def _conv_relu_pool_kernel(w_ref, p_ref, b_ref, idx_ref, o_ref):
    # conv:  (Cout, K) @ (K, N*oh*ow) + bias, ReLU fused.
    y = jnp.dot(w_ref[...], p_ref[...], preferred_element_type=jnp.float32)
    y = jnp.maximum(y + b_ref[...], 0.0)                       # (Cout, m_in)

    # 2x2 maxpool fused in the epilogue: each pooled pixel is the max of 4
    # source lanes; gather each corner with a thin 0/1 matrix built from an
    # iota compare (same trick as the grid_sample gather) and take the max.
    # relu/maxpool commute, so this matches Conv -> MaxPool -> ReLU.
    m_in = p_ref.shape[1]
    m_out = idx_ref.shape[1]
    row_iota = jax.lax.broadcasted_iota(jnp.int32, (m_in, m_out), 0)
    pooled = None
    for d in range(idx_ref.shape[0]):                          # 4 corners
        sel = jnp.where(row_iota == idx_ref[d:d + 1, :], 1.0, 0.0)
        cand = jnp.dot(y, sel, preferred_element_type=jnp.float32)
        pooled = cand if pooled is None else jnp.maximum(pooled, cand)
    o_ref[...] = pooled.astype(o_ref.dtype)


def conv_relu_pool(w_mat, patches, bias_col, pool_idx):
    """w_mat (Cout,K), patches (K,M), bias (Cout,1), pool_idx (4,Mp) -> (Cout,Mp)."""
    cout, k = w_mat.shape
    m_in = patches.shape[1]
    m_out = pool_idx.shape[1]
    return pl.pallas_call(
        _conv_relu_pool_kernel,
        grid=(1,),
        in_specs=[
            pl.BlockSpec((cout, k), lambda i: (0, 0)),
            pl.BlockSpec((k, m_in), lambda i: (0, 0)),
            pl.BlockSpec((cout, 1), lambda i: (0, 0)),
            pl.BlockSpec((4, m_out), lambda i: (0, 0)),
        ],
        out_specs=pl.BlockSpec((cout, m_out), lambda i: (0, 0)),
        out_shape=jax.ShapeDtypeStruct((cout, m_out), jnp.float32),
    )(w_mat, patches, bias_col, pool_idx)


# ----------------------------------------------------------------------------
# Kernel B: conv2 + bias + ReLU + 2x2 maxpool + NCHW flatten + fc_loc, fused.
#   theta^T (6, N) is produced directly; the flatten is decomposed per pooled
#   pixel q so no lane-splitting reshape is needed:
#     h^T = sum_q fc1_wr[q] @ A_q,  A_q[c, n] = maxpool(relu(conv2))[n, c, q]
# ----------------------------------------------------------------------------
def _loc_head_kernel(w2_ref, p2_ref, b2_ref, idx_ref, w1r_ref, b1_ref,
                     wf_ref, bf_ref, o_ref):
    y = jnp.dot(w2_ref[...], p2_ref[...], preferred_element_type=jnp.float32)
    y = jnp.maximum(y + b2_ref[...], 0.0)                      # (10, N*oh2*ow2)

    m_in = p2_ref.shape[1]
    nb = o_ref.shape[1]                                        # batch
    n_q = w1r_ref.shape[0]                                     # nx*nx
    row_iota = jax.lax.broadcasted_iota(jnp.int32, (m_in, nb), 0)

    hT = None
    for q in range(n_q):
        a_q = None
        for d in range(4):                                     # 2x2 corners
            r = q * 4 + d
            sel = jnp.where(row_iota == idx_ref[r:r + 1, :], 1.0, 0.0)
            cand = jnp.dot(y, sel, preferred_element_type=jnp.float32)      # (10, nb)
            a_q = cand if a_q is None else jnp.maximum(a_q, cand)
        term = jnp.dot(w1r_ref[q], a_q, preferred_element_type=jnp.float32)  # (32, nb)
        hT = term if hT is None else hT + term
    hT = jnp.maximum(hT + b1_ref[...], 0.0)                    # (32, nb)

    theta = jnp.dot(wf_ref[...], hT, preferred_element_type=jnp.float32) + bf_ref[...]
    o_ref[...] = theta.astype(o_ref.dtype)                     # (6, nb)


def loc_head(w2_mat, patches2, b2_col, pool2_idx, fc1_wr, fc1_b_col,
             fc2_w, fc2_b_col):
    cout, k2 = w2_mat.shape
    m_in = patches2.shape[1]
    n_rows, n_batch = pool2_idx.shape
    n_q, h1, c2 = fc1_wr.shape
    n_out = fc2_w.shape[0]
    assert n_rows == 4 * n_q
    return pl.pallas_call(
        _loc_head_kernel,
        grid=(1,),
        in_specs=[
            pl.BlockSpec((cout, k2), lambda i: (0, 0)),
            pl.BlockSpec((k2, m_in), lambda i: (0, 0)),
            pl.BlockSpec((cout, 1), lambda i: (0, 0)),
            pl.BlockSpec((n_rows, n_batch), lambda i: (0, 0)),
            pl.BlockSpec((n_q, h1, c2), lambda i: (0, 0, 0)),
            pl.BlockSpec((h1, 1), lambda i: (0, 0)),
            pl.BlockSpec((n_out, h1), lambda i: (0, 0)),
            pl.BlockSpec((n_out, 1), lambda i: (0, 0)),
        ],
        out_specs=pl.BlockSpec((n_out, n_batch), lambda i: (0, 0)),
        out_shape=jax.ShapeDtypeStruct((n_out, n_batch), jnp.float32),
    )(w2_mat, patches2, b2_col, pool2_idx, fc1_wr, fc1_b_col, fc2_w, fc2_b_col)


# ----------------------------------------------------------------------------
# Kernel C: affine_grid + grid_sample (bilinear, align_corners=True, zeros),
# separable form; all batch elements in a single grid step; theta via scalar
# prefetch; x-interpolated rows staged in a VMEM scratch.
# ----------------------------------------------------------------------------
def _grid_sample_kernel(theta_ref, base_ref, x_ref, o_ref, g_ref, *, C, H, W):
    N = x_ref.shape[0]
    HW = H * W
    xn = base_ref[0:1, :]                                      # (1, HW), x in [-1,1]
    yn = base_ref[1:2, :]                                      # (1, HW), y in [-1,1]
    w_iota = jax.lax.broadcasted_iota(jnp.int32, (W, HW), 0)
    h_iota = jax.lax.broadcasted_iota(jnp.int32, (H, HW), 0)

    for n in range(N):                                         # small static batch
        t00 = theta_ref[0, n]; t01 = theta_ref[1, n]; t02 = theta_ref[2, n]
        t10 = theta_ref[3, n]; t11 = theta_ref[4, n]; t12 = theta_ref[5, n]

        gx = t00 * xn + t01 * yn + t02                         # affine_grid
        gy = t10 * xn + t11 * yn + t12
        ix = (gx + 1.0) * (0.5 * (W - 1))                      # align_corners=True
        iy = (gy + 1.0) * (0.5 * (H - 1))

        ix0f = jnp.floor(ix); iy0f = jnp.floor(iy)
        wx1 = ix - ix0f; wx0 = 1.0 - wx1
        wy1 = iy - iy0f; wy0 = 1.0 - wy1
        ix0 = ix0f.astype(jnp.int32); ix1 = ix0 + 1
        iy0 = iy0f.astype(jnp.int32); iy1 = iy0 + 1

        # zero padding: fold (weight * in-bounds) on cheap (1, HW) rows, then
        # a single compare+select per corner builds the thin gather matrices.
        wx0m = jnp.where((ix0 >= 0) & (ix0 < W), wx0, 0.0)
        wx1m = jnp.where((ix1 >= 0) & (ix1 < W), wx1, 0.0)
        wy0m = jnp.where((iy0 >= 0) & (iy0 < H), wy0, 0.0)
        wy1m = jnp.where((iy1 >= 0) & (iy1 < H), wy1, 0.0)
        Cx = (jnp.where(w_iota == ix0, wx0m, 0.0)
              + jnp.where(w_iota == ix1, wx1m, 0.0))           # (W, HW)
        Ry = (jnp.where(h_iota == iy0, wy0m, 0.0)
              + jnp.where(h_iota == iy1, wy1m, 0.0))           # (H, HW)

        # Stage 1 (MXU): x-interpolate every row of every channel; stage into
        # VMEM scratch so the stage-2 reduce keeps a small live set.
        g_ref[...] = jnp.dot(x_ref[n], Cx, preferred_element_type=jnp.float32)

        # Stage 2 (VPU mul + sublane reduce), direct per-row stores, no concat.
        for c in range(C):
            r = n * C + c
            o_ref[r:r + 1, :] = jnp.sum(
                Ry * g_ref[c * H:(c + 1) * H, :], axis=0, keepdims=True)


def grid_sample_affine(x, theta_t):
    """x: (N, C, H, W), theta_t: (6, N) -> (N, C, H, W)."""
    N, C, H, W = x.shape
    HW = H * W
    x_rows = x.reshape(N, C * H, W)

    # Base normalized grid, lane-dense (2, HW): row 0 = x_norm, row 1 = y_norm.
    cs = jnp.tile(jnp.linspace(-1.0, 1.0, W, dtype=jnp.float32), H)
    rs = jnp.repeat(jnp.linspace(-1.0, 1.0, H, dtype=jnp.float32), W)
    base = jnp.stack([cs, rs], axis=0)

    # TODO(synk): for large H*W (and v7x's 64 MiB VMEM) add an output-pixel
    # tiled path: grid=(N, HW//P), P a multiple of 128, building Cx/Ry only
    # for the P-lane pixel tile.
    out = pl.pallas_call(
        functools.partial(_grid_sample_kernel, C=C, H=H, W=W),
        grid_spec=pltpu.PrefetchScalarGridSpec(
            num_scalar_prefetch=1,                             # theta -> SMEM
            grid=(1,),
            in_specs=[
                pl.BlockSpec((2, HW), lambda i, th: (0, 0)),
                pl.BlockSpec((N, C * H, W), lambda i, th: (0, 0, 0)),
            ],
            out_specs=pl.BlockSpec((N * C, HW), lambda i, th: (0, 0)),
            scratch_shapes=[pltpu.VMEM((C * H, HW), jnp.float32)],
        ),
        out_shape=jax.ShapeDtypeStruct((N * C, HW), jnp.float32),
    )(theta_t, base, x_rows)
    return out.reshape(N, C, H, W)


# ----------------------------------------------------------------------------
# Host-side constants / thin XLA glue.
# ----------------------------------------------------------------------------
def _pool_corner_idx(n_batch, oh, ow):
    """Source lanes of the 4 corners of every 2x2 max-pool window.
    Input lanes (n, i, j) row-major; output lanes (n, I, J) row-major.
    Returns (4, n_batch*(oh//2)*(ow//2)) int32, corner d = dy*2+dx."""
    ph, pw = oh // 2, ow // 2
    out = np.empty((4, n_batch * ph * pw), np.int32)
    for d in range(4):
        dy, dx = d // 2, d % 2
        p = 0
        for n in range(n_batch):
            for ii in range(ph):
                for jj in range(pw):
                    out[d, p] = n * oh * ow + (2 * ii + dy) * ow + (2 * jj + dx)
                    p += 1
    return jnp.asarray(out)


def _pool_corner_idx_qmajor(n_batch, oh, ow):
    """Pool corner sources arranged for the fused fc_loc flatten:
    row = q*4 + d with q = I*(ow//2)+J, column = batch n.
    Shape ((oh//2)*(ow//2)*4, n_batch) int32."""
    ph, pw = oh // 2, ow // 2
    out = np.empty((ph * pw * 4, n_batch), np.int32)
    for ii in range(ph):
        for jj in range(pw):
            q = ii * pw + jj
            for d in range(4):
                dy, dx = d // 2, d % 2
                for n in range(n_batch):
                    out[q * 4 + d, n] = (n * oh * ow + (2 * ii + dy) * ow
                                         + (2 * jj + dx))
    return jnp.asarray(out)


def im2col_from_cmajor(xc, kh, kw):
    """xc: (C, N, H, W) channel-major -> (C*kh*kw, N*oh*ow); the final reshape
    is layout-free (no transposed copy of the kh*kw-expanded tensor)."""
    C, N, H, W = xc.shape
    oh, ow = H - kh + 1, W - kw + 1
    slabs = [xc[:, :, i:i + oh, j:j + ow] for i in range(kh) for j in range(kw)]
    p = jnp.stack(slabs, axis=1)                               # (C, kh*kw, N, oh, ow)
    return p.reshape(C * kh * kw, N * oh * ow), oh, ow


def im2col_cmajor(x, kh, kw):
    """x: (N, C, H, W) -> (C*kh*kw, N*oh*ow).  One small transpose of the raw
    input instead of transposing the expanded patch tensor."""
    # TODO(synk): fully in-kernel im2col needs overlapping-window BlockSpecs /
    # lane-splitting reshapes that Mosaic does not lower cleanly; kept as
    # cheap XLA glue.
    xt = jnp.transpose(x, (1, 0, 2, 3))
    return im2col_from_cmajor(xt, kh, kw)


# ----------------------------------------------------------------------------
# Parameters (PyTorch layouts) and one-time kernel-friendly re-arrangement.
# ----------------------------------------------------------------------------
def make_stn_params(img_size=24, n_channel=3, key=jax.random.PRNGKey(42)):
    nx = ((img_size - 7 + 1) // 2 - 5 + 1) // 2
    k1, k2, k3, k4, k5, k6 = jax.random.split(key, 6)
    params = {
        "conv1_w": jax.random.normal(k1, (8, n_channel, 7, 7), jnp.float32) * 0.05,
        "conv1_b": jax.random.normal(k2, (8,), jnp.float32) * 0.05,
        "conv2_w": jax.random.normal(k3, (10, 8, 5, 5), jnp.float32) * 0.05,
        "conv2_b": jax.random.normal(k4, (10,), jnp.float32) * 0.05,
        # PyTorch Linear layout: (out_features, in_features)
        "fc1_w": jax.random.normal(k5, (32, 10 * nx * nx), jnp.float32) * 0.05,
        "fc1_b": jax.random.normal(k6, (32,), jnp.float32) * 0.05,
        # fc_loc[2] starts at the identity transform, as in the PyTorch module.
        "fc2_w": jnp.zeros((6, 32), jnp.float32),
        "fc2_b": jnp.array([1, 0, 0, 0, 1, 0], jnp.float32),
    }
    return params, nx


def prepare_params(params):
    """One-time (outside jit) re-arrangement into kernel-ready layouts."""
    c2_out = params["conv2_w"].shape[0]                        # 10
    n_q = params["fc1_w"].shape[1] // c2_out                   # nx*nx
    return {
        "w1_mat": params["conv1_w"].reshape(params["conv1_w"].shape[0], -1),
        "b1_col": params["conv1_b"].reshape(-1, 1),
        "w2_mat": params["conv2_w"].reshape(c2_out, -1),
        "b2_col": params["conv2_b"].reshape(-1, 1),
        # fc1 weight rearranged to (q, 32, 10): h^T = sum_q fc1_wr[q] @ A_q
        "fc1_wr": params["fc1_w"].reshape(-1, c2_out, n_q).transpose(2, 0, 1),
        "fc1_b_col": params["fc1_b"].reshape(-1, 1),
        "fc2_w": params["fc2_w"],                              # (6, 32)
        "fc2_b_col": params["fc2_b"].reshape(-1, 1),
    }


# ----------------------------------------------------------------------------
# STN forward
# ----------------------------------------------------------------------------
def stn_forward(x, kp):
    N = x.shape[0]

    # localization stage 1: Conv(C->8, k=7) + MaxPool2 + ReLU  (one pallas_call)
    patches1, oh1, ow1 = im2col_cmajor(x, 7, 7)
    pool1_idx = _pool_corner_idx(N, oh1, ow1)
    pooled1 = conv_relu_pool(kp["w1_mat"], patches1, kp["b1_col"], pool1_idx)
    ph1, pw1 = oh1 // 2, ow1 // 2

    # localization stage 2 + fc_loc (one pallas_call):
    # Conv(8->10, k=5) + MaxPool2 + ReLU + flatten + Linear + ReLU + Linear
    pooled1_c = pooled1.reshape(kp["w1_mat"].shape[0], N, ph1, pw1)
    patches2, oh2, ow2 = im2col_from_cmajor(pooled1_c, 5, 5)
    pool2_idx = _pool_corner_idx_qmajor(N, oh2, ow2)
    assert kp["fc1_wr"].shape[0] == (oh2 // 2) * (ow2 // 2)
    theta_t = loc_head(kp["w2_mat"], patches2, kp["b2_col"], pool2_idx,
                       kp["fc1_wr"], kp["fc1_b_col"],
                       kp["fc2_w"], kp["fc2_b_col"])           # (6, N)

    # affine_grid + grid_sample (bilinear, align_corners=True, zero padding)
    return grid_sample_affine(x, theta_t)


if __name__ == "__main__":
    img_size, n_channel, batch = 24, 3, 2
    params, nx = make_stn_params(img_size=img_size, n_channel=n_channel)
    kp = prepare_params(params)

    x = jax.random.normal(jax.random.PRNGKey(0),
                          (batch, n_channel, img_size, img_size), jnp.float32)

    fwd = jax.jit(stn_forward)
    out = jax.block_until_ready(fwd(x, kp))

    assert out.shape == x.shape and out.dtype == jnp.float32
    assert bool(jnp.all(jnp.isfinite(out)))
    # fc_loc[2] is zero-initialized with identity bias (as in the PyTorch
    # module), so theta is the identity transform and grid_sample must
    # reproduce the input up to bilinear rounding noise.
    assert bool(jnp.allclose(out, x, rtol=1e-2, atol=1e-2))
    print("KERNEL_OK")
</pallas_src>

<mosaic_0001>
module attributes {stable_mosaic.version = 11 : i64} {
  func.func @_conv_relu_pool_kernel(%arg0: i32, %arg1: memref<8x147xf32, #tpu.memory_space<vmem>>, %arg2: memref<147x648xf32, #tpu.memory_space<vmem>>, %arg3: memref<8x1xf32, #tpu.memory_space<vmem>>, %arg4: memref<4x162xi32, #tpu.memory_space<vmem>>, %arg5: memref<8x162xf32, #tpu.memory_space<vmem>>) attributes {dimension_semantics = [#tpu.dimension_semantics<arbitrary>], iteration_bounds = array<i64: 1>, scalar_prefetch = 0 : i64, scratch_operands = 0 : i64, tpu.core_type = #tpu.core_type<tc>, window_params = [{pipeline_mode = #tpu.pipeline_mode<synchronous>, transform_indices = @transform_0, window_bounds = array<i64: 8, 147>}, {pipeline_mode = #tpu.pipeline_mode<synchronous>, transform_indices = @transform_1, window_bounds = array<i64: 147, 648>}, {pipeline_mode = #tpu.pipeline_mode<synchronous>, transform_indices = @transform_2, window_bounds = array<i64: 8, 1>}, {pipeline_mode = #tpu.pipeline_mode<synchronous>, transform_indices = @transform_3, window_bounds = array<i64: 4, 162>}, {pipeline_mode = #tpu.pipeline_mode<synchronous>, transform_indices = @transform_4, window_bounds = array<i64: 8, 162>}]} {
    %c0 = arith.constant 0 : index
    %c0_0 = arith.constant 0 : index
    %0 = vector.load %arg1[%c0, %c0_0] : memref<8x147xf32, #tpu.memory_space<vmem>>, vector<8x147xf32>
    %c0_1 = arith.constant 0 : index
    %c0_2 = arith.constant 0 : index
    %1 = vector.load %arg2[%c0_1, %c0_2] : memref<147x648xf32, #tpu.memory_space<vmem>>, vector<147x648xf32>
    %cst = arith.constant dense<0.000000e+00> : vector<8x648xf32>
    %2 = tpu.matmul %0, %1, %cst {dimension_numbers = #tpu.dot_dimension_numbers<[1], [0], [0], [1], [0, 0, 1, 1], [], []>} : vector<8x147xf32>, vector<147x648xf32>, vector<8x648xf32> -> vector<8x648xf32>
    %c0_3 = arith.constant 0 : index
    %c0_4 = arith.constant 0 : index
    %3 = vector.load %arg3[%c0_3, %c0_4] : memref<8x1xf32, #tpu.memory_space<vmem>>, vector<8x1xf32>
    %4 = vector.broadcast %3 : vector<8x1xf32> to vector<8x648xf32>
    %5 = arith.addf %2, %4 : vector<8x648xf32>
    %cst_5 = arith.constant 0.000000e+00 : f32
    %6 = vector.broadcast %cst_5 : f32 to vector<8x648xf32>
    %7 = arith.maximumf %5, %6 : vector<8x648xf32>
    %8 = tpu.iota {dimensions = array<i32: 0>} : vector<648x162xi32>
    %c0_6 = arith.constant 0 : index
    %c0_7 = arith.constant 0 : index
    %9 = vector.load %arg4[%c0_6, %c0_7] : memref<4x162xi32, #tpu.memory_space<vmem>>, vector<1x162xi32>
    %10 = vector.broadcast %9 : vector<1x162xi32> to vector<648x162xi32>
    %11 = arith.cmpi eq, %8, %10 : vector<648x162xi32>
    %cst_8 = arith.constant 1.000000e+00 : f32
    %cst_9 = arith.constant 0.000000e+00 : f32
    %12 = vector.broadcast %cst_8 : f32 to vector<648x162xf32>
    %13 = vector.broadcast %cst_9 : f32 to vector<648x162xf32>
    %14 = arith.select %11, %12, %13 : vector<648x162xi1>, vector<648x162xf32>
    %cst_10 = arith.constant dense<0.000000e+00> : vector<8x162xf32>
    %15 = tpu.matmul %7, %14, %cst_10 {dimension_numbers = #tpu.dot_dimension_numbers<[1], [0], [0], [1], [0, 0, 1, 1], [], []>} : vector<8x648xf32>, vector<648x162xf32>, vector<8x162xf32> -> vector<8x162xf32>
    %c1 = arith.constant 1 : index
    %c0_11 = arith.constant 0 : index
    %16 = vector.load %arg4[%c1, %c0_11] : memref<4x162xi32, #tpu.memory_space<vmem>>, vector<1x162xi32>
    %17 = vector.broadcast %16 : vector<1x162xi32> to vector<648x162xi32>
    %18 = arith.cmpi eq, %8, %17 : vector<648x162xi32>
    %cst_12 = arith.constant 1.000000e+00 : f32
    %cst_13 = arith.constant 0.000000e+00 : f32
    %19 = vector.broadcast %cst_12 : f32 to vector<648x162xf32>
    %20 = vector.broadcast %cst_13 : f32 to vector<648x162xf32>
    %21 = arith.select %18, %19, %20 : vector<648x162xi1>, vector<648x162xf32>
    %cst_14 = arith.constant dense<0.000000e+00> : vector<8x162xf32>
    %22 = tpu.matmul %7, %21, %cst_14 {dimension_numbers = #tpu.dot_dimension_numbers<[1], [0], [0], [1], [0, 0, 1, 1], [], []>} : vector<8x648xf32>, vector<648x162xf32>, vector<8x162xf32> -> vector<8x162xf32>
    %23 = arith.maximumf %15, %22 : vector<8x162xf32>
    %c2 = arith.constant 2 : index
    %c0_15 = arith.constant 0 : index
    %24 = vector.load %arg4[%c2, %c0_15] : memref<4x162xi32, #tpu.memory_space<vmem>>, vector<1x162xi32>
    %25 = vector.broadcast %24 : vector<1x162xi32> to vector<648x162xi32>
    %26 = arith.cmpi eq, %8, %25 : vector<648x162xi32>
    %cst_16 = arith.constant 1.000000e+00 : f32
    %cst_17 = arith.constant 0.000000e+00 : f32
    %27 = vector.broadcast %cst_16 : f32 to vector<648x162xf32>
    %28 = vector.broadcast %cst_17 : f32 to vector<648x162xf32>
    %29 = arith.select %26, %27, %28 : vector<648x162xi1>, vector<648x162xf32>
    %cst_18 = arith.constant dense<0.000000e+00> : vector<8x162xf32>
    %30 = tpu.matmul %7, %29, %cst_18 {dimension_numbers = #tpu.dot_dimension_numbers<[1], [0], [0], [1], [0, 0, 1, 1], [], []>} : vector<8x648xf32>, vector<648x162xf32>, vector<8x162xf32> -> vector<8x162xf32>
    %31 = arith.maximumf %23, %30 : vector<8x162xf32>
    %c3 = arith.constant 3 : index
    %c0_19 = arith.constant 0 : index
    %32 = vector.load %arg4[%c3, %c0_19] : memref<4x162xi32, #tpu.memory_space<vmem>>, vector<1x162xi32>
    %33 = vector.broadcast %32 : vector<1x162xi32> to vector<648x162xi32>
    %34 = arith.cmpi eq, %8, %33 : vector<648x162xi32>
    %cst_20 = arith.constant 1.000000e+00 : f32
    %cst_21 = arith.constant 0.000000e+00 : f32
    %35 = vector.broadcast %cst_20 : f32 to vector<648x162xf32>
    %36 = vector.broadcast %cst_21 : f32 to vector<648x162xf32>
    %37 = arith.select %34, %35, %36 : vector<648x162xi1>, vector<648x162xf32>
    %cst_22 = arith.constant dense<0.000000e+00> : vector<8x162xf32>
    %38 = tpu.matmul %7, %37, %cst_22 {dimension_numbers = #tpu.dot_dimension_numbers<[1], [0], [0], [1], [0, 0, 1, 1], [], []>} : vector<8x648xf32>, vector<648x162xf32>, vector<8x162xf32> -> vector<8x162xf32>
    %39 = arith.maximumf %31, %38 : vector<8x162xf32>
    %c0_23 = arith.constant 0 : index
    %c0_24 = arith.constant 0 : index
    %40 = vector.load %arg5[%c0_23, %c0_24] : memref<8x162xf32, #tpu.memory_space<vmem>>, vector<8x162xf32>
    tpu.vector_store %arg5[%c0_23, %c0_24], %39 {strides = array<i32>} : memref<8x162xf32, #tpu.memory_space<vmem>>, vector<8x162xf32>,
    return
  }
  func.func @transform_0(%arg0: i32) -> (i32, i32) {
    %c0_i32 = arith.constant 0 : i32
    %c0_i32_0 = arith.constant 0 : i32
    %c0_i32_1 = arith.constant 0 : i32
    return %c0_i32, %c0_i32_0 : i32, i32
  }
  func.func @transform_1(%arg0: i32) -> (i32, i32) {
    %c0_i32 = arith.constant 0 : i32
    %c0_i32_0 = arith.constant 0 : i32
    %c0_i32_1 = arith.constant 0 : i32
    return %c0_i32, %c0_i32_0 : i32, i32
  }
  func.func @transform_2(%arg0: i32) -> (i32, i32) {
    %c0_i32 = arith.constant 0 : i32
    %c0_i32_0 = arith.constant 0 : i32
    %c0_i32_1 = arith.constant 0 : i32
    return %c0_i32, %c0_i32_0 : i32, i32
  }
  func.func @transform_3(%arg0: i32) -> (i32, i32) {
    %c0_i32 = arith.constant 0 : i32
    %c0_i32_0 = arith.constant 0 : i32
    %c0_i32_1 = arith.constant 0 : i32
    return %c0_i32, %c0_i32_0 : i32, i32
  }
  func.func @transform_4(%arg0: i32) -> (i32, i32) {
    %c0_i32 = arith.constant 0 : i32
    %c0_i32_0 = arith.constant 0 : i32
    %c0_i32_1 = arith.constant 0 : i32
    return %c0_i32, %c0_i32_0 : i32, i32
  }
}

module attributes {stable_mosaic.version = 11 : i64} {
  func.func @_loc_head_kernel(%arg0: i32, %arg1: memref<10x200xf32, #tpu.memory_space<vmem>>, %arg2: memref<200x50xf32, #tpu.memory_space<vmem>>, %arg3: memref<10x1xf32, #tpu.memory_space<vmem>>, %arg4: memref<16x2xi32, #tpu.memory_space<vmem>>, %arg5: memref<4x32x10xf32, #tpu.memory_space<vmem>>, %arg6: memref<32x1xf32, #tpu.memory_space<vmem>>, %arg7: memref<6x32xf32, #tpu.memory_space<vmem>>, %arg8: memref<6x1xf32, #tpu.memory_space<vmem>>, %arg9: memref<6x2xf32, #tpu.memory_space<vmem>>) attributes {dimension_semantics = [#tpu.dimension_semantics<arbitrary>], iteration_bounds = array<i64: 1>, scalar_prefetch = 0 : i64, scratch_operands = 0 : i64, tpu.core_type = #tpu.core_type<tc>, window_params = [{pipeline_mode = #tpu.pipeline_mode<synchronous>, transform_indices = @transform_0, window_bounds = array<i64: 10, 200>}, {pipeline_mode = #tpu.pipeline_mode<synchronous>, transform_indices = @transform_1, window_bounds = array<i64: 200, 50>}, {pipeline_mode = #tpu.pipeline_mode<synchronous>, transform_indices = @transform_2, window_bounds = array<i64: 10, 1>}, {pipeline_mode = #tpu.pipeline_mode<synchronous>, transform_indices = @transform_3, window_bounds = array<i64: 16, 2>}, {pipeline_mode = #tpu.pipeline_mode<synchronous>, transform_indices = @transform_4, window_bounds = array<i64: 4, 32, 10>}, {pipeline_mode = #tpu.pipeline_mode<synchronous>, transform_indices = @transform_5, window_bounds = array<i64: 32, 1>}, {pipeline_mode = #tpu.pipeline_mode<synchronous>, transform_indices = @transform_6, window_bounds = array<i64: 6, 32>}, {pipeline_mode = #tpu.pipeline_mode<synchronous>, transform_indices = @transform_7, window_bounds = array<i64: 6, 1>}, {pipeline_mode = #tpu.pipeline_mode<synchronous>, transform_indices = @transform_8, window_bounds = array<i64: 6, 2>}]} {
    %c0 = arith.constant 0 : index
    %c0_0 = arith.constant 0 : index
    %0 = vector.load %arg1[%c0, %c0_0] : memref<10x200xf32, #tpu.memory_space<vmem>>, vector<10x200xf32>
    %c0_1 = arith.constant 0 : index
    %c0_2 = arith.constant 0 : index
    %1 = vector.load %arg2[%c0_1, %c0_2] : memref<200x50xf32, #tpu.memory_space<vmem>>, vector<200x50xf32>
    %cst = arith.constant dense<0.000000e+00> : vector<10x50xf32>
    %2 = tpu.matmul %0, %1, %cst {dimension_numbers = #tpu.dot_dimension_numbers<[1], [0], [0], [1], [0, 0, 1, 1], [], []>} : vector<10x200xf32>, vector<200x50xf32>, vector<10x50xf32> -> vector<10x50xf32>
    %c0_3 = arith.constant 0 : index
    %c0_4 = arith.constant 0 : index
    %3 = vector.load %arg3[%c0_3, %c0_4] : memref<10x1xf32, #tpu.memory_space<vmem>>, vector<10x1xf32>
    %4 = vector.broadcast %3 : vector<10x1xf32> to vector<10x50xf32>
    %5 = arith.addf %2, %4 : vector<10x50xf32>
    %cst_5 = arith.constant 0.000000e+00 : f32
    %6 = vector.broadcast %cst_5 : f32 to vector<10x50xf32>
    %7 = arith.maximumf %5, %6 : vector<10x50xf32>
    %8 = tpu.iota {dimensions = array<i32: 0>} : vector<50x2xi32>
    %c0_6 = arith.constant 0 : index
    %c0_7 = arith.constant 0 : index
    %9 = vector.load %arg4[%c0_6, %c0_7] : memref<16x2xi32, #tpu.memory_space<vmem>>, vector<1x2xi32>
    %10 = vector.broadcast %9 : vector<1x2xi32> to vector<50x2xi32>
    %11 = arith.cmpi eq, %8, %10 : vector<50x2xi32>
    %cst_8 = arith.constant 1.000000e+00 : f32
    %cst_9 = arith.constant 0.000000e+00 : f32
    %12 = vector.broadcast %cst_8 : f32 to vector<50x2xf32>
    %13 = vector.broadcast %cst_9 : f32 to vector<50x2xf32>
    %14 = arith.select %11, %12, %13 : vector<50x2xi1>, vector<50x2xf32>
    %cst_10 = arith.constant dense<0.000000e+00> : vector<10x2xf32>
    %15 = tpu.matmul %7, %14, %cst_10 {dimension_numbers = #tpu.dot_dimension_numbers<[1], [0], [0], [1], [0, 0, 1, 1], [], []>} : vector<10x50xf32>, vector<50x2xf32>, vector<10x2xf32> -> vector<10x2xf32>
    %c1 = arith.constant 1 : index
    %c0_11 = arith.constant 0 : index
    %16 = vector.load %arg4[%c1, %c0_11] : memref<16x2xi32, #tpu.memory_space<vmem>>, vector<1x2xi32>
    %17 = vector.broadcast %16 : vector<1x2xi32> to vector<50x2xi32>
    %18 = arith.cmpi eq, %8, %17 : vector<50x2xi32>
    %cst_12 = arith.constant 1.000000e+00 : f32
    %cst_13 = arith.constant 0.000000e+00 : f32
    %19 = vector.broadcast %cst_12 : f32 to vector<50x2xf32>
    %20 = vector.broadcast %cst_13 : f32 to vector<50x2xf32>
    %21 = arith.select %18, %19, %20 : vector<50x2xi1>, vector<50x2xf32>
    %cst_14 = arith.constant dense<0.000000e+00> : vector<10x2xf32>
    %22 = tpu.matmul %7, %21, %cst_14 {dimension_numbers = #tpu.dot_dimension_numbers<[1], [0], [0], [1], [0, 0, 1, 1], [], []>} : vector<10x50xf32>, vector<50x2xf32>, vector<10x2xf32> -> vector<10x2xf32>
    %23 = arith.maximumf %15, %22 : vector<10x2xf32>
    %c2 = arith.constant 2 : index
    %c0_15 = arith.constant 0 : index
    %24 = vector.load %arg4[%c2, %c0_15] : memref<16x2xi32, #tpu.memory_space<vmem>>, vector<1x2xi32>
    %25 = vector.broadcast %24 : vector<1x2xi32> to vector<50x2xi32>
    %26 = arith.cmpi eq, %8, %25 : vector<50x2xi32>
    %cst_16 = arith.constant 1.000000e+00 : f32
    %cst_17 = arith.constant 0.000000e+00 : f32
    %27 = vector.broadcast %cst_16 : f32 to vector<50x2xf32>
    %28 = vector.broadcast %cst_17 : f32 to vector<50x2xf32>
    %29 = arith.select %26, %27, %28 : vector<50x2xi1>, vector<50x2xf32>
    %cst_18 = arith.constant dense<0.000000e+00> : vector<10x2xf32>
    %30 = tpu.matmul %7, %29, %cst_18 {dimension_numbers = #tpu.dot_dimension_numbers<[1], [0], [0], [1], [0, 0, 1, 1], [], []>} : vector<10x50xf32>, vector<50x2xf32>, vector<10x2xf32> -> vector<10x2xf32>
    %31 = arith.maximumf %23, %30 : vector<10x2xf32>
    %c3 = arith.constant 3 : index
    %c0_19 = arith.constant 0 : index
    %32 = vector.load %arg4[%c3, %c0_19] : memref<16x2xi32, #tpu.memory_space<vmem>>, vector<1x2xi32>
    %33 = vector.broadcast %32 : vector<1x2xi32> to vector<50x2xi32>
    %34 = arith.cmpi eq, %8, %33 : vector<50x2xi32>
    %cst_20 = arith.constant 1.000000e+00 : f32
    %cst_21 = arith.constant 0.000000e+00 : f32
    %35 = vector.broadcast %cst_20 : f32 to vector<50x2xf32>
    %36 = vector.broadcast %cst_21 : f32 to vector<50x2xf32>
    %37 = arith.select %34, %35, %36 : vector<50x2xi1>, vector<50x2xf32>
    %cst_22 = arith.constant dense<0.000000e+00> : vector<10x2xf32>
    %38 = tpu.matmul %7, %37, %cst_22 {dimension_numbers = #tpu.dot_dimension_numbers<[1], [0], [0], [1], [0, 0, 1, 1], [], []>} : vector<10x50xf32>, vector<50x2xf32>, vector<10x2xf32> -> vector<10x2xf32>
    %39 = arith.maximumf %31, %38 : vector<10x2xf32>
    %c0_23 = arith.constant 0 : index
    %c0_24 = arith.constant 0 : index
    %c0_25 = arith.constant 0 : index
    %40 = vector.load %arg5[%c0_23, %c0_24, %c0_25] : memref<4x32x10xf32, #tpu.memory_space<vmem>>, vector<1x32x10xf32>
    %41 = vector.shape_cast %40 : vector<1x32x10xf32> to vector<32x10xf32>
    %cst_26 = arith.constant dense<0.000000e+00> : vector<32x2xf32>
    %42 = tpu.matmul %41, %39, %cst_26 {dimension_numbers = #tpu.dot_dimension_numbers<[1], [0], [0], [1], [0, 0, 1, 1], [], []>} : vector<32x10xf32>, vector<10x2xf32>, vector<32x2xf32> -> vector<32x2xf32>
    %c4 = arith.constant 4 : index
    %c0_27 = arith.constant 0 : index
    %43 = vector.load %arg4[%c4, %c0_27] : memref<16x2xi32, #tpu.memory_space<vmem>>, vector<1x2xi32>
    %44 = vector.broadcast %43 : vector<1x2xi32> to vector<50x2xi32>
    %45 = arith.cmpi eq, %8, %44 : vector<50x2xi32>
    %cst_28 = arith.constant 1.000000e+00 : f32
    %cst_29 = arith.constant 0.000000e+00 : f32
    %46 = vector.broadcast %cst_28 : f32 to vector<50x2xf32>
    %47 = vector.broadcast %cst_29 : f32 to vector<50x2xf32>
    %48 = arith.select %45, %46, %47 : vector<50x2xi1>, vector<50x2xf32>
    %cst_30 = arith.constant dense<0.000000e+00> : vector<10x2xf32>
    %49 = tpu.matmul %7, %48, %cst_30 {dimension_numbers = #tpu.dot_dimension_numbers<[1], [0], [0], [1], [0, 0, 1, 1], [], []>} : vector<10x50xf32>, vector<50x2xf32>, vector<10x2xf32> -> vector<10x2xf32>
    %c5 = arith.constant 5 : index
    %c0_31 = arith.constant 0 : index
    %50 = vector.load %arg4[%c5, %c0_31] : memref<16x2xi32, #tpu.memory_space<vmem>>, vector<1x2xi32>
    %51 = vector.broadcast %50 : vector<1x2xi32> to vector<50x2xi32>
    %52 = arith.cmpi eq, %8, %51 : vector<50x2xi32>
    %cst_32 = arith.constant 1.000000e+00 : f32
    %cst_33 = arith.constant 0.000000e+00 : f32
    %53 = vector.broadcast %cst_32 : f32 to vector<50x2xf32>
    %54 = vector.broadcast %cst_33 : f32 to vector<50x2xf32>
    %55 = arith.select %52, %53, %54 : vector<50x2xi1>, vector<50x2xf32>
    %cst_34 = arith.constant dense<0.000000e+00> : vector<10x2xf32>
    %56 = tpu.matmul %7, %55, %cst_34 {dimension_numbers = #tpu.dot_dimension_numbers<[1], [0], [0], [1], [0, 0, 1, 1], [], []>} : vector<10x50xf32>, vector<50x2xf32>, vector<10x2xf32> -> vector<10x2xf32>
    %57 = arith.maximumf %49, %56 : vector<10x2xf32>
    %c6 = arith.constant 6 : index
    %c0_35 = arith.constant 0 : index
    %58 = vector.load %arg4[%c6, %c0_35] : memref<16x2xi32, #tpu.memory_space<vmem>>, vector<1x2xi32>
    %59 = vector.broadcast %58 : vector<1x2xi32> to vector<50x2xi32>
    %60 = arith.cmpi eq, %8, %59 : vector<50x2xi32>
    %cst_36 = arith.constant 1.000000e+00 : f32
    %cst_37 = arith.constant 0.000000e+00 : f32
    %61 = vector.broadcast %cst_36 : f32 to vector<50x2xf32>
    %62 = vector.broadcast %cst_37 : f32 to vector<50x2xf32>
    %63 = arith.select %60, %61, %62 : vector<50x2xi1>, vector<50x2xf32>
    %cst_38 = arith.constant dense<0.000000e+00> : vector<10x2xf32>
    %64 = tpu.matmul %7, %63, %cst_38 {dimension_numbers = #tpu.dot_dimension_numbers<[1], [0], [0], [1], [0, 0, 1, 1], [], []>} : vector<10x50xf32>, vector<50x2xf32>, vector<10x2xf32> -> vector<10x2xf32>
    %65 = arith.maximumf %57, %64 : vector<10x2xf32>
    %c7 = arith.constant 7 : index
    %c0_39 = arith.constant 0 : index
    %66 = vector.load %arg4[%c7, %c0_39] : memref<16x2xi32, #tpu.memory_space<vmem>>, vector<1x2xi32>
    %67 = vector.broadcast %66 : vector<1x2xi32> to vector<50x2xi32>
    %68 = arith.cmpi eq, %8, %67 : vector<50x2xi32>
    %cst_40 = arith.constant 1.000000e+00 : f32
    %cst_41 = arith.constant 0.000000e+00 : f32
    %69 = vector.broadcast %cst_40 : f32 to vector<50x2xf32>
    %70 = vector.broadcast %cst_41 : f32 to vector<50x2xf32>
    %71 = arith.select %68, %69, %70 : vector<50x2xi1>, vector<50x2xf32>
    %cst_42 = arith.constant dense<0.000000e+00> : vector<10x2xf32>
    %72 = tpu.matmul %7, %71, %cst_42 {dimension_numbers = #tpu.dot_dimension_numbers<[1], [0], [0], [1], [0, 0, 1, 1], [], []>} : vector<10x50xf32>, vector<50x2xf32>, vector<10x2xf32> -> vector<10x2xf32>
    %73 = arith.maximumf %65, %72 : vector<10x2xf32>
    %c1_43 = arith.constant 1 : index
    %c0_44 = arith.constant 0 : index
    %c0_45 = arith.constant 0 : index
    %74 = vector.load %arg5[%c1_43, %c0_44, %c0_45] : memref<4x32x10xf32, #tpu.memory_space<vmem>>, vector<1x32x10xf32>
    %75 = vector.shape_cast %74 : vector<1x32x10xf32> to vector<32x10xf32>
    %cst_46 = arith.constant dense<0.000000e+00> : vector<32x2xf32>
    %76 = tpu.matmul %75, %73, %cst_46 {dimension_numbers = #tpu.dot_dimension_numbers<[1], [0], [0], [1], [0, 0, 1, 1], [], []>} : vector<32x10xf32>, vector<10x2xf32>, vector<32x2xf32> -> vector<32x2xf32>
    %77 = arith.addf %42, %76 : vector<32x2xf32>
    %c8 = arith.constant 8 : index
    %c0_47 = arith.constant 0 : index
    %78 = vector.load %arg4[%c8, %c0_47] : memref<16x2xi32, #tpu.memory_space<vmem>>, vector<1x2xi32>
    %79 = vector.broadcast %78 : vector<1x2xi32> to vector<50x2xi32>
    %80 = arith.cmpi eq, %8, %79 : vector<50x2xi32>
    %cst_48 = arith.constant 1.000000e+00 : f32
    %cst_49 = arith.constant 0.000000e+00 : f32
    %81 = vector.broadcast %cst_48 : f32 to vector<50x2xf32>
    %82 = vector.broadcast %cst_49 : f32 to vector<50x2xf32>
    %83 = arith.select %80, %81, %82 : vector<50x2xi1>, vector<50x2xf32>
    %cst_50 = arith.constant dense<0.000000e+00> : vector<10x2xf32>
    %84 = tpu.matmul %7, %83, %cst_50 {dimension_numbers = #tpu.dot_dimension_numbers<[1], [0], [0], [1], [0, 0, 1, 1], [], []>} : vector<10x50xf32>, vector<50x2xf32>, vector<10x2xf32> -> vector<10x2xf32>
    %c9 = arith.constant 9 : index
    %c0_51 = arith.constant 0 : index
    %85 = vector.load %arg4[%c9, %c0_51] : memref<16x2xi32, #tpu.memory_space<vmem>>, vector<1x2xi32>
    %86 = vector.broadcast %85 : vector<1x2xi32> to vector<50x2xi32>
    %87 = arith.cmpi eq, %8, %86 : vector<50x2xi32>
    %cst_52 = arith.constant 1.000000e+00 : f32
    %cst_53 = arith.constant 0.000000e+00 : f32
    %88 = vector.broadcast %cst_52 : f32 to vector<50x2xf32>
    %89 = vector.broadcast %cst_53 : f32 to vector<50x2xf32>
    %90 = arith.select %87, %88, %89 : vector<50x2xi1>, vector<50x2xf32>
    %cst_54 = arith.constant dense<0.000000e+00> : vector<10x2xf32>
    %91 = tpu.matmul %7, %90, %cst_54 {dimension_numbers = #tpu.dot_dimension_numbers<[1], [0], [0], [1], [0, 0, 1, 1], [], []>} : vector<10x50xf32>, vector<50x2xf32>, vector<10x2xf32> -> vector<10x2xf32>
    %92 = arith.maximumf %84, %91 : vector<10x2xf32>
    %c10 = arith.constant 10 : index
    %c0_55 = arith.constant 0 : index
    %93 = vector.load %arg4[%c10, %c0_55] : memref<16x2xi32, #tpu.memory_space<vmem>>, vector<1x2xi32>
    %94 = vector.broadcast %93 : vector<1x2xi32> to vector<50x2xi32>
    %95 = arith.cmpi eq, %8, %94 : vector<50x2xi32>
    %cst_56 = arith.constant 1.000000e+00 : f32
    %cst_57 = arith.constant 0.000000e+00 : f32
    %96 = vector.broadcast %cst_56 : f32 to vector<50x2xf32>
    %97 = vector.broadcast %cst_57 : f32 to vector<50x2xf32>
    %98 = arith.select %95, %96, %97 : vector<50x2xi1>, vector<50x2xf32>
    %cst_58 = arith.constant dense<0.000000e+00> : vector<10x2xf32>
    %99 = tpu.matmul %7, %98, %cst_58 {dimension_numbers = #tpu.dot_dimension_numbers<[1], [0], [0], [1], [0, 0, 1, 1], [], []>} : vector<10x50xf32>, vector<50x2xf32>, vector<10x2xf32> -> vector<10x2xf32>
    %100 = arith.maximumf %92, %99 : vector<10x2xf32>
    %c11 = arith.constant 11 : index
    %c0_59 = arith.constant 0 : index
    %101 = vector.load %arg4[%c11, %c0_59] : memref<16x2xi32, #tpu.memory_space<vmem>>, vector<1x2xi32>
    %102 = vector.broadcast %101 : vector<1x2xi32> to vector<50x2xi32>
    %103 = arith.cmpi eq, %8, %102 : vector<50x2xi32>
    %cst_60 = arith.constant 1.000000e+00 : f32
    %cst_61 = arith.constant 0.000000e+00 : f32
    %104 = vector.broadcast %cst_60 : f32 to vector<50x2xf32>
    %105 = vector.broadcast %cst_61 : f32 to vector<50x2xf32>
    %106 = arith.select %103, %104, %105 : vector<50x2xi1>, vector<50x2xf32>
    %cst_62 = arith.constant dense<0.000000e+00> : vector<10x2xf32>
    %107 = tpu.matmul %7, %106, %cst_62 {dimension_numbers = #tpu.dot_dimension_numbers<[1], [0], [0], [1], [0, 0, 1, 1], [], []>} : vector<10x50xf32>, vector<50x2xf32>, vector<10x2xf32> -> vector<10x2xf32>
    %108 = arith.maximumf %100, %107 : vector<10x2xf32>
    %c2_63 = arith.constant 2 : index
    %c0_64 = arith.constant 0 : index
    %c0_65 = arith.constant 0 : index
    %109 = vector.load %arg5[%c2_63, %c0_64, %c0_65] : memref<4x32x10xf32, #tpu.memory_space<vmem>>, vector<1x32x10xf32>
    %110 = vector.shape_cast %109 : vector<1x32x10xf32> to vector<32x10xf32>
    %cst_66 = arith.constant dense<0.000000e+00> : vector<32x2xf32>
    %111 = tpu.matmul %110, %108, %cst_66 {dimension_numbers = #tpu.dot_dimension_numbers<[1], [0], [0], [1], [0, 0, 1, 1], [], []>} : vector<32x10xf32>, vector<10x2xf32>, vector<32x2xf32> -> vector<32x2xf32>
    %112 = arith.addf %77, %111 : vector<32x2xf32>
    %c12 = arith.constant 12 : index
    %c0_67 = arith.constant 0 : index
    %113 = vector.load %arg4[%c12, %c0_67] : memref<16x2xi32, #tpu.memory_space<vmem>>, vector<1x2xi32>
    %114 = vector.broadcast %113 : vector<1x2xi32> to vector<50x2xi32>
    %115 = arith.cmpi eq, %8, %114 : vector<50x2xi32>
    %cst_68 = arith.constant 1.000000e+00 : f32
    %cst_69 = arith.constant 0.000000e+00 : f32
    %116 = vector.broadcast %cst_68 : f32 to vector<50x2xf32>
    %117 = vector.broadcast %cst_69 : f32 to vector<50x2xf32>
    %118 = arith.select %115, %116, %117 : vector<50x2xi1>, vector<50x2xf32>
    %cst_70 = arith.constant dense<0.000000e+00> : vector<10x2xf32>
    %119 = tpu.matmul %7, %118, %cst_70 {dimension_numbers = #tpu.dot_dimension_numbers<[1], [0], [0], [1], [0, 0, 1, 1], [], []>} : vector<10x50xf32>, vector<50x2xf32>, vector<10x2xf32> -> vector<10x2xf32>
    %c13 = arith.constant 13 : index
    %c0_71 = arith.constant 0 : index
    %120 = vector.load %arg4[%c13, %c0_71] : memref<16x2xi32, #tpu.memory_space<vmem>>, vector<1x2xi32>
    %121 = vector.broadcast %120 : vector<1x2xi32> to vector<50x2xi32>
    %122 = arith.cmpi eq, %8, %121 : vector<50x2xi32>
    %cst_72 = arith.constant 1.000000e+00 : f32
    %cst_73 = arith.constant 0.000000e+00 : f32
    %123 = vector.broadcast %cst_72 : f32 to vector<50x2xf32>
    %124 = vector.broadcast %cst_73 : f32 to vector<50x2xf32>
    %125 = arith.select %122, %123, %124 : vector<50x2xi1>, vector<50x2xf32>
    %cst_74 = arith.constant dense<0.000000e+00> : vector<10x2xf32>
    %126 = tpu.matmul %7, %125, %cst_74 {dimension_numbers = #tpu.dot_dimension_numbers<[1], [0], [0], [1], [0, 0, 1, 1], [], []>} : vector<10x50xf32>, vector<50x2xf32>, vector<10x2xf32> -> vector<10x2xf32>
    %127 = arith.maximumf %119, %126 : vector<10x2xf32>
    %c14 = arith.constant 14 : index
    %c0_75 = arith.constant 0 : index
    %128 = vector.load %arg4[%c14, %c0_75] : memref<16x2xi32, #tpu.memory_space<vmem>>, vector<1x2xi32>
    %129 = vector.broadcast %128 : vector<1x2xi32> to vector<50x2xi32>
    %130 = arith.cmpi eq, %8, %129 : vector<50x2xi32>
    %cst_76 = arith.constant 1.000000e+00 : f32
    %cst_77 = arith.constant 0.000000e+00 : f32
    %131 = vector.broadcast %cst_76 : f32 to vector<50x2xf32>
    %132 = vector.broadcast %cst_77 : f32 to vector<50x2xf32>
    %133 = arith.select %130, %131, %132 : vector<50x2xi1>, vector<50x2xf32>
    %cst_78 = arith.constant dense<0.000000e+00> : vector<10x2xf32>
    %134 = tpu.matmul %7, %133, %cst_78 {dimension_numbers = #tpu.dot_dimension_numbers<[1], [0], [0], [1], [0, 0, 1, 1], [], []>} : vector<10x50xf32>, vector<50x2xf32>, vector<10x2xf32> -> vector<10x2xf32>
    %135 = arith.maximumf %127, %134 : vector<10x2xf32>
    %c15 = arith.constant 15 : index
    %c0_79 = arith.constant 0 : index
    %136 = vector.load %arg4[%c15, %c0_79] : memref<16x2xi32, #tpu.memory_space<vmem>>, vector<1x2xi32>
    %137 = vector.broadcast %136 : vector<1x2xi32> to vector<50x2xi32>
    %138 = arith.cmpi eq, %8, %137 : vector<50x2xi32>
    %cst_80 = arith.constant 1.000000e+00 : f32
    %cst_81 = arith.constant 0.000000e+00 : f32
    %139 = vector.broadcast %cst_80 : f32 to vector<50x2xf32>
    %140 = vector.broadcast %cst_81 : f32 to vector<50x2xf32>
    %141 = arith.select %138, %139, %140 : vector<50x2xi1>, vector<50x2xf32>
    %cst_82 = arith.constant dense<0.000000e+00> : vector<10x2xf32>
    %142 = tpu.matmul %7, %141, %cst_82 {dimension_numbers = #tpu.dot_dimension_numbers<[1], [0], [0], [1], [0, 0, 1, 1], [], []>} : vector<10x50xf32>, vector<50x2xf32>, vector<10x2xf32> -> vector<10x2xf32>
    %143 = arith.maximumf %135, %142 : vector<10x2xf32>
    %c3_83 = arith.constant 3 : index
    %c0_84 = arith.constant 0 : index
    %c0_85 = arith.constant 0 : index
    %144 = vector.load %arg5[%c3_83, %c0_84, %c0_85] : memref<4x32x10xf32, #tpu.memory_space<vmem>>, vector<1x32x10xf32>
    %145 = vector.shape_cast %144 : vector<1x32x10xf32> to vector<32x10xf32>
    %cst_86 = arith.constant dense<0.000000e+00> : vector<32x2xf32>
    %146 = tpu.matmul %145, %143, %cst_86 {dimension_numbers = #tpu.dot_dimension_numbers<[1], [0], [0], [1], [0, 0, 1, 1], [], []>} : vector<32x10xf32>, vector<10x2xf32>, vector<32x2xf32> -> vector<32x2xf32>
    %147 = arith.addf %112, %146 : vector<32x2xf32>
    %c0_87 = arith.constant 0 : index
    %c0_88 = arith.constant 0 : index
    %148 = vector.load %arg6[%c0_87, %c0_88] : memref<32x1xf32, #tpu.memory_space<vmem>>, vector<32x1xf32>
    %149 = vector.broadcast %148 : vector<32x1xf32> to vector<32x2xf32>
    %150 = arith.addf %147, %149 : vector<32x2xf32>
    %cst_89 = arith.constant 0.000000e+00 : f32
    %151 = vector.broadcast %cst_89 : f32 to vector<32x2xf32>
    %152 = arith.maximumf %150, %151 : vector<32x2xf32>
    %c0_90 = arith.constant 0 : index
    %c0_91 = arith.constant 0 : index
    %153 = vector.load %arg7[%c0_90, %c0_91] : memref<6x32xf32, #tpu.memory_space<vmem>>, vector<6x32xf32>
    %cst_92 = arith.constant dense<0.000000e+00> : vector<6x2xf32>
    %154 = tpu.matmul %153, %152, %cst_92 {dimension_numbers = #tpu.dot_dimension_numbers<[1], [0], [0], [1], [0, 0, 1, 1], [], []>} : vector<6x32xf32>, vector<32x2xf32>, vector<6x2xf32> -> vector<6x2xf32>
    %c0_93 = arith.constant 0 : index
    %c0_94 = arith.constant 0 : index
    %155 = vector.load %arg8[%c0_93, %c0_94] : memref<6x1xf32, #tpu.memory_space<vmem>>, vector<6x1xf32>
    %156 = vector.broadcast %155 : vector<6x1xf32> to vector<6x2xf32>
    %157 = arith.addf %154, %156 : vector<6x2xf32>
    %c0_95 = arith.constant 0 : index
    %c0_96 = arith.constant 0 : index
    %158 = vector.load %arg9[%c0_95, %c0_96] : memref<6x2xf32, #tpu.memory_space<vmem>>, vector<6x2xf32>
    tpu.vector_store %arg9[%c0_95, %c0_96], %157 {strides = array<i32>} : memref<6x2xf32, #tpu.memory_space<vmem>>, vector<6x2xf32>,
    return
  }
  func.func @transform_0(%arg0: i32) -> (i32, i32) {
    %c0_i32 = arith.constant 0 : i32
    %c0_i32_0 = arith.constant 0 : i32
    %c0_i32_1 = arith.constant 0 : i32
    return %c0_i32, %c0_i32_0 : i32, i32
  }
  func.func @transform_1(%arg0: i32) -> (i32, i32) {
    %c0_i32 = arith.constant 0 : i32
    %c0_i32_0 = arith.constant 0 : i32
    %c0_i32_1 = arith.constant 0 : i32
    return %c0_i32, %c0_i32_0 : i32, i32
  }
  func.func @transform_2(%arg0: i32) -> (i32, i32) {
    %c0_i32 = arith.constant 0 : i32
    %c0_i32_0 = arith.constant 0 : i32
    %c0_i32_1 = arith.constant 0 : i32
    return %c0_i32, %c0_i32_0 : i32, i32
  }
  func.func @transform_3(%arg0: i32) -> (i32, i32) {
    %c0_i32 = arith.constant 0 : i32
    %c0_i32_0 = arith.constant 0 : i32
    %c0_i32_1 = arith.constant 0 : i32
    return %c0_i32, %c0_i32_0 : i32, i32
  }
  func.func @transform_4(%arg0: i32) -> (i32, i32, i32) {
    %c0_i32 = arith.constant 0 : i32
    %c0_i32_0 = arith.constant 0 : i32
    %c0_i32_1 = arith.constant 0 : i32
    %c0_i32_2 = arith.constant 0 : i32
    return %c0_i32, %c0_i32_0, %c0_i32_1 : i32, i32, i32
  }
  func.func @transform_5(%arg0: i32) -> (i32, i32) {
    %c0_i32 = arith.constant 0 : i32
    %c0_i32_0 = arith.constant 0 : i32
    %c0_i32_1 = arith.constant 0 : i32
    return %c0_i32, %c0_i32_0 : i32, i32
  }
  func.func @transform_6(%arg0: i32) -> (i32, i32) {
    %c0_i32 = arith.constant 0 : i32
    %c0_i32_0 = arith.constant 0 : i32
    %c0_i32_1 = arith.constant 0 : i32
    return %c0_i32, %c0_i32_0 : i32, i32
  }
  func.func @transform_7(%arg0: i32) -> (i32, i32) {
    %c0_i32 = arith.constant 0 : i32
    %c0_i32_0 = arith.constant 0 : i32
    %c0_i32_1 = arith.constant 0 : i32
    return %c0_i32, %c0_i32_0 : i32, i32
  }
  func.func @transform_8(%arg0: i32) -> (i32, i32) {
    %c0_i32 = arith.constant 0 : i32
    %c0_i32_0 = arith.constant 0 : i32
    %c0_i32_1 = arith.constant 0 : i32
    return %c0_i32, %c0_i32_0 : i32, i32
  }
}

module attributes {stable_mosaic.version = 11 : i64} {
  func.func @_grid_sample_kernel(%arg0: i32, %arg1: memref<6x2xf32, #tpu.memory_space<smem>>, %arg2: memref<2x576xf32, #tpu.memory_space<vmem>>, %arg3: memref<2x72x24xf32, #tpu.memory_space<vmem>>, %arg4: memref<6x576xf32, #tpu.memory_space<vmem>>, %arg5: memref<72x576xf32, #tpu.memory_space<vmem>>) attributes {dimension_semantics = [#tpu.dimension_semantics<arbitrary>], iteration_bounds = array<i64: 1>, scalar_prefetch = 1 : i64, scratch_operands = 1 : i64, tpu.core_type = #tpu.core_type<tc>, window_params = [{pipeline_mode = #tpu.pipeline_mode<synchronous>, transform_indices = @transform_0, window_bounds = array<i64: 2, 576>}, {pipeline_mode = #tpu.pipeline_mode<synchronous>, transform_indices = @transform_1, window_bounds = array<i64: 2, 72, 24>}, {pipeline_mode = #tpu.pipeline_mode<synchronous>, transform_indices = @transform_2, window_bounds = array<i64: 6, 576>}]} {
    %c0 = arith.constant 0 : index
    %c0_0 = arith.constant 0 : index
    %0 = vector.load %arg2[%c0, %c0_0] : memref<2x576xf32, #tpu.memory_space<vmem>>, vector<1x576xf32>
    %c1 = arith.constant 1 : index
    %c0_1 = arith.constant 0 : index
    %1 = vector.load %arg2[%c1, %c0_1] : memref<2x576xf32, #tpu.memory_space<vmem>>, vector<1x576xf32>
    %2 = tpu.iota {dimensions = array<i32: 0>} : vector<24x576xi32>
    %3 = tpu.iota {dimensions = array<i32: 0>} : vector<24x576xi32>
    %c0_2 = arith.constant 0 : index
    %c0_3 = arith.constant 0 : index
    %4 = memref.load %arg1[%c0_2, %c0_3] : memref<6x2xf32, #tpu.memory_space<smem>>
    %c1_4 = arith.constant 1 : index
    %c0_5 = arith.constant 0 : index
    %5 = memref.load %arg1[%c1_4, %c0_5] : memref<6x2xf32, #tpu.memory_space<smem>>
    %c2 = arith.constant 2 : index
    %c0_6 = arith.constant 0 : index
    %6 = memref.load %arg1[%c2, %c0_6] : memref<6x2xf32, #tpu.memory_space<smem>>
    %c3 = arith.constant 3 : index
    %c0_7 = arith.constant 0 : index
    %7 = memref.load %arg1[%c3, %c0_7] : memref<6x2xf32, #tpu.memory_space<smem>>
    %c4 = arith.constant 4 : index
    %c0_8 = arith.constant 0 : index
    %8 = memref.load %arg1[%c4, %c0_8] : memref<6x2xf32, #tpu.memory_space<smem>>
    %c5 = arith.constant 5 : index
    %c0_9 = arith.constant 0 : index
    %9 = memref.load %arg1[%c5, %c0_9] : memref<6x2xf32, #tpu.memory_space<smem>>
    %10 = vector.broadcast %4 : f32 to vector<1x576xf32>
    %11 = arith.mulf %10, %0 : vector<1x576xf32>
    %12 = vector.broadcast %5 : f32 to vector<1x576xf32>
    %13 = arith.mulf %12, %1 : vector<1x576xf32>
    %14 = arith.addf %11, %13 : vector<1x576xf32>
    %15 = vector.broadcast %6 : f32 to vector<1x576xf32>
    %16 = arith.addf %14, %15 : vector<1x576xf32>
    %17 = vector.broadcast %7 : f32 to vector<1x576xf32>
    %18 = arith.mulf %17, %0 : vector<1x576xf32>
    %19 = vector.broadcast %8 : f32 to vector<1x576xf32>
    %20 = arith.mulf %19, %1 : vector<1x576xf32>
    %21 = arith.addf %18, %20 : vector<1x576xf32>
    %22 = vector.broadcast %9 : f32 to vector<1x576xf32>
    %23 = arith.addf %21, %22 : vector<1x576xf32>
    %cst = arith.constant 1.000000e+00 : f32
    %24 = vector.broadcast %cst : f32 to vector<1x576xf32>
    %25 = arith.addf %16, %24 : vector<1x576xf32>
    %cst_10 = arith.constant 1.150000e+01 : f32
    %26 = vector.broadcast %cst_10 : f32 to vector<1x576xf32>
    %27 = arith.mulf %25, %26 : vector<1x576xf32>
    %cst_11 = arith.constant 1.000000e+00 : f32
    %28 = vector.broadcast %cst_11 : f32 to vector<1x576xf32>
    %29 = arith.addf %23, %28 : vector<1x576xf32>
    %cst_12 = arith.constant 1.150000e+01 : f32
    %30 = vector.broadcast %cst_12 : f32 to vector<1x576xf32>
    %31 = arith.mulf %29, %30 : vector<1x576xf32>
    %32 = math.floor %27 : vector<1x576xf32>
    %33 = math.floor %31 : vector<1x576xf32>
    %34 = arith.subf %27, %32 : vector<1x576xf32>
    %cst_13 = arith.constant 1.000000e+00 : f32
    %35 = vector.broadcast %cst_13 : f32 to vector<1x576xf32>
    %36 = arith.subf %35, %34 : vector<1x576xf32>
    %37 = arith.subf %31, %33 : vector<1x576xf32>
    %cst_14 = arith.constant 1.000000e+00 : f32
    %38 = vector.broadcast %cst_14 : f32 to vector<1x576xf32>
    %39 = arith.subf %38, %37 : vector<1x576xf32>
    %40 = arith.fptosi %32 : vector<1x576xf32> to vector<1x576xi32>
    %c1_i32 = arith.constant 1 : i32
    %41 = vector.broadcast %c1_i32 : i32 to vector<1x576xi32>
    %42 = arith.addi %40, %41 : vector<1x576xi32>
    %43 = arith.fptosi %33 : vector<1x576xf32> to vector<1x576xi32>
    %c1_i32_15 = arith.constant 1 : i32
    %44 = vector.broadcast %c1_i32_15 : i32 to vector<1x576xi32>
    %45 = arith.addi %43, %44 : vector<1x576xi32>
    %c0_i32 = arith.constant 0 : i32
    %46 = vector.broadcast %c0_i32 : i32 to vector<1x576xi32>
    %47 = arith.cmpi sge, %40, %46 : vector<1x576xi32>
    %c24_i32 = arith.constant 24 : i32
    %48 = vector.broadcast %c24_i32 : i32 to vector<1x576xi32>
    %49 = arith.cmpi slt, %40, %48 : vector<1x576xi32>
    %50 = arith.andi %47, %49 : vector<1x576xi1>
    %cst_16 = arith.constant 0.000000e+00 : f32
    %51 = vector.broadcast %cst_16 : f32 to vector<1x576xf32>
    %52 = arith.select %50, %36, %51 : vector<1x576xi1>, vector<1x576xf32>
    %c0_i32_17 = arith.constant 0 : i32
    %53 = vector.broadcast %c0_i32_17 : i32 to vector<1x576xi32>
    %54 = arith.cmpi sge, %42, %53 : vector<1x576xi32>
    %c24_i32_18 = arith.constant 24 : i32
    %55 = vector.broadcast %c24_i32_18 : i32 to vector<1x576xi32>
    %56 = arith.cmpi slt, %42, %55 : vector<1x576xi32>
    %57 = arith.andi %54, %56 : vector<1x576xi1>
    %cst_19 = arith.constant 0.000000e+00 : f32
    %58 = vector.broadcast %cst_19 : f32 to vector<1x576xf32>
    %59 = arith.select %57, %34, %58 : vector<1x576xi1>, vector<1x576xf32>
    %c0_i32_20 = arith.constant 0 : i32
    %60 = vector.broadcast %c0_i32_20 : i32 to vector<1x576xi32>
    %61 = arith.cmpi sge, %43, %60 : vector<1x576xi32>
    %c24_i32_21 = arith.constant 24 : i32
    %62 = vector.broadcast %c24_i32_21 : i32 to vector<1x576xi32>
    %63 = arith.cmpi slt, %43, %62 : vector<1x576xi32>
    %64 = arith.andi %61, %63 : vector<1x576xi1>
    %cst_22 = arith.constant 0.000000e+00 : f32
    %65 = vector.broadcast %cst_22 : f32 to vector<1x576xf32>
    %66 = arith.select %64, %39, %65 : vector<1x576xi1>, vector<1x576xf32>
    %c0_i32_23 = arith.constant 0 : i32
    %67 = vector.broadcast %c0_i32_23 : i32 to vector<1x576xi32>
    %68 = arith.cmpi sge, %45, %67 : vector<1x576xi32>
    %c24_i32_24 = arith.constant 24 : i32
    %69 = vector.broadcast %c24_i32_24 : i32 to vector<1x576xi32>
    %70 = arith.cmpi slt, %45, %69 : vector<1x576xi32>
    %71 = arith.andi %68, %70 : vector<1x576xi1>
    %cst_25 = arith.constant 0.000000e+00 : f32
    %72 = vector.broadcast %cst_25 : f32 to vector<1x576xf32>
    %73 = arith.select %71, %37, %72 : vector<1x576xi1>, vector<1x576xf32>
    %74 = vector.broadcast %40 : vector<1x576xi32> to vector<24x576xi32>
    %75 = arith.cmpi eq, %2, %74 : vector<24x576xi32>
    %cst_26 = arith.constant 0.000000e+00 : f32
    %76 = vector.shape_cast %52 : vector<1x576xf32> to vector<1x576xf32>
    %77 = vector.broadcast %76 : vector<1x576xf32> to vector<24x576xf32>
    %78 = vector.broadcast %cst_26 : f32 to vector<24x576xf32>
    %79 = arith.select %75, %77, %78 : vector<24x576xi1>, vector<24x576xf32>
    %80 = vector.broadcast %42 : vector<1x576xi32> to vector<24x576xi32>
    %81 = arith.cmpi eq, %2, %80 : vector<24x576xi32>
    %cst_27 = arith.constant 0.000000e+00 : f32
    %82 = vector.shape_cast %59 : vector<1x576xf32> to vector<1x576xf32>
    %83 = vector.broadcast %82 : vector<1x576xf32> to vector<24x576xf32>
    %84 = vector.broadcast %cst_27 : f32 to vector<24x576xf32>
    %85 = arith.select %81, %83, %84 : vector<24x576xi1>, vector<24x576xf32>
    %86 = arith.addf %79, %85 : vector<24x576xf32>
    %87 = vector.broadcast %43 : vector<1x576xi32> to vector<24x576xi32>
    %88 = arith.cmpi eq, %3, %87 : vector<24x576xi32>
    %cst_28 = arith.constant 0.000000e+00 : f32
    %89 = vector.shape_cast %66 : vector<1x576xf32> to vector<1x576xf32>
    %90 = vector.broadcast %89 : vector<1x576xf32> to vector<24x576xf32>
    %91 = vector.broadcast %cst_28 : f32 to vector<24x576xf32>
    %92 = arith.select %88, %90, %91 : vector<24x576xi1>, vector<24x576xf32>
    %93 = vector.broadcast %45 : vector<1x576xi32> to vector<24x576xi32>
    %94 = arith.cmpi eq, %3, %93 : vector<24x576xi32>
    %cst_29 = arith.constant 0.000000e+00 : f32
    %95 = vector.shape_cast %73 : vector<1x576xf32> to vector<1x576xf32>
    %96 = vector.broadcast %95 : vector<1x576xf32> to vector<24x576xf32>
    %97 = vector.broadcast %cst_29 : f32 to vector<24x576xf32>
    %98 = arith.select %94, %96, %97 : vector<24x576xi1>, vector<24x576xf32>
    %99 = arith.addf %92, %98 : vector<24x576xf32>
    %c0_30 = arith.constant 0 : index
    %c0_31 = arith.constant 0 : index
    %c0_32 = arith.constant 0 : index
    %100 = vector.load %arg3[%c0_30, %c0_31, %c0_32] : memref<2x72x24xf32, #tpu.memory_space<vmem>>, vector<1x72x24xf32>
    %101 = vector.shape_cast %100 : vector<1x72x24xf32> to vector<72x24xf32>
    %cst_33 = arith.constant dense<0.000000e+00> : vector<72x576xf32>
    %102 = tpu.matmul %101, %86, %cst_33 {dimension_numbers = #tpu.dot_dimension_numbers<[1], [0], [0], [1], [0, 0, 1, 1], [], []>} : vector<72x24xf32>, vector<24x576xf32>, vector<72x576xf32> -> vector<72x576xf32>
    %c0_34 = arith.constant 0 : index
    %c0_35 = arith.constant 0 : index
    %103 = vector.load %arg5[%c0_34, %c0_35] : memref<72x576xf32, #tpu.memory_space<vmem>>, vector<72x576xf32>
    tpu.vector_store %arg5[%c0_34, %c0_35], %102 {strides = array<i32>} : memref<72x576xf32, #tpu.memory_space<vmem>>, vector<72x576xf32>,
    %c0_36 = arith.constant 0 : index
    %c0_37 = arith.constant 0 : index
    %104 = vector.load %arg5[%c0_36, %c0_37] : memref<72x576xf32, #tpu.memory_space<vmem>>, vector<24x576xf32>
    %105 = arith.mulf %99, %104 : vector<24x576xf32>
    %cst_38 = arith.constant dense<0.000000e+00> : vector<576xf32>
    %106 = vector.multi_reduction <add>, %105, %cst_38 [0] : vector<24x576xf32> to vector<576xf32>
    %107 = vector.shape_cast %106 : vector<576xf32> to vector<1x576xf32>
    %c0_39 = arith.constant 0 : index
    %c0_40 = arith.constant 0 : index
    %108 = vector.load %arg4[%c0_39, %c0_40] : memref<6x576xf32, #tpu.memory_space<vmem>>, vector<1x576xf32>
    tpu.vector_store %arg4[%c0_39, %c0_40], %107 {strides = array<i32>} : memref<6x576xf32, #tpu.memory_space<vmem>>, vector<1x576xf32>,
    %c24 = arith.constant 24 : index
    %c0_41 = arith.constant 0 : index
    %109 = vector.load %arg5[%c24, %c0_41] : memref<72x576xf32, #tpu.memory_space<vmem>>, vector<24x576xf32>
    %110 = arith.mulf %99, %109 : vector<24x576xf32>
    %cst_42 = arith.constant dense<0.000000e+00> : vector<576xf32>
    %111 = vector.multi_reduction <add>, %110, %cst_42 [0] : vector<24x576xf32> to vector<576xf32>
    %112 = vector.shape_cast %111 : vector<576xf32> to vector<1x576xf32>
    %c1_43 = arith.constant 1 : index
    %c0_44 = arith.constant 0 : index
    %113 = vector.load %arg4[%c1_43, %c0_44] : memref<6x576xf32, #tpu.memory_space<vmem>>, vector<1x576xf32>
    tpu.vector_store %arg4[%c1_43, %c0_44], %112 {strides = array<i32>} : memref<6x576xf32, #tpu.memory_space<vmem>>, vector<1x576xf32>,
    %c48 = arith.constant 48 : index
    %c0_45 = arith.constant 0 : index
    %114 = vector.load %arg5[%c48, %c0_45] : memref<72x576xf32, #tpu.memory_space<vmem>>, vector<24x576xf32>
    %115 = arith.mulf %99, %114 : vector<24x576xf32>
    %cst_46 = arith.constant dense<0.000000e+00> : vector<576xf32>
    %116 = vector.multi_reduction <add>, %115, %cst_46 [0] : vector<24x576xf32> to vector<576xf32>
    %117 = vector.shape_cast %116 : vector<576xf32> to vector<1x576xf32>
    %c2_47 = arith.constant 2 : index
    %c0_48 = arith.constant 0 : index
    %118 = vector.load %arg4[%c2_47, %c0_48] : memref<6x576xf32, #tpu.memory_space<vmem>>, vector<1x576xf32>
    tpu.vector_store %arg4[%c2_47, %c0_48], %117 {strides = array<i32>} : memref<6x576xf32, #tpu.memory_space<vmem>>, vector<1x576xf32>,
    %c0_49 = arith.constant 0 : index
    %c1_50 = arith.constant 1 : index
    %119 = memref.load %arg1[%c0_49, %c1_50] : memref<6x2xf32, #tpu.memory_space<smem>>
    %c1_51 = arith.constant 1 : index
    %c1_52 = arith.constant 1 : index
    %120 = memref.load %arg1[%c1_51, %c1_52] : memref<6x2xf32, #tpu.memory_space<smem>>
    %c2_53 = arith.constant 2 : index
    %c1_54 = arith.constant 1 : index
    %121 = memref.load %arg1[%c2_53, %c1_54] : memref<6x2xf32, #tpu.memory_space<smem>>
    %c3_55 = arith.constant 3 : index
    %c1_56 = arith.constant 1 : index
    %122 = memref.load %arg1[%c3_55, %c1_56] : memref<6x2xf32, #tpu.memory_space<smem>>
    %c4_57 = arith.constant 4 : index
    %c1_58 = arith.constant 1 : index
    %123 = memref.load %arg1[%c4_57, %c1_58] : memref<6x2xf32, #tpu.memory_space<smem>>
    %c5_59 = arith.constant 5 : index
    %c1_60 = arith.constant 1 : index
    %124 = memref.load %arg1[%c5_59, %c1_60] : memref<6x2xf32, #tpu.memory_space<smem>>
    %125 = vector.broadcast %119 : f32 to vector<1x576xf32>
    %126 = arith.mulf %125, %0 : vector<1x576xf32>
    %127 = vector.broadcast %120 : f32 to vector<1x576xf32>
    %128 = arith.mulf %127, %1 : vector<1x576xf32>
    %129 = arith.addf %126, %128 : vector<1x576xf32>
    %130 = vector.broadcast %121 : f32 to vector<1x576xf32>
    %131 = arith.addf %129, %130 : vector<1x576xf32>
    %132 = vector.broadcast %122 : f32 to vector<1x576xf32>
    %133 = arith.mulf %132, %0 : vector<1x576xf32>
    %134 = vector.broadcast %123 : f32 to vector<1x576xf32>
    %135 = arith.mulf %134, %1 : vector<1x576xf32>
    %136 = arith.addf %133, %135 : vector<1x576xf32>
    %137 = vector.broadcast %124 : f32 to vector<1x576xf32>
    %138 = arith.addf %136, %137 : vector<1x576xf32>
    %cst_61 = arith.constant 1.000000e+00 : f32
    %139 = vector.broadcast %cst_61 : f32 to vector<1x576xf32>
    %140 = arith.addf %131, %139 : vector<1x576xf32>
    %cst_62 = arith.constant 1.150000e+01 : f32
    %141 = vector.broadcast %cst_62 : f32 to vector<1x576xf32>
    %142 = arith.mulf %140, %141 : vector<1x576xf32>
    %cst_63 = arith.constant 1.000000e+00 : f32
    %143 = vector.broadcast %cst_63 : f32 to vector<1x576xf32>
    %144 = arith.addf %138, %143 : vector<1x576xf32>
    %cst_64 = arith.constant 1.150000e+01 : f32
    %145 = vector.broadcast %cst_64 : f32 to vector<1x576xf32>
    %146 = arith.mulf %144, %145 : vector<1x576xf32>
    %147 = math.floor %142 : vector<1x576xf32>
    %148 = math.floor %146 : vector<1x576xf32>
    %149 = arith.subf %142, %147 : vector<1x576xf32>
    %cst_65 = arith.constant 1.000000e+00 : f32
    %150 = vector.broadcast %cst_65 : f32 to vector<1x576xf32>
    %151 = arith.subf %150, %149 : vector<1x576xf32>
    %152 = arith.subf %146, %148 : vector<1x576xf32>
    %cst_66 = arith.constant 1.000000e+00 : f32
    %153 = vector.broadcast %cst_66 : f32 to vector<1x576xf32>
    %154 = arith.subf %153, %152 : vector<1x576xf32>
    %155 = arith.fptosi %147 : vector<1x576xf32> to vector<1x576xi32>
    %c1_i32_67 = arith.constant 1 : i32
    %156 = vector.broadcast %c1_i32_67 : i32 to vector<1x576xi32>
    %157 = arith.addi %155, %156 : vector<1x576xi32>
    %158 = arith.fptosi %148 : vector<1x576xf32> to vector<1x576xi32>
    %c1_i32_68 = arith.constant 1 : i32
    %159 = vector.broadcast %c1_i32_68 : i32 to vector<1x576xi32>
    %160 = arith.addi %158, %159 : vector<1x576xi32>
    %c0_i32_69 = arith.constant 0 : i32
    %161 = vector.broadcast %c0_i32_69 : i32 to vector<1x576xi32>
    %162 = arith.cmpi sge, %155, %161 : vector<1x576xi32>
    %c24_i32_70 = arith.constant 24 : i32
    %163 = vector.broadcast %c24_i32_70 : i32 to vector<1x576xi32>
    %164 = arith.cmpi slt, %155, %163 : vector<1x576xi32>
    %165 = arith.andi %162, %164 : vector<1x576xi1>
    %cst_71 = arith.constant 0.000000e+00 : f32
    %166 = vector.broadcast %cst_71 : f32 to vector<1x576xf32>
    %167 = arith.select %165, %151, %166 : vector<1x576xi1>, vector<1x576xf32>
    %c0_i32_72 = arith.constant 0 : i32
    %168 = vector.broadcast %c0_i32_72 : i32 to vector<1x576xi32>
    %169 = arith.cmpi sge, %157, %168 : vector<1x576xi32>
    %c24_i32_73 = arith.constant 24 : i32
    %170 = vector.broadcast %c24_i32_73 : i32 to vector<1x576xi32>
    %171 = arith.cmpi slt, %157, %170 : vector<1x576xi32>
    %172 = arith.andi %169, %171 : vector<1x576xi1>
    %cst_74 = arith.constant 0.000000e+00 : f32
    %173 = vector.broadcast %cst_74 : f32 to vector<1x576xf32>
    %174 = arith.select %172, %149, %173 : vector<1x576xi1>, vector<1x576xf32>
    %c0_i32_75 = arith.constant 0 : i32
    %175 = vector.broadcast %c0_i32_75 : i32 to vector<1x576xi32>
    %176 = arith.cmpi sge, %158, %175 : vector<1x576xi32>
    %c24_i32_76 = arith.constant 24 : i32
    %177 = vector.broadcast %c24_i32_76 : i32 to vector<1x576xi32>
    %178 = arith.cmpi slt, %158, %177 : vector<1x576xi32>
    %179 = arith.andi %176, %178 : vector<1x576xi1>
    %cst_77 = arith.constant 0.000000e+00 : f32
    %180 = vector.broadcast %cst_77 : f32 to vector<1x576xf32>
    %181 = arith.select %179, %154, %180 : vector<1x576xi1>, vector<1x576xf32>
    %c0_i32_78 = arith.constant 0 : i32
    %182 = vector.broadcast %c0_i32_78 : i32 to vector<1x576xi32>
    %183 = arith.cmpi sge, %160, %182 : vector<1x576xi32>
    %c24_i32_79 = arith.constant 24 : i32
    %184 = vector.broadcast %c24_i32_79 : i32 to vector<1x576xi32>
    %185 = arith.cmpi slt, %160, %184 : vector<1x576xi32>
    %186 = arith.andi %183, %185 : vector<1x576xi1>
    %cst_80 = arith.constant 0.000000e+00 : f32
    %187 = vector.broadcast %cst_80 : f32 to vector<1x576xf32>
    %188 = arith.select %186, %152, %187 : vector<1x576xi1>, vector<1x576xf32>
    %189 = vector.broadcast %155 : vector<1x576xi32> to vector<24x576xi32>
    %190 = arith.cmpi eq, %2, %189 : vector<24x576xi32>
    %cst_81 = arith.constant 0.000000e+00 : f32
    %191 = vector.shape_cast %167 : vector<1x576xf32> to vector<1x576xf32>
    %192 = vector.broadcast %191 : vector<1x576xf32> to vector<24x576xf32>
    %193 = vector.broadcast %cst_81 : f32 to vector<24x576xf32>
    %194 = arith.select %190, %192, %193 : vector<24x576xi1>, vector<24x576xf32>
    %195 = vector.broadcast %157 : vector<1x576xi32> to vector<24x576xi32>
    %196 = arith.cmpi eq, %2, %195 : vector<24x576xi32>
    %cst_82 = arith.constant 0.000000e+00 : f32
    %197 = vector.shape_cast %174 : vector<1x576xf32> to vector<1x576xf32>
    %198 = vector.broadcast %197 : vector<1x576xf32> to vector<24x576xf32>
    %199 = vector.broadcast %cst_82 : f32 to vector<24x576xf32>
    %200 = arith.select %196, %198, %199 : vector<24x576xi1>, vector<24x576xf32>
    %201 = arith.addf %194, %200 : vector<24x576xf32>
    %202 = vector.broadcast %158 : vector<1x576xi32> to vector<24x576xi32>
    %203 = arith.cmpi eq, %3, %202 : vector<24x576xi32>
    %cst_83 = arith.constant 0.000000e+00 : f32
    %204 = vector.shape_cast %181 : vector<1x576xf32> to vector<1x576xf32>
    %205 = vector.broadcast %204 : vector<1x576xf32> to vector<24x576xf32>
    %206 = vector.broadcast %cst_83 : f32 to vector<24x576xf32>
    %207 = arith.select %203, %205, %206 : vector<24x576xi1>, vector<24x576xf32>
    %208 = vector.broadcast %160 : vector<1x576xi32> to vector<24x576xi32>
    %209 = arith.cmpi eq, %3, %208 : vector<24x576xi32>
    %cst_84 = arith.constant 0.000000e+00 : f32
    %210 = vector.shape_cast %188 : vector<1x576xf32> to vector<1x576xf32>
    %211 = vector.broadcast %210 : vector<1x576xf32> to vector<24x576xf32>
    %212 = vector.broadcast %cst_84 : f32 to vector<24x576xf32>
    %213 = arith.select %209, %211, %212 : vector<24x576xi1>, vector<24x576xf32>
    %214 = arith.addf %207, %213 : vector<24x576xf32>
    %c1_85 = arith.constant 1 : index
    %c0_86 = arith.constant 0 : index
    %c0_87 = arith.constant 0 : index
    %215 = vector.load %arg3[%c1_85, %c0_86, %c0_87] : memref<2x72x24xf32, #tpu.memory_space<vmem>>, vector<1x72x24xf32>
    %216 = vector.shape_cast %215 : vector<1x72x24xf32> to vector<72x24xf32>
    %cst_88 = arith.constant dense<0.000000e+00> : vector<72x576xf32>
    %217 = tpu.matmul %216, %201, %cst_88 {dimension_numbers = #tpu.dot_dimension_numbers<[1], [0], [0], [1], [0, 0, 1, 1], [], []>} : vector<72x24xf32>, vector<24x576xf32>, vector<72x576xf32> -> vector<72x576xf32>
    %c0_89 = arith.constant 0 : index
    %c0_90 = arith.constant 0 : index
    %218 = vector.load %arg5[%c0_89, %c0_90] : memref<72x576xf32, #tpu.memory_space<vmem>>, vector<72x576xf32>
    tpu.vector_store %arg5[%c0_89, %c0_90], %217 {strides = array<i32>} : memref<72x576xf32, #tpu.memory_space<vmem>>, vector<72x576xf32>,
    %c0_91 = arith.constant 0 : index
    %c0_92 = arith.constant 0 : index
    %219 = vector.load %arg5[%c0_91, %c0_92] : memref<72x576xf32, #tpu.memory_space<vmem>>, vector<24x576xf32>
    %220 = arith.mulf %214, %219 : vector<24x576xf32>
    %cst_93 = arith.constant dense<0.000000e+00> : vector<576xf32>
    %221 = vector.multi_reduction <add>, %220, %cst_93 [0] : vector<24x576xf32> to vector<576xf32>
    %222 = vector.shape_cast %221 : vector<576xf32> to vector<1x576xf32>
    %c3_94 = arith.constant 3 : index
    %c0_95 = arith.constant 0 : index
    %223 = vector.load %arg4[%c3_94, %c0_95] : memref<6x576xf32, #tpu.memory_space<vmem>>, vector<1x576xf32>
    tpu.vector_store %arg4[%c3_94, %c0_95], %222 {strides = array<i32>} : memref<6x576xf32, #tpu.memory_space<vmem>>, vector<1x576xf32>,
    %c24_96 = arith.constant 24 : index
    %c0_97 = arith.constant 0 : index
    %224 = vector.load %arg5[%c24_96, %c0_97] : memref<72x576xf32, #tpu.memory_space<vmem>>, vector<24x576xf32>
    %225 = arith.mulf %214, %224 : vector<24x576xf32>
    %cst_98 = arith.constant dense<0.000000e+00> : vector<576xf32>
    %226 = vector.multi_reduction <add>, %225, %cst_98 [0] : vector<24x576xf32> to vector<576xf32>
    %227 = vector.shape_cast %226 : vector<576xf32> to vector<1x576xf32>
    %c4_99 = arith.constant 4 : index
    %c0_100 = arith.constant 0 : index
    %228 = vector.load %arg4[%c4_99, %c0_100] : memref<6x576xf32, #tpu.memory_space<vmem>>, vector<1x576xf32>
    tpu.vector_store %arg4[%c4_99, %c0_100], %227 {strides = array<i32>} : memref<6x576xf32, #tpu.memory_space<vmem>>, vector<1x576xf32>,
    %c48_101 = arith.constant 48 : index
    %c0_102 = arith.constant 0 : index
    %229 = vector.load %arg5[%c48_101, %c0_102] : memref<72x576xf32, #tpu.memory_space<vmem>>, vector<24x576xf32>
    %230 = arith.mulf %214, %229 : vector<24x576xf32>
    %cst_103 = arith.constant dense<0.000000e+00> : vector<576xf32>
    %231 = vector.multi_reduction <add>, %230, %cst_103 [0] : vector<24x576xf32> to vector<576xf32>
    %232 = vector.shape_cast %231 : vector<576xf32> to vector<1x576xf32>
    %c5_104 = arith.constant 5 : index
    %c0_105 = arith.constant 0 : index
    %233 = vector.load %arg4[%c5_104, %c0_105] : memref<6x576xf32, #tpu.memory_space<vmem>>, vector<1x576xf32>
    tpu.vector_store %arg4[%c5_104, %c0_105], %232 {strides = array<i32>} : memref<6x576xf32, #tpu.memory_space<vmem>>, vector<1x576xf32>,
    return
  }
  func.func @transform_0(%arg0: i32, %arg1: memref<6x2xf32, #tpu.memory_space<smem>>) -> (i32, i32) {
    %c0_i32 = arith.constant 0 : i32
    %c0_i32_0 = arith.constant 0 : i32
    %c0_i32_1 = arith.constant 0 : i32
    return %c0_i32, %c0_i32_0 : i32, i32
  }
  func.func @transform_1(%arg0: i32, %arg1: memref<6x2xf32, #tpu.memory_space<smem>>) -> (i32, i32, i32) {
    %c0_i32 = arith.constant 0 : i32
    %c0_i32_0 = arith.constant 0 : i32
    %c0_i32_1 = arith.constant 0 : i32
    %c0_i32_2 = arith.constant 0 : i32
    return %c0_i32, %c0_i32_0, %c0_i32_1 : i32, i32, i32
  }
  func.func @transform_2(%arg0: i32, %arg1: memref<6x2xf32, #tpu.memory_space<smem>>) -> (i32, i32) {
    %c0_i32 = arith.constant 0 : i32
    %c0_i32_0 = arith.constant 0 : i32
    %c0_i32_1 = arith.constant 0 : i32
    return %c0_i32, %c0_i32_0 : i32, i32
  }
}

</mosaic_0001>

<llo_original>
// kernel: stn_forward.3
$region0: #{stn_forward.3}
  #allocation0 [shape = 'u32[]', space=smem, size = 0x4, offset = 0x4, fixed_abs, tag = 'smem constant byte address 0x4 - core index']
  #allocation1 [shape = 'u32[144,128]{1,0:T(1,128)}', space=vmem, size = 0x12000, scoped, tag = 'internal scratch']
  %s0 = inlined_call_operand.vmem [shape: f32[8,147], index: 0, kind: input, shape index: {}]
  %s1 = inlined_call_operand.vmem [shape: f32[147,648], index: 1, kind: input, shape index: {}]
  %s2 = inlined_call_operand.vmem [shape: f32[8,1], index: 2, kind: input, shape index: {}]
  %s3 = inlined_call_operand.vmem [shape: s32[4,162], index: 3, kind: input, shape index: {}]
  %s4 = inlined_call_operand.vmem [shape: f32[8,162], index: 4, kind: output, shape index: {}]
  %s5 = sld [smem:[#allocation0]]
  $region26: #{stn_forward.3} parent=0
    _
  %s7 = ssub.s32 1, %s5
  %s8 = scalar_select 0, %s7, %s5
  // Predicated region
  $region2: #{stn_forward.3} parent=0 // pred_check
    _
  $region3: #{stn_forward.3} parent=0 // pred_check_branch
    %10 = sbr.rel (0) target = $region5
  $region4: #{stn_forward.3} parent=0 // pred_region
    _
  $region5: #{stn_forward.3} parent=0 // pred_fallthru
    _
  // Predicated region
  $region6: #{stn_forward.3} parent=0 // pred_check
    _
  $region7: #{stn_forward.3} parent=0 // pred_check_branch
    %12 = sbr.rel (0) target = $region9
  $region8: #{stn_forward.3} parent=0 // pred_region
    _
  $region9: #{stn_forward.3} parent=0 // pred_fallthru
    _
  // Predicated region
  $region10: #{stn_forward.3} parent=0 // pred_check
    _
  $region11: #{stn_forward.3} parent=0 // pred_check_branch
    %14 = sbr.rel (0) target = $region13
  $region12: #{stn_forward.3} parent=0 // pred_region
    _
  $region13: #{stn_forward.3} parent=0 // pred_fallthru
    _
  // Predicated region
  $region14: #{stn_forward.3} parent=0 // pred_check
    _
  $region15: #{stn_forward.3} parent=0 // pred_check_branch
    %16 = sbr.rel (0) target = $region17
  $region16: #{stn_forward.3} parent=0 // pred_region
    _
  $region17: #{stn_forward.3} parent=0 // pred_fallthru
    _
  %v17 = vld [vmem:[%s0] sm:$0xff]
  %v18 = vld [vmem:[%s0 + $0x8] sm:$0xff]
  %v19 = vld [vmem:[%s1] sm:$0xff]
  %v20 = vld [vmem:[%s1 + $0x8] sm:$0xff]
  %v21 = vld [vmem:[%s1 + $0x10] sm:$0xff]
  %v22 = vld [vmem:[%s1 + $0x18] sm:$0xff]
  %v23 = vld [vmem:[%s1 + $0x20] sm:$0xff]
  %v24 = vld [vmem:[%s1 + $0x28] sm:$0xff]
  %v25 = vld [vmem:[%s1 + $0x30] sm:$0xff]
  %v26 = vld [vmem:[%s1 + $0x38] sm:$0xff]
  %v27 = vld [vmem:[%s1 + $0x40] sm:$0xff]
  %v28 = vld [vmem:[%s1 + $0x48] sm:$0xff]
  %v29 = vld [vmem:[%s1 + $0x50] sm:$0xff]
  %v30 = vld [vmem:[%s1 + $0x58] sm:$0xff]
  %v31 = vld [vmem:[%s1 + $0x60] sm:$0xff]
  %v32 = vld [vmem:[%s1 + $0x68] sm:$0xff]
  %v33 = vld [vmem:[%s1 + $0x70] sm:$0xff]
  %v34 = vld [vmem:[%s1 + $0x78] sm:$0xff]
  %v35 = vld [vmem:[%s1 + $0x80] sm:$0xff]
  %v36 = vld [vmem:[%s1 + $0x88] sm:$0xff]
  %v37 = vld [vmem:[%s1 + $0x90] sm:$0xff]
  %v38 = vld [vmem:[%s1 + $0x98] sm:$0xff]
  %v39 = vld [vmem:[%s1 + $0xa0] sm:$0xff]
  %v40 = vld [vmem:[%s1 + $0xa8] sm:$0xff]
  %v41 = vld [vmem:[%s1 + $0xb0] sm:$0xff]
  %v42 = vld [vmem:[%s1 + $0xb8] sm:$0xff]
  %v43 = vld [vmem:[%s1 + $0xc0] sm:$0xff]
  %v44 = vld [vmem:[%s1 + $0xc8] sm:$0xff]
  %v45 = vld [vmem:[%s1 + $0xd0] sm:$0xff]
  %v46 = vld [vmem:[%s1 + $0xd8] sm:$0xff]
  %v47 = vld [vmem:[%s1 + $0xe0] sm:$0xff]
  %v48 = vld [vmem:[%s1 + $0xe8] sm:$0xff]
  %v49 = vld [vmem:[%s1 + $0xf0] sm:$0xff]
  %v50 = vld [vmem:[%s1 + $0xf8] sm:$0xff]
  %v51 = vld [vmem:[%s1 + $0x100] sm:$0xff]
  %v52 = vld [vmem:[%s1 + $0x108] sm:$0xff]
  %v53 = vld [vmem:[%s1 + $0x110] sm:$0xff]
  %v54 = vld [vmem:[%s1 + $0x118] sm:$0xff]
  %v55 = vld [vmem:[%s1 + $0x120] sm:$0xff]
  %v56 = vld [vmem:[%s1 + $0x128] sm:$0xff]
  %v57 = vld [vmem:[%s1 + $0x130] sm:$0xff]
  %v58 = vld [vmem:[%s1 + $0x138] sm:$0xff]
  %v59 = vld [vmem:[%s1 + $0x140] sm:$0xff]
  %v60 = vld [vmem:[%s1 + $0x148] sm:$0xff]
  %v61 = vld [vmem:[%s1 + $0x150] sm:$0xff]
  %v62 = vld [vmem:[%s1 + $0x158] sm:$0xff]
  %v63 = vld [vmem:[%s1 + $0x160] sm:$0xff]
  %v64 = vld [vmem:[%s1 + $0x168] sm:$0xff]
  %v65 = vld [vmem:[%s1 + $0x170] sm:$0xff]
  %v66 = vld [vmem:[%s1 + $0x178] sm:$0xff]
  %v67 = vld [vmem:[%s1 + $0x180] sm:$0xff]
  %v68 = vld [vmem:[%s1 + $0x188] sm:$0xff]
  %v69 = vld [vmem:[%s1 + $0x190] sm:$0xff]
  %v70 = vld [vmem:[%s1 + $0x198] sm:$0xff]
  %v71 = vld [vmem:[%s1 + $0x1a0] sm:$0xff]
  %v72 = vld [vmem:[%s1 + $0x1a8] sm:$0xff]
  %v73 = vld [vmem:[%s1 + $0x1b0] sm:$0xff]
  %v74 = vld [vmem:[%s1 + $0x1b8] sm:$0xff]
  %v75 = vld [vmem:[%s1 + $0x1c0] sm:$0xff]
  %v76 = vld [vmem:[%s1 + $0x1c8] sm:$0xff]
  %v77 = vld [vmem:[%s1 + $0x1d0] sm:$0xff]
  %v78 = vld [vmem:[%s1 + $0x1d8] sm:$0xff]
  %v79 = vld [vmem:[%s1 + $0x1e0] sm:$0xff]
  %v80 = vld [vmem:[%s1 + $0x1e8] sm:$0xff]
  %v81 = vld [vmem:[%s1 + $0x1f0] sm:$0xff]
  %v82 = vld [vmem:[%s1 + $0x1f8] sm:$0xff]
  %v83 = vld [vmem:[%s1 + $0x200] sm:$0xff]
  %v84 = vld [vmem:[%s1 + $0x208] sm:$0xff]
  %v85 = vld [vmem:[%s1 + $0x210] sm:$0xff]
  %v86 = vld [vmem:[%s1 + $0x218] sm:$0xff]
  %v87 = vld [vmem:[%s1 + $0x220] sm:$0xff]
  %v88 = vld [vmem:[%s1 + $0x228] sm:$0xff]
  %v89 = vld [vmem:[%s1 + $0x230] sm:$0xff]
  %v90 = vld [vmem:[%s1 + $0x238] sm:$0xff]
  %v91 = vld [vmem:[%s1 + $0x240] sm:$0xff]
  %v92 = vld [vmem:[%s1 + $0x248] sm:$0xff]
  %v93 = vld [vmem:[%s1 + $0x250] sm:$0xff]
  %v94 = vld [vmem:[%s1 + $0x258] sm:$0xff]
  %v95 = vld [vmem:[%s1 + $0x260] sm:$0xff]
  %v96 = vld [vmem:[%s1 + $0x268] sm:$0xff]
  %v97 = vld [vmem:[%s1 + $0x270] sm:$0xff]
  %v98 = vld [vmem:[%s1 + $0x278] sm:$0xff]
  %v99 = vld [vmem:[%s1 + $0x280] sm:$0xff]
  %v100 = vld [vmem:[%s1 + $0x288] sm:$0xff]
  %v101 = vld [vmem:[%s1 + $0x290] sm:$0xff]
  %v102 = vld [vmem:[%s1 + $0x298] sm:$0xff]
  %v103 = vld [vmem:[%s1 + $0x2a0] sm:$0xff]
  %v104 = vld [vmem:[%s1 + $0x2a8] sm:$0xff]
  %v105 = vld [vmem:[%s1 + $0x2b0] sm:$0xff]
  %v106 = vld [vmem:[%s1 + $0x2b8] sm:$0xff]
  %v107 = vld [vmem:[%s1 + $0x2c0] sm:$0xff]
  %v108 = vld [vmem:[%s1 + $0x2c8] sm:$0xff]
  %v109 = vld [vmem:[%s1 + $0x2d0] sm:$0xff]
  %v110 = vld [vmem:[%s1 + $0x2d8] sm:$0xff]
  %v111 = vld [vmem:[%s1 + $0x2e0] sm:$0xff]
  %v112 = vld [vmem:[%s1 + $0x2e8] sm:$0xff]
  %v113 = vld [vmem:[%s1 + $0x2f0] sm:$0xff]
  %v114 = vld [vmem:[%s1 + $0x2f8] sm:$0xff]
  %v115 = vld [vmem:[%s1 + $0x300] sm:$0xff]
  %v116 = vld [vmem:[%s1 + $0x308] sm:$0xff]
  %v117 = vld [vmem:[%s1 + $0x310] sm:$0xff]
  %v118 = vld [vmem:[%s1 + $0x318] sm:$0xff]
  %v119 = vld [vmem:[%s1 + $0x320] sm:$0xff]
  %v120 = vld [vmem:[%s1 + $0x328] sm:$0xff]
  %v121 = vld [vmem:[%s1 + $0x330] sm:$0xff]
  %v122 = vld [vmem:[%s1 + $0x338] sm:$0xff]
  %v123 = vld [vmem:[%s1 + $0x340] sm:$0xff]
  %v124 = vld [vmem:[%s1 + $0x348] sm:$0xff]
  %v125 = vld [vmem:[%s1 + $0x350] sm:$0xff]
  %v126 = vld [vmem:[%s1 + $0x358] sm:$0xff]
  %v127 = vld [vmem:[%s1 + $0x360] sm:$0x7]
  %v128 = vld [vmem:[%s1 + $0x368] sm:$0x7]
  %v129 = vld [vmem:[%s1 + $0x370] sm:$0x7]
  %v130 = vld [vmem:[%s1 + $0x378] sm:$0x7]
  %v131 = vld [vmem:[%s1 + $0x380] sm:$0x7]
  %v132 = vld [vmem:[%s1 + $0x388] sm:$0x7]
  %v133 = vld [vmem:[%s2] sm:$0xff]
  %135 = vset.pattern.permute.xlu0 0
  %136 = vperm.xlu0 %135, %v133
  %v137 = vpop.permute.xlu0 %136
  %vm139 = vcmask 154624
  %v141 = vsel %vm139, %v18, 0
  %vm143 = vcmask 1042432
  %v145 = vsel %vm143, %v127, 0
  %v148 = vsel %vm143, %v128, 0
  %v151 = vsel %vm143, %v129, 0
  %v154 = vsel %vm143, %v130, 0
  %v157 = vsel %vm143, %v131, 0
  %v160 = vsel %vm143, %v132, 0
  %162 = vmatprep.subr.mxu0 %v20
  %163 = vmatpush1.msra.mxu0 %v19
  %164 = vmatprep.subr.mxu0 %v26
  %165 = vmatpush1.msra.mxu0 %v25
  %166 = vmatprep.subr.mxu0 %v32
  %167 = vmatpush1.msra.mxu0 %v31
  %168 = vmatprep.subr.mxu0 %v38
  %169 = vmatpush1.msra.mxu0 %v37
  %170 = vmatprep.subr.mxu0 %v44
  %171 = vmatpush1.msra.mxu0 %v43
  %172 = vmatprep.subr.mxu0 %v50
  %173 = vmatpush1.msra.mxu0 %v49
  %174 = vmatprep.subr.mxu0 %v56
  %175 = vmatpush1.msra.mxu0 %v55
  %176 = vmatprep.subr.mxu0 %v62
  %177 = vmatpush1.msra.mxu0 %v61
  %178 = vmatprep.subr.mxu0 %v68
  %179 = vmatpush1.msra.mxu0 %v67
  %180 = vmatprep.subr.mxu0 %v74
  %181 = vmatpush1.msra.mxu0 %v73
  %182 = vmatprep.subr.mxu0 %v80
  %183 = vmatpush1.msra.mxu0 %v79
  %184 = vmatprep.subr.mxu0 %v86
  %185 = vmatpush1.msra.mxu0 %v85
  %186 = vmatprep.subr.mxu0 %v92
  %187 = vmatpush1.msra.mxu0 %v91
  %188 = vmatprep.subr.mxu0 %v98
  %189 = vmatpush1.msra.mxu0 %v97
  %190 = vmatprep.subr.mxu0 %v104
  %191 = vmatpush1.msra.mxu0 %v103
  %192 = vmatprep.subr.mxu0 %v110
  %193 = vmatpush1.msra.mxu0 %v109
  %194 = vmatprep.subr.mxu0 %v116
  %195 = vmatpush1.msra.mxu0 %v115
  %196 = vmatprep.subr.mxu0 %v122
  %197 = vmatpush1.msra.mxu0 %v121
  %198 = vmatprep.subr.mxu0 %v148
  %199 = vmatpush1.msra.mxu0 %v145
  %200 = vmatprep.subr.mxu0 0.0
  %201 = vmatpush1.msra.mxu0 0.0
  %202 = vmatprep.subr.mxu0 0.0
  %203 = vmatpush1.msra.mxu0 0.0
  %204 = vmatprep.subr.mxu0 0.0
  %205 = vmatpush1.msra.mxu0 0.0
  %206 = vmatprep.subr.mxu0 0.0
  %207 = vmatpush1.msra.mxu0 0.0
  %208 = vmatprep.subr.mxu0 0.0
  %209 = vmatpush1.msra.mxu0 0.0
  %210 = vmatprep.subr.mxu0 0.0
  %211 = vmatpush1.msra.mxu0 0.0
  %212 = vmatprep.subr.mxu0 0.0
  %213 = vmatpush1.msra.mxu0 0.0
  %214 = vmatprep.subr.mxu0 0.0
  %215 = vmatpush1.msra.mxu0 0.0
  %216 = vmatprep.subr.mxu0 0.0
  %217 = vmatpush1.msra.mxu0 0.0
  %218 = vmatprep.subr.mxu0 0.0
  %219 = vmatpush1.msra.mxu0 0.0
  %220 = vmatprep.subr.mxu0 0.0
  %221 = vmatpush1.msra.mxu0 0.0
  %222 = vmatprep.subr.mxu0 0.0
  %223 = vmatpush1.msra.mxu0 0.0
  %224 = vmatprep.subr.mxu0 0.0
  %225 = vmatpush1.msra.mxu0 0.0
  %226 = vmatprep.mubr.f32.mxu0 %v141
  %227 = vmatmul.mubr.f32.gmra.mrb[0].mxu0 %v17
  %v228 = vpop.f32.mrb[0].mxu0
  %v229 = vadd.f32 %v137, %v228
  %v230 = vpop.f32.mrb[0].mxu0
  %v231 = vadd.f32 %v137, %v230
  %232 = vdwg.mxu0
  %233 = vmatprep.subr.mxu0 %v22
  %234 = vmatpush1.msra.mxu0 %v21
  %235 = vmatprep.subr.mxu0 %v28
  %236 = vmatpush1.msra.mxu0 %v27
  %237 = vmatprep.subr.mxu0 %v34
  %238 = vmatpush1.msra.mxu0 %v33
  %239 = vmatprep.subr.mxu0 %v40
  %240 = vmatpush1.msra.mxu0 %v39
  %241 = vmatprep.subr.mxu0 %v46
  %242 = vmatpush1.msra.mxu0 %v45
  %243 = vmatprep.subr.mxu0 %v52
  %244 = vmatpush1.msra.mxu0 %v51
  %245 = vmatprep.subr.mxu0 %v58
  %246 = vmatpush1.msra.mxu0 %v57
  %247 = vmatprep.subr.mxu0 %v64
  %248 = vmatpush1.msra.mxu0 %v63
  %249 = vmatprep.subr.mxu0 %v70
  %250 = vmatpush1.msra.mxu0 %v69
  %251 = vmatprep.subr.mxu0 %v76
  %252 = vmatpush1.msra.mxu0 %v75
  %253 = vmatprep.subr.mxu0 %v82
  %254 = vmatpush1.msra.mxu0 %v81
  %255 = vmatprep.subr.mxu0 %v88
  %256 = vmatpush1.msra.mxu0 %v87
  %257 = vmatprep.subr.mxu0 %v94
  %258 = vmatpush1.msra.mxu0 %v93
  %259 = vmatprep.subr.mxu0 %v100
  %260 = vmatpush1.msra.mxu0 %v99
  %261 = vmatprep.subr.mxu0 %v106
  %262 = vmatpush1.msra.mxu0 %v105
  %263 = vmatprep.subr.mxu0 %v112
  %264 = vmatpush1.msra.mxu0 %v111
  %265 = vmatprep.subr.mxu0 %v118
  %266 = vmatpush1.msra.mxu0 %v117
  %267 = vmatprep.subr.mxu0 %v124
  %268 = vmatpush1.msra.mxu0 %v123
  %269 = vmatprep.subr.mxu0 %v154
  %270 = vmatpush1.msra.mxu0 %v151
  %271 = vmatprep.subr.mxu0 0.0
  %272 = vmatpush1.msra.mxu0 0.0
  %273 = vmatprep.subr.mxu0 0.0
  %274 = vmatpush1.msra.mxu0 0.0
  %275 = vmatprep.subr.mxu0 0.0
  %276 = vmatpush1.msra.mxu0 0.0
  %277 = vmatprep.subr.mxu0 0.0
  %278 = vmatpush1.msra.mxu0 0.0
  %279 = vmatprep.subr.mxu0 0.0
  %280 = vmatpush1.msra.mxu0 0.0
  %281 = vmatprep.subr.mxu0 0.0
  %282 = vmatpush1.msra.mxu0 0.0
  %283 = vmatprep.subr.mxu0 0.0
  %284 = vmatpush1.msra.mxu0 0.0
  %285 = vmatprep.subr.mxu0 0.0
  %286 = vmatpush1.msra.mxu0 0.0
  %287 = vmatprep.subr.mxu0 0.0
  %288 = vmatpush1.msra.mxu0 0.0
  %289 = vmatprep.subr.mxu0 0.0
  %290 = vmatpush1.msra.mxu0 0.0
  %291 = vmatprep.subr.mxu0 0.0
  %292 = vmatpush1.msra.mxu0 0.0
  %293 = vmatprep.subr.mxu0 0.0
  %294 = vmatpush1.msra.mxu0 0.0
  %295 = vmatprep.subr.mxu0 0.0
  %296 = vmatpush1.msra.mxu0 0.0
  %297 = vmatprep.mubr.f32.mxu0 %v141
  %298 = vmatmul.mubr.f32.gmra.mrb[0].mxu0 %v17
  %v299 = vpop.f32.mrb[0].mxu0
  %v300 = vadd.f32 %v137, %v299
  %v301 = vpop.f32.mrb[0].mxu0
  %v302 = vadd.f32 %v137, %v301
  %303 = vdwg.mxu0
  %304 = vmatprep.subr.mxu0 %v24
  %305 = vmatpush1.msra.mxu0 %v23
  %306 = vmatprep.subr.mxu0 %v30
  %307 = vmatpush1.msra.mxu0 %v29
  %308 = vmatprep.subr.mxu0 %v36
  %309 = vmatpush1.msra.mxu0 %v35
  %310 = vmatprep.subr.mxu0 %v42
  %311 = vmatpush1.msra.mxu0 %v41
  %312 = vmatprep.subr.mxu0 %v48
  %313 = vmatpush1.msra.mxu0 %v47
  %314 = vmatprep.subr.mxu0 %v54
  %315 = vmatpush1.msra.mxu0 %v53
  %316 = vmatprep.subr.mxu0 %v60
  %317 = vmatpush1.msra.mxu0 %v59
  %318 = vmatprep.subr.mxu0 %v66
  %319 = vmatpush1.msra.mxu0 %v65
  %320 = vmatprep.subr.mxu0 %v72
  %321 = vmatpush1.msra.mxu0 %v71
  %322 = vmatprep.subr.mxu0 %v78
  %323 = vmatpush1.msra.mxu0 %v77
  %324 = vmatprep.subr.mxu0 %v84
  %325 = vmatpush1.msra.mxu0 %v83
  %326 = vmatprep.subr.mxu0 %v90
  %327 = vmatpush1.msra.mxu0 %v89
  %328 = vmatprep.subr.mxu0 %v96
  %329 = vmatpush1.msra.mxu0 %v95
  %330 = vmatprep.subr.mxu0 %v102
  %331 = vmatpush1.msra.mxu0 %v101
  %332 = vmatprep.subr.mxu0 %v108
  %333 = vmatpush1.msra.mxu0 %v107
  %334 = vmatprep.subr.mxu0 %v114
  %335 = vmatpush1.msra.mxu0 %v113
  %336 = vmatprep.subr.mxu0 %v120
  %337 = vmatpush1.msra.mxu0 %v119
  %338 = vmatprep.subr.mxu0 %v126
  %339 = vmatpush1.msra.mxu0 %v125
  %340 = vmatprep.subr.mxu0 %v160
  %341 = vmatpush1.msra.mxu0 %v157
  %342 = vmatprep.subr.mxu0 0.0
  %343 = vmatpush1.msra.mxu0 0.0
  %344 = vmatprep.subr.mxu0 0.0
  %345 = vmatpush1.msra.mxu0 0.0
  %346 = vmatprep.subr.mxu0 0.0
  %347 = vmatpush1.msra.mxu0 0.0
  %348 = vmatprep.subr.mxu0 0.0
  %349 = vmatpush1.msra.mxu0 0.0
  %350 = vmatprep.subr.mxu0 0.0
  %351 = vmatpush1.msra.mxu0 0.0
  %352 = vmatprep.subr.mxu0 0.0
  %353 = vmatpush1.msra.mxu0 0.0
  %354 = vmatprep.subr.mxu0 0.0
  %355 = vmatpush1.msra.mxu0 0.0
  %356 = vmatprep.subr.mxu0 0.0
  %357 = vmatpush1.msra.mxu0 0.0
  %358 = vmatprep.subr.mxu0 0.0
  %359 = vmatpush1.msra.mxu0 0.0
  %360 = vmatprep.subr.mxu0 0.0
  %361 = vmatpush1.msra.mxu0 0.0
  %362 = vmatprep.subr.mxu0 0.0
  %363 = vmatpush1.msra.mxu0 0.0
  %364 = vmatprep.subr.mxu0 0.0
  %365 = vmatpush1.msra.mxu0 0.0
  %366 = vmatprep.subr.mxu0 0.0
  %367 = vmatpush1.msra.mxu0 0.0
  %368 = vmatprep.mubr.f32.mxu0 %v141
  %369 = vmatmul.mubr.f32.gmra.mrb[0].mxu0 %v17
  %v370 = vpop.f32.mrb[0].mxu0
  %v371 = vadd.f32 %v137, %v370
  %v372 = vpop.f32.mrb[0].mxu0
  %v373 = vadd.f32 %v137, %v372
  %374 = vdwg.mxu0
  %v375 = vmax.f32 %v229, 0.0
  %v376 = vmax.f32 %v231, 0.0
  %v377 = vmax.f32 %v300, 0.0
  %v378 = vmax.f32 %v302, 0.0
  %v379 = vmax.f32 %v371, 0.0
  %v380 = vmax.f32 %v373, 0.0
  %v381 = vlaneseq
  %v382 = vshrl.u32 %v381, 7
  %v383 = vadd.s32 %v382, 8
  %v384 = vadd.s32 %v382, 16
  %v385 = vadd.s32 %v382, 24
  %v386 = vadd.s32 %v382, 32
  %v387 = vadd.s32 %v382, 40
  %v388 = vadd.s32 %v382, 48
  %v389 = vadd.s32 %v382, 56
  %v390 = vadd.s32 %v382, 64
  %v391 = vadd.s32 %v382, 72
  %v392 = vadd.s32 %v382, 80
  %v393 = vadd.s32 %v382, 88
  %v394 = vadd.s32 %v382, 96
  %v395 = vadd.s32 %v382, 104
  %v396 = vadd.s32 %v382, 112
  %v397 = vadd.s32 %v382, 120
  %v398 = vadd.s32 %v382, 128
  %v399 = vadd.s32 %v382, 136
  %v400 = vadd.s32 %v382, 144
  %v401 = vadd.s32 %v382, 152
  %v402 = vadd.s32 %v382, 160
  %v403 = vadd.s32 %v382, 168
  %v404 = vadd.s32 %v382, 176
  %v405 = vadd.s32 %v382, 184
  %v406 = vadd.s32 %v382, 192
  %v407 = vadd.s32 %v382, 200
  %v408 = vadd.s32 %v382, 208
  %v409 = vadd.s32 %v382, 216
  %v410 = vadd.s32 %v382, 224
  %v411 = vadd.s32 %v382, 232
  %v412 = vadd.s32 %v382, 240
  %v413 = vadd.s32 %v382, 248
  %v414 = vadd.s32 %v382, 256
  %v415 = vadd.s32 %v382, 264
  %v416 = vadd.s32 %v382, 272
  %v417 = vadd.s32 %v382, 280
  %v418 = vadd.s32 %v382, 288
  %v419 = vadd.s32 %v382, 296
  %v420 = vadd.s32 %v382, 304
  %v421 = vadd.s32 %v382, 312
  %v422 = vadd.s32 %v382, 320
  %v423 = vadd.s32 %v382, 328
  %v424 = vadd.s32 %v382, 336
  %v425 = vadd.s32 %v382, 344
  %v426 = vadd.s32 %v382, 352
  %v427 = vadd.s32 %v382, 360
  %v428 = vadd.s32 %v382, 368
  %v429 = vadd.s32 %v382, 376
  %v430 = vadd.s32 %v382, 384
  %v431 = vadd.s32 %v382, 392
  %v432 = vadd.s32 %v382, 400
  %v433 = vadd.s32 %v382, 408
  %v434 = vadd.s32 %v382, 416
  %v435 = vadd.s32 %v382, 424
  %v436 = vadd.s32 %v382, 432
  %v437 = vadd.s32 %v382, 440
  %v438 = vadd.s32 %v382, 448
  %v439 = vadd.s32 %v382, 456
  %v440 = vadd.s32 %v382, 464
  %v441 = vadd.s32 %v382, 472
  %v442 = vadd.s32 %v382, 480
  %v443 = vadd.s32 %v382, 488
  %v444 = vadd.s32 %v382, 496
  %v445 = vadd.s32 %v382, 504
  %v446 = vadd.s32 %v382, 512
  %v447 = vadd.s32 %v382, 520
  %v448 = vadd.s32 %v382, 528
  %v449 = vadd.s32 %v382, 536
  %v450 = vadd.s32 %v382, 544
  %v451 = vadd.s32 %v382, 552
  %v452 = vadd.s32 %v382, 560
  %v453 = vadd.s32 %v382, 568
  %v454 = vadd.s32 %v382, 576
  %v455 = vadd.s32 %v382, 584
  %v456 = vadd.s32 %v382, 592
  %v457 = vadd.s32 %v382, 600
  %v458 = vadd.s32 %v382, 608
  %v459 = vadd.s32 %v382, 616
  %v460 = vadd.s32 %v382, 624
  %v461 = vadd.s32 %v382, 632
  %v462 = vadd.s32 %v382, 640
  %v463 = vld [vmem:[%s3] ss:$4 sm:$0x3]
  %v464 = vlaneseq
  %v465 = vshrl.u32 %v464, 7
  %v466 = vsub.s32 0, %v465
  %v467 = vrot.slane %v463, %v466
  %v468 = vlaneseq
  %v469 = vshrl.u32 %v468, 7
  %v470 = vsub.s32 1, %v469
  %v471 = vrot.slane %v463, %v470
  %vm472 = vcmp.eq.s32.totalorder %v382, %v467
  %vm473 = vcmp.eq.s32.totalorder %v382, %v471
  %vm474 = vcmp.eq.s32.totalorder %v383, %v467
  %vm475 = vcmp.eq.s32.totalorder %v383, %v471
  %vm476 = vcmp.eq.s32.totalorder %v384, %v467
  %vm477 = vcmp.eq.s32.totalorder %v384, %v471
  %vm478 = vcmp.eq.s32.totalorder %v385, %v467
  %vm479 = vcmp.eq.s32.totalorder %v385, %v471
  %vm480 = vcmp.eq.s32.totalorder %v386, %v467
  %vm481 = vcmp.eq.s32.totalorder %v386, %v471
  %vm482 = vcmp.eq.s32.totalorder %v387, %v467
  %vm483 = vcmp.eq.s32.totalorder %v387, %v471
  %vm484 = vcmp.eq.s32.totalorder %v388, %v467
  %vm485 = vcmp.eq.s32.totalorder %v388, %v471
  %vm486 = vcmp.eq.s32.totalorder %v389, %v467
  %vm487 = vcmp.eq.s32.totalorder %v389, %v471
  %vm488 = vcmp.eq.s32.totalorder %v390, %v467
  %vm489 = vcmp.eq.s32.totalorder %v390, %v471
  %vm490 = vcmp.eq.s32.totalorder %v391, %v467
  %vm491 = vcmp.eq.s32.totalorder %v391, %v471
  %vm492 = vcmp.eq.s32.totalorder %v392, %v467
  %vm493 = vcmp.eq.s32.totalorder %v392, %v471
  %vm494 = vcmp.eq.s32.totalorder %v393, %v467
  %vm495 = vcmp.eq.s32.totalorder %v393, %v471
  %vm496 = vcmp.eq.s32.totalorder %v394, %v467
  %vm497 = vcmp.eq.s32.totalorder %v394, %v471
  %vm498 = vcmp.eq.s32.totalorder %v395, %v467
  %vm499 = vcmp.eq.s32.totalorder %v395, %v471
  %vm500 = vcmp.eq.s32.totalorder %v396, %v467
  %vm501 = vcmp.eq.s32.totalorder %v396, %v471
  %vm502 = vcmp.eq.s32.totalorder %v397, %v467
  %vm503 = vcmp.eq.s32.totalorder %v397, %v471
  %vm504 = vcmp.eq.s32.totalorder %v398, %v467
  %vm505 = vcmp.eq.s32.totalorder %v398, %v471
  %vm506 = vcmp.eq.s32.totalorder %v399, %v467
  %vm507 = vcmp.eq.s32.totalorder %v399, %v471
  %vm508 = vcmp.eq.s32.totalorder %v400, %v467
  %vm509 = vcmp.eq.s32.totalorder %v400, %v471
  %vm510 = vcmp.eq.s32.totalorder %v401, %v467
  %vm511 = vcmp.eq.s32.totalorder %v401, %v471
  %vm512 = vcmp.eq.s32.totalorder %v402, %v467
  %vm513 = vcmp.eq.s32.totalorder %v402, %v471
  %vm514 = vcmp.eq.s32.totalorder %v403, %v467
  %vm515 = vcmp.eq.s32.totalorder %v403, %v471
  %vm516 = vcmp.eq.s32.totalorder %v404, %v467
  %vm517 = vcmp.eq.s32.totalorder %v404, %v471
  %vm518 = vcmp.eq.s32.totalorder %v405, %v467
  %vm519 = vcmp.eq.s32.totalorder %v405, %v471
  %vm520 = vcmp.eq.s32.totalorder %v406, %v467
  %vm521 = vcmp.eq.s32.totalorder %v406, %v471
  %vm522 = vcmp.eq.s32.totalorder %v407, %v467
  %vm523 = vcmp.eq.s32.totalorder %v407, %v471
  %vm524 = vcmp.eq.s32.totalorder %v408, %v467
  %vm525 = vcmp.eq.s32.totalorder %v408, %v471
  %vm526 = vcmp.eq.s32.totalorder %v409, %v467
  %vm527 = vcmp.eq.s32.totalorder %v409, %v471
  %vm528 = vcmp.eq.s32.totalorder %v410, %v467
  %vm529 = vcmp.eq.s32.totalorder %v410, %v471
  %vm530 = vcmp.eq.s32.totalorder %v411, %v467
  %vm531 = vcmp.eq.s32.totalorder %v411, %v471
  %vm532 = vcmp.eq.s32.totalorder %v412, %v467
  %vm533 = vcmp.eq.s32.totalorder %v412, %v471
  %vm534 = vcmp.eq.s32.totalorder %v413, %v467
  %vm535 = vcmp.eq.s32.totalorder %v413, %v471
  %vm536 = vcmp.eq.s32.totalorder %v414, %v467
  %vm537 = vcmp.eq.s32.totalorder %v414, %v471
  %vm538 = vcmp.eq.s32.totalorder %v415, %v467
  %vm539 = vcmp.eq.s32.totalorder %v415, %v471
  %vm540 = vcmp.eq.s32.totalorder %v416, %v467
  %vm541 = vcmp.eq.s32.totalorder %v416, %v471
  %vm542 = vcmp.eq.s32.totalorder %v417, %v467
  %vm543 = vcmp.eq.s32.totalorder %v417, %v471
  %vm544 = vcmp.eq.s32.totalorder %v418, %v467
  %vm545 = vcmp.eq.s32.totalorder %v418, %v471
  %vm546 = vcmp.eq.s32.totalorder %v419, %v467
  %vm547 = vcmp.eq.s32.totalorder %v419, %v471
  %vm548 = vcmp.eq.s32.totalorder %v420, %v467
  %vm549 = vcmp.eq.s32.totalorder %v420, %v471
  %vm550 = vcmp.eq.s32.totalorder %v421, %v467
  %vm551 = vcmp.eq.s32.totalorder %v421, %v471
  %vm552 = vcmp.eq.s32.totalorder %v422, %v467
  %vm553 = vcmp.eq.s32.totalorder %v422, %v471
  %vm554 = vcmp.eq.s32.totalorder %v423, %v467
  %vm555 = vcmp.eq.s32.totalorder %v423, %v471
  %vm556 = vcmp.eq.s32.totalorder %v424, %v467
  %vm557 = vcmp.eq.s32.totalorder %v424, %v471
  %vm558 = vcmp.eq.s32.totalorder %v425, %v467
  %vm559 = vcmp.eq.s32.totalorder %v425, %v471
  %vm560 = vcmp.eq.s32.totalorder %v426, %v467
  %vm561 = vcmp.eq.s32.totalorder %v426, %v471
  %vm562 = vcmp.eq.s32.totalorder %v427, %v467
  %vm563 = vcmp.eq.s32.totalorder %v427, %v471
  %vm564 = vcmp.eq.s32.totalorder %v428, %v467
  %vm565 = vcmp.eq.s32.totalorder %v428, %v471
  %vm566 = vcmp.eq.s32.totalorder %v429, %v467
  %vm567 = vcmp.eq.s32.totalorder %v429, %v471
  %vm568 = vcmp.eq.s32.totalorder %v430, %v467
  %vm569 = vcmp.eq.s32.totalorder %v430, %v471
  %vm570 = vcmp.eq.s32.totalorder %v431, %v467
  %vm571 = vcmp.eq.s32.totalorder %v431, %v471
  %vm572 = vcmp.eq.s32.totalorder %v432, %v467
  %vm573 = vcmp.eq.s32.totalorder %v432, %v471
  %vm574 = vcmp.eq.s32.totalorder %v433, %v467
  %vm575 = vcmp.eq.s32.totalorder %v433, %v471
  %vm576 = vcmp.eq.s32.totalorder %v434, %v467
  %vm577 = vcmp.eq.s32.totalorder %v434, %v471
  %vm578 = vcmp.eq.s32.totalorder %v435, %v467
  %vm579 = vcmp.eq.s32.totalorder %v435, %v471
  %vm580 = vcmp.eq.s32.totalorder %v436, %v467
  %vm581 = vcmp.eq.s32.totalorder %v436, %v471
  %vm582 = vcmp.eq.s32.totalorder %v437, %v467
  %vm583 = vcmp.eq.s32.totalorder %v437, %v471
  %vm584 = vcmp.eq.s32.totalorder %v438, %v467
  %vm585 = vcmp.eq.s32.totalorder %v438, %v471
  %vm586 = vcmp.eq.s32.totalorder %v439, %v467
  %vm587 = vcmp.eq.s32.totalorder %v439, %v471
  %vm588 = vcmp.eq.s32.totalorder %v440, %v467
  %vm589 = vcmp.eq.s32.totalorder %v440, %v471
  %vm590 = vcmp.eq.s32.totalorder %v441, %v467
  %vm591 = vcmp.eq.s32.totalorder %v441, %v471
  %vm592 = vcmp.eq.s32.totalorder %v442, %v467
  %vm593 = vcmp.eq.s32.totalorder %v442, %v471
  %vm594 = vcmp.eq.s32.totalorder %v443, %v467
  %vm595 = vcmp.eq.s32.totalorder %v443, %v471
  %vm596 = vcmp.eq.s32.totalorder %v444, %v467
  %vm597 = vcmp.eq.s32.totalorder %v444, %v471
  %vm598 = vcmp.eq.s32.totalorder %v445, %v467
  %vm599 = vcmp.eq.s32.totalorder %v445, %v471
  %vm600 = vcmp.eq.s32.totalorder %v446, %v467
  %vm601 = vcmp.eq.s32.totalorder %v446, %v471
  %vm602 = vcmp.eq.s32.totalorder %v447, %v467
  %vm603 = vcmp.eq.s32.totalorder %v447, %v471
  %vm604 = vcmp.eq.s32.totalorder %v448, %v467
  %vm605 = vcmp.eq.s32.totalorder %v448, %v471
  %vm606 = vcmp.eq.s32.totalorder %v449, %v467
  %vm607 = vcmp.eq.s32.totalorder %v449, %v471
  %vm608 = vcmp.eq.s32.totalorder %v450, %v467
  %vm609 = vcmp.eq.s32.totalorder %v450, %v471
  %vm610 = vcmp.eq.s32.totalorder %v451, %v467
  %vm611 = vcmp.eq.s32.totalorder %v451, %v471
  %vm612 = vcmp.eq.s32.totalorder %v452, %v467
  %vm613 = vcmp.eq.s32.totalorder %v452, %v471
  %vm614 = vcmp.eq.s32.totalorder %v453, %v467
  %vm615 = vcmp.eq.s32.totalorder %v453, %v471
  %vm616 = vcmp.eq.s32.totalorder %v454, %v467
  %vm617 = vcmp.eq.s32.totalorder %v454, %v471
  %vm618 = vcmp.eq.s32.totalorder %v455, %v467
  %vm619 = vcmp.eq.s32.totalorder %v455, %v471
  %vm620 = vcmp.eq.s32.totalorder %v456, %v467
  %vm621 = vcmp.eq.s32.totalorder %v456, %v471
  %vm622 = vcmp.eq.s32.totalorder %v457, %v467
  %vm623 = vcmp.eq.s32.totalorder %v457, %v471
  %vm624 = vcmp.eq.s32.totalorder %v458, %v467
  %vm625 = vcmp.eq.s32.totalorder %v458, %v471
  %vm626 = vcmp.eq.s32.totalorder %v459, %v467
  %vm627 = vcmp.eq.s32.totalorder %v459, %v471
  %vm628 = vcmp.eq.s32.totalorder %v460, %v467
  %vm629 = vcmp.eq.s32.totalorder %v460, %v471
  %vm630 = vcmp.eq.s32.totalorder %v461, %v467
  %vm631 = vcmp.eq.s32.totalorder %v461, %v471
  %vm632 = vcmp.eq.s32.totalorder %v462, %v467
  %vm633 = vcmp.eq.s32.totalorder %v462, %v471
  %v634 = vsel %vm472, 1.0, 0.0
  %v635 = vsel %vm473, 1.0, 0.0
  %v636 = vsel %vm474, 1.0, 0.0
  %v637 = vsel %vm475, 1.0, 0.0
  %v638 = vsel %vm476, 1.0, 0.0
  %v639 = vsel %vm477, 1.0, 0.0
  %v640 = vsel %vm478, 1.0, 0.0
  %v641 = vsel %vm479, 1.0, 0.0
  %v642 = vsel %vm480, 1.0, 0.0
  %v643 = vsel %vm481, 1.0, 0.0
  %v644 = vsel %vm482, 1.0, 0.0
  %v645 = vsel %vm483, 1.0, 0.0
  %v646 = vsel %vm484, 1.0, 0.0
  %v647 = vsel %vm485, 1.0, 0.0
  %v648 = vsel %vm486, 1.0, 0.0
  %v649 = vsel %vm487, 1.0, 0.0
  %v650 = vsel %vm488, 1.0, 0.0
  %v651 = vsel %vm489, 1.0, 0.0
  %v652 = vsel %vm490, 1.0, 0.0
  %v653 = vsel %vm491, 1.0, 0.0
  %v654 = vsel %vm492, 1.0, 0.0
  %v655 = vsel %vm493, 1.0, 0.0
  %v656 = vsel %vm494, 1.0, 0.0
  %v657 = vsel %vm495, 1.0, 0.0
  %v658 = vsel %vm496, 1.0, 0.0
  %v659 = vsel %vm497, 1.0, 0.0
  %v660 = vsel %vm498, 1.0, 0.0
  %v661 = vsel %vm499, 1.0, 0.0
  %v662 = vsel %vm500, 1.0, 0.0
  %v663 = vsel %vm501, 1.0, 0.0
  %v664 = vsel %vm502, 1.0, 0.0
  %v665 = vsel %vm503, 1.0, 0.0
  %v666 = vsel %vm504, 1.0, 0.0
  %v667 = vsel %vm505, 1.0, 0.0
  %v668 = vsel %vm506, 1.0, 0.0
  %v669 = vsel %vm507, 1.0, 0.0
  %v670 = vsel %vm508, 1.0, 0.0
  %v671 = vsel %vm509, 1.0, 0.0
  %v672 = vsel %vm510, 1.0, 0.0
  %v673 = vsel %vm511, 1.0, 0.0
  %v674 = vsel %vm512, 1.0, 0.0
  %v675 = vsel %vm513, 1.0, 0.0
  %v676 = vsel %vm514, 1.0, 0.0
  %v677 = vsel %vm515, 1.0, 0.0
  %v678 = vsel %vm516, 1.0, 0.0
  %v679 = vsel %vm517, 1.0, 0.0
  %v680 = vsel %vm518, 1.0, 0.0
  %v681 = vsel %vm519, 1.0, 0.0
  %v682 = vsel %vm520, 1.0, 0.0
  %v683 = vsel %vm521, 1.0, 0.0
  %v684 = vsel %vm522, 1.0, 0.0
  %v685 = vsel %vm523, 1.0, 0.0
  %v686 = vsel %vm524, 1.0, 0.0
  %v687 = vsel %vm525, 1.0, 0.0
  %v688 = vsel %vm526, 1.0, 0.0
  %v689 = vsel %vm527, 1.0, 0.0
  %v690 = vsel %vm528, 1.0, 0.0
  %v691 = vsel %vm529, 1.0, 0.0
  %v692 = vsel %vm530, 1.0, 0.0
  %v693 = vsel %vm531, 1.0, 0.0
  %v694 = vsel %vm532, 1.0, 0.0
  %v695 = vsel %vm533, 1.0, 0.0
  %v696 = vsel %vm534, 1.0, 0.0
  %v697 = vsel %vm535, 1.0, 0.0
  %v698 = vsel %vm536, 1.0, 0.0
  %v699 = vsel %vm537, 1.0, 0.0
  %v700 = vsel %vm538, 1.0, 0.0
  %v701 = vsel %vm539, 1.0, 0.0
  %v702 = vsel %vm540, 1.0, 0.0
  %v703 = vsel %vm541, 1.0, 0.0
  %v704 = vsel %vm542, 1.0, 0.0
  %v705 = vsel %vm543, 1.0, 0.0
  %v706 = vsel %vm544, 1.0, 0.0
  %v707 = vsel %vm545, 1.0, 0.0
  %v708 = vsel %vm546, 1.0, 0.0
  %v709 = vsel %vm547, 1.0, 0.0
  %v710 = vsel %vm548, 1.0, 0.0
  %v711 = vsel %vm549, 1.0, 0.0
  %v712 = vsel %vm550, 1.0, 0.0
  %v713 = vsel %vm551, 1.0, 0.0
  %v714 = vsel %vm552, 1.0, 0.0
  %v715 = vsel %vm553, 1.0, 0.0
  %v716 = vsel %vm554, 1.0, 0.0
  %v717 = vsel %vm555, 1.0, 0.0
  %v718 = vsel %vm556, 1.0, 0.0
  %v719 = vsel %vm557, 1.0, 0.0
  %v720 = vsel %vm558, 1.0, 0.0
  %v721 = vsel %vm559, 1.0, 0.0
  %v722 = vsel %vm560, 1.0, 0.0
  %v723 = vsel %vm561, 1.0, 0.0
  %v724 = vsel %vm562, 1.0, 0.0
  %v725 = vsel %vm563, 1.0, 0.0
  %v726 = vsel %vm564, 1.0, 0.0
  %v727 = vsel %vm565, 1.0, 0.0
  %v728 = vsel %vm566, 1.0, 0.0
  %v729 = vsel %vm567, 1.0, 0.0
  %v730 = vsel %vm568, 1.0, 0.0
  %v731 = vsel %vm569, 1.0, 0.0
  %v732 = vsel %vm570, 1.0, 0.0
  %v733 = vsel %vm571, 1.0, 0.0
  %v734 = vsel %vm572, 1.0, 0.0
  %v735 = vsel %vm573, 1.0, 0.0
  %v736 = vsel %vm574, 1.0, 0.0
  %v737 = vsel %vm575, 1.0, 0.0
  %v738 = vsel %vm576, 1.0, 0.0
  %v739 = vsel %vm577, 1.0, 0.0
  %v740 = vsel %vm578, 1.0, 0.0
  %v741 = vsel %vm579, 1.0, 0.0
  %v742 = vsel %vm580, 1.0, 0.0
  %v743 = vsel %vm581, 1.0, 0.0
  %v744 = vsel %vm582, 1.0, 0.0
  %v745 = vsel %vm583, 1.0, 0.0
  %v746 = vsel %vm584, 1.0, 0.0
  %v747 = vsel %vm585, 1.0, 0.0
  %v748 = vsel %vm586, 1.0, 0.0
  %v749 = vsel %vm587, 1.0, 0.0
  %v750 = vsel %vm588, 1.0, 0.0
  %v751 = vsel %vm589, 1.0, 0.0
  %v752 = vsel %vm590, 1.0, 0.0
  %v753 = vsel %vm591, 1.0, 0.0
  %v754 = vsel %vm592, 1.0, 0.0
  %v755 = vsel %vm593, 1.0, 0.0
  %v756 = vsel %vm594, 1.0, 0.0
  %v757 = vsel %vm595, 1.0, 0.0
  %v758 = vsel %vm596, 1.0, 0.0
  %v759 = vsel %vm597, 1.0, 0.0
  %v760 = vsel %vm598, 1.0, 0.0
  %v761 = vsel %vm599, 1.0, 0.0
  %v762 = vsel %vm600, 1.0, 0.0
  %v763 = vsel %vm601, 1.0, 0.0
  %v764 = vsel %vm602, 1.0, 0.0
  %v765 = vsel %vm603, 1.0, 0.0
  %v766 = vsel %vm604, 1.0, 0.0
  %v767 = vsel %vm605, 1.0, 0.0
  %v768 = vsel %vm606, 1.0, 0.0
  %v769 = vsel %vm607, 1.0, 0.0
  %v770 = vsel %vm608, 1.0, 0.0
  %v771 = vsel %vm609, 1.0, 0.0
  %v772 = vsel %vm610, 1.0, 0.0
  %v773 = vsel %vm611, 1.0, 0.0
  %v774 = vsel %vm612, 1.0, 0.0
  %v775 = vsel %vm613, 1.0, 0.0
  %v776 = vsel %vm614, 1.0, 0.0
  %v777 = vsel %vm615, 1.0, 0.0
  %v778 = vsel %vm616, 1.0, 0.0
  %v779 = vsel %vm617, 1.0, 0.0
  %v780 = vsel %vm618, 1.0, 0.0
  %v781 = vsel %vm619, 1.0, 0.0
  %v782 = vsel %vm620, 1.0, 0.0
  %v783 = vsel %vm621, 1.0, 0.0
  %v784 = vsel %vm622, 1.0, 0.0
  %v785 = vsel %vm623, 1.0, 0.0
  %v786 = vsel %vm624, 1.0, 0.0
  %v787 = vsel %vm625, 1.0, 0.0
  %v788 = vsel %vm626, 1.0, 0.0
  %v789 = vsel %vm627, 1.0, 0.0
  %v790 = vsel %vm628, 1.0, 0.0
  %v791 = vsel %vm629, 1.0, 0.0
  %v792 = vsel %vm630, 1.0, 0.0
  %v793 = vsel %vm631, 1.0, 0.0
  %v794 = vsel %vm632, 1.0, 0.0
  %v795 = vsel %vm633, 1.0, 0.0
  %vm796 = vcmask 64512
  %v798 = vsel %vm796, %v380, 0
  %800 = vmatprep.subr.mxu0 %v635
  %801 = vmatpush1.msra.mxu0 %v634
  %802 = vmatprep.subr.mxu0 %v637
  %803 = vmatpush1.msra.mxu0 %v636
  %804 = vmatprep.subr.mxu0 %v639
  %805 = vmatpush1.msra.mxu0 %v638
  %806 = vmatprep.subr.mxu0 %v641
  %807 = vmatpush1.msra.mxu0 %v640
  %808 = vmatprep.subr.mxu0 %v643
  %809 = vmatpush1.msra.mxu0 %v642
  %810 = vmatprep.subr.mxu0 %v645
  %811 = vmatpush1.msra.mxu0 %v644
  %812 = vmatprep.subr.mxu0 %v647
  %813 = vmatpush1.msra.mxu0 %v646
  %814 = vmatprep.subr.mxu0 %v649
  %815 = vmatpush1.msra.mxu0 %v648
  %816 = vmatprep.subr.mxu0 %v651
  %817 = vmatpush1.msra.mxu0 %v650
  %818 = vmatprep.subr.mxu0 %v653
  %819 = vmatpush1.msra.mxu0 %v652
  %820 = vmatprep.subr.mxu0 %v655
  %821 = vmatpush1.msra.mxu0 %v654
  %822 = vmatprep.subr.mxu0 %v657
  %823 = vmatpush1.msra.mxu0 %v656
  %824 = vmatprep.subr.mxu0 %v659
  %825 = vmatpush1.msra.mxu0 %v658
  %826 = vmatprep.subr.mxu0 %v661
  %827 = vmatpush1.msra.mxu0 %v660
  %828 = vmatprep.subr.mxu0 %v663
  %829 = vmatpush1.msra.mxu0 %v662
  %830 = vmatprep.subr.mxu0 %v665
  %831 = vmatpush1.msra.mxu0 %v664
  %832 = vmatprep.subr.mxu0 %v667
  %833 = vmatpush1.msra.mxu0 %v666
  %834 = vmatprep.subr.mxu0 %v669
  %835 = vmatpush1.msra.mxu0 %v668
  %836 = vmatprep.subr.mxu0 %v671
  %837 = vmatpush1.msra.mxu0 %v670
  %838 = vmatprep.subr.mxu0 %v673
  %839 = vmatpush1.msra.mxu0 %v672
  %840 = vmatprep.subr.mxu0 %v675
  %841 = vmatpush1.msra.mxu0 %v674
  %842 = vmatprep.subr.mxu0 %v677
  %843 = vmatpush1.msra.mxu0 %v676
  %844 = vmatprep.subr.mxu0 %v679
  %845 = vmatpush1.msra.mxu0 %v678
  %846 = vmatprep.subr.mxu0 %v681
  %847 = vmatpush1.msra.mxu0 %v680
  %848 = vmatprep.subr.mxu0 %v683
  %849 = vmatpush1.msra.mxu0 %v682
  %850 = vmatprep.subr.mxu0 %v685
  %851 = vmatpush1.msra.mxu0 %v684
  %852 = vmatprep.subr.mxu0 %v687
  %853 = vmatpush1.msra.mxu0 %v686
  %854 = vmatprep.subr.mxu0 %v689
  %855 = vmatpush1.msra.mxu0 %v688
  %856 = vmatprep.subr.mxu0 %v691
  %857 = vmatpush1.msra.mxu0 %v690
  %858 = vmatprep.subr.mxu0 %v693
  %859 = vmatpush1.msra.mxu0 %v692
  %860 = vmatprep.subr.mxu0 %v695
  %861 = vmatpush1.msra.mxu0 %v694
  %862 = vmatprep.subr.mxu0 %v697
  %863 = vmatpush1.msra.mxu0 %v696
  %864 = vmatprep.mubr.f32.mxu0 %v376
  %865 = vmatmul.mubr.f32.gmra.mrb[0].mxu0 %v375
  %v866 = vpop.f32.mrb[0].mxu0
  %v867 = vadd.f32 0.0, %v866
  %v868 = vpop.f32.mrb[0].mxu0
  %v869 = vadd.f32 0.0, %v868
  %870 = vdwg.mxu0
  %871 = vmatprep.subr.mxu0 %v699
  %872 = vmatpush1.msra.mxu0 %v698
  %873 = vmatprep.subr.mxu0 %v701
  %874 = vmatpush1.msra.mxu0 %v700
  %875 = vmatprep.subr.mxu0 %v703
  %876 = vmatpush1.msra.mxu0 %v702
  %877 = vmatprep.subr.mxu0 %v705
  %878 = vmatpush1.msra.mxu0 %v704
  %879 = vmatprep.subr.mxu0 %v707
  %880 = vmatpush1.msra.mxu0 %v706
  %881 = vmatprep.subr.mxu0 %v709
  %882 = vmatpush1.msra.mxu0 %v708
  %883 = vmatprep.subr.mxu0 %v711
  %884 = vmatpush1.msra.mxu0 %v710
  %885 = vmatprep.subr.mxu0 %v713
  %886 = vmatpush1.msra.mxu0 %v712
  %887 = vmatprep.subr.mxu0 %v715
  %888 = vmatpush1.msra.mxu0 %v714
  %889 = vmatprep.subr.mxu0 %v717
  %890 = vmatpush1.msra.mxu0 %v716
  %891 = vmatprep.subr.mxu0 %v719
  %892 = vmatpush1.msra.mxu0 %v718
  %893 = vmatprep.subr.mxu0 %v721
  %894 = vmatpush1.msra.mxu0 %v720
  %895 = vmatprep.subr.mxu0 %v723
  %896 = vmatpush1.msra.mxu0 %v722
  %897 = vmatprep.subr.mxu0 %v725
  %898 = vmatpush1.msra.mxu0 %v724
  %899 = vmatprep.subr.mxu0 %v727
  %900 = vmatpush1.msra.mxu0 %v726
  %901 = vmatprep.subr.mxu0 %v729
  %902 = vmatpush1.msra.mxu0 %v728
  %903 = vmatprep.subr.mxu0 %v731
  %904 = vmatpush1.msra.mxu0 %v730
  %905 = vmatprep.subr.mxu0 %v733
  %906 = vmatpush1.msra.mxu0 %v732
  %907 = vmatprep.subr.mxu0 %v735
  %908 = vmatpush1.msra.mxu0 %v734
  %909 = vmatprep.subr.mxu0 %v737
  %910 = vmatpush1.msra.mxu0 %v736
  %911 = vmatprep.subr.mxu0 %v739
  %912 = vmatpush1.msra.mxu0 %v738
  %913 = vmatprep.subr.mxu0 %v741
  %914 = vmatpush1.msra.mxu0 %v740
  %915 = vmatprep.subr.mxu0 %v743
  %916 = vmatpush1.msra.mxu0 %v742
  %917 = vmatprep.subr.mxu0 %v745
  %918 = vmatpush1.msra.mxu0 %v744
  %919 = vmatprep.subr.mxu0 %v747
  %920 = vmatpush1.msra.mxu0 %v746
  %921 = vmatprep.subr.mxu0 %v749
  %922 = vmatpush1.msra.mxu0 %v748
  %923 = vmatprep.subr.mxu0 %v751
  %924 = vmatpush1.msra.mxu0 %v750
  %925 = vmatprep.subr.mxu0 %v753
  %926 = vmatpush1.msra.mxu0 %v752
  %927 = vmatprep.subr.mxu0 %v755
  %928 = vmatpush1.msra.mxu0 %v754
  %929 = vmatprep.subr.mxu0 %v757
  %930 = vmatpush1.msra.mxu0 %v756
  %931 = vmatprep.subr.mxu0 %v759
  %932 = vmatpush1.msra.mxu0 %v758
  %933 = vmatprep.subr.mxu0 %v761
  %934 = vmatpush1.msra.mxu0 %v760
  %935 = vmatprep.mubr.f32.mxu0 %v378
  %936 = vmatmul.mubr.f32.gmra.mrb[0].mxu0 %v377
  %v937 = vpop.f32.mrb[0].mxu0
  %v938 = vadd.f32 %v867, %v937
  %v939 = vpop.f32.mrb[0].mxu0
  %v940 = vadd.f32 %v869, %v939
  %941 = vdwg.mxu0
  %942 = vmatprep.subr.mxu0 %v763
  %943 = vmatpush1.msra.mxu0 %v762
  %944 = vmatprep.subr.mxu0 %v765
  %945 = vmatpush1.msra.mxu0 %v764
  %946 = vmatprep.subr.mxu0 %v767
  %947 = vmatpush1.msra.mxu0 %v766
  %948 = vmatprep.subr.mxu0 %v769
  %949 = vmatpush1.msra.mxu0 %v768
  %950 = vmatprep.subr.mxu0 %v771
  %951 = vmatpush1.msra.mxu0 %v770
  %952 = vmatprep.subr.mxu0 %v773
  %953 = vmatpush1.msra.mxu0 %v772
  %954 = vmatprep.subr.mxu0 %v775
  %955 = vmatpush1.msra.mxu0 %v774
  %956 = vmatprep.subr.mxu0 %v777
  %957 = vmatpush1.msra.mxu0 %v776
  %958 = vmatprep.subr.mxu0 %v779
  %959 = vmatpush1.msra.mxu0 %v778
  %960 = vmatprep.subr.mxu0 %v781
  %961 = vmatpush1.msra.mxu0 %v780
  %962 = vmatprep.subr.mxu0 %v783
  %963 = vmatpush1.msra.mxu0 %v782
  %964 = vmatprep.subr.mxu0 %v785
  %965 = vmatpush1.msra.mxu0 %v784
  %966 = vmatprep.subr.mxu0 %v787
  %967 = vmatpush1.msra.mxu0 %v786
  %968 = vmatprep.subr.mxu0 %v789
  %969 = vmatpush1.msra.mxu0 %v788
  %970 = vmatprep.subr.mxu0 %v791
  %971 = vmatpush1.msra.mxu0 %v790
  %972 = vmatprep.subr.mxu0 %v793
  %973 = vmatpush1.msra.mxu0 %v792
  %974 = vmatprep.subr.mxu0 %v795
  %975 = vmatpush1.msra.mxu0 %v794
  %976 = vmatprep.subr.mxu0 0.0
  %977 = vmatpush1.msra.mxu0 0.0
  %978 = vmatprep.subr.mxu0 0.0
  %979 = vmatpush1.msra.mxu0 0.0
  %980 = vmatprep.subr.mxu0 0.0
  %981 = vmatpush1.msra.mxu0 0.0
  %982 = vmatprep.subr.mxu0 0.0
  %983 = vmatpush1.msra.mxu0 0.0
  %984 = vmatprep.subr.mxu0 0.0
  %985 = vmatpush1.msra.mxu0 0.0
  %986 = vmatprep.subr.mxu0 0.0
  %987 = vmatpush1.msra.mxu0 0.0
  %988 = vmatprep.subr.mxu0 0.0
  %989 = vmatpush1.msra.mxu0 0.0
  %990 = vmatprep.subr.mxu0 0.0
  %991 = vmatpush1.msra.mxu0 0.0
  %992 = vmatprep.subr.mxu0 0.0
  %993 = vmatpush1.msra.mxu0 0.0
  %994 = vmatprep.subr.mxu0 0.0
  %995 = vmatpush1.msra.mxu0 0.0
  %996 = vmatprep.subr.mxu0 0.0
  %997 = vmatpush1.msra.mxu0 0.0
  %998 = vmatprep.subr.mxu0 0.0
  %999 = vmatpush1.msra.mxu0 0.0
  %1000 = vmatprep.subr.mxu0 0.0
  %1001 = vmatpush1.msra.mxu0 0.0
  %1002 = vmatprep.subr.mxu0 0.0
  %1003 = vmatpush1.msra.mxu0 0.0
  %1004 = vmatprep.subr.mxu0 0.0
  %1005 = vmatpush1.msra.mxu0 0.0
  %1006 = vmatprep.mubr.f32.mxu0 %v798
  %1007 = vmatmul.mubr.f32.gmra.mrb[0].mxu0 %v379
  %v1008 = vpop.f32.mrb[0].mxu0
  %v1009 = vadd.f32 %v938, %v1008
  %v1010 = vpop.f32.mrb[0].mxu0
  %v1011 = vadd.f32 %v940, %v1010
  %1012 = vdwg.mxu0
  %s1013 = scalar_lea.vmem %s3, 1
  %v1014 = vld [vmem:[%s1013] ss:$4 sm:$0x3]
  %v1015 = vlaneseq
  %v1016 = vshrl.u32 %v1015, 7
  %v1017 = vsub.s32 0, %v1016
  %v1018 = vrot.slane %v1014, %v1017
  %v1019 = vlaneseq
  %v1020 = vshrl.u32 %v1019, 7
  %v1021 = vsub.s32 1, %v1020
  %v1022 = vrot.slane %v1014, %v1021
  %vm1023 = vcmp.eq.s32.totalorder %v382, %v1018
  %vm1024 = vcmp.eq.s32.totalorder %v382, %v1022
  %vm1025 = vcmp.eq.s32.totalorder %v383, %v1018
  %vm1026 = vcmp.eq.s32.totalorder %v383, %v1022
  %vm1027 = vcmp.eq.s32.totalorder %v384, %v1018
  %vm1028 = vcmp.eq.s32.totalorder %v384, %v1022
  %vm1029 = vcmp.eq.s32.totalorder %v385, %v1018
  %vm1030 = vcmp.eq.s32.totalorder %v385, %v1022
  %vm1031 = vcmp.eq.s32.totalorder %v386, %v1018
  %vm1032 = vcmp.eq.s32.totalorder %v386, %v1022
  %vm1033 = vcmp.eq.s32.totalorder %v387, %v1018
  %vm1034 = vcmp.eq.s32.totalorder %v387, %v1022
  %vm1035 = vcmp.eq.s32.totalorder %v388, %v1018
  %vm1036 = vcmp.eq.s32.totalorder %v388, %v1022
  %vm1037 = vcmp.eq.s32.totalorder %v389, %v1018
  %vm1038 = vcmp.eq.s32.totalorder %v389, %v1022
  %vm1039 = vcmp.eq.s32.totalorder %v390, %v1018
  %vm1040 = vcmp.eq.s32.totalorder %v390, %v1022
  %vm1041 = vcmp.eq.s32.totalorder %v391, %v1018
  %vm1042 = vcmp.eq.s32.totalorder %v391, %v1022
  %vm1043 = vcmp.eq.s32.totalorder %v392, %v1018
  %vm1044 = vcmp.eq.s32.totalorder %v392, %v1022
  %vm1045 = vcmp.eq.s32.totalorder %v393, %v1018
  %vm1046 = vcmp.eq.s32.totalorder %v393, %v1022
  %vm1047 = vcmp.eq.s32.totalorder %v394, %v1018
  %vm1048 = vcmp.eq.s32.totalorder %v394, %v1022
  %vm1049 = vcmp.eq.s32.totalorder %v395, %v1018
  %vm1050 = vcmp.eq.s32.totalorder %v395, %v1022
  %vm1051 = vcmp.eq.s32.totalorder %v396, %v1018
  %vm1052 = vcmp.eq.s32.totalorder %v396, %v1022
  %vm1053 = vcmp.eq.s32.totalorder %v397, %v1018
  %vm1054 = vcmp.eq.s32.totalorder %v397, %v1022
  %vm1055 = vcmp.eq.s32.totalorder %v398, %v1018
  %vm1056 = vcmp.eq.s32.totalorder %v398, %v1022
  %vm1057 = vcmp.eq.s32.totalorder %v399, %v1018
  %vm1058 = vcmp.eq.s32.totalorder %v399, %v1022
  %vm1059 = vcmp.eq.s32.totalorder %v400, %v1018
  %vm1060 = vcmp.eq.s32.totalorder %v400, %v1022
  %vm1061 = vcmp.eq.s32.totalorder %v401, %v1018
  %vm1062 = vcmp.eq.s32.totalorder %v401, %v1022
  %vm1063 = vcmp.eq.s32.totalorder %v402, %v1018
  %vm1064 = vcmp.eq.s32.totalorder %v402, %v1022
  %vm1065 = vcmp.eq.s32.totalorder %v403, %v1018
  %vm1066 = vcmp.eq.s32.totalorder %v403, %v1022
  %vm1067 = vcmp.eq.s32.totalorder %v404, %v1018
  %vm1068 = vcmp.eq.s32.totalorder %v404, %v1022
  %vm1069 = vcmp.eq.s32.totalorder %v405, %v1018
  %vm1070 = vcmp.eq.s32.totalorder %v405, %v1022
  %vm1071 = vcmp.eq.s32.totalorder %v406, %v1018
  %vm1072 = vcmp.eq.s32.totalorder %v406, %v1022
  %vm1073 = vcmp.eq.s32.totalorder %v407, %v1018
  %vm1074 = vcmp.eq.s32.totalorder %v407, %v1022
  %vm1075 = vcmp.eq.s32.totalorder %v408, %v1018
  %vm1076 = vcmp.eq.s32.totalorder %v408, %v1022
  %vm1077 = vcmp.eq.s32.totalorder %v409, %v1018
  %vm1078 = vcmp.eq.s32.totalorder %v409, %v1022
  %vm1079 = vcmp.eq.s32.totalorder %v410, %v1018
  %vm1080 = vcmp.eq.s32.totalorder %v410, %v1022
  %vm1081 = vcmp.eq.s32.totalorder %v411, %v1018
  %vm1082 = vcmp.eq.s32.totalorder %v411, %v1022
  %vm1083 = vcmp.eq.s32.totalorder %v412, %v1018
  %vm1084 = vcmp.eq.s32.totalorder %v412, %v1022
  %vm1085 = vcmp.eq.s32.totalorder %v413, %v1018
  %vm1086 = vcmp.eq.s32.totalorder %v413, %v1022
  %vm1087 = vcmp.eq.s32.totalorder %v414, %v1018
  %vm1088 = vcmp.eq.s32.totalorder %v414, %v1022
  %vm1089 = vcmp.eq.s32.totalorder %v415, %v1018
  %vm1090 = vcmp.eq.s32.totalorder %v415, %v1022
  %vm1091 = vcmp.eq.s32.totalorder %v416, %v1018
  %vm1092 = vcmp.eq.s32.totalorder %v416, %v1022
  %vm1093 = vcmp.eq.s32.totalorder %v417, %v1018
  %vm1094 = vcmp.eq.s32.totalorder %v417, %v1022
  %vm1095 = vcmp.eq.s32.totalorder %v418, %v1018
  %vm1096 = vcmp.eq.s32.totalorder %v418, %v1022
  %vm1097 = vcmp.eq.s32.totalorder %v419, %v1018
  %vm1098 = vcmp.eq.s32.totalorder %v419, %v1022
  %vm1099 = vcmp.eq.s32.totalorder %v420, %v1018
  %vm1100 = vcmp.eq.s32.totalorder %v420, %v1022
  %vm1101 = vcmp.eq.s32.totalorder %v421, %v1018
  %vm1102 = vcmp.eq.s32.totalorder %v421, %v1022
  %vm1103 = vcmp.eq.s32.totalorder %v422, %v1018
  %vm1104 = vcmp.eq.s32.totalorder %v422, %v1022
  %vm1105 = vcmp.eq.s32.totalorder %v423, %v1018
  %vm1106 = vcmp.eq.s32.totalorder %v423, %v1022
  %vm1107 = vcmp.eq.s32.totalorder %v424, %v1018
  %vm1108 = vcmp.eq.s32.totalorder %v424, %v1022
  %vm1109 = vcmp.eq.s32.totalorder %v425, %v1018
  %vm1110 = vcmp.eq.s32.totalorder %v425, %v1022
  %vm1111 = vcmp.eq.s32.totalorder %v426, %v1018
  %vm1112 = vcmp.eq.s32.totalorder %v426, %v1022
  %vm1113 = vcmp.eq.s32.totalorder %v427, %v1018
  %vm1114 = vcmp.eq.s32.totalorder %v427, %v1022
  %vm1115 = vcmp.eq.s32.totalorder %v428, %v1018
  %vm1116 = vcmp.eq.s32.totalorder %v428, %v1022
  %vm1117 = vcmp.eq.s32.totalorder %v429, %v1018
  %vm1118 = vcmp.eq.s32.totalorder %v429, %v1022
  %vm1119 = vcmp.eq.s32.totalorder %v430, %v1018
  %vm1120 = vcmp.eq.s32.totalorder %v430, %v1022
  %vm1121 = vcmp.eq.s32.totalorder %v431, %v1018
  %vm1122 = vcmp.eq.s32.totalorder %v431, %v1022
  %vm1123 = vcmp.eq.s32.totalorder %v432, %v1018
  %vm1124 = vcmp.eq.s32.totalorder %v432, %v1022
  %vm1125 = vcmp.eq.s32.totalorder %v433, %v1018
  %vm1126 = vcmp.eq.s32.totalorder %v433, %v1022
  %vm1127 = vcmp.eq.s32.totalorder %v434, %v1018
  %vm1128 = vcmp.eq.s32.totalorder %v434, %v1022
  %vm1129 = vcmp.eq.s32.totalorder %v435, %v1018
  %vm1130 = vcmp.eq.s32.totalorder %v435, %v1022
  %vm1131 = vcmp.eq.s32.totalorder %v436, %v1018
  %vm1132 = vcmp.eq.s32.totalorder %v436, %v1022
  %vm1133 = vcmp.eq.s32.totalorder %v437, %v1018
  %vm1134 = vcmp.eq.s32.totalorder %v437, %v1022
  %vm1135 = vcmp.eq.s32.totalorder %v438, %v1018
  %vm1136 = vcmp.eq.s32.totalorder %v438, %v1022
  %vm1137 = vcmp.eq.s32.totalorder %v439, %v1018
  %vm1138 = vcmp.eq.s32.totalorder %v439, %v1022
  %vm1139 = vcmp.eq.s32.totalorder %v440, %v1018
  %vm1140 = vcmp.eq.s32.totalorder %v440, %v1022
  %vm1141 = vcmp.eq.s32.totalorder %v441, %v1018
  %vm1142 = vcmp.eq.s32.totalorder %v441, %v1022
  %vm1143 = vcmp.eq.s32.totalorder %v442, %v1018
  %vm1144 = vcmp.eq.s32.totalorder %v442, %v1022
  %vm1145 = vcmp.eq.s32.totalorder %v443, %v1018
  %vm1146 = vcmp.eq.s32.totalorder %v443, %v1022
  %vm1147 = vcmp.eq.s32.totalorder %v444, %v1018
  %vm1148 = vcmp.eq.s32.totalorder %v444, %v1022
  %vm1149 = vcmp.eq.s32.totalorder %v445, %v1018
  %vm1150 = vcmp.eq.s32.totalorder %v445, %v1022
  %vm1151 = vcmp.eq.s32.totalorder %v446, %v1018
  %vm1152 = vcmp.eq.s32.totalorder %v446, %v1022
  %vm1153 = vcmp.eq.s32.totalorder %v447, %v1018
  %vm1154 = vcmp.eq.s32.totalorder %v447, %v1022
  %vm1155 = vcmp.eq.s32.totalorder %v448, %v1018
  %vm1156 = vcmp.eq.s32.totalorder %v448, %v1022
  %vm1157 = vcmp.eq.s32.totalorder %v449, %v1018
  %vm1158 = vcmp.eq.s32.totalorder %v449, %v1022
  %vm1159 = vcmp.eq.s32.totalorder %v450, %v1018
  %vm1160 = vcmp.eq.s32.totalorder %v450, %v1022
  %vm1161 = vcmp.eq.s32.totalorder %v451, %v1018
  %vm1162 = vcmp.eq.s32.totalorder %v451, %v1022
  %vm1163 = vcmp.eq.s32.totalorder %v452, %v1018
  %vm1164 = vcmp.eq.s32.totalorder %v452, %v1022
  %vm1165 = vcmp.eq.s32.totalorder %v453, %v1018
  %vm1166 = vcmp.eq.s32.totalorder %v453, %v1022
  %vm1167 = vcmp.eq.s32.totalorder %v454, %v1018
  %vm1168 = vcmp.eq.s32.totalorder %v454, %v1022
  %vm1169 = vcmp.eq.s32.totalorder %v455, %v1018
  %vm1170 = vcmp.eq.s32.totalorder %v455, %v1022
  %vm1171 = vcmp.eq.s32.totalorder %v456, %v1018
  %vm1172 = vcmp.eq.s32.totalorder %v456, %v1022
  %vm1173 = vcmp.eq.s32.totalorder %v457, %v1018
  %vm1174 = vcmp.eq.s32.totalorder %v457, %v1022
  %vm1175 = vcmp.eq.s32.totalorder %v458, %v1018
  %vm1176 = vcmp.eq.s32.totalorder %v458, %v1022
  %vm1177 = vcmp.eq.s32.totalorder %v459, %v1018
  %vm1178 = vcmp.eq.s32.totalorder %v459, %v1022
  %vm1179 = vcmp.eq.s32.totalorder %v460, %v1018
  %vm1180 = vcmp.eq.s32.totalorder %v460, %v1022
  %vm1181 = vcmp.eq.s32.totalorder %v461, %v1018
  %vm1182 = vcmp.eq.s32.totalorder %v461, %v1022
  %vm1183 = vcmp.eq.s32.totalorder %v462, %v1018
  %vm1184 = vcmp.eq.s32.totalorder %v462, %v1022
  %v1185 = vsel %vm1023, 1.0, 0.0
  %v1186 = vsel %vm1024, 1.0, 0.0
  %v1187 = vsel %vm1025, 1.0, 0.0
  %v1188 = vsel %vm1026, 1.0, 0.0
  %v1189 = vsel %vm1027, 1.0, 0.0
  %v1190 = vsel %vm1028, 1.0, 0.0
  %v1191 = vsel %vm1029, 1.0, 0.0
  %v1192 = vsel %vm1030, 1.0, 0.0
  %v1193 = vsel %vm1031, 1.0, 0.0
  %v1194 = vsel %vm1032, 1.0, 0.0
  %v1195 = vsel %vm1033, 1.0, 0.0
  %v1196 = vsel %vm1034, 1.0, 0.0
  %v1197 = vsel %vm1035, 1.0, 0.0
  %v1198 = vsel %vm1036, 1.0, 0.0
  %v1199 = vsel %vm1037, 1.0, 0.0
  %v1200 = vsel %vm1038, 1.0, 0.0
  %v1201 = vsel %vm1039, 1.0, 0.0
  %v1202 = vsel %vm1040, 1.0, 0.0
  %v1203 = vsel %vm1041, 1.0, 0.0
  %v1204 = vsel %vm1042, 1.0, 0.0
  %v1205 = vsel %vm1043, 1.0, 0.0
  %v1206 = vsel %vm1044, 1.0, 0.0
  %v1207 = vsel %vm1045, 1.0, 0.0
  %v1208 = vsel %vm1046, 1.0, 0.0
  %v1209 = vsel %vm1047, 1.0, 0.0
  %v1210 = vsel %vm1048, 1.0, 0.0
  %v1211 = vsel %vm1049, 1.0, 0.0
  %v1212 = vsel %vm1050, 1.0, 0.0
  %v1213 = vsel %vm1051, 1.0, 0.0
  %v1214 = vsel %vm1052, 1.0, 0.0
  %v1215 = vsel %vm1053, 1.0, 0.0
  %v1216 = vsel %vm1054, 1.0, 0.0
  %v1217 = vsel %vm1055, 1.0, 0.0
  %v1218 = vsel %vm1056, 1.0, 0.0
  %v1219 = vsel %vm1057, 1.0, 0.0
  %v1220 = vsel %vm1058, 1.0, 0.0
  %v1221 = vsel %vm1059, 1.0, 0.0
  %v1222 = vsel %vm1060, 1.0, 0.0
  %v1223 = vsel %vm1061, 1.0, 0.0
  %v1224 = vsel %vm1062, 1.0, 0.0
  %v1225 = vsel %vm1063, 1.0, 0.0
  %v1226 = vsel %vm1064, 1.0, 0.0
  %v1227 = vsel %vm1065, 1.0, 0.0
  %v1228 = vsel %vm1066, 1.0, 0.0
  %v1229 = vsel %vm1067, 1.0, 0.0
  %v1230 = vsel %vm1068, 1.0, 0.0
  %v1231 = vsel %vm1069, 1.0, 0.0
  %v1232 = vsel %vm1070, 1.0, 0.0
  %v1233 = vsel %vm1071, 1.0, 0.0
  %v1234 = vsel %vm1072, 1.0, 0.0
  %v1235 = vsel %vm1073, 1.0, 0.0
  %v1236 = vsel %vm1074, 1.0, 0.0
  %v1237 = vsel %vm1075, 1.0, 0.0
  %v1238 = vsel %vm1076, 1.0, 0.0
  %v1239 = vsel %vm1077, 1.0, 0.0
  %v1240 = vsel %vm1078, 1.0, 0.0
  %v1241 = vsel %vm1079, 1.0, 0.0
  %v1242 = vsel %vm1080, 1.0, 0.0
  %v1243 = vsel %vm1081, 1.0, 0.0
  %v1244 = vsel %vm1082, 1.0, 0.0
  %v1245 = vsel %vm1083, 1.0, 0.0
  %v1246 = vsel %vm1084, 1.0, 0.0
  %v1247 = vsel %vm1085, 1.0, 0.0
  %v1248 = vsel %vm1086, 1.0, 0.0
  %v1249 = vsel %vm1087, 1.0, 0.0
  %v1250 = vsel %vm1088, 1.0, 0.0
  %v1251 = vsel %vm1089, 1.0, 0.0
  %v1252 = vsel %vm1090, 1.0, 0.0
  %v1253 = vsel %vm1091, 1.0, 0.0
  %v1254 = vsel %vm1092, 1.0, 0.0
  %v1255 = vsel %vm1093, 1.0, 0.0
  %v1256 = vsel %vm1094, 1.0, 0.0
  %v1257 = vsel %vm1095, 1.0, 0.0
  %v1258 = vsel %vm1096, 1.0, 0.0
  %v1259 = vsel %vm1097, 1.0, 0.0
  %v1260 = vsel %vm1098, 1.0, 0.0
  %v1261 = vsel %vm1099, 1.0, 0.0
  %v1262 = vsel %vm1100, 1.0, 0.0
  %v1263 = vsel %vm1101, 1.0, 0.0
  %v1264 = vsel %vm1102, 1.0, 0.0
  %v1265 = vsel %vm1103, 1.0, 0.0
  %v1266 = vsel %vm1104, 1.0, 0.0
  %v1267 = vsel %vm1105, 1.0, 0.0
  %v1268 = vsel %vm1106, 1.0, 0.0
  %v1269 = vsel %vm1107, 1.0, 0.0
  %v1270 = vsel %vm1108, 1.0, 0.0
  %v1271 = vsel %vm1109, 1.0, 0.0
  %v1272 = vsel %vm1110, 1.0, 0.0
  %v1273 = vsel %vm1111, 1.0, 0.0
  %v1274 = vsel %vm1112, 1.0, 0.0
  %v1275 = vsel %vm1113, 1.0, 0.0
  %v1276 = vsel %vm1114, 1.0, 0.0
  %v1277 = vsel %vm1115, 1.0, 0.0
  %v1278 = vsel %vm1116, 1.0, 0.0
  %v1279 = vsel %vm1117, 1.0, 0.0
  %v1280 = vsel %vm1118, 1.0, 0.0
  %v1281 = vsel %vm1119, 1.0, 0.0
  %v1282 = vsel %vm1120, 1.0, 0.0
  %v1283 = vsel %vm1121, 1.0, 0.0
  %v1284 = vsel %vm1122, 1.0, 0.0
  %v1285 = vsel %vm1123, 1.0, 0.0
  %v1286 = vsel %vm1124, 1.0, 0.0
  %v1287 = vsel %vm1125, 1.0, 0.0
  %v1288 = vsel %vm1126, 1.0, 0.0
  %v1289 = vsel %vm1127, 1.0, 0.0
  %v1290 = vsel %vm1128, 1.0, 0.0
  %v1291 = vsel %vm1129, 1.0, 0.0
  %v1292 = vsel %vm1130, 1.0, 0.0
  %v1293 = vsel %vm1131, 1.0, 0.0
  %v1294 = vsel %vm1132, 1.0, 0.0
  %v1295 = vsel %vm1133, 1.0, 0.0
  %v1296 = vsel %vm1134, 1.0, 0.0
  %v1297 = vsel %vm1135, 1.0, 0.0
  %v1298 = vsel %vm1136, 1.0, 0.0
  %v1299 = vsel %vm1137, 1.0, 0.0
  %v1300 = vsel %vm1138, 1.0, 0.0
  %v1301 = vsel %vm1139, 1.0, 0.0
  %v1302 = vsel %vm1140, 1.0, 0.0
  %v1303 = vsel %vm1141, 1.0, 0.0
  %v1304 = vsel %vm1142, 1.0, 0.0
  %v1305 = vsel %vm1143, 1.0, 0.0
  %v1306 = vsel %vm1144, 1.0, 0.0
  %v1307 = vsel %vm1145, 1.0, 0.0
  %v1308 = vsel %vm1146, 1.0, 0.0
  %v1309 = vsel %vm1147, 1.0, 0.0
  %v1310 = vsel %vm1148, 1.0, 0.0
  %v1311 = vsel %vm1149, 1.0, 0.0
  %v1312 = vsel %vm1150, 1.0, 0.0
  %v1313 = vsel %vm1151, 1.0, 0.0
  %v1314 = vsel %vm1152, 1.0, 0.0
  %v1315 = vsel %vm1153, 1.0, 0.0
  %v1316 = vsel %vm1154, 1.0, 0.0
  %v1317 = vsel %vm1155, 1.0, 0.0
  %v1318 = vsel %vm1156, 1.0, 0.0
  %v1319 = vsel %vm1157, 1.0, 0.0
  %v1320 = vsel %vm1158, 1.0, 0.0
  %v1321 = vsel %vm1159, 1.0, 0.0
  %v1322 = vsel %vm1160, 1.0, 0.0
  %v1323 = vsel %vm1161, 1.0, 0.0
  %v1324 = vsel %vm1162, 1.0, 0.0
  %v1325 = vsel %vm1163, 1.0, 0.0
  %v1326 = vsel %vm1164, 1.0, 0.0
  %v1327 = vsel %vm1165, 1.0, 0.0
  %v1328 = vsel %vm1166, 1.0, 0.0
  %v1329 = vsel %vm1167, 1.0, 0.0
  %v1330 = vsel %vm1168, 1.0, 0.0
  %v1331 = vsel %vm1169, 1.0, 0.0
  %v1332 = vsel %vm1170, 1.0, 0.0
  %v1333 = vsel %vm1171, 1.0, 0.0
  %v1334 = vsel %vm1172, 1.0, 0.0
  %v1335 = vsel %vm1173, 1.0, 0.0
  %v1336 = vsel %vm1174, 1.0, 0.0
  %v1337 = vsel %vm1175, 1.0, 0.0
  %v1338 = vsel %vm1176, 1.0, 0.0
  %v1339 = vsel %vm1177, 1.0, 0.0
  %v1340 = vsel %vm1178, 1.0, 0.0
  %v1341 = vsel %vm1179, 1.0, 0.0
  %v1342 = vsel %vm1180, 1.0, 0.0
  %v1343 = vsel %vm1181, 1.0, 0.0
  %v1344 = vsel %vm1182, 1.0, 0.0
  %v1345 = vsel %vm1183, 1.0, 0.0
  %v1346 = vsel %vm1184, 1.0, 0.0
  %1347 = vmatprep.subr.mxu0 %v1186
  %1348 = vmatpush1.msra.mxu0 %v1185
  %1349 = vmatprep.subr.mxu0 %v1188
  %1350 = vmatpush1.msra.mxu0 %v1187
  %1351 = vmatprep.subr.mxu0 %v1190
  %1352 = vmatpush1.msra.mxu0 %v1189
  %1353 = vmatprep.subr.mxu0 %v1192
  %1354 = vmatpush1.msra.mxu0 %v1191
  %1355 = vmatprep.subr.mxu0 %v1194
  %1356 = vmatpush1.msra.mxu0 %v1193
  %1357 = vmatprep.subr.mxu0 %v1196
  %1358 = vmatpush1.msra.mxu0 %v1195
  %1359 = vmatprep.subr.mxu0 %v1198
  %1360 = vmatpush1.msra.mxu0 %v1197
  %1361 = vmatprep.subr.mxu0 %v1200
  %1362 = vmatpush1.msra.mxu0 %v1199
  %1363 = vmatprep.subr.mxu0 %v1202
  %1364 = vmatpush1.msra.mxu0 %v1201
  %1365 = vmatprep.subr.mxu0 %v1204
  %1366 = vmatpush1.msra.mxu0 %v1203
  %1367 = vmatprep.subr.mxu0 %v1206
  %1368 = vmatpush1.msra.mxu0 %v1205
  %1369 = vmatprep.subr.mxu0 %v1208
  %1370 = vmatpush1.msra.mxu0 %v1207
  %1371 = vmatprep.subr.mxu0 %v1210
  %1372 = vmatpush1.msra.mxu0 %v1209
  %1373 = vmatprep.subr.mxu0 %v1212
  %1374 = vmatpush1.msra.mxu0 %v1211
  %1375 = vmatprep.subr.mxu0 %v1214
  %1376 = vmatpush1.msra.mxu0 %v1213
  %1377 = vmatprep.subr.mxu0 %v1216
  %1378 = vmatpush1.msra.mxu0 %v1215
  %1379 = vmatprep.subr.mxu0 %v1218
  %1380 = vmatpush1.msra.mxu0 %v1217
  %1381 = vmatprep.subr.mxu0 %v1220
  %1382 = vmatpush1.msra.mxu0 %v1219
  %1383 = vmatprep.subr.mxu0 %v1222
  %1384 = vmatpush1.msra.mxu0 %v1221
  %1385 = vmatprep.subr.mxu0 %v1224
  %1386 = vmatpush1.msra.mxu0 %v1223
  %1387 = vmatprep.subr.mxu0 %v1226
  %1388 = vmatpush1.msra.mxu0 %v1225
  %1389 = vmatprep.subr.mxu0 %v1228
  %1390 = vmatpush1.msra.mxu0 %v1227
  %1391 = vmatprep.subr.mxu0 %v1230
  %1392 = vmatpush1.msra.mxu0 %v1229
  %1393 = vmatprep.subr.mxu0 %v1232
  %1394 = vmatpush1.msra.mxu0 %v1231
  %1395 = vmatprep.subr.mxu0 %v1234
  %1396 = vmatpush1.msra.mxu0 %v1233
  %1397 = vmatprep.subr.mxu0 %v1236
  %1398 = vmatpush1.msra.mxu0 %v1235
  %1399 = vmatprep.subr.mxu0 %v1238
  %1400 = vmatpush1.msra.mxu0 %v1237
  %1401 = vmatprep.subr.mxu0 %v1240
  %1402 = vmatpush1.msra.mxu0 %v1239
  %1403 = vmatprep.subr.mxu0 %v1242
  %1404 = vmatpush1.msra.mxu0 %v1241
  %1405 = vmatprep.subr.mxu0 %v1244
  %1406 = vmatpush1.msra.mxu0 %v1243
  %1407 = vmatprep.subr.mxu0 %v1246
  %1408 = vmatpush1.msra.mxu0 %v1245
  %1409 = vmatprep.subr.mxu0 %v1248
  %1410 = vmatpush1.msra.mxu0 %v1247
  %1411 = vmatprep.mubr.f32.mxu0 %v376
  %1412 = vmatmul.mubr.f32.gmra.mrb[0].mxu0 %v375
  %v1413 = vpop.f32.mrb[0].mxu0
  %v1414 = vadd.f32 0.0, %v1413
  %v1415 = vpop.f32.mrb[0].mxu0
  %v1416 = vadd.f32 0.0, %v1415
  %1417 = vdwg.mxu0
  %1418 = vmatprep.subr.mxu0 %v1250
  %1419 = vmatpush1.msra.mxu0 %v1249
  %1420 = vmatprep.subr.mxu0 %v1252
  %1421 = vmatpush1.msra.mxu0 %v1251
  %1422 = vmatprep.subr.mxu0 %v1254
  %1423 = vmatpush1.msra.mxu0 %v1253
  %1424 = vmatprep.subr.mxu0 %v1256
  %1425 = vmatpush1.msra.mxu0 %v1255
  %1426 = vmatprep.subr.mxu0 %v1258
  %1427 = vmatpush1.msra.mxu0 %v1257
  %1428 = vmatprep.subr.mxu0 %v1260
  %1429 = vmatpush1.msra.mxu0 %v1259
  %1430 = vmatprep.subr.mxu0 %v1262
  %1431 = vmatpush1.msra.mxu0 %v1261
  %1432 = vmatprep.subr.mxu0 %v1264
  %1433 = vmatpush1.msra.mxu0 %v1263
  %1434 = vmatprep.subr.mxu0 %v1266
  %1435 = vmatpush1.msra.mxu0 %v1265
  %1436 = vmatprep.subr.mxu0 %v1268
  %1437 = vmatpush1.msra.mxu0 %v1267
  %1438 = vmatprep.subr.mxu0 %v1270
  %1439 = vmatpush1.msra.mxu0 %v1269
  %1440 = vmatprep.subr.mxu0 %v1272
  %1441 = vmatpush1.msra.mxu0 %v1271
  %1442 = vmatprep.subr.mxu0 %v1274
  %1443 = vmatpush1.msra.mxu0 %v1273
  %1444 = vmatprep.subr.mxu0 %v1276
  %1445 = vmatpush1.msra.mxu0 %v1275
  %1446 = vmatprep.subr.mxu0 %v1278
  %1447 = vmatpush1.msra.mxu0 %v1277
  %1448 = vmatprep.subr.mxu0 %v1280
  %1449 = vmatpush1.msra.mxu0 %v1279
  %1450 = vmatprep.subr.mxu0 %v1282
  %1451 = vmatpush1.msra.mxu0 %v1281
  %1452 = vmatprep.subr.mxu0 %v1284
  %1453 = vmatpush1.msra.mxu0 %v1283
  %1454 = vmatprep.subr.mxu0 %v1286
  %1455 = vmatpush1.msra.mxu0 %v1285
  %1456 = vmatprep.subr.mxu0 %v1288
  %1457 = vmatpush1.msra.mxu0 %v1287
  %1458 = vmatprep.subr.mxu0 %v1290
  %1459 = vmatpush1.msra.mxu0 %v1289
  %1460 = vmatprep.subr.mxu0 %v1292
  %1461 = vmatpush1.msra.mxu0 %v1291
  %1462 = vmatprep.subr.mxu0 %v1294
  %1463 = vmatpush1.msra.mxu0 %v1293
  %1464 = vmatprep.subr.mxu0 %v1296
  %1465 = vmatpush1.msra.mxu0 %v1295
  %1466 = vmatprep.subr.mxu0 %v1298
  %1467 = vmatpush1.msra.mxu0 %v1297
  %1468 = vmatprep.subr.mxu0 %v1300
  %1469 = vmatpush1.msra.mxu0 %v1299
  %1470 = vmatprep.subr.mxu0 %v1302
  %1471 = vmatpush1.msra.mxu0 %v1301
  %1472 = vmatprep.subr.mxu0 %v1304
  %1473 = vmatpush1.msra.mxu0 %v1303
  %1474 = vmatprep.subr.mxu0 %v1306
  %1475 = vmatpush1.msra.mxu0 %v1305
  %1476 = vmatprep.subr.mxu0 %v1308
  %1477 = vmatpush1.msra.mxu0 %v1307
  %1478 = vmatprep.subr.mxu0 %v1310
  %1479 = vmatpush1.msra.mxu0 %v1309
  %1480 = vmatprep.subr.mxu0 %v1312
  %1481 = vmatpush1.msra.mxu0 %v1311
  %1482 = vmatprep.mubr.f32.mxu0 %v378
  %1483 = vmatmul.mubr.f32.gmra.mrb[0].mxu0 %v377
  %v1484 = vpop.f32.mrb[0].mxu0
  %v1485 = vadd.f32 %v1414, %v1484
  %v1486 = vpop.f32.mrb[0].mxu0
  %v1487 = vadd.f32 %v1416, %v1486
  %1488 = vdwg.mxu0
  %1489 = vmatprep.subr.mxu0 %v1314
  %1490 = vmatpush1.msra.mxu0 %v1313
  %1491 = vmatprep.subr.mxu0 %v1316
  %1492 = vmatpush1.msra.mxu0 %v1315
  %1493 = vmatprep.subr.mxu0 %v1318
  %1494 = vmatpush1.msra.mxu0 %v1317
  %1495 = vmatprep.subr.mxu0 %v1320
  %1496 = vmatpush1.msra.mxu0 %v1319
  %1497 = vmatprep.subr.mxu0 %v1322
  %1498 = vmatpush1.msra.mxu0 %v1321
  %1499 = vmatprep.subr.mxu0 %v1324
  %1500 = vmatpush1.msra.mxu0 %v1323
  %1501 = vmatprep.subr.mxu0 %v1326
  %1502 = vmatpush1.msra.mxu0 %v1325
  %1503 = vmatprep.subr.mxu0 %v1328
  %1504 = vmatpush1.msra.mxu0 %v1327
  %1505 = vmatprep.subr.mxu0 %v1330
  %1506 = vmatpush1.msra.mxu0 %v1329
  %1507 = vmatprep.subr.mxu0 %v1332
  %1508 = vmatpush1.msra.mxu0 %v1331
  %1509 = vmatprep.subr.mxu0 %v1334
  %1510 = vmatpush1.msra.mxu0 %v1333
  %1511 = vmatprep.subr.mxu0 %v1336
  %1512 = vmatpush1.msra.mxu0 %v1335
  %1513 = vmatprep.subr.mxu0 %v1338
  %1514 = vmatpush1.msra.mxu0 %v1337
  %1515 = vmatprep.subr.mxu0 %v1340
  %1516 = vmatpush1.msra.mxu0 %v1339
  %1517 = vmatprep.subr.mxu0 %v1342
  %1518 = vmatpush1.msra.mxu0 %v1341
  %1519 = vmatprep.subr.mxu0 %v1344
  %1520 = vmatpush1.msra.mxu0 %v1343
  %1521 = vmatprep.subr.mxu0 %v1346
  %1522 = vmatpush1.msra.mxu0 %v1345
  %1523 = vmatprep.subr.mxu0 0.0
  %1524 = vmatpush1.msra.mxu0 0.0
  %1525 = vmatprep.subr.mxu0 0.0
  %1526 = vmatpush1.msra.mxu0 0.0
  %1527 = vmatprep.subr.mxu0 0.0
  %1528 = vmatpush1.msra.mxu0 0.0
  %1529 = vmatprep.subr.mxu0 0.0
  %1530 = vmatpush1.msra.mxu0 0.0
  %1531 = vmatprep.subr.mxu0 0.0
  %1532 = vmatpush1.msra.mxu0 0.0
  %1533 = vmatprep.subr.mxu0 0.0
  %1534 = vmatpush1.msra.mxu0 0.0
  %1535 = vmatprep.subr.mxu0 0.0
  %1536 = vmatpush1.msra.mxu0 0.0
  %1537 = vmatprep.subr.mxu0 0.0
  %1538 = vmatpush1.msra.mxu0 0.0
  %1539 = vmatprep.subr.mxu0 0.0
  %1540 = vmatpush1.msra.mxu0 0.0
  %1541 = vmatprep.subr.mxu0 0.0
  %1542 = vmatpush1.msra.mxu0 0.0
  %1543 = vmatprep.subr.mxu0 0.0
  %1544 = vmatpush1.msra.mxu0 0.0
  %1545 = vmatprep.subr.mxu0 0.0
  %1546 = vmatpush1.msra.mxu0 0.0
  %1547 = vmatprep.subr.mxu0 0.0
  %1548 = vmatpush1.msra.mxu0 0.0
  %1549 = vmatprep.subr.mxu0 0.0
  %1550 = vmatpush1.msra.mxu0 0.0
  %1551 = vmatprep.subr.mxu0 0.0
  %1552 = vmatpush1.msra.mxu0 0.0
  %1553 = vmatprep.mubr.f32.mxu0 %v798
  %1554 = vmatmul.mubr.f32.gmra.mrb[0].mxu0 %v379
  %v1555 = vpop.f32.mrb[0].mxu0
  %v1556 = vadd.f32 %v1485, %v1555
  %v1557 = vpop.f32.mrb[0].mxu0
  %v1558 = vadd.f32 %v1487, %v1557
  %1559 = vdwg.mxu0
  %v1560 = vmax.f32 %v1009, %v1556
  %v1561 = vmax.f32 %v1011, %v1558
  %s1562 = scalar_lea.vmem %s3, 2
  %v1563 = vld [vmem:[%s1562] ss:$4 sm:$0x3]
  %v1564 = vlaneseq
  %v1565 = vshrl.u32 %v1564, 7
  %v1566 = vsub.s32 0, %v1565
  %v1567 = vrot.slane %v1563, %v1566
  %v1568 = vlaneseq
  %v1569 = vshrl.u32 %v1568, 7
  %v1570 = vsub.s32 1, %v1569
  %v1571 = vrot.slane %v1563, %v1570
  %vm1572 = vcmp.eq.s32.totalorder %v382, %v1567
  %vm1573 = vcmp.eq.s32.totalorder %v382, %v1571
  %vm1574 = vcmp.eq.s32.totalorder %v383, %v1567
  %vm1575 = vcmp.eq.s32.totalorder %v383, %v1571
  %vm1576 = vcmp.eq.s32.totalorder %v384, %v1567
  %vm1577 = vcmp.eq.s32.totalorder %v384, %v1571
  %vm1578 = vcmp.eq.s32.totalorder %v385, %v1567
  %vm1579 = vcmp.eq.s32.totalorder %v385, %v1571
  %vm1580 = vcmp.eq.s32.totalorder %v386, %v1567
  %vm1581 = vcmp.eq.s32.totalorder %v386, %v1571
  %vm1582 = vcmp.eq.s32.totalorder %v387, %v1567
  %vm1583 = vcmp.eq.s32.totalorder %v387, %v1571
  %vm1584 = vcmp.eq.s32.totalorder %v388, %v1567
  %vm1585 = vcmp.eq.s32.totalorder %v388, %v1571
  %vm1586 = vcmp.eq.s32.totalorder %v389, %v1567
  %vm1587 = vcmp.eq.s32.totalorder %v389, %v1571
  %vm1588 = vcmp.eq.s32.totalorder %v390, %v1567
  %vm1589 = vcmp.eq.s32.totalorder %v390, %v1571
  %vm1590 = vcmp.eq.s32.totalorder %v391, %v1567
  %vm1591 = vcmp.eq.s32.totalorder %v391, %v1571
  %vm1592 = vcmp.eq.s32.totalorder %v392, %v1567
  %vm1593 = vcmp.eq.s32.totalorder %v392, %v1571
  %vm1594 = vcmp.eq.s32.totalorder %v393, %v1567
  %vm1595 = vcmp.eq.s32.totalorder %v393, %v1571
  %vm1596 = vcmp.eq.s32.totalorder %v394, %v1567
  %vm1597 = vcmp.eq.s32.totalorder %v394, %v1571
  %vm1598 = vcmp.eq.s32.totalorder %v395, %v1567
  %vm1599 = vcmp.eq.s32.totalorder %v395, %v1571
  %vm1600 = vcmp.eq.s32.totalorder %v396, %v1567
  %vm1601 = vcmp.eq.s32.totalorder %v396, %v1571
  %vm1602 = vcmp.eq.s32.totalorder %v397, %v1567
  %vm1603 = vcmp.eq.s32.totalorder %v397, %v1571
  %vm1604 = vcmp.eq.s32.totalorder %v398, %v1567
  %vm1605 = vcmp.eq.s32.totalorder %v398, %v1571
  %vm1606 = vcmp.eq.s32.totalorder %v399, %v1567
  %vm1607 = vcmp.eq.s32.totalorder %v399, %v1571
  %vm1608 = vcmp.eq.s32.totalorder %v400, %v1567
  %vm1609 = vcmp.eq.s32.totalorder %v400, %v1571
  %vm1610 = vcmp.eq.s32.totalorder %v401, %v1567
  %vm1611 = vcmp.eq.s32.totalorder %v401, %v1571
  %vm1612 = vcmp.eq.s32.totalorder %v402, %v1567
  %vm1613 = vcmp.eq.s32.totalorder %v402, %v1571
  %vm1614 = vcmp.eq.s32.totalorder %v403, %v1567
  %vm1615 = vcmp.eq.s32.totalorder %v403, %v1571
  %vm1616 = vcmp.eq.s32.totalorder %v404, %v1567
  %vm1617 = vcmp.eq.s32.totalorder %v404, %v1571
  %vm1618 = vcmp.eq.s32.totalorder %v405, %v1567
  %vm1619 = vcmp.eq.s32.totalorder %v405, %v1571
  %vm1620 = vcmp.eq.s32.totalorder %v406, %v1567
  %vm1621 = vcmp.eq.s32.totalorder %v406, %v1571
  %vm1622 = vcmp.eq.s32.totalorder %v407, %v1567
  %vm1623 = vcmp.eq.s32.totalorder %v407, %v1571
  %vm1624 = vcmp.eq.s32.totalorder %v408, %v1567
  %vm1625 = vcmp.eq.s32.totalorder %v408, %v1571
  %vm1626 = vcmp.eq.s32.totalorder %v409, %v1567
  %vm1627 = vcmp.eq.s32.totalorder %v409, %v1571
  %vm1628 = vcmp.eq.s32.totalorder %v410, %v1567
  %vm1629 = vcmp.eq.s32.totalorder %v410, %v1571
  %vm1630 = vcmp.eq.s32.totalorder %v411, %v1567
  %vm1631 = vcmp.eq.s32.totalorder %v411, %v1571
  %vm1632 = vcmp.eq.s32.totalorder %v412, %v1567
  %vm1633 = vcmp.eq.s32.totalorder %v412, %v1571
  %vm1634 = vcmp.eq.s32.totalorder %v413, %v1567
  %vm1635 = vcmp.eq.s32.totalorder %v413, %v1571
  %vm1636 = vcmp.eq.s32.totalorder %v414, %v1567
  %vm1637 = vcmp.eq.s32.totalorder %v414, %v1571
  %vm1638 = vcmp.eq.s32.totalorder %v415, %v1567
  %vm1639 = vcmp.eq.s32.totalorder %v415, %v1571
  %vm1640 = vcmp.eq.s32.totalorder %v416, %v1567
  %vm1641 = vcmp.eq.s32.totalorder %v416, %v1571
  %vm1642 = vcmp.eq.s32.totalorder %v417, %v1567
  %vm1643 = vcmp.eq.s32.totalorder %v417, %v1571
  %vm1644 = vcmp.eq.s32.totalorder %v418, %v1567
  %vm1645 = vcmp.eq.s32.totalorder %v418, %v1571
  %vm1646 = vcmp.eq.s32.totalorder %v419, %v1567
  %vm1647 = vcmp.eq.s32.totalorder %v419, %v1571
  %vm1648 = vcmp.eq.s32.totalorder %v420, %v1567
  %vm1649 = vcmp.eq.s32.totalorder %v420, %v1571
  %vm1650 = vcmp.eq.s32.totalorder %v421, %v1567
  %vm1651 = vcmp.eq.s32.totalorder %v421, %v1571
  %vm1652 = vcmp.eq.s32.totalorder %v422, %v1567
  %vm1653 = vcmp.eq.s32.totalorder %v422, %v1571
  %vm1654 = vcmp.eq.s32.totalorder %v423, %v1567
  %vm1655 = vcmp.eq.s32.totalorder %v423, %v1571
  %vm1656 = vcmp.eq.s32.totalorder %v424, %v1567
  %vm1657 = vcmp.eq.s32.totalorder %v424, %v1571
  %vm1658 = vcmp.eq.s32.totalorder %v425, %v1567
  %vm1659 = vcmp.eq.s32.totalorder %v425, %v1571
  %vm1660 = vcmp.eq.s32.totalorder %v426, %v1567
  %vm1661 = vcmp.eq.s32.totalorder %v426, %v1571
  %vm1662 = vcmp.eq.s32.totalorder %v427, %v1567
  %vm1663 = vcmp.eq.s32.totalorder %v427, %v1571
  %vm1664 = vcmp.eq.s32.totalorder %v428, %v1567
  %vm1665 = vcmp.eq.s32.totalorder %v428, %v1571
  %vm1666 = vcmp.eq.s32.totalorder %v429, %v1567
  %vm1667 = vcmp.eq.s32.totalorder %v429, %v1571
  %vm1668 = vcmp.eq.s32.totalorder %v430, %v1567
  %vm1669 = vcmp.eq.s32.totalorder %v430, %v1571
  %vm1670 = vcmp.eq.s32.totalorder %v431, %v1567
  %vm1671 = vcmp.eq.s32.totalorder %v431, %v1571
  %vm1672 = vcmp.eq.s32.totalorder %v432, %v1567
  %vm1673 = vcmp.eq.s32.totalorder %v432, %v1571
  %vm1674 = vcmp.eq.s32.totalorder %v433, %v1567
  %vm1675 = vcmp.eq.s32.totalorder %v433, %v1571
  %vm1676 = vcmp.eq.s32.totalorder %v434, %v1567
  %vm1677 = vcmp.eq.s32.totalorder %v434, %v1571
  %vm1678 = vcmp.eq.s32.totalorder %v435, %v1567
  %vm1679 = vcmp.eq.s32.totalorder %v435, %v1571
  %vm1680 = vcmp.eq.s32.totalorder %v436, %v1567
  %vm1681 = vcmp.eq.s32.totalorder %v436, %v1571
  %vm1682 = vcmp.eq.s32.totalorder %v437, %v1567
  %vm1683 = vcmp.eq.s32.totalorder %v437, %v1571
  %vm1684 = vcmp.eq.s32.totalorder %v438, %v1567
  %vm1685 = vcmp.eq.s32.totalorder %v438, %v1571
  %vm1686 = vcmp.eq.s32.totalorder %v439, %v1567
  %vm1687 = vcmp.eq.s32.totalorder %v439, %v1571
  %vm1688 = vcmp.eq.s32.totalorder %v440, %v1567
  %vm1689 = vcmp.eq.s32.totalorder %v440, %v1571
  %vm1690 = vcmp.eq.s32.totalorder %v441, %v1567
  %vm1691 = vcmp.eq.s32.totalorder %v441, %v1571
  %vm1692 = vcmp.eq.s32.totalorder %v442, %v1567
  %vm1693 = vcmp.eq.s32.totalorder %v442, %v1571
  %vm1694 = vcmp.eq.s32.totalorder %v443, %v1567
  %vm1695 = vcmp.eq.s32.totalorder %v443, %v1571
  %vm1696 = vcmp.eq.s32.totalorder %v444, %v1567
  %vm1697 = vcmp.eq.s32.totalorder %v444, %v1571
  %vm1698 = vcmp.eq.s32.totalorder %v445, %v1567
  %vm1699 = vcmp.eq.s32.totalorder %v445, %v1571
  %vm1700 = vcmp.eq.s32.totalorder %v446, %v1567
  %vm1701 = vcmp.eq.s32.totalorder %v446, %v1571
  %vm1702 = vcmp.eq.s32.totalorder %v447, %v1567
  %vm1703 = vcmp.eq.s32.totalorder %v447, %v1571
  %vm1704 = vcmp.eq.s32.totalorder %v448, %v1567
  %vm1705 = vcmp.eq.s32.totalorder %v448, %v1571
  %vm1706 = vcmp.eq.s32.totalorder %v449, %v1567
  %vm1707 = vcmp.eq.s32.totalorder %v449, %v1571
  %vm1708 = vcmp.eq.s32.totalorder %v450, %v1567
  %vm1709 = vcmp.eq.s32.totalorder %v450, %v1571
  %vm1710 = vcmp.eq.s32.totalorder %v451, %v1567
  %vm1711 = vcmp.eq.s32.totalorder %v451, %v1571
  %vm1712 = vcmp.eq.s32.totalorder %v452, %v1567
  %vm1713 = vcmp.eq.s32.totalorder %v452, %v1571
  %vm1714 = vcmp.eq.s32.totalorder %v453, %v1567
  %vm1715 = vcmp.eq.s32.totalorder %v453, %v1571
  %vm1716 = vcmp.eq.s32.totalorder %v454, %v1567
  %vm1717 = vcmp.eq.s32.totalorder %v454, %v1571
  %vm1718 = vcmp.eq.s32.totalorder %v455, %v1567
  %vm1719 = vcmp.eq.s32.totalorder %v455, %v1571
  %vm1720 = vcmp.eq.s32.totalorder %v456, %v1567
  %vm1721 = vcmp.eq.s32.totalorder %v456, %v1571
  %vm1722 = vcmp.eq.s32.totalorder %v457, %v1567
  %vm1723 = vcmp.eq.s32.totalorder %v457, %v1571
  %vm1724 = vcmp.eq.s32.totalorder %v458, %v1567
  %vm1725 = vcmp.eq.s32.totalorder %v458, %v1571
  %vm1726 = vcmp.eq.s32.totalorder %v459, %v1567
  %vm1727 = vcmp.eq.s32.totalorder %v459, %v1571
  %vm1728 = vcmp.eq.s32.totalorder %v460, %v1567
  %vm1729 = vcmp.eq.s32.totalorder %v460, %v1571
  %vm1730 = vcmp.eq.s32.totalorder %v461, %v1567
  %vm1731 = vcmp.eq.s32.totalorder %v461, %v1571
  %vm1732 = vcmp.eq.s32.totalorder %v462, %v1567
  %vm1733 = vcmp.eq.s32.totalorder %v462, %v1571
  %v1734 = vsel %vm1572, 1.0, 0.0
  %v1735 = vsel %vm1573, 1.0, 0.0
  %v1736 = vsel %vm1574, 1.0, 0.0
  %v1737 = vsel %vm1575, 1.0, 0.0
  %v1738 = vsel %vm1576, 1.0, 0.0
  %v1739 = vsel %vm1577, 1.0, 0.0
  %v1740 = vsel %vm1578, 1.0, 0.0
  %v1741 = vsel %vm1579, 1.0, 0.0
  %v1742 = vsel %vm1580, 1.0, 0.0
  %v1743 = vsel %vm1581, 1.0, 0.0
  %v1744 = vsel %vm1582, 1.0, 0.0
  %v1745 = vsel %vm1583, 1.0, 0.0
  %v1746 = vsel %vm1584, 1.0, 0.0
  %v1747 = vsel %vm1585, 1.0, 0.0
  %v1748 = vsel %vm1586, 1.0, 0.0
  %v1749 = vsel %vm1587, 1.0, 0.0
  %v1750 = vsel %vm1588, 1.0, 0.0
  %v1751 = vsel %vm1589, 1.0, 0.0
  %v1752 = vsel %vm1590, 1.0, 0.0
  %v1753 = vsel %vm1591, 1.0, 0.0
  %v1754 = vsel %vm1592, 1.0, 0.0
  %v1755 = vsel %vm1593, 1.0, 0.0
  %v1756 = vsel %vm1594, 1.0, 0.0
  %v1757 = vsel %vm1595, 1.0, 0.0
  %v1758 = vsel %vm1596, 1.0, 0.0
  %v1759 = vsel %vm1597, 1.0, 0.0
  %v1760 = vsel %vm1598, 1.0, 0.0
  %v1761 = vsel %vm1599, 1.0, 0.0
  %v1762 = vsel %vm1600, 1.0, 0.0
  %v1763 = vsel %vm1601, 1.0, 0.0
  %v1764 = vsel %vm1602, 1.0, 0.0
  %v1765 = vsel %vm1603, 1.0, 0.0
  %v1766 = vsel %vm1604, 1.0, 0.0
  %v1767 = vsel %vm1605, 1.0, 0.0
  %v1768 = vsel %vm1606, 1.0, 0.0
  %v1769 = vsel %vm1607, 1.0, 0.0
  %v1770 = vsel %vm1608, 1.0, 0.0
  %v1771 = vsel %vm1609, 1.0, 0.0
  %v1772 = vsel %vm1610, 1.0, 0.0
  %v1773 = vsel %vm1611, 1.0, 0.0
  %v1774 = vsel %vm1612, 1.0, 0.0
  %v1775 = vsel %vm1613, 1.0, 0.0
  %v1776 = vsel %vm1614, 1.0, 0.0
  %v1777 = vsel %vm1615, 1.0, 0.0
  %v1778 = vsel %vm1616, 1.0, 0.0
  %v1779 = vsel %vm1617, 1.0, 0.0
  %v1780 = vsel %vm1618, 1.0, 0.0
  %v1781 = vsel %vm1619, 1.0, 0.0
  %v1782 = vsel %vm1620, 1.0, 0.0
  %v1783 = vsel %vm1621, 1.0, 0.0
  %v1784 = vsel %vm1622, 1.0, 0.0
  %v1785 = vsel %vm1623, 1.0, 0.0
  %v1786 = vsel %vm1624, 1.0, 0.0
  %v1787 = vsel %vm1625, 1.0, 0.0
  %v1788 = vsel %vm1626, 1.0, 0.0
  %v1789 = vsel %vm1627, 1.0, 0.0
  %v1790 = vsel %vm1628, 1.0, 0.0
  %v1791 = vsel %vm1629, 1.0, 0.0
  %v1792 = vsel %vm1630, 1.0, 0.0
  %v1793 = vsel %vm1631, 1.0, 0.0
  %v1794 = vsel %vm1632, 1.0, 0.0
  %v1795 = vsel %vm1633, 1.0, 0.0
  %v1796 = vsel %vm1634, 1.0, 0.0
  %v1797 = vsel %vm1635, 1.0, 0.0
  %v1798 = vsel %vm1636, 1.0, 0.0
  %v1799 = vsel %vm1637, 1.0, 0.0
  %v1800 = vsel %vm1638, 1.0, 0.0
  %v1801 = vsel %vm1639, 1.0, 0.0
  %v1802 = vsel %vm1640, 1.0, 0.0
  %v1803 = vsel %vm1641, 1.0, 0.0
  %v1804 = vsel %vm1642, 1.0, 0.0
  %v1805 = vsel %vm1643, 1.0, 0.0
  %v1806 = vsel %vm1644, 1.0, 0.0
  %v1807 = vsel %vm1645, 1.0, 0.0
  %v1808 = vsel %vm1646, 1.0, 0.0
  %v1809 = vsel %vm1647, 1.0, 0.0
  %v1810 = vsel %vm1648, 1.0, 0.0
  %v1811 = vsel %vm1649, 1.0, 0.0
  %v1812 = vsel %vm1650, 1.0, 0.0
  %v1813 = vsel %vm1651, 1.0, 0.0
  %v1814 = vsel %vm1652, 1.0, 0.0
  %v1815 = vsel %vm1653, 1.0, 0.0
  %v1816 = vsel %vm1654, 1.0, 0.0
  %v1817 = vsel %vm1655, 1.0, 0.0
  %v1818 = vsel %vm1656, 1.0, 0.0
  %v1819 = vsel %vm1657, 1.0, 0.0
  %v1820 = vsel %vm1658, 1.0, 0.0
  %v1821 = vsel %vm1659, 1.0, 0.0
  %v1822 = vsel %vm1660, 1.0, 0.0
  %v1823 = vsel %vm1661, 1.0, 0.0
  %v1824 = vsel %vm1662, 1.0, 0.0
  %v1825 = vsel %vm1663, 1.0, 0.0
  %v1826 = vsel %vm1664, 1.0, 0.0
  %v1827 = vsel %vm1665, 1.0, 0.0
  %v1828 = vsel %vm1666, 1.0, 0.0
  %v1829 = vsel %vm1667, 1.0, 0.0
  %v1830 = vsel %vm1668, 1.0, 0.0
  %v1831 = vsel %vm1669, 1.0, 0.0
  %v1832 = vsel %vm1670, 1.0, 0.0
  %v1833 = vsel %vm1671, 1.0, 0.0
  %v1834 = vsel %vm1672, 1.0, 0.0
  %v1835 = vsel %vm1673, 1.0, 0.0
  %v1836 = vsel %vm1674, 1.0, 0.0
  %v1837 = vsel %vm1675, 1.0, 0.0
  %v1838 = vsel %vm1676, 1.0, 0.0
  %v1839 = vsel %vm1677, 1.0, 0.0
  %v1840 = vsel %vm1678, 1.0, 0.0
  %v1841 = vsel %vm1679, 1.0, 0.0
  %v1842 = vsel %vm1680, 1.0, 0.0
  %v1843 = vsel %vm1681, 1.0, 0.0
  %v1844 = vsel %vm1682, 1.0, 0.0
  %v1845 = vsel %vm1683, 1.0, 0.0
  %v1846 = vsel %vm1684, 1.0, 0.0
  %v1847 = vsel %vm1685, 1.0, 0.0
  %v1848 = vsel %vm1686, 1.0, 0.0
  %v1849 = vsel %vm1687, 1.0, 0.0
  %v1850 = vsel %vm1688, 1.0, 0.0
  %v1851 = vsel %vm1689, 1.0, 0.0
  %v1852 = vsel %vm1690, 1.0, 0.0
  %v1853 = vsel %vm1691, 1.0, 0.0
  %v1854 = vsel %vm1692, 1.0, 0.0
  %v1855 = vsel %vm1693, 1.0, 0.0
  %v1856 = vsel %vm1694, 1.0, 0.0
  %v1857 = vsel %vm1695, 1.0, 0.0
  %v1858 = vsel %vm1696, 1.0, 0.0
  %v1859 = vsel %vm1697, 1.0, 0.0
  %v1860 = vsel %vm1698, 1.0, 0.0
  %v1861 = vsel %vm1699, 1.0, 0.0
  %v1862 = vsel %vm1700, 1.0, 0.0
  %v1863 = vsel %vm1701, 1.0, 0.0
  %v1864 = vsel %vm1702, 1.0, 0.0
  %v1865 = vsel %vm1703, 1.0, 0.0
  %v1866 = vsel %vm1704, 1.0, 0.0
  %v1867 = vsel %vm1705, 1.0, 0.0
  %v1868 = vsel %vm1706, 1.0, 0.0
  %v1869 = vsel %vm1707, 1.0, 0.0
  %v1870 = vsel %vm1708, 1.0, 0.0
  %v1871 = vsel %vm1709, 1.0, 0.0
  %v1872 = vsel %vm1710, 1.0, 0.0
  %v1873 = vsel %vm1711, 1.0, 0.0
  %v1874 = vsel %vm1712, 1.0, 0.0
  %v1875 = vsel %vm1713, 1.0, 0.0
  %v1876 = vsel %vm1714, 1.0, 0.0
  %v1877 = vsel %vm1715, 1.0, 0.0
  %v1878 = vsel %vm1716, 1.0, 0.0
  %v1879 = vsel %vm1717, 1.0, 0.0
  %v1880 = vsel %vm1718, 1.0, 0.0
  %v1881 = vsel %vm1719, 1.0, 0.0
  %v1882 = vsel %vm1720, 1.0, 0.0
  %v1883 = vsel %vm1721, 1.0, 0.0
  %v1884 = vsel %vm1722, 1.0, 0.0
  %v1885 = vsel %vm1723, 1.0, 0.0
  %v1886 = vsel %vm1724, 1.0, 0.0
  %v1887 = vsel %vm1725, 1.0, 0.0
  %v1888 = vsel %vm1726, 1.0, 0.0
  %v1889 = vsel %vm1727, 1.0, 0.0
  %v1890 = vsel %vm1728, 1.0, 0.0
  %v1891 = vsel %vm1729, 1.0, 0.0
  %v1892 = vsel %vm1730, 1.0, 0.0
  %v1893 = vsel %vm1731, 1.0, 0.0
  %v1894 = vsel %vm1732, 1.0, 0.0
  %v1895 = vsel %vm1733, 1.0, 0.0
  %1896 = vmatprep.subr.mxu0 %v1735
  %1897 = vmatpush1.msra.mxu0 %v1734
  %1898 = vmatprep.subr.mxu0 %v1737
  %1899 = vmatpush1.msra.mxu0 %v1736
  %1900 = vmatprep.subr.mxu0 %v1739
  %1901 = vmatpush1.msra.mxu0 %v1738
  %1902 = vmatprep.subr.mxu0 %v1741
  %1903 = vmatpush1.msra.mxu0 %v1740
  %1904 = vmatprep.subr.mxu0 %v1743
  %1905 = vmatpush1.msra.mxu0 %v1742
  %1906 = vmatprep.subr.mxu0 %v1745
  %1907 = vmatpush1.msra.mxu0 %v1744
  %1908 = vmatprep.subr.mxu0 %v1747
  %1909 = vmatpush1.msra.mxu0 %v1746
  %1910 = vmatprep.subr.mxu0 %v1749
  %1911 = vmatpush1.msra.mxu0 %v1748
  %1912 = vmatprep.subr.mxu0 %v1751
  %1913 = vmatpush1.msra.mxu0 %v1750
  %1914 = vmatprep.subr.mxu0 %v1753
  %1915 = vmatpush1.msra.mxu0 %v1752
  %1916 = vmatprep.subr.mxu0 %v1755
  %1917 = vmatpush1.msra.mxu0 %v1754
  %1918 = vmatprep.subr.mxu0 %v1757
  %1919 = vmatpush1.msra.mxu0 %v1756
  %1920 = vmatprep.subr.mxu0 %v1759
  %1921 = vmatpush1.msra.mxu0 %v1758
  %1922 = vmatprep.subr.mxu0 %v1761
  %1923 = vmatpush1.msra.mxu0 %v1760
  %1924 = vmatprep.subr.mxu0 %v1763
  %1925 = vmatpush1.msra.mxu0 %v1762
  %1926 = vmatprep.subr.mxu0 %v1765
  %1927 = vmatpush1.msra.mxu0 %v1764
  %1928 = vmatprep.subr.mxu0 %v1767
  %1929 = vmatpush1.msra.mxu0 %v1766
  %1930 = vmatprep.subr.mxu0 %v1769
  %1931 = vmatpush1.msra.mxu0 %v1768
  %1932 = vmatprep.subr.mxu0 %v1771
  %1933 = vmatpush1.msra.mxu0 %v1770
  %1934 = vmatprep.subr.mxu0 %v1773
  %1935 = vmatpush1.msra.mxu0 %v1772
  %1936 = vmatprep.subr.mxu0 %v1775
  %1937 = vmatpush1.msra.mxu0 %v1774
  %1938 = vmatprep.subr.mxu0 %v1777
  %1939 = vmatpush1.msra.mxu0 %v1776
  %1940 = vmatprep.subr.mxu0 %v1779
  %1941 = vmatpush1.msra.mxu0 %v1778
  %1942 = vmatprep.subr.mxu0 %v1781
  %1943 = vmatpush1.msra.mxu0 %v1780
  %1944 = vmatprep.subr.mxu0 %v1783
  %1945 = vmatpush1.msra.mxu0 %v1782
  %1946 = vmatprep.subr.mxu0 %v1785
  %1947 = vmatpush1.msra.mxu0 %v1784
  %1948 = vmatprep.subr.mxu0 %v1787
  %1949 = vmatpush1.msra.mxu0 %v1786
  %1950 = vmatprep.subr.mxu0 %v1789
  %1951 = vmatpush1.msra.mxu0 %v1788
  %1952 = vmatprep.subr.mxu0 %v1791
  %1953 = vmatpush1.msra.mxu0 %v1790
  %1954 = vmatprep.subr.mxu0 %v1793
  %1955 = vmatpush1.msra.mxu0 %v1792
  %1956 = vmatprep.subr.mxu0 %v1795
  %1957 = vmatpush1.msra.mxu0 %v1794
  %1958 = vmatprep.subr.mxu0 %v1797
  %1959 = vmatpush1.msra.mxu0 %v1796
  %1960 = vmatprep.mubr.f32.mxu0 %v376
  %1961 = vmatmul.mubr.f32.gmra.mrb[0].mxu0 %v375
  %v1962 = vpop.f32.mrb[0].mxu0
  %v1963 = vadd.f32 0.0, %v1962
  %v1964 = vpop.f32.mrb[0].mxu0
  %v1965 = vadd.f32 0.0, %v1964
  %1966 = vdwg.mxu0
  %1967 = vmatprep.subr.mxu0 %v1799
  %1968 = vmatpush1.msra.mxu0 %v1798
  %1969 = vmatprep.subr.mxu0 %v1801
  %1970 = vmatpush1.msra.mxu0 %v1800
  %1971 = vmatprep.subr.mxu0 %v1803
  %1972 = vmatpush1.msra.mxu0 %v1802
  %1973 = vmatprep.subr.mxu0 %v1805
  %1974 = vmatpush1.msra.mxu0 %v1804
  %1975 = vmatprep.subr.mxu0 %v1807
  %1976 = vmatpush1.msra.mxu0 %v1806
  %1977 = vmatprep.subr.mxu0 %v1809
  %1978 = vmatpush1.msra.mxu0 %v1808
  %1979 = vmatprep.subr.mxu0 %v1811
  %1980 = vmatpush1.msra.mxu0 %v1810
  %1981 = vmatprep.subr.mxu0 %v1813
  %1982 = vmatpush1.msra.mxu0 %v1812
  %1983 = vmatprep.subr.mxu0 %v1815
  %1984 = vmatpush1.msra.mxu0 %v1814
  %1985 = vmatprep.subr.mxu0 %v1817
  %1986 = vmatpush1.msra.mxu0 %v1816
  %1987 = vmatprep.subr.mxu0 %v1819
  %1988 = vmatpush1.msra.mxu0 %v1818
  %1989 = vmatprep.subr.mxu0 %v1821
  %1990 = vmatpush1.msra.mxu0 %v1820
  %1991 = vmatprep.subr.mxu0 %v1823
  %1992 = vmatpush1.msra.mxu0 %v1822
  %1993 = vmatprep.subr.mxu0 %v1825
  %1994 = vmatpush1.msra.mxu0 %v1824
  %1995 = vmatprep.subr.mxu0 %v1827
  %1996 = vmatpush1.msra.mxu0 %v1826
  %1997 = vmatprep.subr.mxu0 %v1829
  %1998 = vmatpush1.msra.mxu0 %v1828
  %1999 = vmatprep.subr.mxu0 %v1831
  %2000 = vmatpush1.msra.mxu0 %v1830
  %2001 = vmatprep.subr.mxu0 %v1833
  %2002 = vmatpush1.msra.mxu0 %v1832
  %2003 = vmatprep.subr.mxu0 %v1835
  %2004 = vmatpush1.msra.mxu0 %v1834
  %2005 = vmatprep.subr.mxu0 %v1837
  %2006 = vmatpush1.msra.mxu0 %v1836
  %2007 = vmatprep.subr.mxu0 %v1839
  %2008 = vmatpush1.msra.mxu0 %v1838
  %2009 = vmatprep.subr.mxu0 %v1841
  %2010 = vmatpush1.msra.mxu0 %v1840
  %2011 = vmatprep.subr.mxu0 %v1843
  %2012 = vmatpush1.msra.mxu0 %v1842
  %2013 = vmatprep.subr.mxu0 %v1845
  %2014 = vmatpush1.msra.mxu0 %v1844
  %2015 = vmatprep.subr.mxu0 %v1847
  %2016 = vmatpush1.msra.mxu0 %v1846
  %2017 = vmatprep.subr.mxu0 %v1849
  %2018 = vmatpush1.msra.mxu0 %v1848
  %2019 = vmatprep.subr.mxu0 %v1851
  %2020 = vmatpush1.msra.mxu0 %v1850
  %2021 = vmatprep.subr.mxu0 %v1853
  %2022 = vmatpush1.msra.mxu0 %v1852
  %2023 = vmatprep.subr.mxu0 %v1855
  %2024 = vmatpush1.msra.mxu0 %v1854
  %2025 = vmatprep.subr.mxu0 %v1857
  %2026 = vmatpush1.msra.mxu0 %v1856
  %2027 = vmatprep.subr.mxu0 %v1859
  %2028 = vmatpush1.msra.mxu0 %v1858
  %2029 = vmatprep.subr.mxu0 %v1861
  %2030 = vmatpush1.msra.mxu0 %v1860
  %2031 = vmatprep.mubr.f32.mxu0 %v378
  %2032 = vmatmul.mubr.f32.gmra.mrb[0].mxu0 %v377
  %v2033 = vpop.f32.mrb[0].mxu0
  %v2034 = vadd.f32 %v1963, %v2033
  %v2035 = vpop.f32.mrb[0].mxu0
  %v2036 = vadd.f32 %v1965, %v2035
  %2037 = vdwg.mxu0
  %2038 = vmatprep.subr.mxu0 %v1863
  %2039 = vmatpush1.msra.mxu0 %v1862
  %2040 = vmatprep.subr.mxu0 %v1865
  %2041 = vmatpush1.msra.mxu0 %v1864
  %2042 = vmatprep.subr.mxu0 %v1867
  %2043 = vmatpush1.msra.mxu0 %v1866
  %2044 = vmatprep.subr.mxu0 %v1869
  %2045 = vmatpush1.msra.mxu0 %v1868
  %2046 = vmatprep.subr.mxu0 %v1871
  %2047 = vmatpush1.msra.mxu0 %v1870
  %2048 = vmatprep.subr.mxu0 %v1873
  %2049 = vmatpush1.msra.mxu0 %v1872
  %2050 = vmatprep.subr.mxu0 %v1875
  %2051 = vmatpush1.msra.mxu0 %v1874
  %2052 = vmatprep.subr.mxu0 %v1877
  %2053 = vmatpush1.msra.mxu0 %v1876
  %2054 = vmatprep.subr.mxu0 %v1879
  %2055 = vmatpush1.msra.mxu0 %v1878
  %2056 = vmatprep.subr.mxu0 %v1881
  %2057 = vmatpush1.msra.mxu0 %v1880
  %2058 = vmatprep.subr.mxu0 %v1883
  %2059 = vmatpush1.msra.mxu0 %v1882
  %2060 = vmatprep.subr.mxu0 %v1885
  %2061 = vmatpush1.msra.mxu0 %v1884
  %2062 = vmatprep.subr.mxu0 %v1887
  %2063 = vmatpush1.msra.mxu0 %v1886
  %2064 = vmatprep.subr.mxu0 %v1889
  %2065 = vmatpush1.msra.mxu0 %v1888
  %2066 = vmatprep.subr.mxu0 %v1891
  %2067 = vmatpush1.msra.mxu0 %v1890
  %2068 = vmatprep.subr.mxu0 %v1893
  %2069 = vmatpush1.msra.mxu0 %v1892
  %2070 = vmatprep.subr.mxu0 %v1895
  %2071 = vmatpush1.msra.mxu0 %v1894
  %2072 = vmatprep.subr.mxu0 0.0
  %2073 = vmatpush1.msra.mxu0 0.0
  %2074 = vmatprep.subr.mxu0 0.0
  %2075 = vmatpush1.msra.mxu0 0.0
  %2076 = vmatprep.subr.mxu0 0.0
  %2077 = vmatpush1.msra.mxu0 0.0
  %2078 = vmatprep.subr.mxu0 0.0
  %2079 = vmatpush1.msra.mxu0 0.0
  %2080 = vmatprep.subr.mxu0 0.0
  %2081 = vmatpush1.msra.mxu0 0.0
  %2082 = vmatprep.subr.mxu0 0.0
  %2083 = vmatpush1.msra.mxu0 0.0
  %2084 = vmatprep.subr.mxu0 0.0
  %2085 = vmatpush1.msra.mxu0 0.0
  %2086 = vmatprep.subr.mxu0 0.0
  %2087 = vmatpush1.msra.mxu0 0.0
  %2088 = vmatprep.subr.mxu0 0.0
  %2089 = vmatpush1.msra.mxu0 0.0
  %2090 = vmatprep.subr.mxu0 0.0
  %2091 = vmatpush1.msra.mxu0 0.0
  %2092 = vmatprep.subr.mxu0 0.0
  %2093 = vmatpush1.msra.mxu0 0.0
  %2094 = vmatprep.subr.mxu0 0.0
  %2095 = vmatpush1.msra.mxu0 0.0
  %2096 = vmatprep.subr.mxu0 0.0
  %2097 = vmatpush1.msra.mxu0 0.0
  %2098 = vmatprep.subr.mxu0 0.0
  %2099 = vmatpush1.msra.mxu0 0.0
  %2100 = vmatprep.subr.mxu0 0.0
  %2101 = vmatpush1.msra.mxu0 0.0
  %2102 = vmatprep.mubr.f32.mxu0 %v798
  %2103 = vmatmul.mubr.f32.gmra.mrb[0].mxu0 %v379
  %v2104 = vpop.f32.mrb[0].mxu0
  %v2105 = vadd.f32 %v2034, %v2104
  %v2106 = vpop.f32.mrb[0].mxu0
  %v2107 = vadd.f32 %v2036, %v2106
  %2108 = vdwg.mxu0
  %v2109 = vmax.f32 %v1560, %v2105
  %v2110 = vmax.f32 %v1561, %v2107
  %s2111 = scalar_lea.vmem %s3, 3
  %v2112 = vld [vmem:[%s2111] ss:$4 sm:$0x3]
  %v2113 = vlaneseq
  %v2114 = vshrl.u32 %v2113, 7
  %v2115 = vsub.s32 0, %v2114
  %v2116 = vrot.slane %v2112, %v2115
  %v2117 = vlaneseq
  %v2118 = vshrl.u32 %v2117, 7
  %v2119 = vsub.s32 1, %v2118
  %v2120 = vrot.slane %v2112, %v2119
  %vm2121 = vcmp.eq.s32.totalorder %v382, %v2116
  %vm2122 = vcmp.eq.s32.totalorder %v382, %v2120
  %vm2123 = vcmp.eq.s32.totalorder %v383, %v2116
  %vm2124 = vcmp.eq.s32.totalorder %v383, %v2120
  %vm2125 = vcmp.eq.s32.totalorder %v384, %v2116
  %vm2126 = vcmp.eq.s32.totalorder %v384, %v2120
  %vm2127 = vcmp.eq.s32.totalorder %v385, %v2116
  %vm2128 = vcmp.eq.s32.totalorder %v385, %v2120
  %vm2129 = vcmp.eq.s32.totalorder %v386, %v2116
  %vm2130 = vcmp.eq.s32.totalorder %v386, %v2120
  %vm2131 = vcmp.eq.s32.totalorder %v387, %v2116
  %vm2132 = vcmp.eq.s32.totalorder %v387, %v2120
  %vm2133 = vcmp.eq.s32.totalorder %v388, %v2116
  %vm2134 = vcmp.eq.s32.totalorder %v388, %v2120
  %vm2135 = vcmp.eq.s32.totalorder %v389, %v2116
  %vm2136 = vcmp.eq.s32.totalorder %v389, %v2120
  %vm2137 = vcmp.eq.s32.totalorder %v390, %v2116
  %vm2138 = vcmp.eq.s32.totalorder %v390, %v2120
  %vm2139 = vcmp.eq.s32.totalorder %v391, %v2116
  %vm2140 = vcmp.eq.s32.totalorder %v391, %v2120
  %vm2141 = vcmp.eq.s32.totalorder %v392, %v2116
  %vm2142 = vcmp.eq.s32.totalorder %v392, %v2120
  %vm2143 = vcmp.eq.s32.totalorder %v393, %v2116
  %vm2144 = vcmp.eq.s32.totalorder %v393, %v2120
  %vm2145 = vcmp.eq.s32.totalorder %v394, %v2116
  %vm2146 = vcmp.eq.s32.totalorder %v394, %v2120
  %vm2147 = vcmp.eq.s32.totalorder %v395, %v2116
  %vm2148 = vcmp.eq.s32.totalorder %v395, %v2120
  %vm2149 = vcmp.eq.s32.totalorder %v396, %v2116
  %vm2150 = vcmp.eq.s32.totalorder %v396, %v2120
  %vm2151 = vcmp.eq.s32.totalorder %v397, %v2116
  %vm2152 = vcmp.eq.s32.totalorder %v397, %v2120
  %vm2153 = vcmp.eq.s32.totalorder %v398, %v2116
  %vm2154 = vcmp.eq.s32.totalorder %v398, %v2120
  %vm2155 = vcmp.eq.s32.totalorder %v399, %v2116
  %vm2156 = vcmp.eq.s32.totalorder %v399, %v2120
  %vm2157 = vcmp.eq.s32.totalorder %v400, %v2116
  %vm2158 = vcmp.eq.s32.totalorder %v400, %v2120
  %vm2159 = vcmp.eq.s32.totalorder %v401, %v2116
  %vm2160 = vcmp.eq.s32.totalorder %v401, %v2120
  %vm2161 = vcmp.eq.s32.totalorder %v402, %v2116
  %vm2162 = vcmp.eq.s32.totalorder %v402, %v2120
  %vm2163 = vcmp.eq.s32.totalorder %v403, %v2116
  %vm2164 = vcmp.eq.s32.totalorder %v403, %v2120
  %vm2165 = vcmp.eq.s32.totalorder %v404, %v2116
  %vm2166 = vcmp.eq.s32.totalorder %v404, %v2120
  %vm2167 = vcmp.eq.s32.totalorder %v405, %v2116
  %vm2168 = vcmp.eq.s32.totalorder %v405, %v2120
  %vm2169 = vcmp.eq.s32.totalorder %v406, %v2116
  %vm2170 = vcmp.eq.s32.totalorder %v406, %v2120
  %vm2171 = vcmp.eq.s32.totalorder %v407, %v2116
  %vm2172 = vcmp.eq.s32.totalorder %v407, %v2120
  %vm2173 = vcmp.eq.s32.totalorder %v408, %v2116
  %vm2174 = vcmp.eq.s32.totalorder %v408, %v2120
  %vm2175 = vcmp.eq.s32.totalorder %v409, %v2116
  %vm2176 = vcmp.eq.s32.totalorder %v409, %v2120
  %vm2177 = vcmp.eq.s32.totalorder %v410, %v2116
  %vm2178 = vcmp.eq.s32.totalorder %v410, %v2120
  %vm2179 = vcmp.eq.s32.totalorder %v411, %v2116
  %vm2180 = vcmp.eq.s32.totalorder %v411, %v2120
  %vm2181 = vcmp.eq.s32.totalorder %v412, %v2116
  %vm2182 = vcmp.eq.s32.totalorder %v412, %v2120
  %vm2183 = vcmp.eq.s32.totalorder %v413, %v2116
  %vm2184 = vcmp.eq.s32.totalorder %v413, %v2120
  %vm2185 = vcmp.eq.s32.totalorder %v414, %v2116
  %vm2186 = vcmp.eq.s32.totalorder %v414, %v2120
  %vm2187 = vcmp.eq.s32.totalorder %v415, %v2116
  %vm2188 = vcmp.eq.s32.totalorder %v415, %v2120
  %vm2189 = vcmp.eq.s32.totalorder %v416, %v2116
  %vm2190 = vcmp.eq.s32.totalorder %v416, %v2120
  %vm2191 = vcmp.eq.s32.totalorder %v417, %v2116
  %vm2192 = vcmp.eq.s32.totalorder %v417, %v2120
  %vm2193 = vcmp.eq.s32.totalorder %v418, %v2116
  %vm2194 = vcmp.eq.s32.totalorder %v418, %v2120
  %vm2195 = vcmp.eq.s32.totalorder %v419, %v2116
  %vm2196 = vcmp.eq.s32.totalorder %v419, %v2120
  %vm2197 = vcmp.eq.s32.totalorder %v420, %v2116
  %vm2198 = vcmp.eq.s32.totalorder %v420, %v2120
  %vm2199 = vcmp.eq.s32.totalorder %v421, %v2116
  %vm2200 = vcmp.eq.s32.totalorder %v421, %v2120
  %vm2201 = vcmp.eq.s32.totalorder %v422, %v2116
  %vm2202 = vcmp.eq.s32.totalorder %v422, %v2120
  %vm2203 = vcmp.eq.s32.totalorder %v423, %v2116
  %vm2204 = vcmp.eq.s32.totalorder %v423, %v2120
  %vm2205 = vcmp.eq.s32.totalorder %v424, %v2116
  %vm2206 = vcmp.eq.s32.totalorder %v424, %v2120
  %vm2207 = vcmp.eq.s32.totalorder %v425, %v2116
  %vm2208 = vcmp.eq.s32.totalorder %v425, %v2120
  %vm2209 = vcmp.eq.s32.totalorder %v426, %v2116
  %vm2210 = vcmp.eq.s32.totalorder %v426, %v2120
  %vm2211 = vcmp.eq.s32.totalorder %v427, %v2116
  %vm2212 = vcmp.eq.s32.totalorder %v427, %v2120
  %vm2213 = vcmp.eq.s32.totalorder %v428, %v2116
  %vm2214 = vcmp.eq.s32.totalorder %v428, %v2120
  %vm2215 = vcmp.eq.s32.totalorder %v429, %v2116
  %vm2216 = vcmp.eq.s32.totalorder %v429, %v2120
  %vm2217 = vcmp.eq.s32.totalorder %v430, %v2116
  %vm2218 = vcmp.eq.s32.totalorder %v430, %v2120
  %vm2219 = vcmp.eq.s32.totalorder %v431, %v2116
  %vm2220 = vcmp.eq.s32.totalorder %v431, %v2120
  %vm2221 = vcmp.eq.s32.totalorder %v432, %v2116
  %vm2222 = vcmp.eq.s32.totalorder %v432, %v2120
  %vm2223 = vcmp.eq.s32.totalorder %v433, %v2116
  %vm2224 = vcmp.eq.s32.totalorder %v433, %v2120
  %vm2225 = vcmp.eq.s32.totalorder %v434, %v2116
  %vm2226 = vcmp.eq.s32.totalorder %v434, %v2120
  %vm2227 = vcmp.eq.s32.totalorder %v435, %v2116
  %vm2228 = vcmp.eq.s32.totalorder %v435, %v2120
  %vm2229 = vcmp.eq.s32.totalorder %v436, %v2116
  %vm2230 = vcmp.eq.s32.totalorder %v436, %v2120
  %vm2231 = vcmp.eq.s32.totalorder %v437, %v2116
  %vm2232 = vcmp.eq.s32.totalorder %v437, %v2120
  %vm2233 = vcmp.eq.s32.totalorder %v438, %v2116
  %vm2234 = vcmp.eq.s32.totalorder %v438, %v2120
  %vm2235 = vcmp.eq.s32.totalorder %v439, %v2116
  %vm2236 = vcmp.eq.s32.totalorder %v439, %v2120
  %vm2237 = vcmp.eq.s32.totalorder %v440, %v2116
  %vm2238 = vcmp.eq.s32.totalorder %v440, %v2120
  %vm2239 = vcmp.eq.s32.totalorder %v441, %v2116
  %vm2240 = vcmp.eq.s32.totalorder %v441, %v2120
  %vm2241 = vcmp.eq.s32.totalorder %v442, %v2116
  %vm2242 = vcmp.eq.s32.totalorder %v442, %v2120
  %vm2243 = vcmp.eq.s32.totalorder %v443, %v2116
  %vm2244 = vcmp.eq.s32.totalorder %v443, %v2120
  %vm2245 = vcmp.eq.s32.totalorder %v444, %v2116
  %vm2246 = vcmp.eq.s32.totalorder %v444, %v2120
  %vm2247 = vcmp.eq.s32.totalorder %v445, %v2116
  %vm2248 = vcmp.eq.s32.totalorder %v445, %v2120
  %vm2249 = vcmp.eq.s32.totalorder %v446, %v2116
  %vm2250 = vcmp.eq.s32.totalorder %v446, %v2120
  %vm2251 = vcmp.eq.s32.totalorder %v447, %v2116
  %vm2252 = vcmp.eq.s32.totalorder %v447, %v2120
  %vm2253 = vcmp.eq.s32.totalorder %v448, %v2116
  %vm2254 = vcmp.eq.s32.totalorder %v448, %v2120
  %vm2255 = vcmp.eq.s32.totalorder %v449, %v2116
  %vm2256 = vcmp.eq.s32.totalorder %v449, %v2120
  %vm2257 = vcmp.eq.s32.totalorder %v450, %v2116
  %vm2258 = vcmp.eq.s32.totalorder %v450, %v2120
  %vm2259 = vcmp.eq.s32.totalorder %v451, %v2116
  %vm2260 = vcmp.eq.s32.totalorder %v451, %v2120
  %vm2261 = vcmp.eq.s32.totalorder %v452, %v2116
  %vm2262 = vcmp.eq.s32.totalorder %v452, %v2120
  %vm2263 = vcmp.eq.s32.totalorder %v453, %v2116
  %vm2264 = vcmp.eq.s32.totalorder %v453, %v2120
  %vm2265 = vcmp.eq.s32.totalorder %v454, %v2116
  %vm2266 = vcmp.eq.s32.totalorder %v454, %v2120
  %vm2267 = vcmp.eq.s32.totalorder %v455, %v2116
  %vm2268 = vcmp.eq.s32.totalorder %v455, %v2120
  %vm2269 = vcmp.eq.s32.totalorder %v456, %v2116
  %vm2270 = vcmp.eq.s32.totalorder %v456, %v2120
  %vm2271 = vcmp.eq.s32.totalorder %v457, %v2116
  %vm2272 = vcmp.eq.s32.totalorder %v457, %v2120
  %vm2273 = vcmp.eq.s32.totalorder %v458, %v2116
  %vm2274 = vcmp.eq.s32.totalorder %v458, %v2120
  %vm2275 = vcmp.eq.s32.totalorder %v459, %v2116
  %vm2276 = vcmp.eq.s32.totalorder %v459, %v2120
  %vm2277 = vcmp.eq.s32.totalorder %v460, %v2116
  %vm2278 = vcmp.eq.s32.totalorder %v460, %v2120
  %vm2279 = vcmp.eq.s32.totalorder %v461, %v2116
  %vm2280 = vcmp.eq.s32.totalorder %v461, %v2120
  %vm2281 = vcmp.eq.s32.totalorder %v462, %v2116
  %vm2282 = vcmp.eq.s32.totalorder %v462, %v2120
  %v2283 = vsel %vm2121, 1.0, 0.0
  %v2284 = vsel %vm2122, 1.0, 0.0
  %v2285 = vsel %vm2123, 1.0, 0.0
  %v2286 = vsel %vm2124, 1.0, 0.0
  %v2287 = vsel %vm2125, 1.0, 0.0
  %v2288 = vsel %vm2126, 1.0, 0.0
  %v2289 = vsel %vm2127, 1.0, 0.0
  %v2290 = vsel %vm2128, 1.0, 0.0
  %v2291 = vsel %vm2129, 1.0, 0.0
  %v2292 = vsel %vm2130, 1.0, 0.0
  %v2293 = vsel %vm2131, 1.0, 0.0
  %v2294 = vsel %vm2132, 1.0, 0.0
  %v2295 = vsel %vm2133, 1.0, 0.0
  %v2296 = vsel %vm2134, 1.0, 0.0
  %v2297 = vsel %vm2135, 1.0, 0.0
  %v2298 = vsel %vm2136, 1.0, 0.0
  %v2299 = vsel %vm2137, 1.0, 0.0
  %v2300 = vsel %vm2138, 1.0, 0.0
  %v2301 = vsel %vm2139, 1.0, 0.0
  %v2302 = vsel %vm2140, 1.0, 0.0
  %v2303 = vsel %vm2141, 1.0, 0.0
  %v2304 = vsel %vm2142, 1.0, 0.0
  %v2305 = vsel %vm2143, 1.0, 0.0
  %v2306 = vsel %vm2144, 1.0, 0.0
  %v2307 = vsel %vm2145, 1.0, 0.0
  %v2308 = vsel %vm2146, 1.0, 0.0
  %v2309 = vsel %vm2147, 1.0, 0.0
  %v2310 = vsel %vm2148, 1.0, 0.0
  %v2311 = vsel %vm2149, 1.0, 0.0
  %v2312 = vsel %vm2150, 1.0, 0.0
  %v2313 = vsel %vm2151, 1.0, 0.0
  %v2314 = vsel %vm2152, 1.0, 0.0
  %v2315 = vsel %vm2153, 1.0, 0.0
  %v2316 = vsel %vm2154, 1.0, 0.0
  %v2317 = vsel %vm2155, 1.0, 0.0
  %v2318 = vsel %vm2156, 1.0, 0.0
  %v2319 = vsel %vm2157, 1.0, 0.0
  %v2320 = vsel %vm2158, 1.0, 0.0
  %v2321 = vsel %vm2159, 1.0, 0.0
  %v2322 = vsel %vm2160, 1.0, 0.0
  %v2323 = vsel %vm2161, 1.0, 0.0
  %v2324 = vsel %vm2162, 1.0, 0.0
  %v2325 = vsel %vm2163, 1.0, 0.0
  %v2326 = vsel %vm2164, 1.0, 0.0
  %v2327 = vsel %vm2165, 1.0, 0.0
  %v2328 = vsel %vm2166, 1.0, 0.0
  %v2329 = vsel %vm2167, 1.0, 0.0
  %v2330 = vsel %vm2168, 1.0, 0.0
  %v2331 = vsel %vm2169, 1.0, 0.0
  %v2332 = vsel %vm2170, 1.0, 0.0
  %v2333 = vsel %vm2171, 1.0, 0.0
  %v2334 = vsel %vm2172, 1.0, 0.0
  %v2335 = vsel %vm2173, 1.0, 0.0
  %v2336 = vsel %vm2174, 1.0, 0.0
  %v2337 = vsel %vm2175, 1.0, 0.0
  %v2338 = vsel %vm2176, 1.0, 0.0
  %v2339 = vsel %vm2177, 1.0, 0.0
  %v2340 = vsel %vm2178, 1.0, 0.0
  %v2341 = vsel %vm2179, 1.0, 0.0
  %v2342 = vsel %vm2180, 1.0, 0.0
  %v2343 = vsel %vm2181, 1.0, 0.0
  %v2344 = vsel %vm2182, 1.0, 0.0
  %v2345 = vsel %vm2183, 1.0, 0.0
  %v2346 = vsel %vm2184, 1.0, 0.0
  %v2347 = vsel %vm2185, 1.0, 0.0
  %v2348 = vsel %vm2186, 1.0, 0.0
  %v2349 = vsel %vm2187, 1.0, 0.0
  %v2350 = vsel %vm2188, 1.0, 0.0
  %v2351 = vsel %vm2189, 1.0, 0.0
  %v2352 = vsel %vm2190, 1.0, 0.0
  %v2353 = vsel %vm2191, 1.0, 0.0
  %v2354 = vsel %vm2192, 1.0, 0.0
  %v2355 = vsel %vm2193, 1.0, 0.0
  %v2356 = vsel %vm2194, 1.0, 0.0
  %v2357 = vsel %vm2195, 1.0, 0.0
  %v2358 = vsel %vm2196, 1.0, 0.0
  %v2359 = vsel %vm2197, 1.0, 0.0
  %v2360 = vsel %vm2198, 1.0, 0.0
  %v2361 = vsel %vm2199, 1.0, 0.0
  %v2362 = vsel %vm2200, 1.0, 0.0
  %v2363 = vsel %vm2201, 1.0, 0.0
  %v2364 = vsel %vm2202, 1.0, 0.0
  %v2365 = vsel %vm2203, 1.0, 0.0
  %v2366 = vsel %vm2204, 1.0, 0.0
  %v2367 = vsel %vm2205, 1.0, 0.0
  %v2368 = vsel %vm2206, 1.0, 0.0
  %v2369 = vsel %vm2207, 1.0, 0.0
  %v2370 = vsel %vm2208, 1.0, 0.0
  %v2371 = vsel %vm2209, 1.0, 0.0
  %v2372 = vsel %vm2210, 1.0, 0.0
  %v2373 = vsel %vm2211, 1.0, 0.0
  %v2374 = vsel %vm2212, 1.0, 0.0
  %v2375 = vsel %vm2213, 1.0, 0.0
  %v2376 = vsel %vm2214, 1.0, 0.0
  %v2377 = vsel %vm2215, 1.0, 0.0
  %v2378 = vsel %vm2216, 1.0, 0.0
  %v2379 = vsel %vm2217, 1.0, 0.0
  %v2380 = vsel %vm2218, 1.0, 0.0
  %v2381 = vsel %vm2219, 1.0, 0.0
  %v2382 = vsel %vm2220, 1.0, 0.0
  %v2383 = vsel %vm2221, 1.0, 0.0
  %v2384 = vsel %vm2222, 1.0, 0.0
  %v2385 = vsel %vm2223, 1.0, 0.0
  %v2386 = vsel %vm2224, 1.0, 0.0
  %v2387 = vsel %vm2225, 1.0, 0.0
  %v2388 = vsel %vm2226, 1.0, 0.0
  %v2389 = vsel %vm2227, 1.0, 0.0
  %v2390 = vsel %vm2228, 1.0, 0.0
  %v2391 = vsel %vm2229, 1.0, 0.0
  %v2392 = vsel %vm2230, 1.0, 0.0
  %v2393 = vsel %vm2231, 1.0, 0.0
  %v2394 = vsel %vm2232, 1.0, 0.0
  %v2395 = vsel %vm2233, 1.0, 0.0
  %v2396 = vsel %vm2234, 1.0, 0.0
  %v2397 = vsel %vm2235, 1.0, 0.0
  %v2398 = vsel %vm2236, 1.0, 0.0
  %v2399 = vsel %vm2237, 1.0, 0.0
  %v2400 = vsel %vm2238, 1.0, 0.0
  %v2401 = vsel %vm2239, 1.0, 0.0
  %v2402 = vsel %vm2240, 1.0, 0.0
  %v2403 = vsel %vm2241, 1.0, 0.0
  %v2404 = vsel %vm2242, 1.0, 0.0
  %v2405 = vsel %vm2243, 1.0, 0.0
  %v2406 = vsel %vm2244, 1.0, 0.0
  %v2407 = vsel %vm2245, 1.0, 0.0
  %v2408 = vsel %vm2246, 1.0, 0.0
  %v2409 = vsel %vm2247, 1.0, 0.0
  %v2410 = vsel %vm2248, 1.0, 0.0
  %v2411 = vsel %vm2249, 1.0, 0.0
  %v2412 = vsel %vm2250, 1.0, 0.0
  %v2413 = vsel %vm2251, 1.0, 0.0
  %v2414 = vsel %vm2252, 1.0, 0.0
  %v2415 = vsel %vm2253, 1.0, 0.0
  %v2416 = vsel %vm2254, 1.0, 0.0
  %v2417 = vsel %vm2255, 1.0, 0.0
  %v2418 = vsel %vm2256, 1.0, 0.0
  %v2419 = vsel %vm2257, 1.0, 0.0
  %v2420 = vsel %vm2258, 1.0, 0.0
  %v2421 = vsel %vm2259, 1.0, 0.0
  %v2422 = vsel %vm2260, 1.0, 0.0
  %v2423 = vsel %vm2261, 1.0, 0.0
  %v2424 = vsel %vm2262, 1.0, 0.0
  %v2425 = vsel %vm2263, 1.0, 0.0
  %v2426 = vsel %vm2264, 1.0, 0.0
  %v2427 = vsel %vm2265, 1.0, 0.0
  %v2428 = vsel %vm2266, 1.0, 0.0
  %v2429 = vsel %vm2267, 1.0, 0.0
  %v2430 = vsel %vm2268, 1.0, 0.0
  %v2431 = vsel %vm2269, 1.0, 0.0
  %v2432 = vsel %vm2270, 1.0, 0.0
  %v2433 = vsel %vm2271, 1.0, 0.0
  %v2434 = vsel %vm2272, 1.0, 0.0
  %v2435 = vsel %vm2273, 1.0, 0.0
  %v2436 = vsel %vm2274, 1.0, 0.0
  %v2437 = vsel %vm2275, 1.0, 0.0
  %v2438 = vsel %vm2276, 1.0, 0.0
  %v2439 = vsel %vm2277, 1.0, 0.0
  %v2440 = vsel %vm2278, 1.0, 0.0
  %v2441 = vsel %vm2279, 1.0, 0.0
  %v2442 = vsel %vm2280, 1.0, 0.0
  %v2443 = vsel %vm2281, 1.0, 0.0
  %v2444 = vsel %vm2282, 1.0, 0.0
  %2445 = vmatprep.subr.mxu0 %v2284
  %2446 = vmatpush1.msra.mxu0 %v2283
  %2447 = vmatprep.subr.mxu0 %v2286
  %2448 = vmatpush1.msra.mxu0 %v2285
  %2449 = vmatprep.subr.mxu0 %v2288
  %2450 = vmatpush1.msra.mxu0 %v2287
  %2451 = vmatprep.subr.mxu0 %v2290
  %2452 = vmatpush1.msra.mxu0 %v2289
  %2453 = vmatprep.subr.mxu0 %v2292
  %2454 = vmatpush1.msra.mxu0 %v2291
  %2455 = vmatprep.subr.mxu0 %v2294
  %2456 = vmatpush1.msra.mxu0 %v2293
  %2457 = vmatprep.subr.mxu0 %v2296
  %2458 = vmatpush1.msra.mxu0 %v2295
  %2459 = vmatprep.subr.mxu0 %v2298
  %2460 = vmatpush1.msra.mxu0 %v2297
  %2461 = vmatprep.subr.mxu0 %v2300
  %2462 = vmatpush1.msra.mxu0 %v2299
  %2463 = vmatprep.subr.mxu0 %v2302
  %2464 = vmatpush1.msra.mxu0 %v2301
  %2465 = vmatprep.subr.mxu0 %v2304
  %2466 = vmatpush1.msra.mxu0 %v2303
  %2467 = vmatprep.subr.mxu0 %v2306
  %2468 = vmatpush1.msra.mxu0 %v2305
  %2469 = vmatprep.subr.mxu0 %v2308
  %2470 = vmatpush1.msra.mxu0 %v2307
  %2471 = vmatprep.subr.mxu0 %v2310
  %2472 = vmatpush1.msra.mxu0 %v2309
  %2473 = vmatprep.subr.mxu0 %v2312
  %2474 = vmatpush1.msra.mxu0 %v2311
  %2475 = vmatprep.subr.mxu0 %v2314
  %2476 = vmatpush1.msra.mxu0 %v2313
  %2477 = vmatprep.subr.mxu0 %v2316
  %2478 = vmatpush1.msra.mxu0 %v2315
  %2479 = vmatprep.subr.mxu0 %v2318
  %2480 = vmatpush1.msra.mxu0 %v2317
  %2481 = vmatprep.subr.mxu0 %v2320
  %2482 = vmatpush1.msra.mxu0 %v2319
  %2483 = vmatprep.subr.mxu0 %v2322
  %2484 = vmatpush1.msra.mxu0 %v2321
  %2485 = vmatprep.subr.mxu0 %v2324
  %2486 = vmatpush1.msra.mxu0 %v2323
  %2487 = vmatprep.subr.mxu0 %v2326
  %2488 = vmatpush1.msra.mxu0 %v2325
  %2489 = vmatprep.subr.mxu0 %v2328
  %2490 = vmatpush1.msra.mxu0 %v2327
  %2491 = vmatprep.subr.mxu0 %v2330
  %2492 = vmatpush1.msra.mxu0 %v2329
  %2493 = vmatprep.subr.mxu0 %v2332
  %2494 = vmatpush1.msra.mxu0 %v2331
  %2495 = vmatprep.subr.mxu0 %v2334
  %2496 = vmatpush1.msra.mxu0 %v2333
  %2497 = vmatprep.subr.mxu0 %v2336
  %2498 = vmatpush1.msra.mxu0 %v2335
  %2499 = vmatprep.subr.mxu0 %v2338
  %2500 = vmatpush1.msra.mxu0 %v2337
  %2501 = vmatprep.subr.mxu0 %v2340
  %2502 = vmatpush1.msra.mxu0 %v2339
  %2503 = vmatprep.subr.mxu0 %v2342
  %2504 = vmatpush1.msra.mxu0 %v2341
  %2505 = vmatprep.subr.mxu0 %v2344
  %2506 = vmatpush1.msra.mxu0 %v2343
  %2507 = vmatprep.subr.mxu0 %v2346
  %2508 = vmatpush1.msra.mxu0 %v2345
  %2509 = vmatprep.mubr.f32.mxu0 %v376
  %2510 = vmatmul.mubr.f32.gmra.mrb[0].mxu0 %v375
  %v2511 = vpop.f32.mrb[0].mxu0
  %v2512 = vadd.f32 0.0, %v2511
  %v2513 = vpop.f32.mrb[0].mxu0
  %v2514 = vadd.f32 0.0, %v2513
  %2515 = vdwg.mxu0
  %2516 = vmatprep.subr.mxu0 %v2348
  %2517 = vmatpush1.msra.mxu0 %v2347
  %2518 = vmatprep.subr.mxu0 %v2350
  %2519 = vmatpush1.msra.mxu0 %v2349
  %2520 = vmatprep.subr.mxu0 %v2352
  %2521 = vmatpush1.msra.mxu0 %v2351
  %2522 = vmatprep.subr.mxu0 %v2354
  %2523 = vmatpush1.msra.mxu0 %v2353
  %2524 = vmatprep.subr.mxu0 %v2356
  %2525 = vmatpush1.msra.mxu0 %v2355
  %2526 = vmatprep.subr.mxu0 %v2358
  %2527 = vmatpush1.msra.mxu0 %v2357
  %2528 = vmatprep.subr.mxu0 %v2360
  %2529 = vmatpush1.msra.mxu0 %v2359
  %2530 = vmatprep.subr.mxu0 %v2362
  %2531 = vmatpush1.msra.mxu0 %v2361
  %2532 = vmatprep.subr.mxu0 %v2364
  %2533 = vmatpush1.msra.mxu0 %v2363
  %2534 = vmatprep.subr.mxu0 %v2366
  %2535 = vmatpush1.msra.mxu0 %v2365
  %2536 = vmatprep.subr.mxu0 %v2368
  %2537 = vmatpush1.msra.mxu0 %v2367
  %2538 = vmatprep.subr.mxu0 %v2370
  %2539 = vmatpush1.msra.mxu0 %v2369
  %2540 = vmatprep.subr.mxu0 %v2372
  %2541 = vmatpush1.msra.mxu0 %v2371
  %2542 = vmatprep.subr.mxu0 %v2374
  %2543 = vmatpush1.msra.mxu0 %v2373
  %2544 = vmatprep.subr.mxu0 %v2376
  %2545 = vmatpush1.msra.mxu0 %v2375
  %2546 = vmatprep.subr.mxu0 %v2378
  %2547 = vmatpush1.msra.mxu0 %v2377
  %2548 = vmatprep.subr.mxu0 %v2380
  %2549 = vmatpush1.msra.mxu0 %v2379
  %2550 = vmatprep.subr.mxu0 %v2382
  %2551 = vmatpush1.msra.mxu0 %v2381
  %2552 = vmatprep.subr.mxu0 %v2384
  %2553 = vmatpush1.msra.mxu0 %v2383
  %2554 = vmatprep.subr.mxu0 %v2386
  %2555 = vmatpush1.msra.mxu0 %v2385
  %2556 = vmatprep.subr.mxu0 %v2388
  %2557 = vmatpush1.msra.mxu0 %v2387
  %2558 = vmatprep.subr.mxu0 %v2390
  %2559 = vmatpush1.msra.mxu0 %v2389
  %2560 = vmatprep.subr.mxu0 %v2392
  %2561 = vmatpush1.msra.mxu0 %v2391
  %2562 = vmatprep.subr.mxu0 %v2394
  %2563 = vmatpush1.msra.mxu0 %v2393
  %2564 = vmatprep.subr.mxu0 %v2396
  %2565 = vmatpush1.msra.mxu0 %v2395
  %2566 = vmatprep.subr.mxu0 %v2398
  %2567 = vmatpush1.msra.mxu0 %v2397
  %2568 = vmatprep.subr.mxu0 %v2400
  %2569 = vmatpush1.msra.mxu0 %v2399
  %2570 = vmatprep.subr.mxu0 %v2402
  %2571 = vmatpush1.msra.mxu0 %v2401
  %2572 = vmatprep.subr.mxu0 %v2404
  %2573 = vmatpush1.msra.mxu0 %v2403
  %2574 = vmatprep.subr.mxu0 %v2406
  %2575 = vmatpush1.msra.mxu0 %v2405
  %2576 = vmatprep.subr.mxu0 %v2408
  %2577 = vmatpush1.msra.mxu0 %v2407
  %2578 = vmatprep.subr.mxu0 %v2410
  %2579 = vmatpush1.msra.mxu0 %v2409
  %2580 = vmatprep.mubr.f32.mxu0 %v378
  %2581 = vmatmul.mubr.f32.gmra.mrb[0].mxu0 %v377
  %v2582 = vpop.f32.mrb[0].mxu0
  %v2583 = vadd.f32 %v2512, %v2582
  %v2584 = vpop.f32.mrb[0].mxu0
  %v2585 = vadd.f32 %v2514, %v2584
  %2586 = vdwg.mxu0
  %2587 = vmatprep.subr.mxu0 %v2412
  %2588 = vmatpush1.msra.mxu0 %v2411
  %2589 = vmatprep.subr.mxu0 %v2414
  %2590 = vmatpush1.msra.mxu0 %v2413
  %2591 = vmatprep.subr.mxu0 %v2416
  %2592 = vmatpush1.msra.mxu0 %v2415
  %2593 = vmatprep.subr.mxu0 %v2418
  %2594 = vmatpush1.msra.mxu0 %v2417
  %2595 = vmatprep.subr.mxu0 %v2420
  %2596 = vmatpush1.msra.mxu0 %v2419
  %2597 = vmatprep.subr.mxu0 %v2422
  %2598 = vmatpush1.msra.mxu0 %v2421
  %2599 = vmatprep.subr.mxu0 %v2424
  %2600 = vmatpush1.msra.mxu0 %v2423
  %2601 = vmatprep.subr.mxu0 %v2426
  %2602 = vmatpush1.msra.mxu0 %v2425
  %2603 = vmatprep.subr.mxu0 %v2428
  %2604 = vmatpush1.msra.mxu0 %v2427
  %2605 = vmatprep.subr.mxu0 %v2430
  %2606 = vmatpush1.msra.mxu0 %v2429
  %2607 = vmatprep.subr.mxu0 %v2432
  %2608 = vmatpush1.msra.mxu0 %v2431
  %2609 = vmatprep.subr.mxu0 %v2434
  %2610 = vmatpush1.msra.mxu0 %v2433
  %2611 = vmatprep.subr.mxu0 %v2436
  %2612 = vmatpush1.msra.mxu0 %v2435
  %2613 = vmatprep.subr.mxu0 %v2438
  %2614 = vmatpush1.msra.mxu0 %v2437
  %2615 = vmatprep.subr.mxu0 %v2440
  %2616 = vmatpush1.msra.mxu0 %v2439
  %2617 = vmatprep.subr.mxu0 %v2442
  %2618 = vmatpush1.msra.mxu0 %v2441
  %2619 = vmatprep.subr.mxu0 %v2444
  %2620 = vmatpush1.msra.mxu0 %v2443
  %2621 = vmatprep.subr.mxu0 0.0
  %2622 = vmatpush1.msra.mxu0 0.0
  %2623 = vmatprep.subr.mxu0 0.0
  %2624 = vmatpush1.msra.mxu0 0.0
  %2625 = vmatprep.subr.mxu0 0.0
  %2626 = vmatpush1.msra.mxu0 0.0
  %2627 = vmatprep.subr.mxu0 0.0
  %2628 = vmatpush1.msra.mxu0 0.0
  %2629 = vmatprep.subr.mxu0 0.0
  %2630 = vmatpush1.msra.mxu0 0.0
  %2631 = vmatprep.subr.mxu0 0.0
  %2632 = vmatpush1.msra.mxu0 0.0
  %2633 = vmatprep.subr.mxu0 0.0
  %2634 = vmatpush1.msra.mxu0 0.0
  %2635 = vmatprep.subr.mxu0 0.0
  %2636 = vmatpush1.msra.mxu0 0.0
  %2637 = vmatprep.subr.mxu0 0.0
  %2638 = vmatpush1.msra.mxu0 0.0
  %2639 = vmatprep.subr.mxu0 0.0
  %2640 = vmatpush1.msra.mxu0 0.0
  %2641 = vmatprep.subr.mxu0 0.0
  %2642 = vmatpush1.msra.mxu0 0.0
  %2643 = vmatprep.subr.mxu0 0.0
  %2644 = vmatpush1.msra.mxu0 0.0
  %2645 = vmatprep.subr.mxu0 0.0
  %2646 = vmatpush1.msra.mxu0 0.0
  %2647 = vmatprep.subr.mxu0 0.0
  %2648 = vmatpush1.msra.mxu0 0.0
  %2649 = vmatprep.subr.mxu0 0.0
  %2650 = vmatpush1.msra.mxu0 0.0
  %2651 = vmatprep.mubr.f32.mxu0 %v798
  %2652 = vmatmul.mubr.f32.gmra.mrb[0].mxu0 %v379
  %v2653 = vpop.f32.mrb[0].mxu0
  %v2654 = vadd.f32 %v2583, %v2653
  %v2655 = vpop.f32.mrb[0].mxu0
  %v2656 = vadd.f32 %v2585, %v2655
  %2657 = vdwg.mxu0
  %v2658 = vmax.f32 %v2109, %v2654
  %v2659 = vmax.f32 %v2110, %v2656
  %2660 = vst [vmem:[%s4] sm:$0xff] %v2658
  %vm2661 = vcmask 277504
  %2662 = vst.msk [vmem:[%s4 + $0x8] sm:$0xff] %vm2661, %v2659
  // Predicated region
  $region18: #{stn_forward.3} parent=0 // pred_check
    _
  $region19: #{stn_forward.3} parent=0 // pred_check_branch
    %2664 = sbr.rel (0) target = $region21
  $region20: #{stn_forward.3} parent=0 // pred_region
    _
  $region21: #{stn_forward.3} parent=0 // pred_fallthru
    _
  // Predicated region
  $region22: #{stn_forward.3} parent=0 // pred_check
    _
  $region23: #{stn_forward.3} parent=0 // pred_check_branch
    %2666 = sbr.rel (0) target = $region25
  $region24: #{stn_forward.3} parent=0 // pred_region
    _
  $region25: #{stn_forward.3} parent=0 // pred_fallthru
    _

// kernel: tile.8
$region0: #{tile.8}
  #allocation0 [shape = 's32[1]{0}', space=sflag, size = 0x4, scoped, tag = 'scoped memory for tile.8']
  %s0 = inlined_call_operand.vmem [shape: f32[24], index: 0, kind: input, shape index: {}]
  %s1 = inlined_call_operand.vmem [shape: f32[24,24], index: 1, kind: output, shape index: {}]
  // Predicated region
  $region2: #{tile.8} parent=0 // pred_check
    _
  $region3: #{tile.8} parent=0 // pred_check_branch
    %3 = sbr.rel (0) target = $region5
  $region4: #{tile.8} parent=0 // pred_region
    _
  $region5: #{tile.8} parent=0 // pred_fallthru
    _
  %v4 = vld [vmem:[%s0] ss:$0 sm:$0xff]
  %5 = vst [vmem:[%s1] sm:$0xff] %v4
  %s6 = scalar_lea.vmem %s1, 8
  %7 = vst [vmem:[%s6] sm:$0xff] %v4
  %s8 = scalar_lea.vmem %s1, 16
  %9 = vst [vmem:[%s8] sm:$0xff] %v4

// kernel: stn_forward.4
$region0: #{stn_forward.4}
  #allocation0 [shape = 'u32[]', space=smem, size = 0x4, offset = 0x4, fixed_abs, tag = 'smem constant byte address 0x4 - core index']
  #allocation1 [shape = 'u32[144,128]{1,0:T(1,128)}', space=vmem, size = 0x12000, scoped, tag = 'internal scratch']
  %s0 = inlined_call_operand.vmem [shape: f32[10,200], index: 0, kind: input, shape index: {}]
  %s1 = inlined_call_operand.vmem [shape: f32[200,50], index: 1, kind: input, shape index: {}]
  %s2 = inlined_call_operand.vmem [shape: f32[10,1], index: 2, kind: input, shape index: {}]
  %s3 = inlined_call_operand.vmem [shape: s32[16,2], index: 3, kind: input, shape index: {}]
  %s4 = inlined_call_operand.vmem [shape: f32[4,32,10], index: 4, kind: input, shape index: {}]
  %s5 = inlined_call_operand.vmem [shape: f32[32,1], index: 5, kind: input, shape index: {}]
  %s6 = inlined_call_operand.vmem [shape: f32[6,32], index: 6, kind: input, shape index: {}]
  %s7 = inlined_call_operand.vmem [shape: f32[6,1], index: 7, kind: input, shape index: {}]
  %s8 = inlined_call_operand.vmem [shape: f32[6,2], index: 8, kind: output, shape index: {}]
  %s9 = sld [smem:[#allocation0]]
  $region42: #{stn_forward.4} parent=0
    _
  %s11 = ssub.s32 1, %s9
  %s12 = scalar_select 0, %s11, %s9
  // Predicated region
  $region2: #{stn_forward.4} parent=0 // pred_check
    _
  $region3: #{stn_forward.4} parent=0 // pred_check_branch
    %14 = sbr.rel (0) target = $region5
  $region4: #{stn_forward.4} parent=0 // pred_region
    _
  $region5: #{stn_forward.4} parent=0 // pred_fallthru
    _
  // Predicated region
  $region6: #{stn_forward.4} parent=0 // pred_check
    _
  $region7: #{stn_forward.4} parent=0 // pred_check_branch
    %16 = sbr.rel (0) target = $region9
  $region8: #{stn_forward.4} parent=0 // pred_region
    _
  $region9: #{stn_forward.4} parent=0 // pred_fallthru
    _
  // Predicated region
  $region10: #{stn_forward.4} parent=0 // pred_check
    _
  $region11: #{stn_forward.4} parent=0 // pred_check_branch
    %18 = sbr.rel (0) target = $region13
  $region12: #{stn_forward.4} parent=0 // pred_region
    _
  $region13: #{stn_forward.4} parent=0 // pred_fallthru
    _
  // Predicated region
  $region14: #{stn_forward.4} parent=0 // pred_check
    _
  $region15: #{stn_forward.4} parent=0 // pred_check_branch
    %20 = sbr.rel (0) target = $region17
  $region16: #{stn_forward.4} parent=0 // pred_region
    _
  $region17: #{stn_forward.4} parent=0 // pred_fallthru
    _
  // Predicated region
  $region18: #{stn_forward.4} parent=0 // pred_check
    _
  $region19: #{stn_forward.4} parent=0 // pred_check_branch
    %22 = sbr.rel (0) target = $region21
  $region20: #{stn_forward.4} parent=0 // pred_region
    _
  $region21: #{stn_forward.4} parent=0 // pred_fallthru
    _
  // Predicated region
  $region22: #{stn_forward.4} parent=0 // pred_check
    _
  $region23: #{stn_forward.4} parent=0 // pred_check_branch
    %24 = sbr.rel (0) target = $region25
  $region24: #{stn_forward.4} parent=0 // pred_region
    _
  $region25: #{stn_forward.4} parent=0 // pred_fallthru
    _
  // Predicated region
  $region26: #{stn_forward.4} parent=0 // pred_check
    _
  $region27: #{stn_forward.4} parent=0 // pred_check_branch
    %26 = sbr.rel (0) target = $region29
  $region28: #{stn_forward.4} parent=0 // pred_region
    _
  $region29: #{stn_forward.4} parent=0 // pred_fallthru
    _
  // Predicated region
  $region30: #{stn_forward.4} parent=0 // pred_check
    _
  $region31: #{stn_forward.4} parent=0 // pred_check_branch
    %28 = sbr.rel (0) target = $region33
  $region32: #{stn_forward.4} parent=0 // pred_region
    _
  $region33: #{stn_forward.4} parent=0 // pred_fallthru
    _
  %v29 = vld [vmem:[%s0] sm:$0xff]
  %v30 = vld [vmem:[%s0 + $0x8] sm:$0xff]
  %v31 = vld [vmem:[%s0 + $0x10] sm:$0x3]
  %v32 = vld [vmem:[%s0 + $0x18] sm:$0x3]
  %v33 = vld [vmem:[%s1] sm:$0xff]
  %v34 = vld [vmem:[%s1 + $0x8] sm:$0xff]
  %v35 = vld [vmem:[%s1 + $0x10] sm:$0xff]
  %v36 = vld [vmem:[%s1 + $0x18] sm:$0xff]
  %v37 = vld [vmem:[%s1 + $0x20] sm:$0xff]
  %v38 = vld [vmem:[%s1 + $0x28] sm:$0xff]
  %v39 = vld [vmem:[%s1 + $0x30] sm:$0xff]
  %v40 = vld [vmem:[%s1 + $0x38] sm:$0xff]
  %v41 = vld [vmem:[%s1 + $0x40] sm:$0xff]
  %v42 = vld [vmem:[%s1 + $0x48] sm:$0xff]
  %v43 = vld [vmem:[%s1 + $0x50] sm:$0xff]
  %v44 = vld [vmem:[%s1 + $0x58] sm:$0xff]
  %v45 = vld [vmem:[%s1 + $0x60] sm:$0xff]
  %v46 = vld [vmem:[%s1 + $0x68] sm:$0xff]
  %v47 = vld [vmem:[%s1 + $0x70] sm:$0xff]
  %v48 = vld [vmem:[%s1 + $0x78] sm:$0xff]
  %v49 = vld [vmem:[%s1 + $0x80] sm:$0xff]
  %v50 = vld [vmem:[%s1 + $0x88] sm:$0xff]
  %v51 = vld [vmem:[%s1 + $0x90] sm:$0xff]
  %v52 = vld [vmem:[%s1 + $0x98] sm:$0xff]
  %v53 = vld [vmem:[%s1 + $0xa0] sm:$0xff]
  %v54 = vld [vmem:[%s1 + $0xa8] sm:$0xff]
  %v55 = vld [vmem:[%s1 + $0xb0] sm:$0xff]
  %v56 = vld [vmem:[%s1 + $0xb8] sm:$0xff]
  %v57 = vld [vmem:[%s1 + $0xc0] sm:$0xff]
  %v58 = vld [vmem:[%s2] sm:$0xff]
  %v59 = vld [vmem:[%s2 + $0x8] sm:$0x3]
  %61 = vset.pattern.permute.xlu0 0
  %62 = vperm.xlu0 %61, %v58
  %v63 = vpop.permute.xlu0 %62
  %66 = vset.pattern.permute.xlu0 0
  %67 = vperm.xlu0 %66, %v59
  %v68 = vpop.permute.xlu0 %67
  %vm70 = vcmask 588800
  %v72 = vsel %vm70, %v30, 0
  %v75 = vsel %vm70, %v32, 0
  %77 = vmatprep.subr.mxu0 0.0
  %78 = vmatpush1.msra.mxu0 %v33
  %79 = vmatprep.subr.mxu0 0.0
  %80 = vmatpush1.msra.mxu0 %v34
  %81 = vmatprep.subr.mxu0 0.0
  %82 = vmatpush1.msra.mxu0 %v35
  %83 = vmatprep.subr.mxu0 0.0
  %84 = vmatpush1.msra.mxu0 %v36
  %85 = vmatprep.subr.mxu0 0.0
  %86 = vmatpush1.msra.mxu0 %v37
  %87 = vmatprep.subr.mxu0 0.0
  %88 = vmatpush1.msra.mxu0 %v38
  %89 = vmatprep.subr.mxu0 0.0
  %90 = vmatpush1.msra.mxu0 %v39
  %91 = vmatprep.subr.mxu0 0.0
  %92 = vmatpush1.msra.mxu0 %v40
  %93 = vmatprep.subr.mxu0 0.0
  %94 = vmatpush1.msra.mxu0 %v41
  %95 = vmatprep.subr.mxu0 0.0
  %96 = vmatpush1.msra.mxu0 %v42
  %97 = vmatprep.subr.mxu0 0.0
  %98 = vmatpush1.msra.mxu0 %v43
  %99 = vmatprep.subr.mxu0 0.0
  %100 = vmatpush1.msra.mxu0 %v44
  %101 = vmatprep.subr.mxu0 0.0
  %102 = vmatpush1.msra.mxu0 %v45
  %103 = vmatprep.subr.mxu0 0.0
  %104 = vmatpush1.msra.mxu0 %v46
  %105 = vmatprep.subr.mxu0 0.0
  %106 = vmatpush1.msra.mxu0 %v47
  %107 = vmatprep.subr.mxu0 0.0
  %108 = vmatpush1.msra.mxu0 %v48
  %109 = vmatprep.subr.mxu0 0.0
  %110 = vmatpush1.msra.mxu0 %v49
  %111 = vmatprep.subr.mxu0 0.0
  %112 = vmatpush1.msra.mxu0 %v50
  %113 = vmatprep.subr.mxu0 0.0
  %114 = vmatpush1.msra.mxu0 %v51
  %115 = vmatprep.subr.mxu0 0.0
  %116 = vmatpush1.msra.mxu0 %v52
  %117 = vmatprep.subr.mxu0 0.0
  %118 = vmatpush1.msra.mxu0 %v53
  %119 = vmatprep.subr.mxu0 0.0
  %120 = vmatpush1.msra.mxu0 %v54
  %121 = vmatprep.subr.mxu0 0.0
  %122 = vmatpush1.msra.mxu0 %v55
  %123 = vmatprep.subr.mxu0 0.0
  %124 = vmatpush1.msra.mxu0 %v56
  %125 = vmatprep.subr.mxu0 0.0
  %126 = vmatpush1.msra.mxu0 %v57
  %127 = vmatprep.subr.mxu0 0.0
  %128 = vmatpush1.msra.mxu0 0.0
  %129 = vmatprep.subr.mxu0 0.0
  %130 = vmatpush1.msra.mxu0 0.0
  %131 = vmatprep.subr.mxu0 0.0
  %132 = vmatpush1.msra.mxu0 0.0
  %133 = vmatprep.subr.mxu0 0.0
  %134 = vmatpush1.msra.mxu0 0.0
  %135 = vmatprep.subr.mxu0 0.0
  %136 = vmatpush1.msra.mxu0 0.0
  %137 = vmatprep.subr.mxu0 0.0
  %138 = vmatpush1.msra.mxu0 0.0
  %139 = vmatprep.subr.mxu0 0.0
  %140 = vmatpush1.msra.mxu0 0.0
  %141 = vmatprep.mubr.f32.mxu0 %v72
  %142 = vmatmul.mubr.f32.gmra.mrb[0].mxu0 %v29
  %v143 = vpop.f32.mrb[0].mxu0
  %v144 = vadd.f32 %v63, %v143
  %v145 = vpop.f32.mrb[0].mxu0
  %146 = vmatprep.mubr.f32.mxu0 %v75
  %147 = vmatmul.mubr.f32.gmra.mrb[0].mxu0 %v31
  %v148 = vpop.f32.mrb[0].mxu0
  %v149 = vadd.f32 %v68, %v148
  %v150 = vpop.f32.mrb[0].mxu0
  %151 = vdwg.mxu0
  %v152 = vmax.f32 %v144, 0.0
  %v153 = vmax.f32 %v149, 0.0
  %v154 = vlaneseq
  %v155 = vshrl.u32 %v154, 7
  %v156 = vadd.s32 %v155, 8
  %v157 = vadd.s32 %v155, 16
  %v158 = vadd.s32 %v155, 24
  %v159 = vadd.s32 %v155, 32
  %v160 = vadd.s32 %v155, 40
  %v161 = vadd.s32 %v155, 48
  %v162 = vld [vmem:[%s3] sm:$0x1]
  %v163 = vlaneseq
  %v164 = vshrl.u32 %v163, 7
  %v165 = vsub.s32 0, %v164
  %v166 = vrot.slane %v162, %v165
  %vm167 = vcmp.eq.s32.totalorder %v155, %v166
  %vm168 = vcmp.eq.s32.totalorder %v156, %v166
  %vm169 = vcmp.eq.s32.totalorder %v157, %v166
  %vm170 = vcmp.eq.s32.totalorder %v158, %v166
  %vm171 = vcmp.eq.s32.totalorder %v159, %v166
  %vm172 = vcmp.eq.s32.totalorder %v160, %v166
  %vm173 = vcmp.eq.s32.totalorder %v161, %v166
  %v174 = vsel %vm167, 1.0, 0.0
  %v175 = vsel %vm168, 1.0, 0.0
  %v176 = vsel %vm169, 1.0, 0.0
  %v177 = vsel %vm170, 1.0, 0.0
  %v178 = vsel %vm171, 1.0, 0.0
  %v179 = vsel %vm172, 1.0, 0.0
  %v180 = vsel %vm173, 1.0, 0.0
  %vm181 = vcmask 408576
  %v183 = vsel %vm181, %v152, 0
  %v186 = vsel %vm181, %v153, 0
  %vm188 = vcmask 1041408
  %v190 = vsel %vm188, %v180, 0
  %192 = vmatprep.subr.mxu0 0.0
  %193 = vmatpush1.msra.mxu0 %v174
  %194 = vmatprep.subr.mxu0 0.0
  %195 = vmatpush1.msra.mxu0 %v175
  %196 = vmatprep.subr.mxu0 0.0
  %197 = vmatpush1.msra.mxu0 %v176
  %198 = vmatprep.subr.mxu0 0.0
  %199 = vmatpush1.msra.mxu0 %v177
  %200 = vmatprep.subr.mxu0 0.0
  %201 = vmatpush1.msra.mxu0 %v178
  %202 = vmatprep.subr.mxu0 0.0
  %203 = vmatpush1.msra.mxu0 %v179
  %204 = vmatprep.subr.mxu0 0.0
  %205 = vmatpush1.msra.mxu0 %v190
  %206 = vmatprep.subr.mxu0 0.0
  %207 = vmatpush1.msra.mxu0 0.0
  %208 = vmatprep.subr.mxu0 0.0
  %209 = vmatpush1.msra.mxu0 0.0
  %210 = vmatprep.subr.mxu0 0.0
  %211 = vmatpush1.msra.mxu0 0.0
  %212 = vmatprep.subr.mxu0 0.0
  %213 = vmatpush1.msra.mxu0 0.0
  %214 = vmatprep.subr.mxu0 0.0
  %215 = vmatpush1.msra.mxu0 0.0
  %216 = vmatprep.subr.mxu0 0.0
  %217 = vmatpush1.msra.mxu0 0.0
  %218 = vmatprep.subr.mxu0 0.0
  %219 = vmatpush1.msra.mxu0 0.0
  %220 = vmatprep.subr.mxu0 0.0
  %221 = vmatpush1.msra.mxu0 0.0
  %222 = vmatprep.subr.mxu0 0.0
  %223 = vmatpush1.msra.mxu0 0.0
  %224 = vmatprep.subr.mxu0 0.0
  %225 = vmatpush1.msra.mxu0 0.0
  %226 = vmatprep.subr.mxu0 0.0
  %227 = vmatpush1.msra.mxu0 0.0
  %228 = vmatprep.subr.mxu0 0.0
  %229 = vmatpush1.msra.mxu0 0.0
  %230 = vmatprep.subr.mxu0 0.0
  %231 = vmatpush1.msra.mxu0 0.0
  %232 = vmatprep.subr.mxu0 0.0
  %233 = vmatpush1.msra.mxu0 0.0
  %234 = vmatprep.subr.mxu0 0.0
  %235 = vmatpush1.msra.mxu0 0.0
  %236 = vmatprep.subr.mxu0 0.0
  %237 = vmatpush1.msra.mxu0 0.0
  %238 = vmatprep.subr.mxu0 0.0
  %239 = vmatpush1.msra.mxu0 0.0
  %240 = vmatprep.subr.mxu0 0.0
  %241 = vmatpush1.msra.mxu0 0.0
  %242 = vmatprep.subr.mxu0 0.0
  %243 = vmatpush1.msra.mxu0 0.0
  %244 = vmatprep.subr.mxu0 0.0
  %245 = vmatpush1.msra.mxu0 0.0
  %246 = vmatprep.subr.mxu0 0.0
  %247 = vmatpush1.msra.mxu0 0.0
  %248 = vmatprep.subr.mxu0 0.0
  %249 = vmatpush1.msra.mxu0 0.0
  %250 = vmatprep.subr.mxu0 0.0
  %251 = vmatpush1.msra.mxu0 0.0
  %252 = vmatprep.subr.mxu0 0.0
  %253 = vmatpush1.msra.mxu0 0.0
  %254 = vmatprep.subr.mxu0 0.0
  %255 = vmatpush1.msra.mxu0 0.0
  %256 = vmatprep.mubr.f32.mxu0 0.0
  %257 = vmatmul.mubr.f32.gmra.mrb[0].mxu0 %v183
  %v258 = vpop.f32.mrb[0].mxu0
  %v259 = vadd.f32 0.0, %v258
  %v260 = vpop.f32.mrb[0].mxu0
  %261 = vmatprep.mubr.f32.mxu0 0.0
  %262 = vmatmul.mubr.f32.gmra.mrb[0].mxu0 %v186
  %v263 = vpop.f32.mrb[0].mxu0
  %v264 = vadd.f32 0.0, %v263
  %v265 = vpop.f32.mrb[0].mxu0
  %266 = vdwg.mxu0
  %v267 = vld [vmem:[%s3 + $0x1] sm:$0x1]
  %v268 = vlaneseq
  %v269 = vshrl.u32 %v268, 7
  %v270 = vsub.s32 0, %v269
  %v271 = vrot.slane %v267, %v270
  %vm272 = vcmp.eq.s32.totalorder %v155, %v271
  %vm273 = vcmp.eq.s32.totalorder %v156, %v271
  %vm274 = vcmp.eq.s32.totalorder %v157, %v271
  %vm275 = vcmp.eq.s32.totalorder %v158, %v271
  %vm276 = vcmp.eq.s32.totalorder %v159, %v271
  %vm277 = vcmp.eq.s32.totalorder %v160, %v271
  %vm278 = vcmp.eq.s32.totalorder %v161, %v271
  %v279 = vsel %vm272, 1.0, 0.0
  %v280 = vsel %vm273, 1.0, 0.0
  %v281 = vsel %vm274, 1.0, 0.0
  %v282 = vsel %vm275, 1.0, 0.0
  %v283 = vsel %vm276, 1.0, 0.0
  %v284 = vsel %vm277, 1.0, 0.0
  %v285 = vsel %vm278, 1.0, 0.0
  %v287 = vsel %vm188, %v285, 0
  %289 = vmatprep.subr.mxu0 0.0
  %290 = vmatpush1.msra.mxu0 %v279
  %291 = vmatprep.subr.mxu0 0.0
  %292 = vmatpush1.msra.mxu0 %v280
  %293 = vmatprep.subr.mxu0 0.0
  %294 = vmatpush1.msra.mxu0 %v281
  %295 = vmatprep.subr.mxu0 0.0
  %296 = vmatpush1.msra.mxu0 %v282
  %297 = vmatprep.subr.mxu0 0.0
  %298 = vmatpush1.msra.mxu0 %v283
  %299 = vmatprep.subr.mxu0 0.0
  %300 = vmatpush1.msra.mxu0 %v284
  %301 = vmatprep.subr.mxu0 0.0
  %302 = vmatpush1.msra.mxu0 %v287
  %303 = vmatprep.subr.mxu0 0.0
  %304 = vmatpush1.msra.mxu0 0.0
  %305 = vmatprep.subr.mxu0 0.0
  %306 = vmatpush1.msra.mxu0 0.0
  %307 = vmatprep.subr.mxu0 0.0
  %308 = vmatpush1.msra.mxu0 0.0
  %309 = vmatprep.subr.mxu0 0.0
  %310 = vmatpush1.msra.mxu0 0.0
  %311 = vmatprep.subr.mxu0 0.0
  %312 = vmatpush1.msra.mxu0 0.0
  %313 = vmatprep.subr.mxu0 0.0
  %314 = vmatpush1.msra.mxu0 0.0
  %315 = vmatprep.subr.mxu0 0.0
  %316 = vmatpush1.msra.mxu0 0.0
  %317 = vmatprep.subr.mxu0 0.0
  %318 = vmatpush1.msra.mxu0 0.0
  %319 = vmatprep.subr.mxu0 0.0
  %320 = vmatpush1.msra.mxu0 0.0
  %321 = vmatprep.subr.mxu0 0.0
  %322 = vmatpush1.msra.mxu0 0.0
  %323 = vmatprep.subr.mxu0 0.0
  %324 = vmatpush1.msra.mxu0 0.0
  %325 = vmatprep.subr.mxu0 0.0
  %326 = vmatpush1.msra.mxu0 0.0
  %327 = vmatprep.subr.mxu0 0.0
  %328 = vmatpush1.msra.mxu0 0.0
  %329 = vmatprep.subr.mxu0 0.0
  %330 = vmatpush1.msra.mxu0 0.0
  %331 = vmatprep.subr.mxu0 0.0
  %332 = vmatpush1.msra.mxu0 0.0
  %333 = vmatprep.subr.mxu0 0.0
  %334 = vmatpush1.msra.mxu0 0.0
  %335 = vmatprep.subr.mxu0 0.0
  %336 = vmatpush1.msra.mxu0 0.0
  %337 = vmatprep.subr.mxu0 0.0
  %338 = vmatpush1.msra.mxu0 0.0
  %339 = vmatprep.subr.mxu0 0.0
  %340 = vmatpush1.msra.mxu0 0.0
  %341 = vmatprep.subr.mxu0 0.0
  %342 = vmatpush1.msra.mxu0 0.0
  %343 = vmatprep.subr.mxu0 0.0
  %344 = vmatpush1.msra.mxu0 0.0
  %345 = vmatprep.subr.mxu0 0.0
  %346 = vmatpush1.msra.mxu0 0.0
  %347 = vmatprep.subr.mxu0 0.0
  %348 = vmatpush1.msra.mxu0 0.0
  %349 = vmatprep.subr.mxu0 0.0
  %350 = vmatpush1.msra.mxu0 0.0
  %351 = vmatprep.subr.mxu0 0.0
  %352 = vmatpush1.msra.mxu0 0.0
  %353 = vmatprep.mubr.f32.mxu0 0.0
  %354 = vmatmul.mubr.f32.gmra.mrb[0].mxu0 %v183
  %v355 = vpop.f32.mrb[0].mxu0
  %v356 = vadd.f32 0.0, %v355
  %v357 = vpop.f32.mrb[0].mxu0
  %358 = vmatprep.mubr.f32.mxu0 0.0
  %359 = vmatmul.mubr.f32.gmra.mrb[0].mxu0 %v186
  %v360 = vpop.f32.mrb[0].mxu0
  %v361 = vadd.f32 0.0, %v360
  %v362 = vpop.f32.mrb[0].mxu0
  %363 = vdwg.mxu0
  %v364 = vmax.f32 %v259, %v356
  %v365 = vmax.f32 %v264, %v361
  %v366 = vld [vmem:[%s3 + $0x2] sm:$0x1]
  %v367 = vlaneseq
  %v368 = vshrl.u32 %v367, 7
  %v369 = vsub.s32 0, %v368
  %v370 = vrot.slane %v366, %v369
  %vm371 = vcmp.eq.s32.totalorder %v155, %v370
  %vm372 = vcmp.eq.s32.totalorder %v156, %v370
  %vm373 = vcmp.eq.s32.totalorder %v157, %v370
  %vm374 = vcmp.eq.s32.totalorder %v158, %v370
  %vm375 = vcmp.eq.s32.totalorder %v159, %v370
  %vm376 = vcmp.eq.s32.totalorder %v160, %v370
  %vm377 = vcmp.eq.s32.totalorder %v161, %v370
  %v378 = vsel %vm371, 1.0, 0.0
  %v379 = vsel %vm372, 1.0, 0.0
  %v380 = vsel %vm373, 1.0, 0.0
  %v381 = vsel %vm374, 1.0, 0.0
  %v382 = vsel %vm375, 1.0, 0.0
  %v383 = vsel %vm376, 1.0, 0.0
  %v384 = vsel %vm377, 1.0, 0.0
  %v386 = vsel %vm188, %v384, 0
  %388 = vmatprep.subr.mxu0 0.0
  %389 = vmatpush1.msra.mxu0 %v378
  %390 = vmatprep.subr.mxu0 0.0
  %391 = vmatpush1.msra.mxu0 %v379
  %392 = vmatprep.subr.mxu0 0.0
  %393 = vmatpush1.msra.mxu0 %v380
  %394 = vmatprep.subr.mxu0 0.0
  %395 = vmatpush1.msra.mxu0 %v381
  %396 = vmatprep.subr.mxu0 0.0
  %397 = vmatpush1.msra.mxu0 %v382
  %398 = vmatprep.subr.mxu0 0.0
  %399 = vmatpush1.msra.mxu0 %v383
  %400 = vmatprep.subr.mxu0 0.0
  %401 = vmatpush1.msra.mxu0 %v386
  %402 = vmatprep.subr.mxu0 0.0
  %403 = vmatpush1.msra.mxu0 0.0
  %404 = vmatprep.subr.mxu0 0.0
  %405 = vmatpush1.msra.mxu0 0.0
  %406 = vmatprep.subr.mxu0 0.0
  %407 = vmatpush1.msra.mxu0 0.0
  %408 = vmatprep.subr.mxu0 0.0
  %409 = vmatpush1.msra.mxu0 0.0
  %410 = vmatprep.subr.mxu0 0.0
  %411 = vmatpush1.msra.mxu0 0.0
  %412 = vmatprep.subr.mxu0 0.0
  %413 = vmatpush1.msra.mxu0 0.0
  %414 = vmatprep.subr.mxu0 0.0
  %415 = vmatpush1.msra.mxu0 0.0
  %416 = vmatprep.subr.mxu0 0.0
  %417 = vmatpush1.msra.mxu0 0.0
  %418 = vmatprep.subr.mxu0 0.0
  %419 = vmatpush1.msra.mxu0 0.0
  %420 = vmatprep.subr.mxu0 0.0
  %421 = vmatpush1.msra.mxu0 0.0
  %422 = vmatprep.subr.mxu0 0.0
  %423 = vmatpush1.msra.mxu0 0.0
  %424 = vmatprep.subr.mxu0 0.0
  %425 = vmatpush1.msra.mxu0 0.0
  %426 = vmatprep.subr.mxu0 0.0
  %427 = vmatpush1.msra.mxu0 0.0
  %428 = vmatprep.subr.mxu0 0.0
  %429 = vmatpush1.msra.mxu0 0.0
  %430 = vmatprep.subr.mxu0 0.0
  %431 = vmatpush1.msra.mxu0 0.0
  %432 = vmatprep.subr.mxu0 0.0
  %433 = vmatpush1.msra.mxu0 0.0
  %434 = vmatprep.subr.mxu0 0.0
  %435 = vmatpush1.msra.mxu0 0.0
  %436 = vmatprep.subr.mxu0 0.0
  %437 = vmatpush1.msra.mxu0 0.0
  %438 = vmatprep.subr.mxu0 0.0
  %439 = vmatpush1.msra.mxu0 0.0
  %440 = vmatprep.subr.mxu0 0.0
  %441 = vmatpush1.msra.mxu0 0.0
  %442 = vmatprep.subr.mxu0 0.0
  %443 = vmatpush1.msra.mxu0 0.0
  %444 = vmatprep.subr.mxu0 0.0
  %445 = vmatpush1.msra.mxu0 0.0
  %446 = vmatprep.subr.mxu0 0.0
  %447 = vmatpush1.msra.mxu0 0.0
  %448 = vmatprep.subr.mxu0 0.0
  %449 = vmatpush1.msra.mxu0 0.0
  %450 = vmatprep.subr.mxu0 0.0
  %451 = vmatpush1.msra.mxu0 0.0
  %452 = vmatprep.mubr.f32.mxu0 0.0
  %453 = vmatmul.mubr.f32.gmra.mrb[0].mxu0 %v183
  %v454 = vpop.f32.mrb[0].mxu0
  %v455 = vadd.f32 0.0, %v454
  %v456 = vpop.f32.mrb[0].mxu0
  %457 = vmatprep.mubr.f32.mxu0 0.0
  %458 = vmatmul.mubr.f32.gmra.mrb[0].mxu0 %v186
  %v459 = vpop.f32.mrb[0].mxu0
  %v460 = vadd.f32 0.0, %v459
  %v461 = vpop.f32.mrb[0].mxu0
  %462 = vdwg.mxu0
  %v463 = vmax.f32 %v364, %v455
  %v464 = vmax.f32 %v365, %v460
  %v465 = vld [vmem:[%s3 + $0x3] sm:$0x1]
  %v466 = vlaneseq
  %v467 = vshrl.u32 %v466, 7
  %v468 = vsub.s32 0, %v467
  %v469 = vrot.slane %v465, %v468
  %vm470 = vcmp.eq.s32.totalorder %v155, %v469
  %vm471 = vcmp.eq.s32.totalorder %v156, %v469
  %vm472 = vcmp.eq.s32.totalorder %v157, %v469
  %vm473 = vcmp.eq.s32.totalorder %v158, %v469
  %vm474 = vcmp.eq.s32.totalorder %v159, %v469
  %vm475 = vcmp.eq.s32.totalorder %v160, %v469
  %vm476 = vcmp.eq.s32.totalorder %v161, %v469
  %v477 = vsel %vm470, 1.0, 0.0
  %v478 = vsel %vm471, 1.0, 0.0
  %v479 = vsel %vm472, 1.0, 0.0
  %v480 = vsel %vm473, 1.0, 0.0
  %v481 = vsel %vm474, 1.0, 0.0
  %v482 = vsel %vm475, 1.0, 0.0
  %v483 = vsel %vm476, 1.0, 0.0
  %v485 = vsel %vm188, %v483, 0
  %487 = vmatprep.subr.mxu0 0.0
  %488 = vmatpush1.msra.mxu0 %v477
  %489 = vmatprep.subr.mxu0 0.0
  %490 = vmatpush1.msra.mxu0 %v478
  %491 = vmatprep.subr.mxu0 0.0
  %492 = vmatpush1.msra.mxu0 %v479
  %493 = vmatprep.subr.mxu0 0.0
  %494 = vmatpush1.msra.mxu0 %v480
  %495 = vmatprep.subr.mxu0 0.0
  %496 = vmatpush1.msra.mxu0 %v481
  %497 = vmatprep.subr.mxu0 0.0
  %498 = vmatpush1.msra.mxu0 %v482
  %499 = vmatprep.subr.mxu0 0.0
  %500 = vmatpush1.msra.mxu0 %v485
  %501 = vmatprep.subr.mxu0 0.0
  %502 = vmatpush1.msra.mxu0 0.0
  %503 = vmatprep.subr.mxu0 0.0
  %504 = vmatpush1.msra.mxu0 0.0
  %505 = vmatprep.subr.mxu0 0.0
  %506 = vmatpush1.msra.mxu0 0.0
  %507 = vmatprep.subr.mxu0 0.0
  %508 = vmatpush1.msra.mxu0 0.0
  %509 = vmatprep.subr.mxu0 0.0
  %510 = vmatpush1.msra.mxu0 0.0
  %511 = vmatprep.subr.mxu0 0.0
  %512 = vmatpush1.msra.mxu0 0.0
  %513 = vmatprep.subr.mxu0 0.0
  %514 = vmatpush1.msra.mxu0 0.0
  %515 = vmatprep.subr.mxu0 0.0
  %516 = vmatpush1.msra.mxu0 0.0
  %517 = vmatprep.subr.mxu0 0.0
  %518 = vmatpush1.msra.mxu0 0.0
  %519 = vmatprep.subr.mxu0 0.0
  %520 = vmatpush1.msra.mxu0 0.0
  %521 = vmatprep.subr.mxu0 0.0
  %522 = vmatpush1.msra.mxu0 0.0
  %523 = vmatprep.subr.mxu0 0.0
  %524 = vmatpush1.msra.mxu0 0.0
  %525 = vmatprep.subr.mxu0 0.0
  %526 = vmatpush1.msra.mxu0 0.0
  %527 = vmatprep.subr.mxu0 0.0
  %528 = vmatpush1.msra.mxu0 0.0
  %529 = vmatprep.subr.mxu0 0.0
  %530 = vmatpush1.msra.mxu0 0.0
  %531 = vmatprep.subr.mxu0 0.0
  %532 = vmatpush1.msra.mxu0 0.0
  %533 = vmatprep.subr.mxu0 0.0
  %534 = vmatpush1.msra.mxu0 0.0
  %535 = vmatprep.subr.mxu0 0.0
  %536 = vmatpush1.msra.mxu0 0.0
  %537 = vmatprep.subr.mxu0 0.0
  %538 = vmatpush1.msra.mxu0 0.0
  %539 = vmatprep.subr.mxu0 0.0
  %540 = vmatpush1.msra.mxu0 0.0
  %541 = vmatprep.subr.mxu0 0.0
  %542 = vmatpush1.msra.mxu0 0.0
  %543 = vmatprep.subr.mxu0 0.0
  %544 = vmatpush1.msra.mxu0 0.0
  %545 = vmatprep.subr.mxu0 0.0
  %546 = vmatpush1.msra.mxu0 0.0
  %547 = vmatprep.subr.mxu0 0.0
  %548 = vmatpush1.msra.mxu0 0.0
  %549 = vmatprep.subr.mxu0 0.0
  %550 = vmatpush1.msra.mxu0 0.0
  %551 = vmatprep.mubr.f32.mxu0 0.0
  %552 = vmatmul.mubr.f32.gmra.mrb[0].mxu0 %v183
  %v553 = vpop.f32.mrb[0].mxu0
  %v554 = vadd.f32 0.0, %v553
  %v555 = vpop.f32.mrb[0].mxu0
  %556 = vmatprep.mubr.f32.mxu0 0.0
  %557 = vmatmul.mubr.f32.gmra.mrb[0].mxu0 %v186
  %v558 = vpop.f32.mrb[0].mxu0
  %v559 = vadd.f32 0.0, %v558
  %v560 = vpop.f32.mrb[0].mxu0
  %561 = vdwg.mxu0
  %v562 = vmax.f32 %v463, %v554
  %v563 = vmax.f32 %v464, %v559
  %v564 = vld [vmem:[%s4] sm:$0xff]
  %v565 = vld [vmem:[%s4 + $0x8] sm:$0xff]
  %v566 = vld [vmem:[%s4 + $0x10] sm:$0xff]
  %v567 = vld [vmem:[%s4 + $0x18] sm:$0xff]
  %v568 = vld [vmem:[%s3 + $0x4] sm:$0x1]
  %v569 = vlaneseq
  %v570 = vshrl.u32 %v569, 7
  %v571 = vsub.s32 0, %v570
  %v572 = vrot.slane %v568, %v571
  %vm573 = vcmp.eq.s32.totalorder %v155, %v572
  %vm574 = vcmp.eq.s32.totalorder %v156, %v572
  %vm575 = vcmp.eq.s32.totalorder %v157, %v572
  %vm576 = vcmp.eq.s32.totalorder %v158, %v572
  %vm577 = vcmp.eq.s32.totalorder %v159, %v572
  %vm578 = vcmp.eq.s32.totalorder %v160, %v572
  %vm579 = vcmp.eq.s32.totalorder %v161, %v572
  %v580 = vsel %vm573, 1.0, 0.0
  %v581 = vsel %vm574, 1.0, 0.0
  %v582 = vsel %vm575, 1.0, 0.0
  %v583 = vsel %vm576, 1.0, 0.0
  %v584 = vsel %vm577, 1.0, 0.0
  %v585 = vsel %vm578, 1.0, 0.0
  %v586 = vsel %vm579, 1.0, 0.0
  %v588 = vsel %vm188, %v586, 0
  %590 = vmatprep.subr.mxu0 0.0
  %591 = vmatpush1.msra.mxu0 %v580
  %592 = vmatprep.subr.mxu0 0.0
  %593 = vmatpush1.msra.mxu0 %v581
  %594 = vmatprep.subr.mxu0 0.0
  %595 = vmatpush1.msra.mxu0 %v582
  %596 = vmatprep.subr.mxu0 0.0
  %597 = vmatpush1.msra.mxu0 %v583
  %598 = vmatprep.subr.mxu0 0.0
  %599 = vmatpush1.msra.mxu0 %v584
  %600 = vmatprep.subr.mxu0 0.0
  %601 = vmatpush1.msra.mxu0 %v585
  %602 = vmatprep.subr.mxu0 0.0
  %603 = vmatpush1.msra.mxu0 %v588
  %604 = vmatprep.subr.mxu0 0.0
  %605 = vmatpush1.msra.mxu0 0.0
  %606 = vmatprep.subr.mxu0 0.0
  %607 = vmatpush1.msra.mxu0 0.0
  %608 = vmatprep.subr.mxu0 0.0
  %609 = vmatpush1.msra.mxu0 0.0
  %610 = vmatprep.subr.mxu0 0.0
  %611 = vmatpush1.msra.mxu0 0.0
  %612 = vmatprep.subr.mxu0 0.0
  %613 = vmatpush1.msra.mxu0 0.0
  %614 = vmatprep.subr.mxu0 0.0
  %615 = vmatpush1.msra.mxu0 0.0
  %616 = vmatprep.subr.mxu0 0.0
  %617 = vmatpush1.msra.mxu0 0.0
  %618 = vmatprep.subr.mxu0 0.0
  %619 = vmatpush1.msra.mxu0 0.0
  %620 = vmatprep.subr.mxu0 0.0
  %621 = vmatpush1.msra.mxu0 0.0
  %622 = vmatprep.subr.mxu0 0.0
  %623 = vmatpush1.msra.mxu0 0.0
  %624 = vmatprep.subr.mxu0 0.0
  %625 = vmatpush1.msra.mxu0 0.0
  %626 = vmatprep.subr.mxu0 0.0
  %627 = vmatpush1.msra.mxu0 0.0
  %628 = vmatprep.subr.mxu0 0.0
  %629 = vmatpush1.msra.mxu0 0.0
  %630 = vmatprep.subr.mxu0 0.0
  %631 = vmatpush1.msra.mxu0 0.0
  %632 = vmatprep.subr.mxu0 0.0
  %633 = vmatpush1.msra.mxu0 0.0
  %634 = vmatprep.subr.mxu0 0.0
  %635 = vmatpush1.msra.mxu0 0.0
  %636 = vmatprep.subr.mxu0 0.0
  %637 = vmatpush1.msra.mxu0 0.0
  %638 = vmatprep.subr.mxu0 0.0
  %639 = vmatpush1.msra.mxu0 0.0
  %640 = vmatprep.subr.mxu0 0.0
  %641 = vmatpush1.msra.mxu0 0.0
  %642 = vmatprep.subr.mxu0 0.0
  %643 = vmatpush1.msra.mxu0 0.0
  %644 = vmatprep.subr.mxu0 0.0
  %645 = vmatpush1.msra.mxu0 0.0
  %646 = vmatprep.subr.mxu0 0.0
  %647 = vmatpush1.msra.mxu0 0.0
  %648 = vmatprep.subr.mxu0 0.0
  %649 = vmatpush1.msra.mxu0 0.0
  %650 = vmatprep.subr.mxu0 0.0
  %651 = vmatpush1.msra.mxu0 0.0
  %652 = vmatprep.subr.mxu0 0.0
  %653 = vmatpush1.msra.mxu0 0.0
  %654 = vmatprep.mubr.f32.mxu0 0.0
  %655 = vmatmul.mubr.f32.gmra.mrb[0].mxu0 %v183
  %v656 = vpop.f32.mrb[0].mxu0
  %v657 = vadd.f32 0.0, %v656
  %v658 = vpop.f32.mrb[0].mxu0
  %659 = vmatprep.mubr.f32.mxu0 0.0
  %660 = vmatmul.mubr.f32.gmra.mrb[0].mxu0 %v186
  %v661 = vpop.f32.mrb[0].mxu0
  %v662 = vadd.f32 0.0, %v661
  %v663 = vpop.f32.mrb[0].mxu0
  %664 = vdwg.mxu0
  %v665 = vld [vmem:[%s3 + $0x5] sm:$0x1]
  %v666 = vlaneseq
  %v667 = vshrl.u32 %v666, 7
  %v668 = vsub.s32 0, %v667
  %v669 = vrot.slane %v665, %v668
  %vm670 = vcmp.eq.s32.totalorder %v155, %v669
  %vm671 = vcmp.eq.s32.totalorder %v156, %v669
  %vm672 = vcmp.eq.s32.totalorder %v157, %v669
  %vm673 = vcmp.eq.s32.totalorder %v158, %v669
  %vm674 = vcmp.eq.s32.totalorder %v159, %v669
  %vm675 = vcmp.eq.s32.totalorder %v160, %v669
  %vm676 = vcmp.eq.s32.totalorder %v161, %v669
  %v677 = vsel %vm670, 1.0, 0.0
  %v678 = vsel %vm671, 1.0, 0.0
  %v679 = vsel %vm672, 1.0, 0.0
  %v680 = vsel %vm673, 1.0, 0.0
  %v681 = vsel %vm674, 1.0, 0.0
  %v682 = vsel %vm675, 1.0, 0.0
  %v683 = vsel %vm676, 1.0, 0.0
  %v685 = vsel %vm188, %v683, 0
  %687 = vmatprep.subr.mxu0 0.0
  %688 = vmatpush1.msra.mxu0 %v677
  %689 = vmatprep.subr.mxu0 0.0
  %690 = vmatpush1.msra.mxu0 %v678
  %691 = vmatprep.subr.mxu0 0.0
  %692 = vmatpush1.msra.mxu0 %v679
  %693 = vmatprep.subr.mxu0 0.0
  %694 = vmatpush1.msra.mxu0 %v680
  %695 = vmatprep.subr.mxu0 0.0
  %696 = vmatpush1.msra.mxu0 %v681
  %697 = vmatprep.subr.mxu0 0.0
  %698 = vmatpush1.msra.mxu0 %v682
  %699 = vmatprep.subr.mxu0 0.0
  %700 = vmatpush1.msra.mxu0 %v685
  %701 = vmatprep.subr.mxu0 0.0
  %702 = vmatpush1.msra.mxu0 0.0
  %703 = vmatprep.subr.mxu0 0.0
  %704 = vmatpush1.msra.mxu0 0.0
  %705 = vmatprep.subr.mxu0 0.0
  %706 = vmatpush1.msra.mxu0 0.0
  %707 = vmatprep.subr.mxu0 0.0
  %708 = vmatpush1.msra.mxu0 0.0
  %709 = vmatprep.subr.mxu0 0.0
  %710 = vmatpush1.msra.mxu0 0.0
  %711 = vmatprep.subr.mxu0 0.0
  %712 = vmatpush1.msra.mxu0 0.0
  %713 = vmatprep.subr.mxu0 0.0
  %714 = vmatpush1.msra.mxu0 0.0
  %715 = vmatprep.subr.mxu0 0.0
  %716 = vmatpush1.msra.mxu0 0.0
  %717 = vmatprep.subr.mxu0 0.0
  %718 = vmatpush1.msra.mxu0 0.0
  %719 = vmatprep.subr.mxu0 0.0
  %720 = vmatpush1.msra.mxu0 0.0
  %721 = vmatprep.subr.mxu0 0.0
  %722 = vmatpush1.msra.mxu0 0.0
  %723 = vmatprep.subr.mxu0 0.0
  %724 = vmatpush1.msra.mxu0 0.0
  %725 = vmatprep.subr.mxu0 0.0
  %726 = vmatpush1.msra.mxu0 0.0
  %727 = vmatprep.subr.mxu0 0.0
  %728 = vmatpush1.msra.mxu0 0.0
  %729 = vmatprep.subr.mxu0 0.0
  %730 = vmatpush1.msra.mxu0 0.0
  %731 = vmatprep.subr.mxu0 0.0
  %732 = vmatpush1.msra.mxu0 0.0
  %733 = vmatprep.subr.mxu0 0.0
  %734 = vmatpush1.msra.mxu0 0.0
  %735 = vmatprep.subr.mxu0 0.0
  %736 = vmatpush1.msra.mxu0 0.0
  %737 = vmatprep.subr.mxu0 0.0
  %738 = vmatpush1.msra.mxu0 0.0
  %739 = vmatprep.subr.mxu0 0.0
  %740 = vmatpush1.msra.mxu0 0.0
  %741 = vmatprep.subr.mxu0 0.0
  %742 = vmatpush1.msra.mxu0 0.0
  %743 = vmatprep.subr.mxu0 0.0
  %744 = vmatpush1.msra.mxu0 0.0
  %745 = vmatprep.subr.mxu0 0.0
  %746 = vmatpush1.msra.mxu0 0.0
  %747 = vmatprep.subr.mxu0 0.0
  %748 = vmatpush1.msra.mxu0 0.0
  %749 = vmatprep.subr.mxu0 0.0
  %750 = vmatpush1.msra.mxu0 0.0
  %751 = vmatprep.mubr.f32.mxu0 0.0
  %752 = vmatmul.mubr.f32.gmra.mrb[0].mxu0 %v183
  %v753 = vpop.f32.mrb[0].mxu0
  %v754 = vadd.f32 0.0, %v753
  %v755 = vpop.f32.mrb[0].mxu0
  %756 = vmatprep.mubr.f32.mxu0 0.0
  %757 = vmatmul.mubr.f32.gmra.mrb[0].mxu0 %v186
  %v758 = vpop.f32.mrb[0].mxu0
  %v759 = vadd.f32 0.0, %v758
  %v760 = vpop.f32.mrb[0].mxu0
  %761 = vdwg.mxu0
  %v762 = vmax.f32 %v657, %v754
  %v763 = vmax.f32 %v662, %v759
  %v764 = vld [vmem:[%s3 + $0x6] sm:$0x1]
  %v765 = vlaneseq
  %v766 = vshrl.u32 %v765, 7
  %v767 = vsub.s32 0, %v766
  %v768 = vrot.slane %v764, %v767
  %vm769 = vcmp.eq.s32.totalorder %v155, %v768
  %vm770 = vcmp.eq.s32.totalorder %v156, %v768
  %vm771 = vcmp.eq.s32.totalorder %v157, %v768
  %vm772 = vcmp.eq.s32.totalorder %v158, %v768
  %vm773 = vcmp.eq.s32.totalorder %v159, %v768
  %vm774 = vcmp.eq.s32.totalorder %v160, %v768
  %vm775 = vcmp.eq.s32.totalorder %v161, %v768
  %v776 = vsel %vm769, 1.0, 0.0
  %v777 = vsel %vm770, 1.0, 0.0
  %v778 = vsel %vm771, 1.0, 0.0
  %v779 = vsel %vm772, 1.0, 0.0
  %v780 = vsel %vm773, 1.0, 0.0
  %v781 = vsel %vm774, 1.0, 0.0
  %v782 = vsel %vm775, 1.0, 0.0
  %v784 = vsel %vm188, %v782, 0
  %786 = vmatprep.subr.mxu0 0.0
  %787 = vmatpush1.msra.mxu0 %v776
  %788 = vmatprep.subr.mxu0 0.0
  %789 = vmatpush1.msra.mxu0 %v777
  %790 = vmatprep.subr.mxu0 0.0
  %791 = vmatpush1.msra.mxu0 %v778
  %792 = vmatprep.subr.mxu0 0.0
  %793 = vmatpush1.msra.mxu0 %v779
  %794 = vmatprep.subr.mxu0 0.0
  %795 = vmatpush1.msra.mxu0 %v780
  %796 = vmatprep.subr.mxu0 0.0
  %797 = vmatpush1.msra.mxu0 %v781
  %798 = vmatprep.subr.mxu0 0.0
  %799 = vmatpush1.msra.mxu0 %v784
  %800 = vmatprep.subr.mxu0 0.0
  %801 = vmatpush1.msra.mxu0 0.0
  %802 = vmatprep.subr.mxu0 0.0
  %803 = vmatpush1.msra.mxu0 0.0
  %804 = vmatprep.subr.mxu0 0.0
  %805 = vmatpush1.msra.mxu0 0.0
  %806 = vmatprep.subr.mxu0 0.0
  %807 = vmatpush1.msra.mxu0 0.0
  %808 = vmatprep.subr.mxu0 0.0
  %809 = vmatpush1.msra.mxu0 0.0
  %810 = vmatprep.subr.mxu0 0.0
  %811 = vmatpush1.msra.mxu0 0.0
  %812 = vmatprep.subr.mxu0 0.0
  %813 = vmatpush1.msra.mxu0 0.0
  %814 = vmatprep.subr.mxu0 0.0
  %815 = vmatpush1.msra.mxu0 0.0
  %816 = vmatprep.subr.mxu0 0.0
  %817 = vmatpush1.msra.mxu0 0.0
  %818 = vmatprep.subr.mxu0 0.0
  %819 = vmatpush1.msra.mxu0 0.0
  %820 = vmatprep.subr.mxu0 0.0
  %821 = vmatpush1.msra.mxu0 0.0
  %822 = vmatprep.subr.mxu0 0.0
  %823 = vmatpush1.msra.mxu0 0.0
  %824 = vmatprep.subr.mxu0 0.0
  %825 = vmatpush1.msra.mxu0 0.0
  %826 = vmatprep.subr.mxu0 0.0
  %827 = vmatpush1.msra.mxu0 0.0
  %828 = vmatprep.subr.mxu0 0.0
  %829 = vmatpush1.msra.mxu0 0.0
  %830 = vmatprep.subr.mxu0 0.0
  %831 = vmatpush1.msra.mxu0 0.0
  %832 = vmatprep.subr.mxu0 0.0
  %833 = vmatpush1.msra.mxu0 0.0
  %834 = vmatprep.subr.mxu0 0.0
  %835 = vmatpush1.msra.mxu0 0.0
  %836 = vmatprep.subr.mxu0 0.0
  %837 = vmatpush1.msra.mxu0 0.0
  %838 = vmatprep.subr.mxu0 0.0
  %839 = vmatpush1.msra.mxu0 0.0
  %840 = vmatprep.subr.mxu0 0.0
  %841 = vmatpush1.msra.mxu0 0.0
  %842 = vmatprep.subr.mxu0 0.0
  %843 = vmatpush1.msra.mxu0 0.0
  %844 = vmatprep.subr.mxu0 0.0
  %845 = vmatpush1.msra.mxu0 0.0
  %846 = vmatprep.subr.mxu0 0.0
  %847 = vmatpush1.msra.mxu0 0.0
  %848 = vmatprep.subr.mxu0 0.0
  %849 = vmatpush1.msra.mxu0 0.0
  %850 = vmatprep.mubr.f32.mxu0 0.0
  %851 = vmatmul.mubr.f32.gmra.mrb[0].mxu0 %v183
  %v852 = vpop.f32.mrb[0].mxu0
  %v853 = vadd.f32 0.0, %v852
  %v854 = vpop.f32.mrb[0].mxu0
  %855 = vmatprep.mubr.f32.mxu0 0.0
  %856 = vmatmul.mubr.f32.gmra.mrb[0].mxu0 %v186
  %v857 = vpop.f32.mrb[0].mxu0
  %v858 = vadd.f32 0.0, %v857
  %v859 = vpop.f32.mrb[0].mxu0
  %860 = vdwg.mxu0
  %v861 = vmax.f32 %v762, %v853
  %v862 = vmax.f32 %v763, %v858
  %v863 = vld [vmem:[%s3 + $0x7] sm:$0x1]
  %v864 = vlaneseq
  %v865 = vshrl.u32 %v864, 7
  %v866 = vsub.s32 0, %v865
  %v867 = vrot.slane %v863, %v866
  %vm868 = vcmp.eq.s32.totalorder %v155, %v867
  %vm869 = vcmp.eq.s32.totalorder %v156, %v867
  %vm870 = vcmp.eq.s32.totalorder %v157, %v867
  %vm871 = vcmp.eq.s32.totalorder %v158, %v867
  %vm872 = vcmp.eq.s32.totalorder %v159, %v867
  %vm873 = vcmp.eq.s32.totalorder %v160, %v867
  %vm874 = vcmp.eq.s32.totalorder %v161, %v867
  %v875 = vsel %vm868, 1.0, 0.0
  %v876 = vsel %vm869, 1.0, 0.0
  %v877 = vsel %vm870, 1.0, 0.0
  %v878 = vsel %vm871, 1.0, 0.0
  %v879 = vsel %vm872, 1.0, 0.0
  %v880 = vsel %vm873, 1.0, 0.0
  %v881 = vsel %vm874, 1.0, 0.0
  %v883 = vsel %vm188, %v881, 0
  %885 = vmatprep.subr.mxu0 0.0
  %886 = vmatpush1.msra.mxu0 %v875
  %887 = vmatprep.subr.mxu0 0.0
  %888 = vmatpush1.msra.mxu0 %v876
  %889 = vmatprep.subr.mxu0 0.0
  %890 = vmatpush1.msra.mxu0 %v877
  %891 = vmatprep.subr.mxu0 0.0
  %892 = vmatpush1.msra.mxu0 %v878
  %893 = vmatprep.subr.mxu0 0.0
  %894 = vmatpush1.msra.mxu0 %v879
  %895 = vmatprep.subr.mxu0 0.0
  %896 = vmatpush1.msra.mxu0 %v880
  %897 = vmatprep.subr.mxu0 0.0
  %898 = vmatpush1.msra.mxu0 %v883
  %899 = vmatprep.subr.mxu0 0.0
  %900 = vmatpush1.msra.mxu0 0.0
  %901 = vmatprep.subr.mxu0 0.0
  %902 = vmatpush1.msra.mxu0 0.0
  %903 = vmatprep.subr.mxu0 0.0
  %904 = vmatpush1.msra.mxu0 0.0
  %905 = vmatprep.subr.mxu0 0.0
  %906 = vmatpush1.msra.mxu0 0.0
  %907 = vmatprep.subr.mxu0 0.0
  %908 = vmatpush1.msra.mxu0 0.0
  %909 = vmatprep.subr.mxu0 0.0
  %910 = vmatpush1.msra.mxu0 0.0
  %911 = vmatprep.subr.mxu0 0.0
  %912 = vmatpush1.msra.mxu0 0.0
  %913 = vmatprep.subr.mxu0 0.0
  %914 = vmatpush1.msra.mxu0 0.0
  %915 = vmatprep.subr.mxu0 0.0
  %916 = vmatpush1.msra.mxu0 0.0
  %917 = vmatprep.subr.mxu0 0.0
  %918 = vmatpush1.msra.mxu0 0.0
  %919 = vmatprep.subr.mxu0 0.0
  %920 = vmatpush1.msra.mxu0 0.0
  %921 = vmatprep.subr.mxu0 0.0
  %922 = vmatpush1.msra.mxu0 0.0
  %923 = vmatprep.subr.mxu0 0.0
  %924 = vmatpush1.msra.mxu0 0.0
  %925 = vmatprep.subr.mxu0 0.0
  %926 = vmatpush1.msra.mxu0 0.0
  %927 = vmatprep.subr.mxu0 0.0
  %928 = vmatpush1.msra.mxu0 0.0
  %929 = vmatprep.subr.mxu0 0.0
  %930 = vmatpush1.msra.mxu0 0.0
  %931 = vmatprep.subr.mxu0 0.0
  %932 = vmatpush1.msra.mxu0 0.0
  %933 = vmatprep.subr.mxu0 0.0
  %934 = vmatpush1.msra.mxu0 0.0
  %935 = vmatprep.subr.mxu0 0.0
  %936 = vmatpush1.msra.mxu0 0.0
  %937 = vmatprep.subr.mxu0 0.0
  %938 = vmatpush1.msra.mxu0 0.0
  %939 = vmatprep.subr.mxu0 0.0
  %940 = vmatpush1.msra.mxu0 0.0
  %941 = vmatprep.subr.mxu0 0.0
  %942 = vmatpush1.msra.mxu0 0.0
  %943 = vmatprep.subr.mxu0 0.0
  %944 = vmatpush1.msra.mxu0 0.0
  %945 = vmatprep.subr.mxu0 0.0
  %946 = vmatpush1.msra.mxu0 0.0
  %947 = vmatprep.subr.mxu0 0.0
  %948 = vmatpush1.msra.mxu0 0.0
  %949 = vmatprep.mubr.f32.mxu0 0.0
  %950 = vmatmul.mubr.f32.gmra.mrb[0].mxu0 %v183
  %v951 = vpop.f32.mrb[0].mxu0
  %v952 = vadd.f32 0.0, %v951
  %v953 = vpop.f32.mrb[0].mxu0
  %954 = vmatprep.mubr.f32.mxu0 0.0
  %955 = vmatmul.mubr.f32.gmra.mrb[0].mxu0 %v186
  %v956 = vpop.f32.mrb[0].mxu0
  %v957 = vadd.f32 0.0, %v956
  %v958 = vpop.f32.mrb[0].mxu0
  %959 = vdwg.mxu0
  %v960 = vmax.f32 %v861, %v952
  %v961 = vmax.f32 %v862, %v957
  %s962 = scalar_lea.vmem %s4, 32
  %v963 = vld [vmem:[%s962] sm:$0xff]
  %v964 = vld [vmem:[%s962 + $0x8] sm:$0xff]
  %v965 = vld [vmem:[%s962 + $0x10] sm:$0xff]
  %v966 = vld [vmem:[%s962 + $0x18] sm:$0xff]
  %vm967 = vcmask 80896
  %v969 = vsel %vm967, %v963, 0
  %v972 = vsel %vm967, %v964, 0
  %v975 = vsel %vm967, %v965, 0
  %v978 = vsel %vm967, %v966, 0
  %v981 = vsel %vm188, %v961, 0
  %983 = vmatprep.subr.mxu0 0.0
  %984 = vmatpush1.msra.mxu0 %v960
  %985 = vmatprep.subr.mxu0 0.0
  %986 = vmatpush1.msra.mxu0 %v981
  %987 = vmatprep.subr.mxu0 0.0
  %988 = vmatpush1.msra.mxu0 0.0
  %989 = vmatprep.subr.mxu0 0.0
  %990 = vmatpush1.msra.mxu0 0.0
  %991 = vmatprep.subr.mxu0 0.0
  %992 = vmatpush1.msra.mxu0 0.0
  %993 = vmatprep.subr.mxu0 0.0
  %994 = vmatpush1.msra.mxu0 0.0
  %995 = vmatprep.subr.mxu0 0.0
  %996 = vmatpush1.msra.mxu0 0.0
  %997 = vmatprep.subr.mxu0 0.0
  %998 = vmatpush1.msra.mxu0 0.0
  %999 = vmatprep.subr.mxu0 0.0
  %1000 = vmatpush1.msra.mxu0 0.0
  %1001 = vmatprep.subr.mxu0 0.0
  %1002 = vmatpush1.msra.mxu0 0.0
  %1003 = vmatprep.subr.mxu0 0.0
  %1004 = vmatpush1.msra.mxu0 0.0
  %1005 = vmatprep.subr.mxu0 0.0
  %1006 = vmatpush1.msra.mxu0 0.0
  %1007 = vmatprep.subr.mxu0 0.0
  %1008 = vmatpush1.msra.mxu0 0.0
  %1009 = vmatprep.subr.mxu0 0.0
  %1010 = vmatpush1.msra.mxu0 0.0
  %1011 = vmatprep.subr.mxu0 0.0
  %1012 = vmatpush1.msra.mxu0 0.0
  %1013 = vmatprep.subr.mxu0 0.0
  %1014 = vmatpush1.msra.mxu0 0.0
  %1015 = vmatprep.subr.mxu0 0.0
  %1016 = vmatpush1.msra.mxu0 0.0
  %1017 = vmatprep.subr.mxu0 0.0
  %1018 = vmatpush1.msra.mxu0 0.0
  %1019 = vmatprep.subr.mxu0 0.0
  %1020 = vmatpush1.msra.mxu0 0.0
  %1021 = vmatprep.subr.mxu0 0.0
  %1022 = vmatpush1.msra.mxu0 0.0
  %1023 = vmatprep.subr.mxu0 0.0
  %1024 = vmatpush1.msra.mxu0 0.0
  %1025 = vmatprep.subr.mxu0 0.0
  %1026 = vmatpush1.msra.mxu0 0.0
  %1027 = vmatprep.subr.mxu0 0.0
  %1028 = vmatpush1.msra.mxu0 0.0
  %1029 = vmatprep.subr.mxu0 0.0
  %1030 = vmatpush1.msra.mxu0 0.0
  %1031 = vmatprep.subr.mxu0 0.0
  %1032 = vmatpush1.msra.mxu0 0.0
  %1033 = vmatprep.subr.mxu0 0.0
  %1034 = vmatpush1.msra.mxu0 0.0
  %1035 = vmatprep.subr.mxu0 0.0
  %1036 = vmatpush1.msra.mxu0 0.0
  %1037 = vmatprep.subr.mxu0 0.0
  %1038 = vmatpush1.msra.mxu0 0.0
  %1039 = vmatprep.subr.mxu0 0.0
  %1040 = vmatpush1.msra.mxu0 0.0
  %1041 = vmatprep.subr.mxu0 0.0
  %1042 = vmatpush1.msra.mxu0 0.0
  %1043 = vmatprep.subr.mxu0 0.0
  %1044 = vmatpush1.msra.mxu0 0.0
  %1045 = vmatprep.subr.mxu0 0.0
  %1046 = vmatpush1.msra.mxu0 0.0
  %1047 = vmatprep.mubr.f32.mxu0 0.0
  %1048 = vmatmul.mubr.f32.gmra.mrb[0].mxu0 %v969
  %v1049 = vpop.f32.mrb[0].mxu0
  %v1050 = vadd.f32 0.0, %v1049
  %v1051 = vpop.f32.mrb[0].mxu0
  %1052 = vmatprep.mubr.f32.mxu0 0.0
  %1053 = vmatmul.mubr.f32.gmra.mrb[0].mxu0 %v972
  %v1054 = vpop.f32.mrb[0].mxu0
  %v1055 = vadd.f32 0.0, %v1054
  %v1056 = vpop.f32.mrb[0].mxu0
  %1057 = vmatprep.mubr.f32.mxu0 0.0
  %1058 = vmatmul.mubr.f32.gmra.mrb[0].mxu0 %v975
  %v1059 = vpop.f32.mrb[0].mxu0
  %v1060 = vadd.f32 0.0, %v1059
  %v1061 = vpop.f32.mrb[0].mxu0
  %1062 = vmatprep.mubr.f32.mxu0 0.0
  %1063 = vmatmul.mubr.f32.gmra.mrb[0].mxu0 %v978
  %v1064 = vpop.f32.mrb[0].mxu0
  %v1065 = vadd.f32 0.0, %v1064
  %v1066 = vpop.f32.mrb[0].mxu0
  %1067 = vdwg.mxu0
  %v1069 = vsel %vm967, %v564, 0
  %v1072 = vsel %vm967, %v565, 0
  %v1075 = vsel %vm967, %v566, 0
  %v1078 = vsel %vm967, %v567, 0
  %v1081 = vsel %vm188, %v563, 0
  %1083 = vmatprep.subr.mxu0 0.0
  %1084 = vmatpush1.msra.mxu0 %v562
  %1085 = vmatprep.subr.mxu0 0.0
  %1086 = vmatpush1.msra.mxu0 %v1081
  %1087 = vmatprep.subr.mxu0 0.0
  %1088 = vmatpush1.msra.mxu0 0.0
  %1089 = vmatprep.subr.mxu0 0.0
  %1090 = vmatpush1.msra.mxu0 0.0
  %1091 = vmatprep.subr.mxu0 0.0
  %1092 = vmatpush1.msra.mxu0 0.0
  %1093 = vmatprep.subr.mxu0 0.0
  %1094 = vmatpush1.msra.mxu0 0.0
  %1095 = vmatprep.subr.mxu0 0.0
  %1096 = vmatpush1.msra.mxu0 0.0
  %1097 = vmatprep.subr.mxu0 0.0
  %1098 = vmatpush1.msra.mxu0 0.0
  %1099 = vmatprep.subr.mxu0 0.0
  %1100 = vmatpush1.msra.mxu0 0.0
  %1101 = vmatprep.subr.mxu0 0.0
  %1102 = vmatpush1.msra.mxu0 0.0
  %1103 = vmatprep.subr.mxu0 0.0
  %1104 = vmatpush1.msra.mxu0 0.0
  %1105 = vmatprep.subr.mxu0 0.0
  %1106 = vmatpush1.msra.mxu0 0.0
  %1107 = vmatprep.subr.mxu0 0.0
  %1108 = vmatpush1.msra.mxu0 0.0
  %1109 = vmatprep.subr.mxu0 0.0
  %1110 = vmatpush1.msra.mxu0 0.0
  %1111 = vmatprep.subr.mxu0 0.0
  %1112 = vmatpush1.msra.mxu0 0.0
  %1113 = vmatprep.subr.mxu0 0.0
  %1114 = vmatpush1.msra.mxu0 0.0
  %1115 = vmatprep.subr.mxu0 0.0
  %1116 = vmatpush1.msra.mxu0 0.0
  %1117 = vmatprep.subr.mxu0 0.0
  %1118 = vmatpush1.msra.mxu0 0.0
  %1119 = vmatprep.subr.mxu0 0.0
  %1120 = vmatpush1.msra.mxu0 0.0
  %1121 = vmatprep.subr.mxu0 0.0
  %1122 = vmatpush1.msra.mxu0 0.0
  %1123 = vmatprep.subr.mxu0 0.0
  %1124 = vmatpush1.msra.mxu0 0.0
  %1125 = vmatprep.subr.mxu0 0.0
  %1126 = vmatpush1.msra.mxu0 0.0
  %1127 = vmatprep.subr.mxu0 0.0
  %1128 = vmatpush1.msra.mxu0 0.0
  %1129 = vmatprep.subr.mxu0 0.0
  %1130 = vmatpush1.msra.mxu0 0.0
  %1131 = vmatprep.subr.mxu0 0.0
  %1132 = vmatpush1.msra.mxu0 0.0
  %1133 = vmatprep.subr.mxu0 0.0
  %1134 = vmatpush1.msra.mxu0 0.0
  %1135 = vmatprep.subr.mxu0 0.0
  %1136 = vmatpush1.msra.mxu0 0.0
  %1137 = vmatprep.subr.mxu0 0.0
  %1138 = vmatpush1.msra.mxu0 0.0
  %1139 = vmatprep.subr.mxu0 0.0
  %1140 = vmatpush1.msra.mxu0 0.0
  %1141 = vmatprep.subr.mxu0 0.0
  %1142 = vmatpush1.msra.mxu0 0.0
  %1143 = vmatprep.subr.mxu0 0.0
  %1144 = vmatpush1.msra.mxu0 0.0
  %1145 = vmatprep.subr.mxu0 0.0
  %1146 = vmatpush1.msra.mxu0 0.0
  %1147 = vmatprep.mubr.f32.mxu0 0.0
  %1148 = vmatmul.mubr.f32.gmra.mrb[0].mxu0 %v1069
  %v1149 = vpop.f32.mrb[0].mxu0
  %v1150 = vadd.f32 %v1050, %v1149
  %v1151 = vpop.f32.mrb[0].mxu0
  %1152 = vmatprep.mubr.f32.mxu0 0.0
  %1153 = vmatmul.mubr.f32.gmra.mrb[0].mxu0 %v1072
  %v1154 = vpop.f32.mrb[0].mxu0
  %v1155 = vadd.f32 %v1055, %v1154
  %v1156 = vpop.f32.mrb[0].mxu0
  %1157 = vmatprep.mubr.f32.mxu0 0.0
  %1158 = vmatmul.mubr.f32.gmra.mrb[0].mxu0 %v1075
  %v1159 = vpop.f32.mrb[0].mxu0
  %v1160 = vadd.f32 %v1060, %v1159
  %v1161 = vpop.f32.mrb[0].mxu0
  %1162 = vmatprep.mubr.f32.mxu0 0.0
  %1163 = vmatmul.mubr.f32.gmra.mrb[0].mxu0 %v1078
  %v1164 = vpop.f32.mrb[0].mxu0
  %v1165 = vadd.f32 %v1065, %v1164
  %v1166 = vpop.f32.mrb[0].mxu0
  %1167 = vdwg.mxu0
  %v1168 = vld [vmem:[%s3 + $0x8] sm:$0x1]
  %v1169 = vlaneseq
  %v1170 = vshrl.u32 %v1169, 7
  %v1171 = vsub.s32 0, %v1170
  %v1172 = vrot.slane %v1168, %v1171
  %vm1173 = vcmp.eq.s32.totalorder %v155, %v1172
  %vm1174 = vcmp.eq.s32.totalorder %v156, %v1172
  %vm1175 = vcmp.eq.s32.totalorder %v157, %v1172
  %vm1176 = vcmp.eq.s32.totalorder %v158, %v1172
  %vm1177 = vcmp.eq.s32.totalorder %v159, %v1172
  %vm1178 = vcmp.eq.s32.totalorder %v160, %v1172
  %vm1179 = vcmp.eq.s32.totalorder %v161, %v1172
  %v1180 = vsel %vm1173, 1.0, 0.0
  %v1181 = vsel %vm1174, 1.0, 0.0
  %v1182 = vsel %vm1175, 1.0, 0.0
  %v1183 = vsel %vm1176, 1.0, 0.0
  %v1184 = vsel %vm1177, 1.0, 0.0
  %v1185 = vsel %vm1178, 1.0, 0.0
  %v1186 = vsel %vm1179, 1.0, 0.0
  %v1188 = vsel %vm188, %v1186, 0
  %1190 = vmatprep.subr.mxu0 0.0
  %1191 = vmatpush1.msra.mxu0 %v1180
  %1192 = vmatprep.subr.mxu0 0.0
  %1193 = vmatpush1.msra.mxu0 %v1181
  %1194 = vmatprep.subr.mxu0 0.0
  %1195 = vmatpush1.msra.mxu0 %v1182
  %1196 = vmatprep.subr.mxu0 0.0
  %1197 = vmatpush1.msra.mxu0 %v1183
  %1198 = vmatprep.subr.mxu0 0.0
  %1199 = vmatpush1.msra.mxu0 %v1184
  %1200 = vmatprep.subr.mxu0 0.0
  %1201 = vmatpush1.msra.mxu0 %v1185
  %1202 = vmatprep.subr.mxu0 0.0
  %1203 = vmatpush1.msra.mxu0 %v1188
  %1204 = vmatprep.subr.mxu0 0.0
  %1205 = vmatpush1.msra.mxu0 0.0
  %1206 = vmatprep.subr.mxu0 0.0
  %1207 = vmatpush1.msra.mxu0 0.0
  %1208 = vmatprep.subr.mxu0 0.0
  %1209 = vmatpush1.msra.mxu0 0.0
  %1210 = vmatprep.subr.mxu0 0.0
  %1211 = vmatpush1.msra.mxu0 0.0
  %1212 = vmatprep.subr.mxu0 0.0
  %1213 = vmatpush1.msra.mxu0 0.0
  %1214 = vmatprep.subr.mxu0 0.0
  %1215 = vmatpush1.msra.mxu0 0.0
  %1216 = vmatprep.subr.mxu0 0.0
  %1217 = vmatpush1.msra.mxu0 0.0
  %1218 = vmatprep.subr.mxu0 0.0
  %1219 = vmatpush1.msra.mxu0 0.0
  %1220 = vmatprep.subr.mxu0 0.0
  %1221 = vmatpush1.msra.mxu0 0.0
  %1222 = vmatprep.subr.mxu0 0.0
  %1223 = vmatpush1.msra.mxu0 0.0
  %1224 = vmatprep.subr.mxu0 0.0
  %1225 = vmatpush1.msra.mxu0 0.0
  %1226 = vmatprep.subr.mxu0 0.0
  %1227 = vmatpush1.msra.mxu0 0.0
  %1228 = vmatprep.subr.mxu0 0.0
  %1229 = vmatpush1.msra.mxu0 0.0
  %1230 = vmatprep.subr.mxu0 0.0
  %1231 = vmatpush1.msra.mxu0 0.0
  %1232 = vmatprep.subr.mxu0 0.0
  %1233 = vmatpush1.msra.mxu0 0.0
  %1234 = vmatprep.subr.mxu0 0.0
  %1235 = vmatpush1.msra.mxu0 0.0
  %1236 = vmatprep.subr.mxu0 0.0
  %1237 = vmatpush1.msra.mxu0 0.0
  %1238 = vmatprep.subr.mxu0 0.0
  %1239 = vmatpush1.msra.mxu0 0.0
  %1240 = vmatprep.subr.mxu0 0.0
  %1241 = vmatpush1.msra.mxu0 0.0
  %1242 = vmatprep.subr.mxu0 0.0
  %1243 = vmatpush1.msra.mxu0 0.0
  %1244 = vmatprep.subr.mxu0 0.0
  %1245 = vmatpush1.msra.mxu0 0.0
  %1246 = vmatprep.subr.mxu0 0.0
  %1247 = vmatpush1.msra.mxu0 0.0
  %1248 = vmatprep.subr.mxu0 0.0
  %1249 = vmatpush1.msra.mxu0 0.0
  %1250 = vmatprep.subr.mxu0 0.0
  %1251 = vmatpush1.msra.mxu0 0.0
  %1252 = vmatprep.subr.mxu0 0.0
  %1253 = vmatpush1.msra.mxu0 0.0
  %1254 = vmatprep.mubr.f32.mxu0 0.0
  %1255 = vmatmul.mubr.f32.gmra.mrb[0].mxu0 %v183
  %v1256 = vpop.f32.mrb[0].mxu0
  %v1257 = vadd.f32 0.0, %v1256
  %v1258 = vpop.f32.mrb[0].mxu0
  %1259 = vmatprep.mubr.f32.mxu0 0.0
  %1260 = vmatmul.mubr.f32.gmra.mrb[0].mxu0 %v186
  %v1261 = vpop.f32.mrb[0].mxu0
  %v1262 = vadd.f32 0.0, %v1261
  %v1263 = vpop.f32.mrb[0].mxu0
  %1264 = vdwg.mxu0
  %v1265 = vld [vmem:[%s3 + $0x9] sm:$0x1]
  %v1266 = vlaneseq
  %v1267 = vshrl.u32 %v1266, 7
  %v1268 = vsub.s32 0, %v1267
  %v1269 = vrot.slane %v1265, %v1268
  %vm1270 = vcmp.eq.s32.totalorder %v155, %v1269
  %vm1271 = vcmp.eq.s32.totalorder %v156, %v1269
  %vm1272 = vcmp.eq.s32.totalorder %v157, %v1269
  %vm1273 = vcmp.eq.s32.totalorder %v158, %v1269
  %vm1274 = vcmp.eq.s32.totalorder %v159, %v1269
  %vm1275 = vcmp.eq.s32.totalorder %v160, %v1269
  %vm1276 = vcmp.eq.s32.totalorder %v161, %v1269
  %v1277 = vsel %vm1270, 1.0, 0.0
  %v1278 = vsel %vm1271, 1.0, 0.0
  %v1279 = vsel %vm1272, 1.0, 0.0
  %v1280 = vsel %vm1273, 1.0, 0.0
  %v1281 = vsel %vm1274, 1.0, 0.0
  %v1282 = vsel %vm1275, 1.0, 0.0
  %v1283 = vsel %vm1276, 1.0, 0.0
  %v1285 = vsel %vm188, %v1283, 0
  %1287 = vmatprep.subr.mxu0 0.0
  %1288 = vmatpush1.msra.mxu0 %v1277
  %1289 = vmatprep.subr.mxu0 0.0
  %1290 = vmatpush1.msra.mxu0 %v1278
  %1291 = vmatprep.subr.mxu0 0.0
  %1292 = vmatpush1.msra.mxu0 %v1279
  %1293 = vmatprep.subr.mxu0 0.0
  %1294 = vmatpush1.msra.mxu0 %v1280
  %1295 = vmatprep.subr.mxu0 0.0
  %1296 = vmatpush1.msra.mxu0 %v1281
  %1297 = vmatprep.subr.mxu0 0.0
  %1298 = vmatpush1.msra.mxu0 %v1282
  %1299 = vmatprep.subr.mxu0 0.0
  %1300 = vmatpush1.msra.mxu0 %v1285
  %1301 = vmatprep.subr.mxu0 0.0
  %1302 = vmatpush1.msra.mxu0 0.0
  %1303 = vmatprep.subr.mxu0 0.0
  %1304 = vmatpush1.msra.mxu0 0.0
  %1305 = vmatprep.subr.mxu0 0.0
  %1306 = vmatpush1.msra.mxu0 0.0
  %1307 = vmatprep.subr.mxu0 0.0
  %1308 = vmatpush1.msra.mxu0 0.0
  %1309 = vmatprep.subr.mxu0 0.0
  %1310 = vmatpush1.msra.mxu0 0.0
  %1311 = vmatprep.subr.mxu0 0.0
  %1312 = vmatpush1.msra.mxu0 0.0
  %1313 = vmatprep.subr.mxu0 0.0
  %1314 = vmatpush1.msra.mxu0 0.0
  %1315 = vmatprep.subr.mxu0 0.0
  %1316 = vmatpush1.msra.mxu0 0.0
  %1317 = vmatprep.subr.mxu0 0.0
  %1318 = vmatpush1.msra.mxu0 0.0
  %1319 = vmatprep.subr.mxu0 0.0
  %1320 = vmatpush1.msra.mxu0 0.0
  %1321 = vmatprep.subr.mxu0 0.0
  %1322 = vmatpush1.msra.mxu0 0.0
  %1323 = vmatprep.subr.mxu0 0.0
  %1324 = vmatpush1.msra.mxu0 0.0
  %1325 = vmatprep.subr.mxu0 0.0
  %1326 = vmatpush1.msra.mxu0 0.0
  %1327 = vmatprep.subr.mxu0 0.0
  %1328 = vmatpush1.msra.mxu0 0.0
  %1329 = vmatprep.subr.mxu0 0.0
  %1330 = vmatpush1.msra.mxu0 0.0
  %1331 = vmatprep.subr.mxu0 0.0
  %1332 = vmatpush1.msra.mxu0 0.0
  %1333 = vmatprep.subr.mxu0 0.0
  %1334 = vmatpush1.msra.mxu0 0.0
  %1335 = vmatprep.subr.mxu0 0.0
  %1336 = vmatpush1.msra.mxu0 0.0
  %1337 = vmatprep.subr.mxu0 0.0
  %1338 = vmatpush1.msra.mxu0 0.0
  %1339 = vmatprep.subr.mxu0 0.0
  %1340 = vmatpush1.msra.mxu0 0.0
  %1341 = vmatprep.subr.mxu0 0.0
  %1342 = vmatpush1.msra.mxu0 0.0
  %1343 = vmatprep.subr.mxu0 0.0
  %1344 = vmatpush1.msra.mxu0 0.0
  %1345 = vmatprep.subr.mxu0 0.0
  %1346 = vmatpush1.msra.mxu0 0.0
  %1347 = vmatprep.subr.mxu0 0.0
  %1348 = vmatpush1.msra.mxu0 0.0
  %1349 = vmatprep.subr.mxu0 0.0
  %1350 = vmatpush1.msra.mxu0 0.0
  %1351 = vmatprep.mubr.f32.mxu0 0.0
  %1352 = vmatmul.mubr.f32.gmra.mrb[0].mxu0 %v183
  %v1353 = vpop.f32.mrb[0].mxu0
  %v1354 = vadd.f32 0.0, %v1353
  %v1355 = vpop.f32.mrb[0].mxu0
  %1356 = vmatprep.mubr.f32.mxu0 0.0
  %1357 = vmatmul.mubr.f32.gmra.mrb[0].mxu0 %v186
  %v1358 = vpop.f32.mrb[0].mxu0
  %v1359 = vadd.f32 0.0, %v1358
  %v1360 = vpop.f32.mrb[0].mxu0
  %1361 = vdwg.mxu0
  %v1362 = vmax.f32 %v1257, %v1354
  %v1363 = vmax.f32 %v1262, %v1359
  %v1364 = vld [vmem:[%s3 + $0xa] sm:$0x1]
  %v1365 = vlaneseq
  %v1366 = vshrl.u32 %v1365, 7
  %v1367 = vsub.s32 0, %v1366
  %v1368 = vrot.slane %v1364, %v1367
  %vm1369 = vcmp.eq.s32.totalorder %v155, %v1368
  %vm1370 = vcmp.eq.s32.totalorder %v156, %v1368
  %vm1371 = vcmp.eq.s32.totalorder %v157, %v1368
  %vm1372 = vcmp.eq.s32.totalorder %v158, %v1368
  %vm1373 = vcmp.eq.s32.totalorder %v159, %v1368
  %vm1374 = vcmp.eq.s32.totalorder %v160, %v1368
  %vm1375 = vcmp.eq.s32.totalorder %v161, %v1368
  %v1376 = vsel %vm1369, 1.0, 0.0
  %v1377 = vsel %vm1370, 1.0, 0.0
  %v1378 = vsel %vm1371, 1.0, 0.0
  %v1379 = vsel %vm1372, 1.0, 0.0
  %v1380 = vsel %vm1373, 1.0, 0.0
  %v1381 = vsel %vm1374, 1.0, 0.0
  %v1382 = vsel %vm1375, 1.0, 0.0
  %v1384 = vsel %vm188, %v1382, 0
  %1386 = vmatprep.subr.mxu0 0.0
  %1387 = vmatpush1.msra.mxu0 %v1376
  %1388 = vmatprep.subr.mxu0 0.0
  %1389 = vmatpush1.msra.mxu0 %v1377
  %1390 = vmatprep.subr.mxu0 0.0
  %1391 = vmatpush1.msra.mxu0 %v1378
  %1392 = vmatprep.subr.mxu0 0.0
  %1393 = vmatpush1.msra.mxu0 %v1379
  %1394 = vmatprep.subr.mxu0 0.0
  %1395 = vmatpush1.msra.mxu0 %v1380
  %1396 = vmatprep.subr.mxu0 0.0
  %1397 = vmatpush1.msra.mxu0 %v1381
  %1398 = vmatprep.subr.mxu0 0.0
  %1399 = vmatpush1.msra.mxu0 %v1384
  %1400 = vmatprep.subr.mxu0 0.0
  %1401 = vmatpush1.msra.mxu0 0.0
  %1402 = vmatprep.subr.mxu0 0.0
  %1403 = vmatpush1.msra.mxu0 0.0
  %1404 = vmatprep.subr.mxu0 0.0
  %1405 = vmatpush1.msra.mxu0 0.0
  %1406 = vmatprep.subr.mxu0 0.0
  %1407 = vmatpush1.msra.mxu0 0.0
  %1408 = vmatprep.subr.mxu0 0.0
  %1409 = vmatpush1.msra.mxu0 0.0
  %1410 = vmatprep.subr.mxu0 0.0
  %1411 = vmatpush1.msra.mxu0 0.0
  %1412 = vmatprep.subr.mxu0 0.0
  %1413 = vmatpush1.msra.mxu0 0.0
  %1414 = vmatprep.subr.mxu0 0.0
  %1415 = vmatpush1.msra.mxu0 0.0
  %1416 = vmatprep.subr.mxu0 0.0
  %1417 = vmatpush1.msra.mxu0 0.0
  %1418 = vmatprep.subr.mxu0 0.0
  %1419 = vmatpush1.msra.mxu0 0.0
  %1420 = vmatprep.subr.mxu0 0.0
  %1421 = vmatpush1.msra.mxu0 0.0
  %1422 = vmatprep.subr.mxu0 0.0
  %1423 = vmatpush1.msra.mxu0 0.0
  %1424 = vmatprep.subr.mxu0 0.0
  %1425 = vmatpush1.msra.mxu0 0.0
  %1426 = vmatprep.subr.mxu0 0.0
  %1427 = vmatpush1.msra.mxu0 0.0
  %1428 = vmatprep.subr.mxu0 0.0
  %1429 = vmatpush1.msra.mxu0 0.0
  %1430 = vmatprep.subr.mxu0 0.0
  %1431 = vmatpush1.msra.mxu0 0.0
  %1432 = vmatprep.subr.mxu0 0.0
  %1433 = vmatpush1.msra.mxu0 0.0
  %1434 = vmatprep.subr.mxu0 0.0
  %1435 = vmatpush1.msra.mxu0 0.0
  %1436 = vmatprep.subr.mxu0 0.0
  %1437 = vmatpush1.msra.mxu0 0.0
  %1438 = vmatprep.subr.mxu0 0.0
  %1439 = vmatpush1.msra.mxu0 0.0
  %1440 = vmatprep.subr.mxu0 0.0
  %1441 = vmatpush1.msra.mxu0 0.0
  %1442 = vmatprep.subr.mxu0 0.0
  %1443 = vmatpush1.msra.mxu0 0.0
  %1444 = vmatprep.subr.mxu0 0.0
  %1445 = vmatpush1.msra.mxu0 0.0
  %1446 = vmatprep.subr.mxu0 0.0
  %1447 = vmatpush1.msra.mxu0 0.0
  %1448 = vmatprep.subr.mxu0 0.0
  %1449 = vmatpush1.msra.mxu0 0.0
  %1450 = vmatprep.mubr.f32.mxu0 0.0
  %1451 = vmatmul.mubr.f32.gmra.mrb[0].mxu0 %v183
  %v1452 = vpop.f32.mrb[0].mxu0
  %v1453 = vadd.f32 0.0, %v1452
  %v1454 = vpop.f32.mrb[0].mxu0
  %1455 = vmatprep.mubr.f32.mxu0 0.0
  %1456 = vmatmul.mubr.f32.gmra.mrb[0].mxu0 %v186
  %v1457 = vpop.f32.mrb[0].mxu0
  %v1458 = vadd.f32 0.0, %v1457
  %v1459 = vpop.f32.mrb[0].mxu0
  %1460 = vdwg.mxu0
  %v1461 = vmax.f32 %v1362, %v1453
  %v1462 = vmax.f32 %v1363, %v1458
  %v1463 = vld [vmem:[%s3 + $0xb] sm:$0x1]
  %v1464 = vlaneseq
  %v1465 = vshrl.u32 %v1464, 7
  %v1466 = vsub.s32 0, %v1465
  %v1467 = vrot.slane %v1463, %v1466
  %vm1468 = vcmp.eq.s32.totalorder %v155, %v1467
  %vm1469 = vcmp.eq.s32.totalorder %v156, %v1467
  %vm1470 = vcmp.eq.s32.totalorder %v157, %v1467
  %vm1471 = vcmp.eq.s32.totalorder %v158, %v1467
  %vm1472 = vcmp.eq.s32.totalorder %v159, %v1467
  %vm1473 = vcmp.eq.s32.totalorder %v160, %v1467
  %vm1474 = vcmp.eq.s32.totalorder %v161, %v1467
  %v1475 = vsel %vm1468, 1.0, 0.0
  %v1476 = vsel %vm1469, 1.0, 0.0
  %v1477 = vsel %vm1470, 1.0, 0.0
  %v1478 = vsel %vm1471, 1.0, 0.0
  %v1479 = vsel %vm1472, 1.0, 0.0
  %v1480 = vsel %vm1473, 1.0, 0.0
  %v1481 = vsel %vm1474, 1.0, 0.0
  %v1483 = vsel %vm188, %v1481, 0
  %1485 = vmatprep.subr.mxu0 0.0
  %1486 = vmatpush1.msra.mxu0 %v1475
  %1487 = vmatprep.subr.mxu0 0.0
  %1488 = vmatpush1.msra.mxu0 %v1476
  %1489 = vmatprep.subr.mxu0 0.0
  %1490 = vmatpush1.msra.mxu0 %v1477
  %1491 = vmatprep.subr.mxu0 0.0
  %1492 = vmatpush1.msra.mxu0 %v1478
  %1493 = vmatprep.subr.mxu0 0.0
  %1494 = vmatpush1.msra.mxu0 %v1479
  %1495 = vmatprep.subr.mxu0 0.0
  %1496 = vmatpush1.msra.mxu0 %v1480
  %1497 = vmatprep.subr.mxu0 0.0
  %1498 = vmatpush1.msra.mxu0 %v1483
  %1499 = vmatprep.subr.mxu0 0.0
  %1500 = vmatpush1.msra.mxu0 0.0
  %1501 = vmatprep.subr.mxu0 0.0
  %1502 = vmatpush1.msra.mxu0 0.0
  %1503 = vmatprep.subr.mxu0 0.0
  %1504 = vmatpush1.msra.mxu0 0.0
  %1505 = vmatprep.subr.mxu0 0.0
  %1506 = vmatpush1.msra.mxu0 0.0
  %1507 = vmatprep.subr.mxu0 0.0
  %1508 = vmatpush1.msra.mxu0 0.0
  %1509 = vmatprep.subr.mxu0 0.0
  %1510 = vmatpush1.msra.mxu0 0.0
  %1511 = vmatprep.subr.mxu0 0.0
  %1512 = vmatpush1.msra.mxu0 0.0
  %1513 = vmatprep.subr.mxu0 0.0
  %1514 = vmatpush1.msra.mxu0 0.0
  %1515 = vmatprep.subr.mxu0 0.0
  %1516 = vmatpush1.msra.mxu0 0.0
  %1517 = vmatprep.subr.mxu0 0.0
  %1518 = vmatpush1.msra.mxu0 0.0
  %1519 = vmatprep.subr.mxu0 0.0
  %1520 = vmatpush1.msra.mxu0 0.0
  %1521 = vmatprep.subr.mxu0 0.0
  %1522 = vmatpush1.msra.mxu0 0.0
  %1523 = vmatprep.subr.mxu0 0.0
  %1524 = vmatpush1.msra.mxu0 0.0
  %1525 = vmatprep.subr.mxu0 0.0
  %1526 = vmatpush1.msra.mxu0 0.0
  %1527 = vmatprep.subr.mxu0 0.0
  %1528 = vmatpush1.msra.mxu0 0.0
  %1529 = vmatprep.subr.mxu0 0.0
  %1530 = vmatpush1.msra.mxu0 0.0
  %1531 = vmatprep.subr.mxu0 0.0
  %1532 = vmatpush1.msra.mxu0 0.0
  %1533 = vmatprep.subr.mxu0 0.0
  %1534 = vmatpush1.msra.mxu0 0.0
  %1535 = vmatprep.subr.mxu0 0.0
  %1536 = vmatpush1.msra.mxu0 0.0
  %1537 = vmatprep.subr.mxu0 0.0
  %1538 = vmatpush1.msra.mxu0 0.0
  %1539 = vmatprep.subr.mxu0 0.0
  %1540 = vmatpush1.msra.mxu0 0.0
  %1541 = vmatprep.subr.mxu0 0.0
  %1542 = vmatpush1.msra.mxu0 0.0
  %1543 = vmatprep.subr.mxu0 0.0
  %1544 = vmatpush1.msra.mxu0 0.0
  %1545 = vmatprep.subr.mxu0 0.0
  %1546 = vmatpush1.msra.mxu0 0.0
  %1547 = vmatprep.subr.mxu0 0.0
  %1548 = vmatpush1.msra.mxu0 0.0
  %1549 = vmatprep.mubr.f32.mxu0 0.0
  %1550 = vmatmul.mubr.f32.gmra.mrb[0].mxu0 %v183
  %v1551 = vpop.f32.mrb[0].mxu0
  %v1552 = vadd.f32 0.0, %v1551
  %v1553 = vpop.f32.mrb[0].mxu0
  %1554 = vmatprep.mubr.f32.mxu0 0.0
  %1555 = vmatmul.mubr.f32.gmra.mrb[0].mxu0 %v186
  %v1556 = vpop.f32.mrb[0].mxu0
  %v1557 = vadd.f32 0.0, %v1556
  %v1558 = vpop.f32.mrb[0].mxu0
  %1559 = vdwg.mxu0
  %v1560 = vmax.f32 %v1461, %v1552
  %v1561 = vmax.f32 %v1462, %v1557
  %s1562 = scalar_lea.vmem %s4, 64
  %v1563 = vld [vmem:[%s1562] sm:$0xff]
  %v1564 = vld [vmem:[%s1562 + $0x8] sm:$0xff]
  %v1565 = vld [vmem:[%s1562 + $0x10] sm:$0xff]
  %v1566 = vld [vmem:[%s1562 + $0x18] sm:$0xff]
  %v1568 = vsel %vm967, %v1563, 0
  %v1571 = vsel %vm967, %v1564, 0
  %v1574 = vsel %vm967, %v1565, 0
  %v1577 = vsel %vm967, %v1566, 0
  %v1580 = vsel %vm188, %v1561, 0
  %1582 = vmatprep.subr.mxu0 0.0
  %1583 = vmatpush1.msra.mxu0 %v1560
  %1584 = vmatprep.subr.mxu0 0.0
  %1585 = vmatpush1.msra.mxu0 %v1580
  %1586 = vmatprep.subr.mxu0 0.0
  %1587 = vmatpush1.msra.mxu0 0.0
  %1588 = vmatprep.subr.mxu0 0.0
  %1589 = vmatpush1.msra.mxu0 0.0
  %1590 = vmatprep.subr.mxu0 0.0
  %1591 = vmatpush1.msra.mxu0 0.0
  %1592 = vmatprep.subr.mxu0 0.0
  %1593 = vmatpush1.msra.mxu0 0.0
  %1594 = vmatprep.subr.mxu0 0.0
  %1595 = vmatpush1.msra.mxu0 0.0
  %1596 = vmatprep.subr.mxu0 0.0
  %1597 = vmatpush1.msra.mxu0 0.0
  %1598 = vmatprep.subr.mxu0 0.0
  %1599 = vmatpush1.msra.mxu0 0.0
  %1600 = vmatprep.subr.mxu0 0.0
  %1601 = vmatpush1.msra.mxu0 0.0
  %1602 = vmatprep.subr.mxu0 0.0
  %1603 = vmatpush1.msra.mxu0 0.0
  %1604 = vmatprep.subr.mxu0 0.0
  %1605 = vmatpush1.msra.mxu0 0.0
  %1606 = vmatprep.subr.mxu0 0.0
  %1607 = vmatpush1.msra.mxu0 0.0
  %1608 = vmatprep.subr.mxu0 0.0
  %1609 = vmatpush1.msra.mxu0 0.0
  %1610 = vmatprep.subr.mxu0 0.0
  %1611 = vmatpush1.msra.mxu0 0.0
  %1612 = vmatprep.subr.mxu0 0.0
  %1613 = vmatpush1.msra.mxu0 0.0
  %1614 = vmatprep.subr.mxu0 0.0
  %1615 = vmatpush1.msra.mxu0 0.0
  %1616 = vmatprep.subr.mxu0 0.0
  %1617 = vmatpush1.msra.mxu0 0.0
  %1618 = vmatprep.subr.mxu0 0.0
  %1619 = vmatpush1.msra.mxu0 0.0
  %1620 = vmatprep.subr.mxu0 0.0
  %1621 = vmatpush1.msra.mxu0 0.0
  %1622 = vmatprep.subr.mxu0 0.0
  %1623 = vmatpush1.msra.mxu0 0.0
  %1624 = vmatprep.subr.mxu0 0.0
  %1625 = vmatpush1.msra.mxu0 0.0
  %1626 = vmatprep.subr.mxu0 0.0
  %1627 = vmatpush1.msra.mxu0 0.0
  %1628 = vmatprep.subr.mxu0 0.0
  %1629 = vmatpush1.msra.mxu0 0.0
  %1630 = vmatprep.subr.mxu0 0.0
  %1631 = vmatpush1.msra.mxu0 0.0
  %1632 = vmatprep.subr.mxu0 0.0
  %1633 = vmatpush1.msra.mxu0 0.0
  %1634 = vmatprep.subr.mxu0 0.0
  %1635 = vmatpush1.msra.mxu0 0.0
  %1636 = vmatprep.subr.mxu0 0.0
  %1637 = vmatpush1.msra.mxu0 0.0
  %1638 = vmatprep.subr.mxu0 0.0
  %1639 = vmatpush1.msra.mxu0 0.0
  %1640 = vmatprep.subr.mxu0 0.0
  %1641 = vmatpush1.msra.mxu0 0.0
  %1642 = vmatprep.subr.mxu0 0.0
  %1643 = vmatpush1.msra.mxu0 0.0
  %1644 = vmatprep.subr.mxu0 0.0
  %1645 = vmatpush1.msra.mxu0 0.0
  %1646 = vmatprep.mubr.f32.mxu0 0.0
  %1647 = vmatmul.mubr.f32.gmra.mrb[0].mxu0 %v1568
  %v1648 = vpop.f32.mrb[0].mxu0
  %v1649 = vadd.f32 0.0, %v1648
  %v1650 = vpop.f32.mrb[0].mxu0
  %1651 = vmatprep.mubr.f32.mxu0 0.0
  %1652 = vmatmul.mubr.f32.gmra.mrb[0].mxu0 %v1571
  %v1653 = vpop.f32.mrb[0].mxu0
  %v1654 = vadd.f32 0.0, %v1653
  %v1655 = vpop.f32.mrb[0].mxu0
  %1656 = vmatprep.mubr.f32.mxu0 0.0
  %1657 = vmatmul.mubr.f32.gmra.mrb[0].mxu0 %v1574
  %v1658 = vpop.f32.mrb[0].mxu0
  %v1659 = vadd.f32 0.0, %v1658
  %v1660 = vpop.f32.mrb[0].mxu0
  %1661 = vmatprep.mubr.f32.mxu0 0.0
  %1662 = vmatmul.mubr.f32.gmra.mrb[0].mxu0 %v1577
  %v1663 = vpop.f32.mrb[0].mxu0
  %v1664 = vadd.f32 0.0, %v1663
  %v1665 = vpop.f32.mrb[0].mxu0
  %1666 = vdwg.mxu0
  %v1667 = vadd.f32 %v1150, %v1649
  %v1668 = vadd.f32 %v1155, %v1654
  %v1669 = vadd.f32 %v1160, %v1659
  %v1670 = vadd.f32 %v1165, %v1664
  %v1671 = vld [vmem:[%s3 + $0xc] sm:$0x1]
  %v1672 = vlaneseq
  %v1673 = vshrl.u32 %v1672, 7
  %v1674 = vsub.s32 0, %v1673
  %v1675 = vrot.slane %v1671, %v1674
  %vm1676 = vcmp.eq.s32.totalorder %v155, %v1675
  %vm1677 = vcmp.eq.s32.totalorder %v156, %v1675
  %vm1678 = vcmp.eq.s32.totalorder %v157, %v1675
  %vm1679 = vcmp.eq.s32.totalorder %v158, %v1675
  %vm1680 = vcmp.eq.s32.totalorder %v159, %v1675
  %vm1681 = vcmp.eq.s32.totalorder %v160, %v1675
  %vm1682 = vcmp.eq.s32.totalorder %v161, %v1675
  %v1683 = vsel %vm1676, 1.0, 0.0
  %v1684 = vsel %vm1677, 1.0, 0.0
  %v1685 = vsel %vm1678, 1.0, 0.0
  %v1686 = vsel %vm1679, 1.0, 0.0
  %v1687 = vsel %vm1680, 1.0, 0.0
  %v1688 = vsel %vm1681, 1.0, 0.0
  %v1689 = vsel %vm1682, 1.0, 0.0
  %v1691 = vsel %vm188, %v1689, 0
  %1693 = vmatprep.subr.mxu0 0.0
  %1694 = vmatpush1.msra.mxu0 %v1683
  %1695 = vmatprep.subr.mxu0 0.0
  %1696 = vmatpush1.msra.mxu0 %v1684
  %1697 = vmatprep.subr.mxu0 0.0
  %1698 = vmatpush1.msra.mxu0 %v1685
  %1699 = vmatprep.subr.mxu0 0.0
  %1700 = vmatpush1.msra.mxu0 %v1686
  %1701 = vmatprep.subr.mxu0 0.0
  %1702 = vmatpush1.msra.mxu0 %v1687
  %1703 = vmatprep.subr.mxu0 0.0
  %1704 = vmatpush1.msra.mxu0 %v1688
  %1705 = vmatprep.subr.mxu0 0.0
  %1706 = vmatpush1.msra.mxu0 %v1691
  %1707 = vmatprep.subr.mxu0 0.0
  %1708 = vmatpush1.msra.mxu0 0.0
  %1709 = vmatprep.subr.mxu0 0.0
  %1710 = vmatpush1.msra.mxu0 0.0
  %1711 = vmatprep.subr.mxu0 0.0
  %1712 = vmatpush1.msra.mxu0 0.0
  %1713 = vmatprep.subr.mxu0 0.0
  %1714 = vmatpush1.msra.mxu0 0.0
  %1715 = vmatprep.subr.mxu0 0.0
  %1716 = vmatpush1.msra.mxu0 0.0
  %1717 = vmatprep.subr.mxu0 0.0
  %1718 = vmatpush1.msra.mxu0 0.0
  %1719 = vmatprep.subr.mxu0 0.0
  %1720 = vmatpush1.msra.mxu0 0.0
  %1721 = vmatprep.subr.mxu0 0.0
  %1722 = vmatpush1.msra.mxu0 0.0
  %1723 = vmatprep.subr.mxu0 0.0
  %1724 = vmatpush1.msra.mxu0 0.0
  %1725 = vmatprep.subr.mxu0 0.0
  %1726 = vmatpush1.msra.mxu0 0.0
  %1727 = vmatprep.subr.mxu0 0.0
  %1728 = vmatpush1.msra.mxu0 0.0
  %1729 = vmatprep.subr.mxu0 0.0
  %1730 = vmatpush1.msra.mxu0 0.0
  %1731 = vmatprep.subr.mxu0 0.0
  %1732 = vmatpush1.msra.mxu0 0.0
  %1733 = vmatprep.subr.mxu0 0.0
  %1734 = vmatpush1.msra.mxu0 0.0
  %1735 = vmatprep.subr.mxu0 0.0
  %1736 = vmatpush1.msra.mxu0 0.0
  %1737 = vmatprep.subr.mxu0 0.0
  %1738 = vmatpush1.msra.mxu0 0.0
  %1739 = vmatprep.subr.mxu0 0.0
  %1740 = vmatpush1.msra.mxu0 0.0
  %1741 = vmatprep.subr.mxu0 0.0
  %1742 = vmatpush1.msra.mxu0 0.0
  %1743 = vmatprep.subr.mxu0 0.0
  %1744 = vmatpush1.msra.mxu0 0.0
  %1745 = vmatprep.subr.mxu0 0.0
  %1746 = vmatpush1.msra.mxu0 0.0
  %1747 = vmatprep.subr.mxu0 0.0
  %1748 = vmatpush1.msra.mxu0 0.0
  %1749 = vmatprep.subr.mxu0 0.0
  %1750 = vmatpush1.msra.mxu0 0.0
  %1751 = vmatprep.subr.mxu0 0.0
  %1752 = vmatpush1.msra.mxu0 0.0
  %1753 = vmatprep.subr.mxu0 0.0
  %1754 = vmatpush1.msra.mxu0 0.0
  %1755 = vmatprep.subr.mxu0 0.0
  %1756 = vmatpush1.msra.mxu0 0.0
  %1757 = vmatprep.mubr.f32.mxu0 0.0
  %1758 = vmatmul.mubr.f32.gmra.mrb[0].mxu0 %v183
  %v1759 = vpop.f32.mrb[0].mxu0
  %v1760 = vadd.f32 0.0, %v1759
  %v1761 = vpop.f32.mrb[0].mxu0
  %1762 = vmatprep.mubr.f32.mxu0 0.0
  %1763 = vmatmul.mubr.f32.gmra.mrb[0].mxu0 %v186
  %v1764 = vpop.f32.mrb[0].mxu0
  %v1765 = vadd.f32 0.0, %v1764
  %v1766 = vpop.f32.mrb[0].mxu0
  %1767 = vdwg.mxu0
  %v1768 = vld [vmem:[%s3 + $0xd] sm:$0x1]
  %v1769 = vlaneseq
  %v1770 = vshrl.u32 %v1769, 7
  %v1771 = vsub.s32 0, %v1770
  %v1772 = vrot.slane %v1768, %v1771
  %vm1773 = vcmp.eq.s32.totalorder %v155, %v1772
  %vm1774 = vcmp.eq.s32.totalorder %v156, %v1772
  %vm1775 = vcmp.eq.s32.totalorder %v157, %v1772
  %vm1776 = vcmp.eq.s32.totalorder %v158, %v1772
  %vm1777 = vcmp.eq.s32.totalorder %v159, %v1772
  %vm1778 = vcmp.eq.s32.totalorder %v160, %v1772
  %vm1779 = vcmp.eq.s32.totalorder %v161, %v1772
  %v1780 = vsel %vm1773, 1.0, 0.0
  %v1781 = vsel %vm1774, 1.0, 0.0
  %v1782 = vsel %vm1775, 1.0, 0.0
  %v1783 = vsel %vm1776, 1.0, 0.0
  %v1784 = vsel %vm1777, 1.0, 0.0
  %v1785 = vsel %vm1778, 1.0, 0.0
  %v1786 = vsel %vm1779, 1.0, 0.0
  %v1788 = vsel %vm188, %v1786, 0
  %1790 = vmatprep.subr.mxu0 0.0
  %1791 = vmatpush1.msra.mxu0 %v1780
  %1792 = vmatprep.subr.mxu0 0.0
  %1793 = vmatpush1.msra.mxu0 %v1781
  %1794 = vmatprep.subr.mxu0 0.0
  %1795 = vmatpush1.msra.mxu0 %v1782
  %1796 = vmatprep.subr.mxu0 0.0
  %1797 = vmatpush1.msra.mxu0 %v1783
  %1798 = vmatprep.subr.mxu0 0.0
  %1799 = vmatpush1.msra.mxu0 %v1784
  %1800 = vmatprep.subr.mxu0 0.0
  %1801 = vmatpush1.msra.mxu0 %v1785
  %1802 = vmatprep.subr.mxu0 0.0
  %1803 = vmatpush1.msra.mxu0 %v1788
  %1804 = vmatprep.subr.mxu0 0.0
  %1805 = vmatpush1.msra.mxu0 0.0
  %1806 = vmatprep.subr.mxu0 0.0
  %1807 = vmatpush1.msra.mxu0 0.0
  %1808 = vmatprep.subr.mxu0 0.0
  %1809 = vmatpush1.msra.mxu0 0.0
  %1810 = vmatprep.subr.mxu0 0.0
  %1811 = vmatpush1.msra.mxu0 0.0
  %1812 = vmatprep.subr.mxu0 0.0
  %1813 = vmatpush1.msra.mxu0 0.0
  %1814 = vmatprep.subr.mxu0 0.0
  %1815 = vmatpush1.msra.mxu0 0.0
  %1816 = vmatprep.subr.mxu0 0.0
  %1817 = vmatpush1.msra.mxu0 0.0
  %1818 = vmatprep.subr.mxu0 0.0
  %1819 = vmatpush1.msra.mxu0 0.0
  %1820 = vmatprep.subr.mxu0 0.0
  %1821 = vmatpush1.msra.mxu0 0.0
  %1822 = vmatprep.subr.mxu0 0.0
  %1823 = vmatpush1.msra.mxu0 0.0
  %1824 = vmatprep.subr.mxu0 0.0
  %1825 = vmatpush1.msra.mxu0 0.0
  %1826 = vmatprep.subr.mxu0 0.0
  %1827 = vmatpush1.msra.mxu0 0.0
  %1828 = vmatprep.subr.mxu0 0.0
  %1829 = vmatpush1.msra.mxu0 0.0
  %1830 = vmatprep.subr.mxu0 0.0
  %1831 = vmatpush1.msra.mxu0 0.0
  %1832 = vmatprep.subr.mxu0 0.0
  %1833 = vmatpush1.msra.mxu0 0.0
  %1834 = vmatprep.subr.mxu0 0.0
  %1835 = vmatpush1.msra.mxu0 0.0
  %1836 = vmatprep.subr.mxu0 0.0
  %1837 = vmatpush1.msra.mxu0 0.0
  %1838 = vmatprep.subr.mxu0 0.0
  %1839 = vmatpush1.msra.mxu0 0.0
  %1840 = vmatprep.subr.mxu0 0.0
  %1841 = vmatpush1.msra.mxu0 0.0
  %1842 = vmatprep.subr.mxu0 0.0
  %1843 = vmatpush1.msra.mxu0 0.0
  %1844 = vmatprep.subr.mxu0 0.0
  %1845 = vmatpush1.msra.mxu0 0.0
  %1846 = vmatprep.subr.mxu0 0.0
  %1847 = vmatpush1.msra.mxu0 0.0
  %1848 = vmatprep.subr.mxu0 0.0
  %1849 = vmatpush1.msra.mxu0 0.0
  %1850 = vmatprep.subr.mxu0 0.0
  %1851 = vmatpush1.msra.mxu0 0.0
  %1852 = vmatprep.subr.mxu0 0.0
  %1853 = vmatpush1.msra.mxu0 0.0
  %1854 = vmatprep.mubr.f32.mxu0 0.0
  %1855 = vmatmul.mubr.f32.gmra.mrb[0].mxu0 %v183
  %v1856 = vpop.f32.mrb[0].mxu0
  %v1857 = vadd.f32 0.0, %v1856
  %v1858 = vpop.f32.mrb[0].mxu0
  %1859 = vmatprep.mubr.f32.mxu0 0.0
  %1860 = vmatmul.mubr.f32.gmra.mrb[0].mxu0 %v186
  %v1861 = vpop.f32.mrb[0].mxu0
  %v1862 = vadd.f32 0.0, %v1861
  %v1863 = vpop.f32.mrb[0].mxu0
  %1864 = vdwg.mxu0
  %v1865 = vmax.f32 %v1760, %v1857
  %v1866 = vmax.f32 %v1765, %v1862
  %v1867 = vld [vmem:[%s3 + $0xe] sm:$0x1]
  %v1868 = vlaneseq
  %v1869 = vshrl.u32 %v1868, 7
  %v1870 = vsub.s32 0, %v1869
  %v1871 = vrot.slane %v1867, %v1870
  %vm1872 = vcmp.eq.s32.totalorder %v155, %v1871
  %vm1873 = vcmp.eq.s32.totalorder %v156, %v1871
  %vm1874 = vcmp.eq.s32.totalorder %v157, %v1871
  %vm1875 = vcmp.eq.s32.totalorder %v158, %v1871
  %vm1876 = vcmp.eq.s32.totalorder %v159, %v1871
  %vm1877 = vcmp.eq.s32.totalorder %v160, %v1871
  %vm1878 = vcmp.eq.s32.totalorder %v161, %v1871
  %v1879 = vsel %vm1872, 1.0, 0.0
  %v1880 = vsel %vm1873, 1.0, 0.0
  %v1881 = vsel %vm1874, 1.0, 0.0
  %v1882 = vsel %vm1875, 1.0, 0.0
  %v1883 = vsel %vm1876, 1.0, 0.0
  %v1884 = vsel %vm1877, 1.0, 0.0
  %v1885 = vsel %vm1878, 1.0, 0.0
  %v1887 = vsel %vm188, %v1885, 0
  %1889 = vmatprep.subr.mxu0 0.0
  %1890 = vmatpush1.msra.mxu0 %v1879
  %1891 = vmatprep.subr.mxu0 0.0
  %1892 = vmatpush1.msra.mxu0 %v1880
  %1893 = vmatprep.subr.mxu0 0.0
  %1894 = vmatpush1.msra.mxu0 %v1881
  %1895 = vmatprep.subr.mxu0 0.0
  %1896 = vmatpush1.msra.mxu0 %v1882
  %1897 = vmatprep.subr.mxu0 0.0
  %1898 = vmatpush1.msra.mxu0 %v1883
  %1899 = vmatprep.subr.mxu0 0.0
  %1900 = vmatpush1.msra.mxu0 %v1884
  %1901 = vmatprep.subr.mxu0 0.0
  %1902 = vmatpush1.msra.mxu0 %v1887
  %1903 = vmatprep.subr.mxu0 0.0
  %1904 = vmatpush1.msra.mxu0 0.0
  %1905 = vmatprep.subr.mxu0 0.0
  %1906 = vmatpush1.msra.mxu0 0.0
  %1907 = vmatprep.subr.mxu0 0.0
  %1908 = vmatpush1.msra.mxu0 0.0
  %1909 = vmatprep.subr.mxu0 0.0
  %1910 = vmatpush1.msra.mxu0 0.0
  %1911 = vmatprep.subr.mxu0 0.0
  %1912 = vmatpush1.msra.mxu0 0.0
  %1913 = vmatprep.subr.mxu0 0.0
  %1914 = vmatpush1.msra.mxu0 0.0
  %1915 = vmatprep.subr.mxu0 0.0
  %1916 = vmatpush1.msra.mxu0 0.0
  %1917 = vmatprep.subr.mxu0 0.0
  %1918 = vmatpush1.msra.mxu0 0.0
  %1919 = vmatprep.subr.mxu0 0.0
  %1920 = vmatpush1.msra.mxu0 0.0
  %1921 = vmatprep.subr.mxu0 0.0
  %1922 = vmatpush1.msra.mxu0 0.0
  %1923 = vmatprep.subr.mxu0 0.0
  %1924 = vmatpush1.msra.mxu0 0.0
  %1925 = vmatprep.subr.mxu0 0.0
  %1926 = vmatpush1.msra.mxu0 0.0
  %1927 = vmatprep.subr.mxu0 0.0
  %1928 = vmatpush1.msra.mxu0 0.0
  %1929 = vmatprep.subr.mxu0 0.0
  %1930 = vmatpush1.msra.mxu0 0.0
  %1931 = vmatprep.subr.mxu0 0.0
  %1932 = vmatpush1.msra.mxu0 0.0
  %1933 = vmatprep.subr.mxu0 0.0
  %1934 = vmatpush1.msra.mxu0 0.0
  %1935 = vmatprep.subr.mxu0 0.0
  %1936 = vmatpush1.msra.mxu0 0.0
  %1937 = vmatprep.subr.mxu0 0.0
  %1938 = vmatpush1.msra.mxu0 0.0
  %1939 = vmatprep.subr.mxu0 0.0
  %1940 = vmatpush1.msra.mxu0 0.0
  %1941 = vmatprep.subr.mxu0 0.0
  %1942 = vmatpush1.msra.mxu0 0.0
  %1943 = vmatprep.subr.mxu0 0.0
  %1944 = vmatpush1.msra.mxu0 0.0
  %1945 = vmatprep.subr.mxu0 0.0
  %1946 = vmatpush1.msra.mxu0 0.0
  %1947 = vmatprep.subr.mxu0 0.0
  %1948 = vmatpush1.msra.mxu0 0.0
  %1949 = vmatprep.subr.mxu0 0.0
  %1950 = vmatpush1.msra.mxu0 0.0
  %1951 = vmatprep.subr.mxu0 0.0
  %1952 = vmatpush1.msra.mxu0 0.0
  %1953 = vmatprep.mubr.f32.mxu0 0.0
  %1954 = vmatmul.mubr.f32.gmra.mrb[0].mxu0 %v183
  %v1955 = vpop.f32.mrb[0].mxu0
  %v1956 = vadd.f32 0.0, %v1955
  %v1957 = vpop.f32.mrb[0].mxu0
  %1958 = vmatprep.mubr.f32.mxu0 0.0
  %1959 = vmatmul.mubr.f32.gmra.mrb[0].mxu0 %v186
  %v1960 = vpop.f32.mrb[0].mxu0
  %v1961 = vadd.f32 0.0, %v1960
  %v1962 = vpop.f32.mrb[0].mxu0
  %1963 = vdwg.mxu0
  %v1964 = vmax.f32 %v1865, %v1956
  %v1965 = vmax.f32 %v1866, %v1961
  %v1966 = vld [vmem:[%s3 + $0xf] sm:$0x1]
  %v1967 = vlaneseq
  %v1968 = vshrl.u32 %v1967, 7
  %v1969 = vsub.s32 0, %v1968
  %v1970 = vrot.slane %v1966, %v1969
  %vm1971 = vcmp.eq.s32.totalorder %v155, %v1970
  %vm1972 = vcmp.eq.s32.totalorder %v156, %v1970
  %vm1973 = vcmp.eq.s32.totalorder %v157, %v1970
  %vm1974 = vcmp.eq.s32.totalorder %v158, %v1970
  %vm1975 = vcmp.eq.s32.totalorder %v159, %v1970
  %vm1976 = vcmp.eq.s32.totalorder %v160, %v1970
  %vm1977 = vcmp.eq.s32.totalorder %v161, %v1970
  %v1978 = vsel %vm1971, 1.0, 0.0
  %v1979 = vsel %vm1972, 1.0, 0.0
  %v1980 = vsel %vm1973, 1.0, 0.0
  %v1981 = vsel %vm1974, 1.0, 0.0
  %v1982 = vsel %vm1975, 1.0, 0.0
  %v1983 = vsel %vm1976, 1.0, 0.0
  %v1984 = vsel %vm1977, 1.0, 0.0
  %v1986 = vsel %vm188, %v1984, 0
  %1988 = vmatprep.subr.mxu0 0.0
  %1989 = vmatpush1.msra.mxu0 %v1978
  %1990 = vmatprep.subr.mxu0 0.0
  %1991 = vmatpush1.msra.mxu0 %v1979
  %1992 = vmatprep.subr.mxu0 0.0
  %1993 = vmatpush1.msra.mxu0 %v1980
  %1994 = vmatprep.subr.mxu0 0.0
  %1995 = vmatpush1.msra.mxu0 %v1981
  %1996 = vmatprep.subr.mxu0 0.0
  %1997 = vmatpush1.msra.mxu0 %v1982
  %1998 = vmatprep.subr.mxu0 0.0
  %1999 = vmatpush1.msra.mxu0 %v1983
  %2000 = vmatprep.subr.mxu0 0.0
  %2001 = vmatpush1.msra.mxu0 %v1986
  %2002 = vmatprep.subr.mxu0 0.0
  %2003 = vmatpush1.msra.mxu0 0.0
  %2004 = vmatprep.subr.mxu0 0.0
  %2005 = vmatpush1.msra.mxu0 0.0
  %2006 = vmatprep.subr.mxu0 0.0
  %2007 = vmatpush1.msra.mxu0 0.0
  %2008 = vmatprep.subr.mxu0 0.0
  %2009 = vmatpush1.msra.mxu0 0.0
  %2010 = vmatprep.subr.mxu0 0.0
  %2011 = vmatpush1.msra.mxu0 0.0
  %2012 = vmatprep.subr.mxu0 0.0
  %2013 = vmatpush1.msra.mxu0 0.0
  %2014 = vmatprep.subr.mxu0 0.0
  %2015 = vmatpush1.msra.mxu0 0.0
  %2016 = vmatprep.subr.mxu0 0.0
  %2017 = vmatpush1.msra.mxu0 0.0
  %2018 = vmatprep.subr.mxu0 0.0
  %2019 = vmatpush1.msra.mxu0 0.0
  %2020 = vmatprep.subr.mxu0 0.0
  %2021 = vmatpush1.msra.mxu0 0.0
  %2022 = vmatprep.subr.mxu0 0.0
  %2023 = vmatpush1.msra.mxu0 0.0
  %2024 = vmatprep.subr.mxu0 0.0
  %2025 = vmatpush1.msra.mxu0 0.0
  %2026 = vmatprep.subr.mxu0 0.0
  %2027 = vmatpush1.msra.mxu0 0.0
  %2028 = vmatprep.subr.mxu0 0.0
  %2029 = vmatpush1.msra.mxu0 0.0
  %2030 = vmatprep.subr.mxu0 0.0
  %2031 = vmatpush1.msra.mxu0 0.0
  %2032 = vmatprep.subr.mxu0 0.0
  %2033 = vmatpush1.msra.mxu0 0.0
  %2034 = vmatprep.subr.mxu0 0.0
  %2035 = vmatpush1.msra.mxu0 0.0
  %2036 = vmatprep.subr.mxu0 0.0
  %2037 = vmatpush1.msra.mxu0 0.0
  %2038 = vmatprep.subr.mxu0 0.0
  %2039 = vmatpush1.msra.mxu0 0.0
  %2040 = vmatprep.subr.mxu0 0.0
  %2041 = vmatpush1.msra.mxu0 0.0
  %2042 = vmatprep.subr.mxu0 0.0
  %2043 = vmatpush1.msra.mxu0 0.0
  %2044 = vmatprep.subr.mxu0 0.0
  %2045 = vmatpush1.msra.mxu0 0.0
  %2046 = vmatprep.subr.mxu0 0.0
  %2047 = vmatpush1.msra.mxu0 0.0
  %2048 = vmatprep.subr.mxu0 0.0
  %2049 = vmatpush1.msra.mxu0 0.0
  %2050 = vmatprep.subr.mxu0 0.0
  %2051 = vmatpush1.msra.mxu0 0.0
  %2052 = vmatprep.mubr.f32.mxu0 0.0
  %2053 = vmatmul.mubr.f32.gmra.mrb[0].mxu0 %v183
  %v2054 = vpop.f32.mrb[0].mxu0
  %v2055 = vadd.f32 0.0, %v2054
  %v2056 = vpop.f32.mrb[0].mxu0
  %2057 = vmatprep.mubr.f32.mxu0 0.0
  %2058 = vmatmul.mubr.f32.gmra.mrb[0].mxu0 %v186
  %v2059 = vpop.f32.mrb[0].mxu0
  %v2060 = vadd.f32 0.0, %v2059
  %v2061 = vpop.f32.mrb[0].mxu0
  %2062 = vdwg.mxu0
  %v2063 = vmax.f32 %v1964, %v2055
  %v2064 = vmax.f32 %v1965, %v2060
  %s2065 = scalar_lea.vmem %s4, 96
  %v2066 = vld [vmem:[%s2065] sm:$0xff]
  %v2067 = vld [vmem:[%s2065 + $0x8] sm:$0xff]
  %v2068 = vld [vmem:[%s2065 + $0x10] sm:$0xff]
  %v2069 = vld [vmem:[%s2065 + $0x18] sm:$0xff]
  %v2071 = vsel %vm967, %v2066, 0
  %v2074 = vsel %vm967, %v2067, 0
  %v2077 = vsel %vm967, %v2068, 0
  %v2080 = vsel %vm967, %v2069, 0
  %v2083 = vsel %vm188, %v2064, 0
  %2085 = vmatprep.subr.mxu0 0.0
  %2086 = vmatpush1.msra.mxu0 %v2063
  %2087 = vmatprep.subr.mxu0 0.0
  %2088 = vmatpush1.msra.mxu0 %v2083
  %2089 = vmatprep.subr.mxu0 0.0
  %2090 = vmatpush1.msra.mxu0 0.0
  %2091 = vmatprep.subr.mxu0 0.0
  %2092 = vmatpush1.msra.mxu0 0.0
  %2093 = vmatprep.subr.mxu0 0.0
  %2094 = vmatpush1.msra.mxu0 0.0
  %2095 = vmatprep.subr.mxu0 0.0
  %2096 = vmatpush1.msra.mxu0 0.0
  %2097 = vmatprep.subr.mxu0 0.0
  %2098 = vmatpush1.msra.mxu0 0.0
  %2099 = vmatprep.subr.mxu0 0.0
  %2100 = vmatpush1.msra.mxu0 0.0
  %2101 = vmatprep.subr.mxu0 0.0
  %2102 = vmatpush1.msra.mxu0 0.0
  %2103 = vmatprep.subr.mxu0 0.0
  %2104 = vmatpush1.msra.mxu0 0.0
  %2105 = vmatprep.subr.mxu0 0.0
  %2106 = vmatpush1.msra.mxu0 0.0
  %2107 = vmatprep.subr.mxu0 0.0
  %2108 = vmatpush1.msra.mxu0 0.0
  %2109 = vmatprep.subr.mxu0 0.0
  %2110 = vmatpush1.msra.mxu0 0.0
  %2111 = vmatprep.subr.mxu0 0.0
  %2112 = vmatpush1.msra.mxu0 0.0
  %2113 = vmatprep.subr.mxu0 0.0
  %2114 = vmatpush1.msra.mxu0 0.0
  %2115 = vmatprep.subr.mxu0 0.0
  %2116 = vmatpush1.msra.mxu0 0.0
  %2117 = vmatprep.subr.mxu0 0.0
  %2118 = vmatpush1.msra.mxu0 0.0
  %2119 = vmatprep.subr.mxu0 0.0
  %2120 = vmatpush1.msra.mxu0 0.0
  %2121 = vmatprep.subr.mxu0 0.0
  %2122 = vmatpush1.msra.mxu0 0.0
  %2123 = vmatprep.subr.mxu0 0.0
  %2124 = vmatpush1.msra.mxu0 0.0
  %2125 = vmatprep.subr.mxu0 0.0
  %2126 = vmatpush1.msra.mxu0 0.0
  %2127 = vmatprep.subr.mxu0 0.0
  %2128 = vmatpush1.msra.mxu0 0.0
  %2129 = vmatprep.subr.mxu0 0.0
  %2130 = vmatpush1.msra.mxu0 0.0
  %2131 = vmatprep.subr.mxu0 0.0
  %2132 = vmatpush1.msra.mxu0 0.0
  %2133 = vmatprep.subr.mxu0 0.0
  %2134 = vmatpush1.msra.mxu0 0.0
  %2135 = vmatprep.subr.mxu0 0.0
  %2136 = vmatpush1.msra.mxu0 0.0
  %2137 = vmatprep.subr.mxu0 0.0
  %2138 = vmatpush1.msra.mxu0 0.0
  %2139 = vmatprep.subr.mxu0 0.0
  %2140 = vmatpush1.msra.mxu0 0.0
  %2141 = vmatprep.subr.mxu0 0.0
  %2142 = vmatpush1.msra.mxu0 0.0
  %2143 = vmatprep.subr.mxu0 0.0
  %2144 = vmatpush1.msra.mxu0 0.0
  %2145 = vmatprep.subr.mxu0 0.0
  %2146 = vmatpush1.msra.mxu0 0.0
  %2147 = vmatprep.subr.mxu0 0.0
  %2148 = vmatpush1.msra.mxu0 0.0
  %2149 = vmatprep.mubr.f32.mxu0 0.0
  %2150 = vmatmul.mubr.f32.gmra.mrb[0].mxu0 %v2071
  %v2151 = vpop.f32.mrb[0].mxu0
  %v2152 = vadd.f32 0.0, %v2151
  %v2153 = vpop.f32.mrb[0].mxu0
  %2154 = vmatprep.mubr.f32.mxu0 0.0
  %2155 = vmatmul.mubr.f32.gmra.mrb[0].mxu0 %v2074
  %v2156 = vpop.f32.mrb[0].mxu0
  %v2157 = vadd.f32 0.0, %v2156
  %v2158 = vpop.f32.mrb[0].mxu0
  %2159 = vmatprep.mubr.f32.mxu0 0.0
  %2160 = vmatmul.mubr.f32.gmra.mrb[0].mxu0 %v2077
  %v2161 = vpop.f32.mrb[0].mxu0
  %v2162 = vadd.f32 0.0, %v2161
  %v2163 = vpop.f32.mrb[0].mxu0
  %2164 = vmatprep.mubr.f32.mxu0 0.0
  %2165 = vmatmul.mubr.f32.gmra.mrb[0].mxu0 %v2080
  %v2166 = vpop.f32.mrb[0].mxu0
  %v2167 = vadd.f32 0.0, %v2166
  %v2168 = vpop.f32.mrb[0].mxu0
  %2169 = vdwg.mxu0
  %v2170 = vadd.f32 %v1667, %v2152
  %v2171 = vadd.f32 %v1668, %v2157
  %v2172 = vadd.f32 %v1669, %v2162
  %v2173 = vadd.f32 %v1670, %v2167
  %v2174 = vld [vmem:[%s5] sm:$0xff]
  %v2175 = vld [vmem:[%s5 + $0x8] sm:$0xff]
  %v2176 = vld [vmem:[%s5 + $0x10] sm:$0xff]
  %v2177 = vld [vmem:[%s5 + $0x18] sm:$0xff]
  %2179 = vset.pattern.permute.xlu0 0
  %2180 = vperm.xlu0 %2179, %v2174
  %v2181 = vpop.permute.xlu0 %2180
  %2184 = vset.pattern.permute.xlu0 0
  %2185 = vperm.xlu0 %2184, %v2175
  %v2186 = vpop.permute.xlu0 %2185
  %2189 = vset.pattern.permute.xlu0 0
  %2190 = vperm.xlu0 %2189, %v2176
  %v2191 = vpop.permute.xlu0 %2190
  %2194 = vset.pattern.permute.xlu0 0
  %2195 = vperm.xlu0 %2194, %v2177
  %v2196 = vpop.permute.xlu0 %2195
  %v2198 = vadd.f32 %v2170, %v2181
  %v2199 = vadd.f32 %v2171, %v2186
  %v2200 = vadd.f32 %v2172, %v2191
  %v2201 = vadd.f32 %v2173, %v2196
  %v2202 = vmax.f32 %v2198, 0.0
  %v2203 = vmax.f32 %v2199, 0.0
  %v2204 = vmax.f32 %v2200, 0.0
  %v2205 = vmax.f32 %v2201, 0.0
  %v2206 = vld [vmem:[%s6] sm:$0x3f]
  %v2207 = vld [vmem:[%s7] sm:$0x3f]
  %2209 = vset.pattern.permute.xlu0 0
  %2210 = vperm.xlu0 %2209, %v2207
  %v2211 = vpop.permute.xlu0 %2210
  %vm2213 = vcmask 261120
  %v2215 = vsel %vm2213, %v2206, 0
  %2217 = vmatprep.subr.mxu0 0.0
  %2218 = vmatpush1.msra.mxu0 %v2202
  %2219 = vmatprep.subr.mxu0 0.0
  %2220 = vmatpush1.msra.mxu0 %v2203
  %2221 = vmatprep.subr.mxu0 0.0
  %2222 = vmatpush1.msra.mxu0 %v2204
  %2223 = vmatprep.subr.mxu0 0.0
  %2224 = vmatpush1.msra.mxu0 %v2205
  %2225 = vmatprep.subr.mxu0 0.0
  %2226 = vmatpush1.msra.mxu0 0.0
  %2227 = vmatprep.subr.mxu0 0.0
  %2228 = vmatpush1.msra.mxu0 0.0
  %2229 = vmatprep.subr.mxu0 0.0
  %2230 = vmatpush1.msra.mxu0 0.0
  %2231 = vmatprep.subr.mxu0 0.0
  %2232 = vmatpush1.msra.mxu0 0.0
  %2233 = vmatprep.subr.mxu0 0.0
  %2234 = vmatpush1.msra.mxu0 0.0
  %2235 = vmatprep.subr.mxu0 0.0
  %2236 = vmatpush1.msra.mxu0 0.0
  %2237 = vmatprep.subr.mxu0 0.0
  %2238 = vmatpush1.msra.mxu0 0.0
  %2239 = vmatprep.subr.mxu0 0.0
  %2240 = vmatpush1.msra.mxu0 0.0
  %2241 = vmatprep.subr.mxu0 0.0
  %2242 = vmatpush1.msra.mxu0 0.0
  %2243 = vmatprep.subr.mxu0 0.0
  %2244 = vmatpush1.msra.mxu0 0.0
  %2245 = vmatprep.subr.mxu0 0.0
  %2246 = vmatpush1.msra.mxu0 0.0
  %2247 = vmatprep.subr.mxu0 0.0
  %2248 = vmatpush1.msra.mxu0 0.0
  %2249 = vmatprep.subr.mxu0 0.0
  %2250 = vmatpush1.msra.mxu0 0.0
  %2251 = vmatprep.subr.mxu0 0.0
  %2252 = vmatpush1.msra.mxu0 0.0
  %2253 = vmatprep.subr.mxu0 0.0
  %2254 = vmatpush1.msra.mxu0 0.0
  %2255 = vmatprep.subr.mxu0 0.0
  %2256 = vmatpush1.msra.mxu0 0.0
  %2257 = vmatprep.subr.mxu0 0.0
  %2258 = vmatpush1.msra.mxu0 0.0
  %2259 = vmatprep.subr.mxu0 0.0
  %2260 = vmatpush1.msra.mxu0 0.0
  %2261 = vmatprep.subr.mxu0 0.0
  %2262 = vmatpush1.msra.mxu0 0.0
  %2263 = vmatprep.subr.mxu0 0.0
  %2264 = vmatpush1.msra.mxu0 0.0
  %2265 = vmatprep.subr.mxu0 0.0
  %2266 = vmatpush1.msra.mxu0 0.0
  %2267 = vmatprep.subr.mxu0 0.0
  %2268 = vmatpush1.msra.mxu0 0.0
  %2269 = vmatprep.subr.mxu0 0.0
  %2270 = vmatpush1.msra.mxu0 0.0
  %2271 = vmatprep.subr.mxu0 0.0
  %2272 = vmatpush1.msra.mxu0 0.0
  %2273 = vmatprep.subr.mxu0 0.0
  %2274 = vmatpush1.msra.mxu0 0.0
  %2275 = vmatprep.subr.mxu0 0.0
  %2276 = vmatpush1.msra.mxu0 0.0
  %2277 = vmatprep.subr.mxu0 0.0
  %2278 = vmatpush1.msra.mxu0 0.0
  %2279 = vmatprep.subr.mxu0 0.0
  %2280 = vmatpush1.msra.mxu0 0.0
  %2281 = vmatprep.mubr.f32.mxu0 0.0
  %2282 = vmatmul.mubr.f32.gmra.mrb[0].mxu0 %v2215
  %v2283 = vpop.f32.mrb[0].mxu0
  %v2284 = vadd.f32 %v2211, %v2283
  %v2285 = vpop.f32.mrb[0].mxu0
  %2286 = vdwg.mxu0
  %vm2287 = vcmask 13312
  %2288 = vst.msk [vmem:[%s8] sm:$0x3f] %vm2287, %v2284
  // Predicated region
  $region34: #{stn_forward.4} parent=0 // pred_check
    _
  $region35: #{stn_forward.4} parent=0 // pred_check_branch
    %2290 = sbr.rel (0) target = $region37
  $region36: #{stn_forward.4} parent=0 // pred_region
    _
  $region37: #{stn_forward.4} parent=0 // pred_fallthru
    _
  // Predicated region
  $region38: #{stn_forward.4} parent=0 // pred_check
    _
  $region39: #{stn_forward.4} parent=0 // pred_check_branch
    %2292 = sbr.rel (0) target = $region41
  $region40: #{stn_forward.4} parent=0 // pred_region
    _
  $region41: #{stn_forward.4} parent=0 // pred_fallthru
    _

// kernel: stn_forward.5
$region0: #{stn_forward.5}
  #allocation0 [shape = 'u32[]', space=smem, size = 0x4, offset = 0x4, fixed_abs, tag = 'smem constant byte address 0x4 - core index']
  #allocation1 [shape = 'u32[144,128]{1,0:T(1,128)}', space=vmem, size = 0x12000, scoped, tag = 'internal scratch']
  #allocation2 [shape = 'f32[72,576]{1,0:T(8,128)}', space=vmem, size = 0x2d000, scoped, tag = 'scratch operand']
  #allocation3 [shape = 's32[1]{0}', space=sflag, size = 0x4, scoped, tag = 'scoped memory for stn_forward.5']
  #allocation4 [shape = 'u8[4096]{0}', space=smem, size = 0x1000, scoped, tag = 'prefetched SMEM operand 0']
  %s0 = inlined_call_operand.vmem [shape: f32[6,2], index: 0, kind: input, shape index: {}]
  %s1 = inlined_call_operand.vmem [shape: f32[2,576], index: 1, kind: input, shape index: {}]
  %s2 = inlined_call_operand.vmem [shape: f32[2,72,24], index: 2, kind: input, shape index: {}]
  %s3 = inlined_call_operand.vmem [shape: f32[6,576], index: 3, kind: output, shape index: {}]
  %s4 = sld [smem:[#allocation0]]
  $region18: #{stn_forward.5} parent=0
    _
  %s6 = ssub.s32 1, %s4
  %s7 = scalar_select 0, %s6, %s4
  %s8 = sshll.u32 %s0, 4
  %s9 = int_to_ptr.vmem [resolvable:$true] %s8
  %11 = dma.vmem_to_smem %s9, 128, [#allocation4], [#allocation3]
  %12 = dma.done [#allocation3], 128
  %13 = sfence
  // Predicated region
  $region2: #{stn_forward.5} parent=0 // pred_check
    _
  $region3: #{stn_forward.5} parent=0 // pred_check_branch
    %15 = sbr.rel (0) target = $region5
  $region4: #{stn_forward.5} parent=0 // pred_region
    _
  $region5: #{stn_forward.5} parent=0 // pred_fallthru
    _
  // Predicated region
  $region6: #{stn_forward.5} parent=0 // pred_check
    _
  $region7: #{stn_forward.5} parent=0 // pred_check_branch
    %17 = sbr.rel (0) target = $region9
  $region8: #{stn_forward.5} parent=0 // pred_region
    _
  $region9: #{stn_forward.5} parent=0 // pred_fallthru
    _
  %v18 = vld [vmem:[%s1] ss:$2 sm:$0x1f]
  %s19 = scalar_lea.vmem %s1, 1
  %v20 = vld [vmem:[%s19] ss:$2 sm:$0x1f]
  %v21 = vlaneseq
  %v22 = vshrl.u32 %v21, 7
  %v23 = vadd.s32 %v22, 8
  %v24 = vadd.s32 %v22, 16
  %s25 = sld [smem:[#allocation4]]
  %s26 = sld [smem:[#allocation4 + $0x80]]
  %s27 = sld [smem:[#allocation4 + $0x100]]
  %s28 = sld [smem:[#allocation4 + $0x180]]
  %s29 = sld [smem:[#allocation4 + $0x200]]
  %s30 = sld [smem:[#allocation4 + $0x280]]
  %v31 = vstv %s25
  %v32 = vmul.f32 %v31, %v18
  %v33 = vstv %s26
  %v34 = vmul.f32 %v33, %v20
  %v35 = vadd.f32 %v32, %v34
  %v36 = vstv %s27
  %v37 = vadd.f32 %v35, %v36
  %v38 = vstv %s28
  %v39 = vmul.f32 %v38, %v18
  %v40 = vstv %s29
  %v41 = vmul.f32 %v40, %v20
  %v42 = vadd.f32 %v39, %v41
  %v43 = vstv %s30
  %v44 = vadd.f32 %v42, %v43
  %v45 = vadd.f32 %v37, 1.0
  %v46 = vmul.f32 %v45, 11.5
  %v47 = vadd.f32 %v44, 1.0
  %v48 = vmul.f32 %v47, 11.5
  %v49 = vfloor.f32 %v46
  %v50 = vfloor.f32 %v48
  %v51 = vsub.f32 %v46, %v49
  %v52 = vsub.f32 1.0, %v51
  %v53 = vsub.f32 %v48, %v50
  %v54 = vsub.f32 1.0, %v53
  %v55 = vcvt.f32.s32.to.zero.pseudo %v49
  %v56 = vadd.s32 %v55, 1
  %v57 = vcvt.f32.s32.to.zero.pseudo %v50
  %v58 = vadd.s32 %v57, 1
  %vm59 = vcmp.ge.s32.totalorder %v55, 0
  %vm60 = vcmp.lt.s32.totalorder %v55, 24
  %vm61 = vmand %vm59, %vm60
  %v62 = vsel %vm61, %v52, 0.0
  %vm63 = vcmp.ge.s32.totalorder %v56, 0
  %vm64 = vcmp.lt.s32.totalorder %v56, 24
  %vm65 = vmand %vm63, %vm64
  %v66 = vsel %vm65, %v51, 0.0
  %vm67 = vcmp.ge.s32.totalorder %v57, 0
  %vm68 = vcmp.lt.s32.totalorder %v57, 24
  %vm69 = vmand %vm67, %vm68
  %v70 = vsel %vm69, %v54, 0.0
  %vm71 = vcmp.ge.s32.totalorder %v58, 0
  %vm72 = vcmp.lt.s32.totalorder %v58, 24
  %vm73 = vmand %vm71, %vm72
  %v74 = vsel %vm73, %v53, 0.0
  %v75 = vlaneseq
  %v76 = vshrl.u32 %v75, 7
  %v77 = vsub.s32 0, %v76
  %v78 = vrot.slane %v55, %v77
  %v79 = vlaneseq
  %v80 = vshrl.u32 %v79, 7
  %v81 = vsub.s32 1, %v80
  %v82 = vrot.slane %v55, %v81
  %v83 = vlaneseq
  %v84 = vshrl.u32 %v83, 7
  %v85 = vsub.s32 2, %v84
  %v86 = vrot.slane %v55, %v85
  %v87 = vlaneseq
  %v88 = vshrl.u32 %v87, 7
  %v89 = vsub.s32 3, %v88
  %v90 = vrot.slane %v55, %v89
  %v91 = vlaneseq
  %v92 = vshrl.u32 %v91, 7
  %v93 = vsub.s32 4, %v92
  %v94 = vrot.slane %v55, %v93
  %vm95 = vcmp.eq.s32.totalorder %v22, %v78
  %vm96 = vcmp.eq.s32.totalorder %v22, %v82
  %vm97 = vcmp.eq.s32.totalorder %v22, %v86
  %vm98 = vcmp.eq.s32.totalorder %v22, %v90
  %vm99 = vcmp.eq.s32.totalorder %v22, %v94
  %vm100 = vcmp.eq.s32.totalorder %v23, %v78
  %vm101 = vcmp.eq.s32.totalorder %v23, %v82
  %vm102 = vcmp.eq.s32.totalorder %v23, %v86
  %vm103 = vcmp.eq.s32.totalorder %v23, %v90
  %vm104 = vcmp.eq.s32.totalorder %v23, %v94
  %vm105 = vcmp.eq.s32.totalorder %v24, %v78
  %vm106 = vcmp.eq.s32.totalorder %v24, %v82
  %vm107 = vcmp.eq.s32.totalorder %v24, %v86
  %vm108 = vcmp.eq.s32.totalorder %v24, %v90
  %vm109 = vcmp.eq.s32.totalorder %v24, %v94
  %v111 = vlaneseq
  %v112 = vshrl.u32 %v111, 7
  %v113 = vsub.s32 0, %v112
  %v114 = vrot.slane %v62, %v113
  %v115 = vlaneseq
  %v116 = vshrl.u32 %v115, 7
  %v117 = vsub.s32 1, %v116
  %v118 = vrot.slane %v62, %v117
  %v119 = vlaneseq
  %v120 = vshrl.u32 %v119, 7
  %v121 = vsub.s32 2, %v120
  %v122 = vrot.slane %v62, %v121
  %v123 = vlaneseq
  %v124 = vshrl.u32 %v123, 7
  %v125 = vsub.s32 3, %v124
  %v126 = vrot.slane %v62, %v125
  %v127 = vlaneseq
  %v128 = vshrl.u32 %v127, 7
  %v129 = vsub.s32 4, %v128
  %v130 = vrot.slane %v62, %v129
  %v136 = vsel %vm95, %v114, 0.0
  %v137 = vsel %vm96, %v118, 0.0
  %v138 = vsel %vm97, %v122, 0.0
  %v139 = vsel %vm98, %v126, 0.0
  %v140 = vsel %vm99, %v130, 0.0
  %v141 = vsel %vm100, %v114, 0.0
  %v142 = vsel %vm101, %v118, 0.0
  %v143 = vsel %vm102, %v122, 0.0
  %v144 = vsel %vm103, %v126, 0.0
  %v145 = vsel %vm104, %v130, 0.0
  %v146 = vsel %vm105, %v114, 0.0
  %v147 = vsel %vm106, %v118, 0.0
  %v148 = vsel %vm107, %v122, 0.0
  %v149 = vsel %vm108, %v126, 0.0
  %v150 = vsel %vm109, %v130, 0.0
  %v151 = vlaneseq
  %v152 = vshrl.u32 %v151, 7
  %v153 = vsub.s32 0, %v152
  %v154 = vrot.slane %v56, %v153
  %v155 = vlaneseq
  %v156 = vshrl.u32 %v155, 7
  %v157 = vsub.s32 1, %v156
  %v158 = vrot.slane %v56, %v157
  %v159 = vlaneseq
  %v160 = vshrl.u32 %v159, 7
  %v161 = vsub.s32 2, %v160
  %v162 = vrot.slane %v56, %v161
  %v163 = vlaneseq
  %v164 = vshrl.u32 %v163, 7
  %v165 = vsub.s32 3, %v164
  %v166 = vrot.slane %v56, %v165
  %v167 = vlaneseq
  %v168 = vshrl.u32 %v167, 7
  %v169 = vsub.s32 4, %v168
  %v170 = vrot.slane %v56, %v169
  %vm171 = vcmp.eq.s32.totalorder %v22, %v154
  %vm172 = vcmp.eq.s32.totalorder %v22, %v158
  %vm173 = vcmp.eq.s32.totalorder %v22, %v162
  %vm174 = vcmp.eq.s32.totalorder %v22, %v166
  %vm175 = vcmp.eq.s32.totalorder %v22, %v170
  %vm176 = vcmp.eq.s32.totalorder %v23, %v154
  %vm177 = vcmp.eq.s32.totalorder %v23, %v158
  %vm178 = vcmp.eq.s32.totalorder %v23, %v162
  %vm179 = vcmp.eq.s32.totalorder %v23, %v166
  %vm180 = vcmp.eq.s32.totalorder %v23, %v170
  %vm181 = vcmp.eq.s32.totalorder %v24, %v154
  %vm182 = vcmp.eq.s32.totalorder %v24, %v158
  %vm183 = vcmp.eq.s32.totalorder %v24, %v162
  %vm184 = vcmp.eq.s32.totalorder %v24, %v166
  %vm185 = vcmp.eq.s32.totalorder %v24, %v170
  %v187 = vlaneseq
  %v188 = vshrl.u32 %v187, 7
  %v189 = vsub.s32 0, %v188
  %v190 = vrot.slane %v66, %v189
  %v191 = vlaneseq
  %v192 = vshrl.u32 %v191, 7
  %v193 = vsub.s32 1, %v192
  %v194 = vrot.slane %v66, %v193
  %v195 = vlaneseq
  %v196 = vshrl.u32 %v195, 7
  %v197 = vsub.s32 2, %v196
  %v198 = vrot.slane %v66, %v197
  %v199 = vlaneseq
  %v200 = vshrl.u32 %v199, 7
  %v201 = vsub.s32 3, %v200
  %v202 = vrot.slane %v66, %v201
  %v203 = vlaneseq
  %v204 = vshrl.u32 %v203, 7
  %v205 = vsub.s32 4, %v204
  %v206 = vrot.slane %v66, %v205
  %v212 = vsel %vm171, %v190, 0.0
  %v213 = vsel %vm172, %v194, 0.0
  %v214 = vsel %vm173, %v198, 0.0
  %v215 = vsel %vm174, %v202, 0.0
  %v216 = vsel %vm175, %v206, 0.0
  %v217 = vsel %vm176, %v190, 0.0
  %v218 = vsel %vm177, %v194, 0.0
  %v219 = vsel %vm178, %v198, 0.0
  %v220 = vsel %vm179, %v202, 0.0
  %v221 = vsel %vm180, %v206, 0.0
  %v222 = vsel %vm181, %v190, 0.0
  %v223 = vsel %vm182, %v194, 0.0
  %v224 = vsel %vm183, %v198, 0.0
  %v225 = vsel %vm184, %v202, 0.0
  %v226 = vsel %vm185, %v206, 0.0
  %v227 = vadd.f32 %v136, %v212
  %v228 = vadd.f32 %v137, %v213
  %v229 = vadd.f32 %v138, %v214
  %v230 = vadd.f32 %v139, %v215
  %v231 = vadd.f32 %v140, %v216
  %v232 = vadd.f32 %v141, %v217
  %v233 = vadd.f32 %v142, %v218
  %v234 = vadd.f32 %v143, %v219
  %v235 = vadd.f32 %v144, %v220
  %v236 = vadd.f32 %v145, %v221
  %v237 = vadd.f32 %v146, %v222
  %v238 = vadd.f32 %v147, %v223
  %v239 = vadd.f32 %v148, %v224
  %v240 = vadd.f32 %v149, %v225
  %v241 = vadd.f32 %v150, %v226
  %v242 = vlaneseq
  %v243 = vshrl.u32 %v242, 7
  %v244 = vsub.s32 0, %v243
  %v245 = vrot.slane %v57, %v244
  %v246 = vlaneseq
  %v247 = vshrl.u32 %v246, 7
  %v248 = vsub.s32 1, %v247
  %v249 = vrot.slane %v57, %v248
  %v250 = vlaneseq
  %v251 = vshrl.u32 %v250, 7
  %v252 = vsub.s32 2, %v251
  %v253 = vrot.slane %v57, %v252
  %v254 = vlaneseq
  %v255 = vshrl.u32 %v254, 7
  %v256 = vsub.s32 3, %v255
  %v257 = vrot.slane %v57, %v256
  %v258 = vlaneseq
  %v259 = vshrl.u32 %v258, 7
  %v260 = vsub.s32 4, %v259
  %v261 = vrot.slane %v57, %v260
  %vm262 = vcmp.eq.s32.totalorder %v22, %v245
  %vm263 = vcmp.eq.s32.totalorder %v22, %v249
  %vm264 = vcmp.eq.s32.totalorder %v22, %v253
  %vm265 = vcmp.eq.s32.totalorder %v22, %v257
  %vm266 = vcmp.eq.s32.totalorder %v22, %v261
  %vm267 = vcmp.eq.s32.totalorder %v23, %v245
  %vm268 = vcmp.eq.s32.totalorder %v23, %v249
  %vm269 = vcmp.eq.s32.totalorder %v23, %v253
  %vm270 = vcmp.eq.s32.totalorder %v23, %v257
  %vm271 = vcmp.eq.s32.totalorder %v23, %v261
  %vm272 = vcmp.eq.s32.totalorder %v24, %v245
  %vm273 = vcmp.eq.s32.totalorder %v24, %v249
  %vm274 = vcmp.eq.s32.totalorder %v24, %v253
  %vm275 = vcmp.eq.s32.totalorder %v24, %v257
  %vm276 = vcmp.eq.s32.totalorder %v24, %v261
  %v278 = vlaneseq
  %v279 = vshrl.u32 %v278, 7
  %v280 = vsub.s32 0, %v279
  %v281 = vrot.slane %v70, %v280
  %v282 = vlaneseq
  %v283 = vshrl.u32 %v282, 7
  %v284 = vsub.s32 1, %v283
  %v285 = vrot.slane %v70, %v284
  %v286 = vlaneseq
  %v287 = vshrl.u32 %v286, 7
  %v288 = vsub.s32 2, %v287
  %v289 = vrot.slane %v70, %v288
  %v290 = vlaneseq
  %v291 = vshrl.u32 %v290, 7
  %v292 = vsub.s32 3, %v291
  %v293 = vrot.slane %v70, %v292
  %v294 = vlaneseq
  %v295 = vshrl.u32 %v294, 7
  %v296 = vsub.s32 4, %v295
  %v297 = vrot.slane %v70, %v296
  %v303 = vsel %vm262, %v281, 0.0
  %v304 = vsel %vm263, %v285, 0.0
  %v305 = vsel %vm264, %v289, 0.0
  %v306 = vsel %vm265, %v293, 0.0
  %v307 = vsel %vm266, %v297, 0.0
  %v308 = vsel %vm267, %v281, 0.0
  %v309 = vsel %vm268, %v285, 0.0
  %v310 = vsel %vm269, %v289, 0.0
  %v311 = vsel %vm270, %v293, 0.0
  %v312 = vsel %vm271, %v297, 0.0
  %v313 = vsel %vm272, %v281, 0.0
  %v314 = vsel %vm273, %v285, 0.0
  %v315 = vsel %vm274, %v289, 0.0
  %v316 = vsel %vm275, %v293, 0.0
  %v317 = vsel %vm276, %v297, 0.0
  %v318 = vlaneseq
  %v319 = vshrl.u32 %v318, 7
  %v320 = vsub.s32 0, %v319
  %v321 = vrot.slane %v58, %v320
  %v322 = vlaneseq
  %v323 = vshrl.u32 %v322, 7
  %v324 = vsub.s32 1, %v323
  %v325 = vrot.slane %v58, %v324
  %v326 = vlaneseq
  %v327 = vshrl.u32 %v326, 7
  %v328 = vsub.s32 2, %v327
  %v329 = vrot.slane %v58, %v328
  %v330 = vlaneseq
  %v331 = vshrl.u32 %v330, 7
  %v332 = vsub.s32 3, %v331
  %v333 = vrot.slane %v58, %v332
  %v334 = vlaneseq
  %v335 = vshrl.u32 %v334, 7
  %v336 = vsub.s32 4, %v335
  %v337 = vrot.slane %v58, %v336
  %vm338 = vcmp.eq.s32.totalorder %v22, %v321
  %vm339 = vcmp.eq.s32.totalorder %v22, %v325
  %vm340 = vcmp.eq.s32.totalorder %v22, %v329
  %vm341 = vcmp.eq.s32.totalorder %v22, %v333
  %vm342 = vcmp.eq.s32.totalorder %v22, %v337
  %vm343 = vcmp.eq.s32.totalorder %v23, %v321
  %vm344 = vcmp.eq.s32.totalorder %v23, %v325
  %vm345 = vcmp.eq.s32.totalorder %v23, %v329
  %vm346 = vcmp.eq.s32.totalorder %v23, %v333
  %vm347 = vcmp.eq.s32.totalorder %v23, %v337
  %vm348 = vcmp.eq.s32.totalorder %v24, %v321
  %vm349 = vcmp.eq.s32.totalorder %v24, %v325
  %vm350 = vcmp.eq.s32.totalorder %v24, %v329
  %vm351 = vcmp.eq.s32.totalorder %v24, %v333
  %vm352 = vcmp.eq.s32.totalorder %v24, %v337
  %v354 = vlaneseq
  %v355 = vshrl.u32 %v354, 7
  %v356 = vsub.s32 0, %v355
  %v357 = vrot.slane %v74, %v356
  %v358 = vlaneseq
  %v359 = vshrl.u32 %v358, 7
  %v360 = vsub.s32 1, %v359
  %v361 = vrot.slane %v74, %v360
  %v362 = vlaneseq
  %v363 = vshrl.u32 %v362, 7
  %v364 = vsub.s32 2, %v363
  %v365 = vrot.slane %v74, %v364
  %v366 = vlaneseq
  %v367 = vshrl.u32 %v366, 7
  %v368 = vsub.s32 3, %v367
  %v369 = vrot.slane %v74, %v368
  %v370 = vlaneseq
  %v371 = vshrl.u32 %v370, 7
  %v372 = vsub.s32 4, %v371
  %v373 = vrot.slane %v74, %v372
  %v379 = vsel %vm338, %v357, 0.0
  %v380 = vsel %vm339, %v361, 0.0
  %v381 = vsel %vm340, %v365, 0.0
  %v382 = vsel %vm341, %v369, 0.0
  %v383 = vsel %vm342, %v373, 0.0
  %v384 = vsel %vm343, %v357, 0.0
  %v385 = vsel %vm344, %v361, 0.0
  %v386 = vsel %vm345, %v365, 0.0
  %v387 = vsel %vm346, %v369, 0.0
  %v388 = vsel %vm347, %v373, 0.0
  %v389 = vsel %vm348, %v357, 0.0
  %v390 = vsel %vm349, %v361, 0.0
  %v391 = vsel %vm350, %v365, 0.0
  %v392 = vsel %vm351, %v369, 0.0
  %v393 = vsel %vm352, %v373, 0.0
  %v394 = vadd.f32 %v303, %v379
  %v395 = vadd.f32 %v304, %v380
  %v396 = vadd.f32 %v305, %v381
  %v397 = vadd.f32 %v306, %v382
  %v398 = vadd.f32 %v307, %v383
  %v399 = vadd.f32 %v308, %v384
  %v400 = vadd.f32 %v309, %v385
  %v401 = vadd.f32 %v310, %v386
  %v402 = vadd.f32 %v311, %v387
  %v403 = vadd.f32 %v312, %v388
  %v404 = vadd.f32 %v313, %v389
  %v405 = vadd.f32 %v314, %v390
  %v406 = vadd.f32 %v315, %v391
  %v407 = vadd.f32 %v316, %v392
  %v408 = vadd.f32 %v317, %v393
  %v409 = vld [vmem:[%s2] sm:$0xff]
  %v410 = vld [vmem:[%s2 + $0x8] sm:$0xff]
  %v411 = vld [vmem:[%s2 + $0x10] sm:$0xff]
  %v412 = vld [vmem:[%s2 + $0x18] sm:$0xff]
  %v413 = vld [vmem:[%s2 + $0x20] sm:$0xff]
  %v414 = vld [vmem:[%s2 + $0x28] sm:$0xff]
  %v415 = vld [vmem:[%s2 + $0x30] sm:$0xff]
  %v416 = vld [vmem:[%s2 + $0x38] sm:$0xff]
  %v417 = vld [vmem:[%s2 + $0x40] sm:$0xff]
  %vm418 = vcmask 195584
  %v420 = vsel %vm418, %v409, 0
  %v423 = vsel %vm418, %v410, 0
  %v426 = vsel %vm418, %v411, 0
  %v429 = vsel %vm418, %v412, 0
  %v432 = vsel %vm418, %v413, 0
  %v435 = vsel %vm418, %v414, 0
  %v438 = vsel %vm418, %v415, 0
  %v441 = vsel %vm418, %v416, 0
  %v444 = vsel %vm418, %v417, 0
  %446 = vmatprep.subr.mxu0 %v228
  %447 = vmatpush1.msra.mxu0 %v227
  %448 = vmatprep.subr.mxu0 %v233
  %449 = vmatpush1.msra.mxu0 %v232
  %450 = vmatprep.subr.mxu0 %v238
  %451 = vmatpush1.msra.mxu0 %v237
  %452 = vmatprep.subr.mxu0 0.0
  %453 = vmatpush1.msra.mxu0 0.0
  %454 = vmatprep.subr.mxu0 0.0
  %455 = vmatpush1.msra.mxu0 0.0
  %456 = vmatprep.subr.mxu0 0.0
  %457 = vmatpush1.msra.mxu0 0.0
  %458 = vmatprep.subr.mxu0 0.0
  %459 = vmatpush1.msra.mxu0 0.0
  %460 = vmatprep.subr.mxu0 0.0
  %461 = vmatpush1.msra.mxu0 0.0
  %462 = vmatprep.subr.mxu0 0.0
  %463 = vmatpush1.msra.mxu0 0.0
  %464 = vmatprep.subr.mxu0 0.0
  %465 = vmatpush1.msra.mxu0 0.0
  %466 = vmatprep.subr.mxu0 0.0
  %467 = vmatpush1.msra.mxu0 0.0
  %468 = vmatprep.subr.mxu0 0.0
  %469 = vmatpush1.msra.mxu0 0.0
  %470 = vmatprep.subr.mxu0 0.0
  %471 = vmatpush1.msra.mxu0 0.0
  %472 = vmatprep.subr.mxu0 0.0
  %473 = vmatpush1.msra.mxu0 0.0
  %474 = vmatprep.subr.mxu0 0.0
  %475 = vmatpush1.msra.mxu0 0.0
  %476 = vmatprep.subr.mxu0 0.0
  %477 = vmatpush1.msra.mxu0 0.0
  %478 = vmatprep.subr.mxu0 0.0
  %479 = vmatpush1.msra.mxu0 0.0
  %480 = vmatprep.subr.mxu0 0.0
  %481 = vmatpush1.msra.mxu0 0.0
  %482 = vmatprep.subr.mxu0 0.0
  %483 = vmatpush1.msra.mxu0 0.0
  %484 = vmatprep.subr.mxu0 0.0
  %485 = vmatpush1.msra.mxu0 0.0
  %486 = vmatprep.subr.mxu0 0.0
  %487 = vmatpush1.msra.mxu0 0.0
  %488 = vmatprep.subr.mxu0 0.0
  %489 = vmatpush1.msra.mxu0 0.0
  %490 = vmatprep.subr.mxu0 0.0
  %491 = vmatpush1.msra.mxu0 0.0
  %492 = vmatprep.subr.mxu0 0.0
  %493 = vmatpush1.msra.mxu0 0.0
  %494 = vmatprep.subr.mxu0 0.0
  %495 = vmatpush1.msra.mxu0 0.0
  %496 = vmatprep.subr.mxu0 0.0
  %497 = vmatpush1.msra.mxu0 0.0
  %498 = vmatprep.subr.mxu0 0.0
  %499 = vmatpush1.msra.mxu0 0.0
  %500 = vmatprep.subr.mxu0 0.0
  %501 = vmatpush1.msra.mxu0 0.0
  %502 = vmatprep.subr.mxu0 0.0
  %503 = vmatpush1.msra.mxu0 0.0
  %504 = vmatprep.subr.mxu0 0.0
  %505 = vmatpush1.msra.mxu0 0.0
  %506 = vmatprep.subr.mxu0 0.0
  %507 = vmatpush1.msra.mxu0 0.0
  %508 = vmatprep.subr.mxu0 0.0
  %509 = vmatpush1.msra.mxu0 0.0
  %510 = vmatprep.mubr.f32.mxu0 0.0
  %511 = vmatmul.mubr.f32.gmra.mrb[0].mxu0 %v420
  %v512 = vpop.f32.mrb[0].mxu0
  %v513 = vadd.f32 0.0, %v512
  %v514 = vpop.f32.mrb[0].mxu0
  %v515 = vadd.f32 0.0, %v514
  %516 = vmatprep.mubr.f32.mxu0 0.0
  %517 = vmatmul.mubr.f32.gmra.mrb[0].mxu0 %v423
  %v518 = vpop.f32.mrb[0].mxu0
  %v519 = vadd.f32 0.0, %v518
  %v520 = vpop.f32.mrb[0].mxu0
  %v521 = vadd.f32 0.0, %v520
  %522 = vmatprep.mubr.f32.mxu0 0.0
  %523 = vmatmul.mubr.f32.gmra.mrb[0].mxu0 %v426
  %v524 = vpop.f32.mrb[0].mxu0
  %v525 = vadd.f32 0.0, %v524
  %v526 = vpop.f32.mrb[0].mxu0
  %v527 = vadd.f32 0.0, %v526
  %528 = vmatprep.mubr.f32.mxu0 0.0
  %529 = vmatmul.mubr.f32.gmra.mrb[0].mxu0 %v429
  %v530 = vpop.f32.mrb[0].mxu0
  %v531 = vadd.f32 0.0, %v530
  %v532 = vpop.f32.mrb[0].mxu0
  %v533 = vadd.f32 0.0, %v532
  %534 = vmatprep.mubr.f32.mxu0 0.0
  %535 = vmatmul.mubr.f32.gmra.mrb[0].mxu0 %v432
  %v536 = vpop.f32.mrb[0].mxu0
  %v537 = vadd.f32 0.0, %v536
  %v538 = vpop.f32.mrb[0].mxu0
  %v539 = vadd.f32 0.0, %v538
  %540 = vmatprep.mubr.f32.mxu0 0.0
  %541 = vmatmul.mubr.f32.gmra.mrb[0].mxu0 %v435
  %v542 = vpop.f32.mrb[0].mxu0
  %v543 = vadd.f32 0.0, %v542
  %v544 = vpop.f32.mrb[0].mxu0
  %v545 = vadd.f32 0.0, %v544
  %546 = vmatprep.mubr.f32.mxu0 0.0
  %547 = vmatmul.mubr.f32.gmra.mrb[0].mxu0 %v438
  %v548 = vpop.f32.mrb[0].mxu0
  %v549 = vadd.f32 0.0, %v548
  %v550 = vpop.f32.mrb[0].mxu0
  %v551 = vadd.f32 0.0, %v550
  %552 = vmatprep.mubr.f32.mxu0 0.0
  %553 = vmatmul.mubr.f32.gmra.mrb[0].mxu0 %v441
  %v554 = vpop.f32.mrb[0].mxu0
  %v555 = vadd.f32 0.0, %v554
  %v556 = vpop.f32.mrb[0].mxu0
  %v557 = vadd.f32 0.0, %v556
  %558 = vmatprep.mubr.f32.mxu0 0.0
  %559 = vmatmul.mubr.f32.gmra.mrb[0].mxu0 %v444
  %v560 = vpop.f32.mrb[0].mxu0
  %v561 = vadd.f32 0.0, %v560
  %v562 = vpop.f32.mrb[0].mxu0
  %v563 = vadd.f32 0.0, %v562
  %564 = vdwg.mxu0
  %565 = vmatprep.subr.mxu0 %v230
  %566 = vmatpush1.msra.mxu0 %v229
  %567 = vmatprep.subr.mxu0 %v235
  %568 = vmatpush1.msra.mxu0 %v234
  %569 = vmatprep.subr.mxu0 %v240
  %570 = vmatpush1.msra.mxu0 %v239
  %571 = vmatprep.subr.mxu0 0.0
  %572 = vmatpush1.msra.mxu0 0.0
  %573 = vmatprep.subr.mxu0 0.0
  %574 = vmatpush1.msra.mxu0 0.0
  %575 = vmatprep.subr.mxu0 0.0
  %576 = vmatpush1.msra.mxu0 0.0
  %577 = vmatprep.subr.mxu0 0.0
  %578 = vmatpush1.msra.mxu0 0.0
  %579 = vmatprep.subr.mxu0 0.0
  %580 = vmatpush1.msra.mxu0 0.0
  %581 = vmatprep.subr.mxu0 0.0
  %582 = vmatpush1.msra.mxu0 0.0
  %583 = vmatprep.subr.mxu0 0.0
  %584 = vmatpush1.msra.mxu0 0.0
  %585 = vmatprep.subr.mxu0 0.0
  %586 = vmatpush1.msra.mxu0 0.0
  %587 = vmatprep.subr.mxu0 0.0
  %588 = vmatpush1.msra.mxu0 0.0
  %589 = vmatprep.subr.mxu0 0.0
  %590 = vmatpush1.msra.mxu0 0.0
  %591 = vmatprep.subr.mxu0 0.0
  %592 = vmatpush1.msra.mxu0 0.0
  %593 = vmatprep.subr.mxu0 0.0
  %594 = vmatpush1.msra.mxu0 0.0
  %595 = vmatprep.subr.mxu0 0.0
  %596 = vmatpush1.msra.mxu0 0.0
  %597 = vmatprep.subr.mxu0 0.0
  %598 = vmatpush1.msra.mxu0 0.0
  %599 = vmatprep.subr.mxu0 0.0
  %600 = vmatpush1.msra.mxu0 0.0
  %601 = vmatprep.subr.mxu0 0.0
  %602 = vmatpush1.msra.mxu0 0.0
  %603 = vmatprep.subr.mxu0 0.0
  %604 = vmatpush1.msra.mxu0 0.0
  %605 = vmatprep.subr.mxu0 0.0
  %606 = vmatpush1.msra.mxu0 0.0
  %607 = vmatprep.subr.mxu0 0.0
  %608 = vmatpush1.msra.mxu0 0.0
  %609 = vmatprep.subr.mxu0 0.0
  %610 = vmatpush1.msra.mxu0 0.0
  %611 = vmatprep.subr.mxu0 0.0
  %612 = vmatpush1.msra.mxu0 0.0
  %613 = vmatprep.subr.mxu0 0.0
  %614 = vmatpush1.msra.mxu0 0.0
  %615 = vmatprep.subr.mxu0 0.0
  %616 = vmatpush1.msra.mxu0 0.0
  %617 = vmatprep.subr.mxu0 0.0
  %618 = vmatpush1.msra.mxu0 0.0
  %619 = vmatprep.subr.mxu0 0.0
  %620 = vmatpush1.msra.mxu0 0.0
  %621 = vmatprep.subr.mxu0 0.0
  %622 = vmatpush1.msra.mxu0 0.0
  %623 = vmatprep.subr.mxu0 0.0
  %624 = vmatpush1.msra.mxu0 0.0
  %625 = vmatprep.subr.mxu0 0.0
  %626 = vmatpush1.msra.mxu0 0.0
  %627 = vmatprep.subr.mxu0 0.0
  %628 = vmatpush1.msra.mxu0 0.0
  %629 = vmatprep.mubr.f32.mxu0 0.0
  %630 = vmatmul.mubr.f32.gmra.mrb[0].mxu0 %v420
  %v631 = vpop.f32.mrb[0].mxu0
  %v632 = vadd.f32 0.0, %v631
  %v633 = vpop.f32.mrb[0].mxu0
  %v634 = vadd.f32 0.0, %v633
  %635 = vmatprep.mubr.f32.mxu0 0.0
  %636 = vmatmul.mubr.f32.gmra.mrb[0].mxu0 %v423
  %v637 = vpop.f32.mrb[0].mxu0
  %v638 = vadd.f32 0.0, %v637
  %v639 = vpop.f32.mrb[0].mxu0
  %v640 = vadd.f32 0.0, %v639
  %641 = vmatprep.mubr.f32.mxu0 0.0
  %642 = vmatmul.mubr.f32.gmra.mrb[0].mxu0 %v426
  %v643 = vpop.f32.mrb[0].mxu0
  %v644 = vadd.f32 0.0, %v643
  %v645 = vpop.f32.mrb[0].mxu0
  %v646 = vadd.f32 0.0, %v645
  %647 = vmatprep.mubr.f32.mxu0 0.0
  %648 = vmatmul.mubr.f32.gmra.mrb[0].mxu0 %v429
  %v649 = vpop.f32.mrb[0].mxu0
  %v650 = vadd.f32 0.0, %v649
  %v651 = vpop.f32.mrb[0].mxu0
  %v652 = vadd.f32 0.0, %v651
  %653 = vmatprep.mubr.f32.mxu0 0.0
  %654 = vmatmul.mubr.f32.gmra.mrb[0].mxu0 %v432
  %v655 = vpop.f32.mrb[0].mxu0
  %v656 = vadd.f32 0.0, %v655
  %v657 = vpop.f32.mrb[0].mxu0
  %v658 = vadd.f32 0.0, %v657
  %659 = vmatprep.mubr.f32.mxu0 0.0
  %660 = vmatmul.mubr.f32.gmra.mrb[0].mxu0 %v435
  %v661 = vpop.f32.mrb[0].mxu0
  %v662 = vadd.f32 0.0, %v661
  %v663 = vpop.f32.mrb[0].mxu0
  %v664 = vadd.f32 0.0, %v663
  %665 = vmatprep.mubr.f32.mxu0 0.0
  %666 = vmatmul.mubr.f32.gmra.mrb[0].mxu0 %v438
  %v667 = vpop.f32.mrb[0].mxu0
  %v668 = vadd.f32 0.0, %v667
  %v669 = vpop.f32.mrb[0].mxu0
  %v670 = vadd.f32 0.0, %v669
  %671 = vmatprep.mubr.f32.mxu0 0.0
  %672 = vmatmul.mubr.f32.gmra.mrb[0].mxu0 %v441
  %v673 = vpop.f32.mrb[0].mxu0
  %v674 = vadd.f32 0.0, %v673
  %v675 = vpop.f32.mrb[0].mxu0
  %v676 = vadd.f32 0.0, %v675
  %677 = vmatprep.mubr.f32.mxu0 0.0
  %678 = vmatmul.mubr.f32.gmra.mrb[0].mxu0 %v444
  %v679 = vpop.f32.mrb[0].mxu0
  %v680 = vadd.f32 0.0, %v679
  %v681 = vpop.f32.mrb[0].mxu0
  %v682 = vadd.f32 0.0, %v681
  %683 = vdwg.mxu0
  %684 = vmatprep.subr.mxu0 0.0
  %685 = vmatpush1.msra.mxu0 %v231
  %686 = vmatprep.subr.mxu0 0.0
  %687 = vmatpush1.msra.mxu0 %v236
  %688 = vmatprep.subr.mxu0 0.0
  %689 = vmatpush1.msra.mxu0 %v241
  %690 = vmatprep.subr.mxu0 0.0
  %691 = vmatpush1.msra.mxu0 0.0
  %692 = vmatprep.subr.mxu0 0.0
  %693 = vmatpush1.msra.mxu0 0.0
  %694 = vmatprep.subr.mxu0 0.0
  %695 = vmatpush1.msra.mxu0 0.0
  %696 = vmatprep.subr.mxu0 0.0
  %697 = vmatpush1.msra.mxu0 0.0
  %698 = vmatprep.subr.mxu0 0.0
  %699 = vmatpush1.msra.mxu0 0.0
  %700 = vmatprep.subr.mxu0 0.0
  %701 = vmatpush1.msra.mxu0 0.0
  %702 = vmatprep.subr.mxu0 0.0
  %703 = vmatpush1.msra.mxu0 0.0
  %704 = vmatprep.subr.mxu0 0.0
  %705 = vmatpush1.msra.mxu0 0.0
  %706 = vmatprep.subr.mxu0 0.0
  %707 = vmatpush1.msra.mxu0 0.0
  %708 = vmatprep.subr.mxu0 0.0
  %709 = vmatpush1.msra.mxu0 0.0
  %710 = vmatprep.subr.mxu0 0.0
  %711 = vmatpush1.msra.mxu0 0.0
  %712 = vmatprep.subr.mxu0 0.0
  %713 = vmatpush1.msra.mxu0 0.0
  %714 = vmatprep.subr.mxu0 0.0
  %715 = vmatpush1.msra.mxu0 0.0
  %716 = vmatprep.subr.mxu0 0.0
  %717 = vmatpush1.msra.mxu0 0.0
  %718 = vmatprep.subr.mxu0 0.0
  %719 = vmatpush1.msra.mxu0 0.0
  %720 = vmatprep.subr.mxu0 0.0
  %721 = vmatpush1.msra.mxu0 0.0
  %722 = vmatprep.subr.mxu0 0.0
  %723 = vmatpush1.msra.mxu0 0.0
  %724 = vmatprep.subr.mxu0 0.0
  %725 = vmatpush1.msra.mxu0 0.0
  %726 = vmatprep.subr.mxu0 0.0
  %727 = vmatpush1.msra.mxu0 0.0
  %728 = vmatprep.subr.mxu0 0.0
  %729 = vmatpush1.msra.mxu0 0.0
  %730 = vmatprep.subr.mxu0 0.0
  %731 = vmatpush1.msra.mxu0 0.0
  %732 = vmatprep.subr.mxu0 0.0
  %733 = vmatpush1.msra.mxu0 0.0
  %734 = vmatprep.subr.mxu0 0.0
  %735 = vmatpush1.msra.mxu0 0.0
  %736 = vmatprep.subr.mxu0 0.0
  %737 = vmatpush1.msra.mxu0 0.0
  %738 = vmatprep.subr.mxu0 0.0
  %739 = vmatpush1.msra.mxu0 0.0
  %740 = vmatprep.subr.mxu0 0.0
  %741 = vmatpush1.msra.mxu0 0.0
  %742 = vmatprep.subr.mxu0 0.0
  %743 = vmatpush1.msra.mxu0 0.0
  %744 = vmatprep.subr.mxu0 0.0
  %745 = vmatpush1.msra.mxu0 0.0
  %746 = vmatprep.subr.mxu0 0.0
  %747 = vmatpush1.msra.mxu0 0.0
  %748 = vmatprep.mubr.f32.mxu0 0.0
  %749 = vmatmul.mubr.f32.gmra.mrb[0].mxu0 %v420
  %v750 = vpop.f32.mrb[0].mxu0
  %v751 = vadd.f32 0.0, %v750
  %v752 = vpop.f32.mrb[0].mxu0
  %753 = vmatprep.mubr.f32.mxu0 0.0
  %754 = vmatmul.mubr.f32.gmra.mrb[0].mxu0 %v423
  %v755 = vpop.f32.mrb[0].mxu0
  %v756 = vadd.f32 0.0, %v755
  %v757 = vpop.f32.mrb[0].mxu0
  %758 = vmatprep.mubr.f32.mxu0 0.0
  %759 = vmatmul.mubr.f32.gmra.mrb[0].mxu0 %v426
  %v760 = vpop.f32.mrb[0].mxu0
  %v761 = vadd.f32 0.0, %v760
  %v762 = vpop.f32.mrb[0].mxu0
  %763 = vmatprep.mubr.f32.mxu0 0.0
  %764 = vmatmul.mubr.f32.gmra.mrb[0].mxu0 %v429
  %v765 = vpop.f32.mrb[0].mxu0
  %v766 = vadd.f32 0.0, %v765
  %v767 = vpop.f32.mrb[0].mxu0
  %768 = vmatprep.mubr.f32.mxu0 0.0
  %769 = vmatmul.mubr.f32.gmra.mrb[0].mxu0 %v432
  %v770 = vpop.f32.mrb[0].mxu0
  %v771 = vadd.f32 0.0, %v770
  %v772 = vpop.f32.mrb[0].mxu0
  %773 = vmatprep.mubr.f32.mxu0 0.0
  %774 = vmatmul.mubr.f32.gmra.mrb[0].mxu0 %v435
  %v775 = vpop.f32.mrb[0].mxu0
  %v776 = vadd.f32 0.0, %v775
  %v777 = vpop.f32.mrb[0].mxu0
  %778 = vmatprep.mubr.f32.mxu0 0.0
  %779 = vmatmul.mubr.f32.gmra.mrb[0].mxu0 %v438
  %v780 = vpop.f32.mrb[0].mxu0
  %v781 = vadd.f32 0.0, %v780
  %v782 = vpop.f32.mrb[0].mxu0
  %783 = vmatprep.mubr.f32.mxu0 0.0
  %784 = vmatmul.mubr.f32.gmra.mrb[0].mxu0 %v441
  %v785 = vpop.f32.mrb[0].mxu0
  %v786 = vadd.f32 0.0, %v785
  %v787 = vpop.f32.mrb[0].mxu0
  %788 = vmatprep.mubr.f32.mxu0 0.0
  %789 = vmatmul.mubr.f32.gmra.mrb[0].mxu0 %v444
  %v790 = vpop.f32.mrb[0].mxu0
  %v791 = vadd.f32 0.0, %v790
  %v792 = vpop.f32.mrb[0].mxu0
  %793 = vdwg.mxu0
  %794 = vst [vmem:[#allocation2] sm:$0xff] %v513
  %795 = vst [vmem:[#allocation2 + $0x8] sm:$0xff] %v515
  %796 = vst [vmem:[#allocation2 + $0x10] sm:$0xff] %v632
  %797 = vst [vmem:[#allocation2 + $0x18] sm:$0xff] %v634
  %vm798 = vcmask 523264
  %799 = vst.msk [vmem:[#allocation2 + $0x20] sm:$0xff] %vm798, %v751
  %800 = vst [vmem:[#allocation2 + $0x28] sm:$0xff] %v519
  %801 = vst [vmem:[#allocation2 + $0x30] sm:$0xff] %v521
  %802 = vst [vmem:[#allocation2 + $0x38] sm:$0xff] %v638
  %803 = vst [vmem:[#allocation2 + $0x40] sm:$0xff] %v640
  %804 = vst.msk [vmem:[#allocation2 + $0x48] sm:$0xff] %vm798, %v756
  %805 = vst [vmem:[#allocation2 + $0x50] sm:$0xff] %v525
  %806 = vst [vmem:[#allocation2 + $0x58] sm:$0xff] %v527
  %807 = vst [vmem:[#allocation2 + $0x60] sm:$0xff] %v644
  %808 = vst [vmem:[#allocation2 + $0x68] sm:$0xff] %v646
  %809 = vst.msk [vmem:[#allocation2 + $0x70] sm:$0xff] %vm798, %v761
  %810 = vst [vmem:[#allocation2 + $0x78] sm:$0xff] %v531
  %811 = vst [vmem:[#allocation2 + $0x80] sm:$0xff] %v533
  %812 = vst [vmem:[#allocation2 + $0x88] sm:$0xff] %v650
  %813 = vst [vmem:[#allocation2 + $0x90] sm:$0xff] %v652
  %814 = vst.msk [vmem:[#allocation2 + $0x98] sm:$0xff] %vm798, %v766
  %815 = vst [vmem:[#allocation2 + $0xa0] sm:$0xff] %v537
  %816 = vst [vmem:[#allocation2 + $0xa8] sm:$0xff] %v539
  %817 = vst [vmem:[#allocation2 + $0xb0] sm:$0xff] %v656
  %818 = vst [vmem:[#allocation2 + $0xb8] sm:$0xff] %v658
  %819 = vst.msk [vmem:[#allocation2 + $0xc0] sm:$0xff] %vm798, %v771
  %820 = vst [vmem:[#allocation2 + $0xc8] sm:$0xff] %v543
  %821 = vst [vmem:[#allocation2 + $0xd0] sm:$0xff] %v545
  %822 = vst [vmem:[#allocation2 + $0xd8] sm:$0xff] %v662
  %823 = vst [vmem:[#allocation2 + $0xe0] sm:$0xff] %v664
  %824 = vst.msk [vmem:[#allocation2 + $0xe8] sm:$0xff] %vm798, %v776
  %825 = vst [vmem:[#allocation2 + $0xf0] sm:$0xff] %v549
  %826 = vst [vmem:[#allocation2 + $0xf8] sm:$0xff] %v551
  %827 = vst [vmem:[#allocation2 + $0x100] sm:$0xff] %v668
  %828 = vst [vmem:[#allocation2 + $0x108] sm:$0xff] %v670
  %829 = vst.msk [vmem:[#allocation2 + $0x110] sm:$0xff] %vm798, %v781
  %830 = vst [vmem:[#allocation2 + $0x118] sm:$0xff] %v555
  %831 = vst [vmem:[#allocation2 + $0x120] sm:$0xff] %v557
  %832 = vst [vmem:[#allocation2 + $0x128] sm:$0xff] %v674
  %833 = vst [vmem:[#allocation2 + $0x130] sm:$0xff] %v676
  %834 = vst.msk [vmem:[#allocation2 + $0x138] sm:$0xff] %vm798, %v786
  %835 = vst [vmem:[#allocation2 + $0x140] sm:$0xff] %v561
  %836 = vst [vmem:[#allocation2 + $0x148] sm:$0xff] %v563
  %837 = vst [vmem:[#allocation2 + $0x150] sm:$0xff] %v680
  %838 = vst [vmem:[#allocation2 + $0x158] sm:$0xff] %v682
  %839 = vst.msk [vmem:[#allocation2 + $0x160] sm:$0xff] %vm798, %v791
  %v840 = vld [vmem:[#allocation2] sm:$0xff]
  %v841 = vld [vmem:[#allocation2 + $0x8] sm:$0xff]
  %v842 = vld [vmem:[#allocation2 + $0x10] sm:$0xff]
  %v843 = vld [vmem:[#allocation2 + $0x18] sm:$0xff]
  %v844 = vld [vmem:[#allocation2 + $0x20] sm:$0xff]
  %v845 = vld [vmem:[#allocation2 + $0x28] sm:$0xff]
  %v846 = vld [vmem:[#allocation2 + $0x30] sm:$0xff]
  %v847 = vld [vmem:[#allocation2 + $0x38] sm:$0xff]
  %v848 = vld [vmem:[#allocation2 + $0x40] sm:$0xff]
  %v849 = vld [vmem:[#allocation2 + $0x48] sm:$0xff]
  %v850 = vld [vmem:[#allocation2 + $0x50] sm:$0xff]
  %v851 = vld [vmem:[#allocation2 + $0x58] sm:$0xff]
  %v852 = vld [vmem:[#allocation2 + $0x60] sm:$0xff]
  %v853 = vld [vmem:[#allocation2 + $0x68] sm:$0xff]
  %v854 = vld [vmem:[#allocation2 + $0x70] sm:$0xff]
  %v855 = vmul.f32 %v394, %v840
  %v856 = vmul.f32 %v395, %v841
  %v857 = vmul.f32 %v396, %v842
  %v858 = vmul.f32 %v397, %v843
  %v859 = vmul.f32 %v398, %v844
  %v860 = vmul.f32 %v399, %v845
  %v861 = vmul.f32 %v400, %v846
  %v862 = vmul.f32 %v401, %v847
  %v863 = vmul.f32 %v402, %v848
  %v864 = vmul.f32 %v403, %v849
  %v865 = vmul.f32 %v404, %v850
  %v866 = vmul.f32 %v405, %v851
  %v867 = vmul.f32 %v406, %v852
  %v868 = vmul.f32 %v407, %v853
  %v869 = vmul.f32 %v408, %v854
  %v870 = vadd.f32 %v855, %v860
  %v871 = vadd.f32 %v870, %v865
  %v872 = vrot.slane %v871, 4
  %v873 = vadd.f32 %v871, %v872
  %v874 = vrot.slane %v873, 2
  %v875 = vadd.f32 %v873, %v874
  %v876 = vrot.slane %v875, 1
  %v877 = vadd.f32 %v875, %v876
  %v878 = vadd.f32 %v856, %v861
  %v879 = vadd.f32 %v878, %v866
  %v880 = vrot.slane %v879, 4
  %v881 = vadd.f32 %v879, %v880
  %v882 = vrot.slane %v881, 2
  %v883 = vadd.f32 %v881, %v882
  %v884 = vrot.slane %v883, 1
  %v885 = vadd.f32 %v883, %v884
  %v886 = vadd.f32 %v857, %v862
  %v887 = vadd.f32 %v886, %v867
  %v888 = vrot.slane %v887, 4
  %v889 = vadd.f32 %v887, %v888
  %v890 = vrot.slane %v889, 2
  %v891 = vadd.f32 %v889, %v890
  %v892 = vrot.slane %v891, 1
  %v893 = vadd.f32 %v891, %v892
  %v894 = vadd.f32 %v858, %v863
  %v895 = vadd.f32 %v894, %v868
  %v896 = vrot.slane %v895, 4
  %v897 = vadd.f32 %v895, %v896
  %v898 = vrot.slane %v897, 2
  %v899 = vadd.f32 %v897, %v898
  %v900 = vrot.slane %v899, 1
  %v901 = vadd.f32 %v899, %v900
  %v902 = vsel %vm798, %v859, 0.0
  %v903 = vsel %vm798, %v864, 0.0
  %v904 = vadd.f32 %v902, %v903
  %v905 = vsel %vm798, %v869, 0.0
  %v906 = vadd.f32 %v904, %v905
  %v907 = vrot.slane %v906, 4
  %v908 = vadd.f32 %v906, %v907
  %v909 = vrot.slane %v908, 2
  %v910 = vadd.f32 %v908, %v909
  %v911 = vrot.slane %v910, 1
  %v912 = vadd.f32 %v910, %v911
  %v918 = vcombine.low %v877, %v885
  %v919 = vcombine.low %v893, %v901
  %v921 = vunpack.c.l.s4 1966171168
  %v922 = vunpack.c.0.s8 %v921
  %v923 = vlaneseq
  %v924 = vshrl.u32 %v923, 7
  %v925 = vsub.s32 %v922, %v924
  %v926 = vrot.slane %v918, %v925
  %v928 = vunpack.c.l.s4 1966171168
  %v929 = vunpack.c.0.s8 %v928
  %v930 = vlaneseq
  %v931 = vshrl.u32 %v930, 7
  %v932 = vsub.s32 %v929, %v931
  %v933 = vrot.slane %v919, %v932
  %v935 = vunpack.c.l.s4 1966171168
  %v936 = vunpack.c.0.s8 %v935
  %v937 = vlaneseq
  %v938 = vshrl.u32 %v937, 7
  %v939 = vsub.s32 %v936, %v938
  %v940 = vrot.slane %v912, %v939
  %v941 = vcombine.low %v926, %v933
  %v943 = vunpack.c.l.s4 1966171168
  %v944 = vunpack.c.0.s8 %v943
  %v945 = vlaneseq
  %v946 = vshrl.u32 %v945, 7
  %v947 = vsub.s32 %v944, %v946
  %v948 = vrot.slane %v941, %v947
  %v950 = vunpack.c.l.s4 1966171168
  %v951 = vunpack.c.0.s8 %v950
  %v952 = vlaneseq
  %v953 = vshrl.u32 %v952, 7
  %v954 = vsub.s32 %v951, %v953
  %v955 = vrot.slane %v940, %v954
  %v956 = vcombine.low %v948, %v955
  %v958 = vlaneseq
  %vm959 = vcmp.ge.s32.totalorder %v958, 0
  %vm960 = vcmp.lt.s32.totalorder %v958, 576
  %vm961 = vmand %vm959, %vm960
  %962 = vst.msk [vmem:[%s3] ss:$8 sm:$0xf] %vm961, %v956
  %963 = vst.msk [vmem:[%s3] ss:$8 sm:$0x10] %vm961, %v956
  %v964 = vld [vmem:[#allocation2 + $0x78] sm:$0xff]
  %v965 = vld [vmem:[#allocation2 + $0x80] sm:$0xff]
  %v966 = vld [vmem:[#allocation2 + $0x88] sm:$0xff]
  %v967 = vld [vmem:[#allocation2 + $0x90] sm:$0xff]
  %v968 = vld [vmem:[#allocation2 + $0x98] sm:$0xff]
  %v969 = vld [vmem:[#allocation2 + $0xa0] sm:$0xff]
  %v970 = vld [vmem:[#allocation2 + $0xa8] sm:$0xff]
  %v971 = vld [vmem:[#allocation2 + $0xb0] sm:$0xff]
  %v972 = vld [vmem:[#allocation2 + $0xb8] sm:$0xff]
  %v973 = vld [vmem:[#allocation2 + $0xc0] sm:$0xff]
  %v974 = vld [vmem:[#allocation2 + $0xc8] sm:$0xff]
  %v975 = vld [vmem:[#allocation2 + $0xd0] sm:$0xff]
  %v976 = vld [vmem:[#allocation2 + $0xd8] sm:$0xff]
  %v977 = vld [vmem:[#allocation2 + $0xe0] sm:$0xff]
  %v978 = vld [vmem:[#allocation2 + $0xe8] sm:$0xff]
  %v979 = vmul.f32 %v394, %v964
  %v980 = vmul.f32 %v395, %v965
  %v981 = vmul.f32 %v396, %v966
  %v982 = vmul.f32 %v397, %v967
  %v983 = vmul.f32 %v398, %v968
  %v984 = vmul.f32 %v399, %v969
  %v985 = vmul.f32 %v400, %v970
  %v986 = vmul.f32 %v401, %v971
  %v987 = vmul.f32 %v402, %v972
  %v988 = vmul.f32 %v403, %v973
  %v989 = vmul.f32 %v404, %v974
  %v990 = vmul.f32 %v405, %v975
  %v991 = vmul.f32 %v406, %v976
  %v992 = vmul.f32 %v407, %v977
  %v993 = vmul.f32 %v408, %v978
  %v994 = vadd.f32 %v979, %v984
  %v995 = vadd.f32 %v994, %v989
  %v996 = vrot.slane %v995, 4
  %v997 = vadd.f32 %v995, %v996
  %v998 = vrot.slane %v997, 2
  %v999 = vadd.f32 %v997, %v998
  %v1000 = vrot.slane %v999, 1
  %v1001 = vadd.f32 %v999, %v1000
  %v1002 = vadd.f32 %v980, %v985
  %v1003 = vadd.f32 %v1002, %v990
  %v1004 = vrot.slane %v1003, 4
  %v1005 = vadd.f32 %v1003, %v1004
  %v1006 = vrot.slane %v1005, 2
  %v1007 = vadd.f32 %v1005, %v1006
  %v1008 = vrot.slane %v1007, 1
  %v1009 = vadd.f32 %v1007, %v1008
  %v1010 = vadd.f32 %v981, %v986
  %v1011 = vadd.f32 %v1010, %v991
  %v1012 = vrot.slane %v1011, 4
  %v1013 = vadd.f32 %v1011, %v1012
  %v1014 = vrot.slane %v1013, 2
  %v1015 = vadd.f32 %v1013, %v1014
  %v1016 = vrot.slane %v1015, 1
  %v1017 = vadd.f32 %v1015, %v1016
  %v1018 = vadd.f32 %v982, %v987
  %v1019 = vadd.f32 %v1018, %v992
  %v1020 = vrot.slane %v1019, 4
  %v1021 = vadd.f32 %v1019, %v1020
  %v1022 = vrot.slane %v1021, 2
  %v1023 = vadd.f32 %v1021, %v1022
  %v1024 = vrot.slane %v1023, 1
  %v1025 = vadd.f32 %v1023, %v1024
  %v1026 = vsel %vm798, %v983, 0.0
  %v1027 = vsel %vm798, %v988, 0.0
  %v1028 = vadd.f32 %v1026, %v1027
  %v1029 = vsel %vm798, %v993, 0.0
  %v1030 = vadd.f32 %v1028, %v1029
  %v1031 = vrot.slane %v1030, 4
  %v1032 = vadd.f32 %v1030, %v1031
  %v1033 = vrot.slane %v1032, 2
  %v1034 = vadd.f32 %v1032, %v1033
  %v1035 = vrot.slane %v1034, 1
  %v1036 = vadd.f32 %v1034, %v1035
  %v1042 = vcombine.low %v1001, %v1009
  %v1043 = vcombine.low %v1017, %v1025
  %v1045 = vunpack.c.l.s4 1966171168
  %v1046 = vunpack.c.0.s8 %v1045
  %v1047 = vlaneseq
  %v1048 = vshrl.u32 %v1047, 7
  %v1049 = vsub.s32 %v1046, %v1048
  %v1050 = vrot.slane %v1042, %v1049
  %v1052 = vunpack.c.l.s4 1966171168
  %v1053 = vunpack.c.0.s8 %v1052
  %v1054 = vlaneseq
  %v1055 = vshrl.u32 %v1054, 7
  %v1056 = vsub.s32 %v1053, %v1055
  %v1057 = vrot.slane %v1043, %v1056
  %v1059 = vunpack.c.l.s4 1966171168
  %v1060 = vunpack.c.0.s8 %v1059
  %v1061 = vlaneseq
  %v1062 = vshrl.u32 %v1061, 7
  %v1063 = vsub.s32 %v1060, %v1062
  %v1064 = vrot.slane %v1036, %v1063
  %v1065 = vcombine.low %v1050, %v1057
  %v1067 = vunpack.c.l.s4 1966171168
  %v1068 = vunpack.c.0.s8 %v1067
  %v1069 = vlaneseq
  %v1070 = vshrl.u32 %v1069, 7
  %v1071 = vsub.s32 %v1068, %v1070
  %v1072 = vrot.slane %v1065, %v1071
  %v1074 = vunpack.c.l.s4 1966171168
  %v1075 = vunpack.c.0.s8 %v1074
  %v1076 = vlaneseq
  %v1077 = vshrl.u32 %v1076, 7
  %v1078 = vsub.s32 %v1075, %v1077
  %v1079 = vrot.slane %v1064, %v1078
  %v1080 = vcombine.low %v1072, %v1079
  %s1082 = scalar_lea.vmem %s3, 1
  %1083 = vst.msk [vmem:[%s1082] ss:$8 sm:$0xf] %vm961, %v1080
  %1084 = vst.msk [vmem:[%s1082] ss:$8 sm:$0x10] %vm961, %v1080
  %v1085 = vld [vmem:[#allocation2 + $0xf0] sm:$0xff]
  %v1086 = vld [vmem:[#allocation2 + $0xf8] sm:$0xff]
  %v1087 = vld [vmem:[#allocation2 + $0x100] sm:$0xff]
  %v1088 = vld [vmem:[#allocation2 + $0x108] sm:$0xff]
  %v1089 = vld [vmem:[#allocation2 + $0x110] sm:$0xff]
  %v1090 = vld [vmem:[#allocation2 + $0x118] sm:$0xff]
  %v1091 = vld [vmem:[#allocation2 + $0x120] sm:$0xff]
  %v1092 = vld [vmem:[#allocation2 + $0x128] sm:$0xff]
  %v1093 = vld [vmem:[#allocation2 + $0x130] sm:$0xff]
  %v1094 = vld [vmem:[#allocation2 + $0x138] sm:$0xff]
  %v1095 = vld [vmem:[#allocation2 + $0x140] sm:$0xff]
  %v1096 = vld [vmem:[#allocation2 + $0x148] sm:$0xff]
  %v1097 = vld [vmem:[#allocation2 + $0x150] sm:$0xff]
  %v1098 = vld [vmem:[#allocation2 + $0x158] sm:$0xff]
  %v1099 = vld [vmem:[#allocation2 + $0x160] sm:$0xff]
  %v1100 = vmul.f32 %v394, %v1085
  %v1101 = vmul.f32 %v395, %v1086
  %v1102 = vmul.f32 %v396, %v1087
  %v1103 = vmul.f32 %v397, %v1088
  %v1104 = vmul.f32 %v398, %v1089
  %v1105 = vmul.f32 %v399, %v1090
  %v1106 = vmul.f32 %v400, %v1091
  %v1107 = vmul.f32 %v401, %v1092
  %v1108 = vmul.f32 %v402, %v1093
  %v1109 = vmul.f32 %v403, %v1094
  %v1110 = vmul.f32 %v404, %v1095
  %v1111 = vmul.f32 %v405, %v1096
  %v1112 = vmul.f32 %v406, %v1097
  %v1113 = vmul.f32 %v407, %v1098
  %v1114 = vmul.f32 %v408, %v1099
  %v1115 = vadd.f32 %v1100, %v1105
  %v1116 = vadd.f32 %v1115, %v1110
  %v1117 = vrot.slane %v1116, 4
  %v1118 = vadd.f32 %v1116, %v1117
  %v1119 = vrot.slane %v1118, 2
  %v1120 = vadd.f32 %v1118, %v1119
  %v1121 = vrot.slane %v1120, 1
  %v1122 = vadd.f32 %v1120, %v1121
  %v1123 = vadd.f32 %v1101, %v1106
  %v1124 = vadd.f32 %v1123, %v1111
  %v1125 = vrot.slane %v1124, 4
  %v1126 = vadd.f32 %v1124, %v1125
  %v1127 = vrot.slane %v1126, 2
  %v1128 = vadd.f32 %v1126, %v1127
  %v1129 = vrot.slane %v1128, 1
  %v1130 = vadd.f32 %v1128, %v1129
  %v1131 = vadd.f32 %v1102, %v1107
  %v1132 = vadd.f32 %v1131, %v1112
  %v1133 = vrot.slane %v1132, 4
  %v1134 = vadd.f32 %v1132, %v1133
  %v1135 = vrot.slane %v1134, 2
  %v1136 = vadd.f32 %v1134, %v1135
  %v1137 = vrot.slane %v1136, 1
  %v1138 = vadd.f32 %v1136, %v1137
  %v1139 = vadd.f32 %v1103, %v1108
  %v1140 = vadd.f32 %v1139, %v1113
  %v1141 = vrot.slane %v1140, 4
  %v1142 = vadd.f32 %v1140, %v1141
  %v1143 = vrot.slane %v1142, 2
  %v1144 = vadd.f32 %v1142, %v1143
  %v1145 = vrot.slane %v1144, 1
  %v1146 = vadd.f32 %v1144, %v1145
  %v1147 = vsel %vm798, %v1104, 0.0
  %v1148 = vsel %vm798, %v1109, 0.0
  %v1149 = vadd.f32 %v1147, %v1148
  %v1150 = vsel %vm798, %v1114, 0.0
  %v1151 = vadd.f32 %v1149, %v1150
  %v1152 = vrot.slane %v1151, 4
  %v1153 = vadd.f32 %v1151, %v1152
  %v1154 = vrot.slane %v1153, 2
  %v1155 = vadd.f32 %v1153, %v1154
  %v1156 = vrot.slane %v1155, 1
  %v1157 = vadd.f32 %v1155, %v1156
  %v1163 = vcombine.low %v1122, %v1130
  %v1164 = vcombine.low %v1138, %v1146
  %v1166 = vunpack.c.l.s4 1966171168
  %v1167 = vunpack.c.0.s8 %v1166
  %v1168 = vlaneseq
  %v1169 = vshrl.u32 %v1168, 7
  %v1170 = vsub.s32 %v1167, %v1169
  %v1171 = vrot.slane %v1163, %v1170
  %v1173 = vunpack.c.l.s4 1966171168
  %v1174 = vunpack.c.0.s8 %v1173
  %v1175 = vlaneseq
  %v1176 = vshrl.u32 %v1175, 7
  %v1177 = vsub.s32 %v1174, %v1176
  %v1178 = vrot.slane %v1164, %v1177
  %v1180 = vunpack.c.l.s4 1966171168
  %v1181 = vunpack.c.0.s8 %v1180
  %v1182 = vlaneseq
  %v1183 = vshrl.u32 %v1182, 7
  %v1184 = vsub.s32 %v1181, %v1183
  %v1185 = vrot.slane %v1157, %v1184
  %v1186 = vcombine.low %v1171, %v1178
  %v1188 = vunpack.c.l.s4 1966171168
  %v1189 = vunpack.c.0.s8 %v1188
  %v1190 = vlaneseq
  %v1191 = vshrl.u32 %v1190, 7
  %v1192 = vsub.s32 %v1189, %v1191
  %v1193 = vrot.slane %v1186, %v1192
  %v1195 = vunpack.c.l.s4 1966171168
  %v1196 = vunpack.c.0.s8 %v1195
  %v1197 = vlaneseq
  %v1198 = vshrl.u32 %v1197, 7
  %v1199 = vsub.s32 %v1196, %v1198
  %v1200 = vrot.slane %v1185, %v1199
  %v1201 = vcombine.low %v1193, %v1200
  %s1203 = scalar_lea.vmem %s3, 2
  %1204 = vst.msk [vmem:[%s1203] ss:$8 sm:$0xf] %vm961, %v1201
  %1205 = vst.msk [vmem:[%s1203] ss:$8 sm:$0x10] %vm961, %v1201
  %s1206 = sld [smem:[#allocation4 + $0x1]]
  %s1207 = sld [smem:[#allocation4 + $0x81]]
  %s1208 = sld [smem:[#allocation4 + $0x101]]
  %s1209 = sld [smem:[#allocation4 + $0x181]]
  %s1210 = sld [smem:[#allocation4 + $0x201]]
  %s1211 = sld [smem:[#allocation4 + $0x281]]
  %v1212 = vstv %s1206
  %v1213 = vmul.f32 %v1212, %v18
  %v1214 = vstv %s1207
  %v1215 = vmul.f32 %v1214, %v20
  %v1216 = vadd.f32 %v1213, %v1215
  %v1217 = vstv %s1208
  %v1218 = vadd.f32 %v1216, %v1217
  %v1219 = vstv %s1209
  %v1220 = vmul.f32 %v1219, %v18
  %v1221 = vstv %s1210
  %v1222 = vmul.f32 %v1221, %v20
  %v1223 = vadd.f32 %v1220, %v1222
  %v1224 = vstv %s1211
  %v1225 = vadd.f32 %v1223, %v1224
  %v1226 = vadd.f32 %v1218, 1.0
  %v1227 = vmul.f32 %v1226, 11.5
  %v1228 = vadd.f32 %v1225, 1.0
  %v1229 = vmul.f32 %v1228, 11.5
  %v1230 = vfloor.f32 %v1227
  %v1231 = vfloor.f32 %v1229
  %v1232 = vsub.f32 %v1227, %v1230
  %v1233 = vsub.f32 1.0, %v1232
  %v1234 = vsub.f32 %v1229, %v1231
  %v1235 = vsub.f32 1.0, %v1234
  %v1236 = vcvt.f32.s32.to.zero.pseudo %v1230
  %v1237 = vadd.s32 %v1236, 1
  %v1238 = vcvt.f32.s32.to.zero.pseudo %v1231
  %v1239 = vadd.s32 %v1238, 1
  %vm1240 = vcmp.ge.s32.totalorder %v1236, 0
  %vm1241 = vcmp.lt.s32.totalorder %v1236, 24
  %vm1242 = vmand %vm1240, %vm1241
  %v1243 = vsel %vm1242, %v1233, 0.0
  %vm1244 = vcmp.ge.s32.totalorder %v1237, 0
  %vm1245 = vcmp.lt.s32.totalorder %v1237, 24
  %vm1246 = vmand %vm1244, %vm1245
  %v1247 = vsel %vm1246, %v1232, 0.0
  %vm1248 = vcmp.ge.s32.totalorder %v1238, 0
  %vm1249 = vcmp.lt.s32.totalorder %v1238, 24
  %vm1250 = vmand %vm1248, %vm1249
  %v1251 = vsel %vm1250, %v1235, 0.0
  %vm1252 = vcmp.ge.s32.totalorder %v1239, 0
  %vm1253 = vcmp.lt.s32.totalorder %v1239, 24
  %vm1254 = vmand %vm1252, %vm1253
  %v1255 = vsel %vm1254, %v1234, 0.0
  %v1256 = vlaneseq
  %v1257 = vshrl.u32 %v1256, 7
  %v1258 = vsub.s32 0, %v1257
  %v1259 = vrot.slane %v1236, %v1258
  %v1260 = vlaneseq
  %v1261 = vshrl.u32 %v1260, 7
  %v1262 = vsub.s32 1, %v1261
  %v1263 = vrot.slane %v1236, %v1262
  %v1264 = vlaneseq
  %v1265 = vshrl.u32 %v1264, 7
  %v1266 = vsub.s32 2, %v1265
  %v1267 = vrot.slane %v1236, %v1266
  %v1268 = vlaneseq
  %v1269 = vshrl.u32 %v1268, 7
  %v1270 = vsub.s32 3, %v1269
  %v1271 = vrot.slane %v1236, %v1270
  %v1272 = vlaneseq
  %v1273 = vshrl.u32 %v1272, 7
  %v1274 = vsub.s32 4, %v1273
  %v1275 = vrot.slane %v1236, %v1274
  %vm1276 = vcmp.eq.s32.totalorder %v22, %v1259
  %vm1277 = vcmp.eq.s32.totalorder %v22, %v1263
  %vm1278 = vcmp.eq.s32.totalorder %v22, %v1267
  %vm1279 = vcmp.eq.s32.totalorder %v22, %v1271
  %vm1280 = vcmp.eq.s32.totalorder %v22, %v1275
  %vm1281 = vcmp.eq.s32.totalorder %v23, %v1259
  %vm1282 = vcmp.eq.s32.totalorder %v23, %v1263
  %vm1283 = vcmp.eq.s32.totalorder %v23, %v1267
  %vm1284 = vcmp.eq.s32.totalorder %v23, %v1271
  %vm1285 = vcmp.eq.s32.totalorder %v23, %v1275
  %vm1286 = vcmp.eq.s32.totalorder %v24, %v1259
  %vm1287 = vcmp.eq.s32.totalorder %v24, %v1263
  %vm1288 = vcmp.eq.s32.totalorder %v24, %v1267
  %vm1289 = vcmp.eq.s32.totalorder %v24, %v1271
  %vm1290 = vcmp.eq.s32.totalorder %v24, %v1275
  %v1292 = vlaneseq
  %v1293 = vshrl.u32 %v1292, 7
  %v1294 = vsub.s32 0, %v1293
  %v1295 = vrot.slane %v1243, %v1294
  %v1296 = vlaneseq
  %v1297 = vshrl.u32 %v1296, 7
  %v1298 = vsub.s32 1, %v1297
  %v1299 = vrot.slane %v1243, %v1298
  %v1300 = vlaneseq
  %v1301 = vshrl.u32 %v1300, 7
  %v1302 = vsub.s32 2, %v1301
  %v1303 = vrot.slane %v1243, %v1302
  %v1304 = vlaneseq
  %v1305 = vshrl.u32 %v1304, 7
  %v1306 = vsub.s32 3, %v1305
  %v1307 = vrot.slane %v1243, %v1306
  %v1308 = vlaneseq
  %v1309 = vshrl.u32 %v1308, 7
  %v1310 = vsub.s32 4, %v1309
  %v1311 = vrot.slane %v1243, %v1310
  %v1317 = vsel %vm1276, %v1295, 0.0
  %v1318 = vsel %vm1277, %v1299, 0.0
  %v1319 = vsel %vm1278, %v1303, 0.0
  %v1320 = vsel %vm1279, %v1307, 0.0
  %v1321 = vsel %vm1280, %v1311, 0.0
  %v1322 = vsel %vm1281, %v1295, 0.0
  %v1323 = vsel %vm1282, %v1299, 0.0
  %v1324 = vsel %vm1283, %v1303, 0.0
  %v1325 = vsel %vm1284, %v1307, 0.0
  %v1326 = vsel %vm1285, %v1311, 0.0
  %v1327 = vsel %vm1286, %v1295, 0.0
  %v1328 = vsel %vm1287, %v1299, 0.0
  %v1329 = vsel %vm1288, %v1303, 0.0
  %v1330 = vsel %vm1289, %v1307, 0.0
  %v1331 = vsel %vm1290, %v1311, 0.0
  %v1332 = vlaneseq
  %v1333 = vshrl.u32 %v1332, 7
  %v1334 = vsub.s32 0, %v1333
  %v1335 = vrot.slane %v1237, %v1334
  %v1336 = vlaneseq
  %v1337 = vshrl.u32 %v1336, 7
  %v1338 = vsub.s32 1, %v1337
  %v1339 = vrot.slane %v1237, %v1338
  %v1340 = vlaneseq
  %v1341 = vshrl.u32 %v1340, 7
  %v1342 = vsub.s32 2, %v1341
  %v1343 = vrot.slane %v1237, %v1342
  %v1344 = vlaneseq
  %v1345 = vshrl.u32 %v1344, 7
  %v1346 = vsub.s32 3, %v1345
  %v1347 = vrot.slane %v1237, %v1346
  %v1348 = vlaneseq
  %v1349 = vshrl.u32 %v1348, 7
  %v1350 = vsub.s32 4, %v1349
  %v1351 = vrot.slane %v1237, %v1350
  %vm1352 = vcmp.eq.s32.totalorder %v22, %v1335
  %vm1353 = vcmp.eq.s32.totalorder %v22, %v1339
  %vm1354 = vcmp.eq.s32.totalorder %v22, %v1343
  %vm1355 = vcmp.eq.s32.totalorder %v22, %v1347
  %vm1356 = vcmp.eq.s32.totalorder %v22, %v1351
  %vm1357 = vcmp.eq.s32.totalorder %v23, %v1335
  %vm1358 = vcmp.eq.s32.totalorder %v23, %v1339
  %vm1359 = vcmp.eq.s32.totalorder %v23, %v1343
  %vm1360 = vcmp.eq.s32.totalorder %v23, %v1347
  %vm1361 = vcmp.eq.s32.totalorder %v23, %v1351
  %vm1362 = vcmp.eq.s32.totalorder %v24, %v1335
  %vm1363 = vcmp.eq.s32.totalorder %v24, %v1339
  %vm1364 = vcmp.eq.s32.totalorder %v24, %v1343
  %vm1365 = vcmp.eq.s32.totalorder %v24, %v1347
  %vm1366 = vcmp.eq.s32.totalorder %v24, %v1351
  %v1368 = vlaneseq
  %v1369 = vshrl.u32 %v1368, 7
  %v1370 = vsub.s32 0, %v1369
  %v1371 = vrot.slane %v1247, %v1370
  %v1372 = vlaneseq
  %v1373 = vshrl.u32 %v1372, 7
  %v1374 = vsub.s32 1, %v1373
  %v1375 = vrot.slane %v1247, %v1374
  %v1376 = vlaneseq
  %v1377 = vshrl.u32 %v1376, 7
  %v1378 = vsub.s32 2, %v1377
  %v1379 = vrot.slane %v1247, %v1378
  %v1380 = vlaneseq
  %v1381 = vshrl.u32 %v1380, 7
  %v1382 = vsub.s32 3, %v1381
  %v1383 = vrot.slane %v1247, %v1382
  %v1384 = vlaneseq
  %v1385 = vshrl.u32 %v1384, 7
  %v1386 = vsub.s32 4, %v1385
  %v1387 = vrot.slane %v1247, %v1386
  %v1393 = vsel %vm1352, %v1371, 0.0
  %v1394 = vsel %vm1353, %v1375, 0.0
  %v1395 = vsel %vm1354, %v1379, 0.0
  %v1396 = vsel %vm1355, %v1383, 0.0
  %v1397 = vsel %vm1356, %v1387, 0.0
  %v1398 = vsel %vm1357, %v1371, 0.0
  %v1399 = vsel %vm1358, %v1375, 0.0
  %v1400 = vsel %vm1359, %v1379, 0.0
  %v1401 = vsel %vm1360, %v1383, 0.0
  %v1402 = vsel %vm1361, %v1387, 0.0
  %v1403 = vsel %vm1362, %v1371, 0.0
  %v1404 = vsel %vm1363, %v1375, 0.0
  %v1405 = vsel %vm1364, %v1379, 0.0
  %v1406 = vsel %vm1365, %v1383, 0.0
  %v1407 = vsel %vm1366, %v1387, 0.0
  %v1408 = vadd.f32 %v1317, %v1393
  %v1409 = vadd.f32 %v1318, %v1394
  %v1410 = vadd.f32 %v1319, %v1395
  %v1411 = vadd.f32 %v1320, %v1396
  %v1412 = vadd.f32 %v1321, %v1397
  %v1413 = vadd.f32 %v1322, %v1398
  %v1414 = vadd.f32 %v1323, %v1399
  %v1415 = vadd.f32 %v1324, %v1400
  %v1416 = vadd.f32 %v1325, %v1401
  %v1417 = vadd.f32 %v1326, %v1402
  %v1418 = vadd.f32 %v1327, %v1403
  %v1419 = vadd.f32 %v1328, %v1404
  %v1420 = vadd.f32 %v1329, %v1405
  %v1421 = vadd.f32 %v1330, %v1406
  %v1422 = vadd.f32 %v1331, %v1407
  %v1423 = vlaneseq
  %v1424 = vshrl.u32 %v1423, 7
  %v1425 = vsub.s32 0, %v1424
  %v1426 = vrot.slane %v1238, %v1425
  %v1427 = vlaneseq
  %v1428 = vshrl.u32 %v1427, 7
  %v1429 = vsub.s32 1, %v1428
  %v1430 = vrot.slane %v1238, %v1429
  %v1431 = vlaneseq
  %v1432 = vshrl.u32 %v1431, 7
  %v1433 = vsub.s32 2, %v1432
  %v1434 = vrot.slane %v1238, %v1433
  %v1435 = vlaneseq
  %v1436 = vshrl.u32 %v1435, 7
  %v1437 = vsub.s32 3, %v1436
  %v1438 = vrot.slane %v1238, %v1437
  %v1439 = vlaneseq
  %v1440 = vshrl.u32 %v1439, 7
  %v1441 = vsub.s32 4, %v1440
  %v1442 = vrot.slane %v1238, %v1441
  %vm1443 = vcmp.eq.s32.totalorder %v22, %v1426
  %vm1444 = vcmp.eq.s32.totalorder %v22, %v1430
  %vm1445 = vcmp.eq.s32.totalorder %v22, %v1434
  %vm1446 = vcmp.eq.s32.totalorder %v22, %v1438
  %vm1447 = vcmp.eq.s32.totalorder %v22, %v1442
  %vm1448 = vcmp.eq.s32.totalorder %v23, %v1426
  %vm1449 = vcmp.eq.s32.totalorder %v23, %v1430
  %vm1450 = vcmp.eq.s32.totalorder %v23, %v1434
  %vm1451 = vcmp.eq.s32.totalorder %v23, %v1438
  %vm1452 = vcmp.eq.s32.totalorder %v23, %v1442
  %vm1453 = vcmp.eq.s32.totalorder %v24, %v1426
  %vm1454 = vcmp.eq.s32.totalorder %v24, %v1430
  %vm1455 = vcmp.eq.s32.totalorder %v24, %v1434
  %vm1456 = vcmp.eq.s32.totalorder %v24, %v1438
  %vm1457 = vcmp.eq.s32.totalorder %v24, %v1442
  %v1459 = vlaneseq
  %v1460 = vshrl.u32 %v1459, 7
  %v1461 = vsub.s32 0, %v1460
  %v1462 = vrot.slane %v1251, %v1461
  %v1463 = vlaneseq
  %v1464 = vshrl.u32 %v1463, 7
  %v1465 = vsub.s32 1, %v1464
  %v1466 = vrot.slane %v1251, %v1465
  %v1467 = vlaneseq
  %v1468 = vshrl.u32 %v1467, 7
  %v1469 = vsub.s32 2, %v1468
  %v1470 = vrot.slane %v1251, %v1469
  %v1471 = vlaneseq
  %v1472 = vshrl.u32 %v1471, 7
  %v1473 = vsub.s32 3, %v1472
  %v1474 = vrot.slane %v1251, %v1473
  %v1475 = vlaneseq
  %v1476 = vshrl.u32 %v1475, 7
  %v1477 = vsub.s32 4, %v1476
  %v1478 = vrot.slane %v1251, %v1477
  %v1484 = vsel %vm1443, %v1462, 0.0
  %v1485 = vsel %vm1444, %v1466, 0.0
  %v1486 = vsel %vm1445, %v1470, 0.0
  %v1487 = vsel %vm1446, %v1474, 0.0
  %v1488 = vsel %vm1447, %v1478, 0.0
  %v1489 = vsel %vm1448, %v1462, 0.0
  %v1490 = vsel %vm1449, %v1466, 0.0
  %v1491 = vsel %vm1450, %v1470, 0.0
  %v1492 = vsel %vm1451, %v1474, 0.0
  %v1493 = vsel %vm1452, %v1478, 0.0
  %v1494 = vsel %vm1453, %v1462, 0.0
  %v1495 = vsel %vm1454, %v1466, 0.0
  %v1496 = vsel %vm1455, %v1470, 0.0
  %v1497 = vsel %vm1456, %v1474, 0.0
  %v1498 = vsel %vm1457, %v1478, 0.0
  %v1499 = vlaneseq
  %v1500 = vshrl.u32 %v1499, 7
  %v1501 = vsub.s32 0, %v1500
  %v1502 = vrot.slane %v1239, %v1501
  %v1503 = vlaneseq
  %v1504 = vshrl.u32 %v1503, 7
  %v1505 = vsub.s32 1, %v1504
  %v1506 = vrot.slane %v1239, %v1505
  %v1507 = vlaneseq
  %v1508 = vshrl.u32 %v1507, 7
  %v1509 = vsub.s32 2, %v1508
  %v1510 = vrot.slane %v1239, %v1509
  %v1511 = vlaneseq
  %v1512 = vshrl.u32 %v1511, 7
  %v1513 = vsub.s32 3, %v1512
  %v1514 = vrot.slane %v1239, %v1513
  %v1515 = vlaneseq
  %v1516 = vshrl.u32 %v1515, 7
  %v1517 = vsub.s32 4, %v1516
  %v1518 = vrot.slane %v1239, %v1517
  %vm1519 = vcmp.eq.s32.totalorder %v22, %v1502
  %vm1520 = vcmp.eq.s32.totalorder %v22, %v1506
  %vm1521 = vcmp.eq.s32.totalorder %v22, %v1510
  %vm1522 = vcmp.eq.s32.totalorder %v22, %v1514
  %vm1523 = vcmp.eq.s32.totalorder %v22, %v1518
  %vm1524 = vcmp.eq.s32.totalorder %v23, %v1502
  %vm1525 = vcmp.eq.s32.totalorder %v23, %v1506
  %vm1526 = vcmp.eq.s32.totalorder %v23, %v1510
  %vm1527 = vcmp.eq.s32.totalorder %v23, %v1514
  %vm1528 = vcmp.eq.s32.totalorder %v23, %v1518
  %vm1529 = vcmp.eq.s32.totalorder %v24, %v1502
  %vm1530 = vcmp.eq.s32.totalorder %v24, %v1506
  %vm1531 = vcmp.eq.s32.totalorder %v24, %v1510
  %vm1532 = vcmp.eq.s32.totalorder %v24, %v1514
  %vm1533 = vcmp.eq.s32.totalorder %v24, %v1518
  %v1535 = vlaneseq
  %v1536 = vshrl.u32 %v1535, 7
  %v1537 = vsub.s32 0, %v1536
  %v1538 = vrot.slane %v1255, %v1537
  %v1539 = vlaneseq
  %v1540 = vshrl.u32 %v1539, 7
  %v1541 = vsub.s32 1, %v1540
  %v1542 = vrot.slane %v1255, %v1541
  %v1543 = vlaneseq
  %v1544 = vshrl.u32 %v1543, 7
  %v1545 = vsub.s32 2, %v1544
  %v1546 = vrot.slane %v1255, %v1545
  %v1547 = vlaneseq
  %v1548 = vshrl.u32 %v1547, 7
  %v1549 = vsub.s32 3, %v1548
  %v1550 = vrot.slane %v1255, %v1549
  %v1551 = vlaneseq
  %v1552 = vshrl.u32 %v1551, 7
  %v1553 = vsub.s32 4, %v1552
  %v1554 = vrot.slane %v1255, %v1553
  %v1560 = vsel %vm1519, %v1538, 0.0
  %v1561 = vsel %vm1520, %v1542, 0.0
  %v1562 = vsel %vm1521, %v1546, 0.0
  %v1563 = vsel %vm1522, %v1550, 0.0
  %v1564 = vsel %vm1523, %v1554, 0.0
  %v1565 = vsel %vm1524, %v1538, 0.0
  %v1566 = vsel %vm1525, %v1542, 0.0
  %v1567 = vsel %vm1526, %v1546, 0.0
  %v1568 = vsel %vm1527, %v1550, 0.0
  %v1569 = vsel %vm1528, %v1554, 0.0
  %v1570 = vsel %vm1529, %v1538, 0.0
  %v1571 = vsel %vm1530, %v1542, 0.0
  %v1572 = vsel %vm1531, %v1546, 0.0
  %v1573 = vsel %vm1532, %v1550, 0.0
  %v1574 = vsel %vm1533, %v1554, 0.0
  %v1575 = vadd.f32 %v1484, %v1560
  %v1576 = vadd.f32 %v1485, %v1561
  %v1577 = vadd.f32 %v1486, %v1562
  %v1578 = vadd.f32 %v1487, %v1563
  %v1579 = vadd.f32 %v1488, %v1564
  %v1580 = vadd.f32 %v1489, %v1565
  %v1581 = vadd.f32 %v1490, %v1566
  %v1582 = vadd.f32 %v1491, %v1567
  %v1583 = vadd.f32 %v1492, %v1568
  %v1584 = vadd.f32 %v1493, %v1569
  %v1585 = vadd.f32 %v1494, %v1570
  %v1586 = vadd.f32 %v1495, %v1571
  %v1587 = vadd.f32 %v1496, %v1572
  %v1588 = vadd.f32 %v1497, %v1573
  %v1589 = vadd.f32 %v1498, %v1574
  %s1590 = scalar_lea.vmem %s2, 72
  %v1591 = vld [vmem:[%s1590] sm:$0xff]
  %v1592 = vld [vmem:[%s1590 + $0x8] sm:$0xff]
  %v1593 = vld [vmem:[%s1590 + $0x10] sm:$0xff]
  %v1594 = vld [vmem:[%s1590 + $0x18] sm:$0xff]
  %v1595 = vld [vmem:[%s1590 + $0x20] sm:$0xff]
  %v1596 = vld [vmem:[%s1590 + $0x28] sm:$0xff]
  %v1597 = vld [vmem:[%s1590 + $0x30] sm:$0xff]
  %v1598 = vld [vmem:[%s1590 + $0x38] sm:$0xff]
  %v1599 = vld [vmem:[%s1590 + $0x40] sm:$0xff]
  %v1601 = vsel %vm418, %v1591, 0
  %v1604 = vsel %vm418, %v1592, 0
  %v1607 = vsel %vm418, %v1593, 0
  %v1610 = vsel %vm418, %v1594, 0
  %v1613 = vsel %vm418, %v1595, 0
  %v1616 = vsel %vm418, %v1596, 0
  %v1619 = vsel %vm418, %v1597, 0
  %v1622 = vsel %vm418, %v1598, 0
  %v1625 = vsel %vm418, %v1599, 0
  %1627 = vmatprep.subr.mxu0 %v1409
  %1628 = vmatpush1.msra.mxu0 %v1408
  %1629 = vmatprep.subr.mxu0 %v1414
  %1630 = vmatpush1.msra.mxu0 %v1413
  %1631 = vmatprep.subr.mxu0 %v1419
  %1632 = vmatpush1.msra.mxu0 %v1418
  %1633 = vmatprep.subr.mxu0 0.0
  %1634 = vmatpush1.msra.mxu0 0.0
  %1635 = vmatprep.subr.mxu0 0.0
  %1636 = vmatpush1.msra.mxu0 0.0
  %1637 = vmatprep.subr.mxu0 0.0
  %1638 = vmatpush1.msra.mxu0 0.0
  %1639 = vmatprep.subr.mxu0 0.0
  %1640 = vmatpush1.msra.mxu0 0.0
  %1641 = vmatprep.subr.mxu0 0.0
  %1642 = vmatpush1.msra.mxu0 0.0
  %1643 = vmatprep.subr.mxu0 0.0
  %1644 = vmatpush1.msra.mxu0 0.0
  %1645 = vmatprep.subr.mxu0 0.0
  %1646 = vmatpush1.msra.mxu0 0.0
  %1647 = vmatprep.subr.mxu0 0.0
  %1648 = vmatpush1.msra.mxu0 0.0
  %1649 = vmatprep.subr.mxu0 0.0
  %1650 = vmatpush1.msra.mxu0 0.0
  %1651 = vmatprep.subr.mxu0 0.0
  %1652 = vmatpush1.msra.mxu0 0.0
  %1653 = vmatprep.subr.mxu0 0.0
  %1654 = vmatpush1.msra.mxu0 0.0
  %1655 = vmatprep.subr.mxu0 0.0
  %1656 = vmatpush1.msra.mxu0 0.0
  %1657 = vmatprep.subr.mxu0 0.0
  %1658 = vmatpush1.msra.mxu0 0.0
  %1659 = vmatprep.subr.mxu0 0.0
  %1660 = vmatpush1.msra.mxu0 0.0
  %1661 = vmatprep.subr.mxu0 0.0
  %1662 = vmatpush1.msra.mxu0 0.0
  %1663 = vmatprep.subr.mxu0 0.0
  %1664 = vmatpush1.msra.mxu0 0.0
  %1665 = vmatprep.subr.mxu0 0.0
  %1666 = vmatpush1.msra.mxu0 0.0
  %1667 = vmatprep.subr.mxu0 0.0
  %1668 = vmatpush1.msra.mxu0 0.0
  %1669 = vmatprep.subr.mxu0 0.0
  %1670 = vmatpush1.msra.mxu0 0.0
  %1671 = vmatprep.subr.mxu0 0.0
  %1672 = vmatpush1.msra.mxu0 0.0
  %1673 = vmatprep.subr.mxu0 0.0
  %1674 = vmatpush1.msra.mxu0 0.0
  %1675 = vmatprep.subr.mxu0 0.0
  %1676 = vmatpush1.msra.mxu0 0.0
  %1677 = vmatprep.subr.mxu0 0.0
  %1678 = vmatpush1.msra.mxu0 0.0
  %1679 = vmatprep.subr.mxu0 0.0
  %1680 = vmatpush1.msra.mxu0 0.0
  %1681 = vmatprep.subr.mxu0 0.0
  %1682 = vmatpush1.msra.mxu0 0.0
  %1683 = vmatprep.subr.mxu0 0.0
  %1684 = vmatpush1.msra.mxu0 0.0
  %1685 = vmatprep.subr.mxu0 0.0
  %1686 = vmatpush1.msra.mxu0 0.0
  %1687 = vmatprep.subr.mxu0 0.0
  %1688 = vmatpush1.msra.mxu0 0.0
  %1689 = vmatprep.subr.mxu0 0.0
  %1690 = vmatpush1.msra.mxu0 0.0
  %1691 = vmatprep.mubr.f32.mxu0 0.0
  %1692 = vmatmul.mubr.f32.gmra.mrb[0].mxu0 %v1601
  %v1693 = vpop.f32.mrb[0].mxu0
  %v1694 = vadd.f32 0.0, %v1693
  %v1695 = vpop.f32.mrb[0].mxu0
  %v1696 = vadd.f32 0.0, %v1695
  %1697 = vmatprep.mubr.f32.mxu0 0.0
  %1698 = vmatmul.mubr.f32.gmra.mrb[0].mxu0 %v1604
  %v1699 = vpop.f32.mrb[0].mxu0
  %v1700 = vadd.f32 0.0, %v1699
  %v1701 = vpop.f32.mrb[0].mxu0
  %v1702 = vadd.f32 0.0, %v1701
  %1703 = vmatprep.mubr.f32.mxu0 0.0
  %1704 = vmatmul.mubr.f32.gmra.mrb[0].mxu0 %v1607
  %v1705 = vpop.f32.mrb[0].mxu0
  %v1706 = vadd.f32 0.0, %v1705
  %v1707 = vpop.f32.mrb[0].mxu0
  %v1708 = vadd.f32 0.0, %v1707
  %1709 = vmatprep.mubr.f32.mxu0 0.0
  %1710 = vmatmul.mubr.f32.gmra.mrb[0].mxu0 %v1610
  %v1711 = vpop.f32.mrb[0].mxu0
  %v1712 = vadd.f32 0.0, %v1711
  %v1713 = vpop.f32.mrb[0].mxu0
  %v1714 = vadd.f32 0.0, %v1713
  %1715 = vmatprep.mubr.f32.mxu0 0.0
  %1716 = vmatmul.mubr.f32.gmra.mrb[0].mxu0 %v1613
  %v1717 = vpop.f32.mrb[0].mxu0
  %v1718 = vadd.f32 0.0, %v1717
  %v1719 = vpop.f32.mrb[0].mxu0
  %v1720 = vadd.f32 0.0, %v1719
  %1721 = vmatprep.mubr.f32.mxu0 0.0
  %1722 = vmatmul.mubr.f32.gmra.mrb[0].mxu0 %v1616
  %v1723 = vpop.f32.mrb[0].mxu0
  %v1724 = vadd.f32 0.0, %v1723
  %v1725 = vpop.f32.mrb[0].mxu0
  %v1726 = vadd.f32 0.0, %v1725
  %1727 = vmatprep.mubr.f32.mxu0 0.0
  %1728 = vmatmul.mubr.f32.gmra.mrb[0].mxu0 %v1619
  %v1729 = vpop.f32.mrb[0].mxu0
  %v1730 = vadd.f32 0.0, %v1729
  %v1731 = vpop.f32.mrb[0].mxu0
  %v1732 = vadd.f32 0.0, %v1731
  %1733 = vmatprep.mubr.f32.mxu0 0.0
  %1734 = vmatmul.mubr.f32.gmra.mrb[0].mxu0 %v1622
  %v1735 = vpop.f32.mrb[0].mxu0
  %v1736 = vadd.f32 0.0, %v1735
  %v1737 = vpop.f32.mrb[0].mxu0
  %v1738 = vadd.f32 0.0, %v1737
  %1739 = vmatprep.mubr.f32.mxu0 0.0
  %1740 = vmatmul.mubr.f32.gmra.mrb[0].mxu0 %v1625
  %v1741 = vpop.f32.mrb[0].mxu0
  %v1742 = vadd.f32 0.0, %v1741
  %v1743 = vpop.f32.mrb[0].mxu0
  %v1744 = vadd.f32 0.0, %v1743
  %1745 = vdwg.mxu0
  %1746 = vmatprep.subr.mxu0 %v1411
  %1747 = vmatpush1.msra.mxu0 %v1410
  %1748 = vmatprep.subr.mxu0 %v1416
  %1749 = vmatpush1.msra.mxu0 %v1415
  %1750 = vmatprep.subr.mxu0 %v1421
  %1751 = vmatpush1.msra.mxu0 %v1420
  %1752 = vmatprep.subr.mxu0 0.0
  %1753 = vmatpush1.msra.mxu0 0.0
  %1754 = vmatprep.subr.mxu0 0.0
  %1755 = vmatpush1.msra.mxu0 0.0
  %1756 = vmatprep.subr.mxu0 0.0
  %1757 = vmatpush1.msra.mxu0 0.0
  %1758 = vmatprep.subr.mxu0 0.0
  %1759 = vmatpush1.msra.mxu0 0.0
  %1760 = vmatprep.subr.mxu0 0.0
  %1761 = vmatpush1.msra.mxu0 0.0
  %1762 = vmatprep.subr.mxu0 0.0
  %1763 = vmatpush1.msra.mxu0 0.0
  %1764 = vmatprep.subr.mxu0 0.0
  %1765 = vmatpush1.msra.mxu0 0.0
  %1766 = vmatprep.subr.mxu0 0.0
  %1767 = vmatpush1.msra.mxu0 0.0
  %1768 = vmatprep.subr.mxu0 0.0
  %1769 = vmatpush1.msra.mxu0 0.0
  %1770 = vmatprep.subr.mxu0 0.0
  %1771 = vmatpush1.msra.mxu0 0.0
  %1772 = vmatprep.subr.mxu0 0.0
  %1773 = vmatpush1.msra.mxu0 0.0
  %1774 = vmatprep.subr.mxu0 0.0
  %1775 = vmatpush1.msra.mxu0 0.0
  %1776 = vmatprep.subr.mxu0 0.0
  %1777 = vmatpush1.msra.mxu0 0.0
  %1778 = vmatprep.subr.mxu0 0.0
  %1779 = vmatpush1.msra.mxu0 0.0
  %1780 = vmatprep.subr.mxu0 0.0
  %1781 = vmatpush1.msra.mxu0 0.0
  %1782 = vmatprep.subr.mxu0 0.0
  %1783 = vmatpush1.msra.mxu0 0.0
  %1784 = vmatprep.subr.mxu0 0.0
  %1785 = vmatpush1.msra.mxu0 0.0
  %1786 = vmatprep.subr.mxu0 0.0
  %1787 = vmatpush1.msra.mxu0 0.0
  %1788 = vmatprep.subr.mxu0 0.0
  %1789 = vmatpush1.msra.mxu0 0.0
  %1790 = vmatprep.subr.mxu0 0.0
  %1791 = vmatpush1.msra.mxu0 0.0
  %1792 = vmatprep.subr.mxu0 0.0
  %1793 = vmatpush1.msra.mxu0 0.0
  %1794 = vmatprep.subr.mxu0 0.0
  %1795 = vmatpush1.msra.mxu0 0.0
  %1796 = vmatprep.subr.mxu0 0.0
  %1797 = vmatpush1.msra.mxu0 0.0
  %1798 = vmatprep.subr.mxu0 0.0
  %1799 = vmatpush1.msra.mxu0 0.0
  %1800 = vmatprep.subr.mxu0 0.0
  %1801 = vmatpush1.msra.mxu0 0.0
  %1802 = vmatprep.subr.mxu0 0.0
  %1803 = vmatpush1.msra.mxu0 0.0
  %1804 = vmatprep.subr.mxu0 0.0
  %1805 = vmatpush1.msra.mxu0 0.0
  %1806 = vmatprep.subr.mxu0 0.0
  %1807 = vmatpush1.msra.mxu0 0.0
  %1808 = vmatprep.subr.mxu0 0.0
  %1809 = vmatpush1.msra.mxu0 0.0
  %1810 = vmatprep.mubr.f32.mxu0 0.0
  %1811 = vmatmul.mubr.f32.gmra.mrb[0].mxu0 %v1601
  %v1812 = vpop.f32.mrb[0].mxu0
  %v1813 = vadd.f32 0.0, %v1812
  %v1814 = vpop.f32.mrb[0].mxu0
  %v1815 = vadd.f32 0.0, %v1814
  %1816 = vmatprep.mubr.f32.mxu0 0.0
  %1817 = vmatmul.mubr.f32.gmra.mrb[0].mxu0 %v1604
  %v1818 = vpop.f32.mrb[0].mxu0
  %v1819 = vadd.f32 0.0, %v1818
  %v1820 = vpop.f32.mrb[0].mxu0
  %v1821 = vadd.f32 0.0, %v1820
  %1822 = vmatprep.mubr.f32.mxu0 0.0
  %1823 = vmatmul.mubr.f32.gmra.mrb[0].mxu0 %v1607
  %v1824 = vpop.f32.mrb[0].mxu0
  %v1825 = vadd.f32 0.0, %v1824
  %v1826 = vpop.f32.mrb[0].mxu0
  %v1827 = vadd.f32 0.0, %v1826
  %1828 = vmatprep.mubr.f32.mxu0 0.0
  %1829 = vmatmul.mubr.f32.gmra.mrb[0].mxu0 %v1610
  %v1830 = vpop.f32.mrb[0].mxu0
  %v1831 = vadd.f32 0.0, %v1830
  %v1832 = vpop.f32.mrb[0].mxu0
  %v1833 = vadd.f32 0.0, %v1832
  %1834 = vmatprep.mubr.f32.mxu0 0.0
  %1835 = vmatmul.mubr.f32.gmra.mrb[0].mxu0 %v1613
  %v1836 = vpop.f32.mrb[0].mxu0
  %v1837 = vadd.f32 0.0, %v1836
  %v1838 = vpop.f32.mrb[0].mxu0
  %v1839 = vadd.f32 0.0, %v1838
  %1840 = vmatprep.mubr.f32.mxu0 0.0
  %1841 = vmatmul.mubr.f32.gmra.mrb[0].mxu0 %v1616
  %v1842 = vpop.f32.mrb[0].mxu0
  %v1843 = vadd.f32 0.0, %v1842
  %v1844 = vpop.f32.mrb[0].mxu0
  %v1845 = vadd.f32 0.0, %v1844
  %1846 = vmatprep.mubr.f32.mxu0 0.0
  %1847 = vmatmul.mubr.f32.gmra.mrb[0].mxu0 %v1619
  %v1848 = vpop.f32.mrb[0].mxu0
  %v1849 = vadd.f32 0.0, %v1848
  %v1850 = vpop.f32.mrb[0].mxu0
  %v1851 = vadd.f32 0.0, %v1850
  %1852 = vmatprep.mubr.f32.mxu0 0.0
  %1853 = vmatmul.mubr.f32.gmra.mrb[0].mxu0 %v1622
  %v1854 = vpop.f32.mrb[0].mxu0
  %v1855 = vadd.f32 0.0, %v1854
  %v1856 = vpop.f32.mrb[0].mxu0
  %v1857 = vadd.f32 0.0, %v1856
  %1858 = vmatprep.mubr.f32.mxu0 0.0
  %1859 = vmatmul.mubr.f32.gmra.mrb[0].mxu0 %v1625
  %v1860 = vpop.f32.mrb[0].mxu0
  %v1861 = vadd.f32 0.0, %v1860
  %v1862 = vpop.f32.mrb[0].mxu0
  %v1863 = vadd.f32 0.0, %v1862
  %1864 = vdwg.mxu0
  %1865 = vmatprep.subr.mxu0 0.0
  %1866 = vmatpush1.msra.mxu0 %v1412
  %1867 = vmatprep.subr.mxu0 0.0
  %1868 = vmatpush1.msra.mxu0 %v1417
  %1869 = vmatprep.subr.mxu0 0.0
  %1870 = vmatpush1.msra.mxu0 %v1422
  %1871 = vmatprep.subr.mxu0 0.0
  %1872 = vmatpush1.msra.mxu0 0.0
  %1873 = vmatprep.subr.mxu0 0.0
  %1874 = vmatpush1.msra.mxu0 0.0
  %1875 = vmatprep.subr.mxu0 0.0
  %1876 = vmatpush1.msra.mxu0 0.0
  %1877 = vmatprep.subr.mxu0 0.0
  %1878 = vmatpush1.msra.mxu0 0.0
  %1879 = vmatprep.subr.mxu0 0.0
  %1880 = vmatpush1.msra.mxu0 0.0
  %1881 = vmatprep.subr.mxu0 0.0
  %1882 = vmatpush1.msra.mxu0 0.0
  %1883 = vmatprep.subr.mxu0 0.0
  %1884 = vmatpush1.msra.mxu0 0.0
  %1885 = vmatprep.subr.mxu0 0.0
  %1886 = vmatpush1.msra.mxu0 0.0
  %1887 = vmatprep.subr.mxu0 0.0
  %1888 = vmatpush1.msra.mxu0 0.0
  %1889 = vmatprep.subr.mxu0 0.0
  %1890 = vmatpush1.msra.mxu0 0.0
  %1891 = vmatprep.subr.mxu0 0.0
  %1892 = vmatpush1.msra.mxu0 0.0
  %1893 = vmatprep.subr.mxu0 0.0
  %1894 = vmatpush1.msra.mxu0 0.0
  %1895 = vmatprep.subr.mxu0 0.0
  %1896 = vmatpush1.msra.mxu0 0.0
  %1897 = vmatprep.subr.mxu0 0.0
  %1898 = vmatpush1.msra.mxu0 0.0
  %1899 = vmatprep.subr.mxu0 0.0
  %1900 = vmatpush1.msra.mxu0 0.0
  %1901 = vmatprep.subr.mxu0 0.0
  %1902 = vmatpush1.msra.mxu0 0.0
  %1903 = vmatprep.subr.mxu0 0.0
  %1904 = vmatpush1.msra.mxu0 0.0
  %1905 = vmatprep.subr.mxu0 0.0
  %1906 = vmatpush1.msra.mxu0 0.0
  %1907 = vmatprep.subr.mxu0 0.0
  %1908 = vmatpush1.msra.mxu0 0.0
  %1909 = vmatprep.subr.mxu0 0.0
  %1910 = vmatpush1.msra.mxu0 0.0
  %1911 = vmatprep.subr.mxu0 0.0
  %1912 = vmatpush1.msra.mxu0 0.0
  %1913 = vmatprep.subr.mxu0 0.0
  %1914 = vmatpush1.msra.mxu0 0.0
  %1915 = vmatprep.subr.mxu0 0.0
  %1916 = vmatpush1.msra.mxu0 0.0
  %1917 = vmatprep.subr.mxu0 0.0
  %1918 = vmatpush1.msra.mxu0 0.0
  %1919 = vmatprep.subr.mxu0 0.0
  %1920 = vmatpush1.msra.mxu0 0.0
  %1921 = vmatprep.subr.mxu0 0.0
  %1922 = vmatpush1.msra.mxu0 0.0
  %1923 = vmatprep.subr.mxu0 0.0
  %1924 = vmatpush1.msra.mxu0 0.0
  %1925 = vmatprep.subr.mxu0 0.0
  %1926 = vmatpush1.msra.mxu0 0.0
  %1927 = vmatprep.subr.mxu0 0.0
  %1928 = vmatpush1.msra.mxu0 0.0
  %1929 = vmatprep.mubr.f32.mxu0 0.0
  %1930 = vmatmul.mubr.f32.gmra.mrb[0].mxu0 %v1601
  %v1931 = vpop.f32.mrb[0].mxu0
  %v1932 = vadd.f32 0.0, %v1931
  %v1933 = vpop.f32.mrb[0].mxu0
  %1934 = vmatprep.mubr.f32.mxu0 0.0
  %1935 = vmatmul.mubr.f32.gmra.mrb[0].mxu0 %v1604
  %v1936 = vpop.f32.mrb[0].mxu0
  %v1937 = vadd.f32 0.0, %v1936
  %v1938 = vpop.f32.mrb[0].mxu0
  %1939 = vmatprep.mubr.f32.mxu0 0.0
  %1940 = vmatmul.mubr.f32.gmra.mrb[0].mxu0 %v1607
  %v1941 = vpop.f32.mrb[0].mxu0
  %v1942 = vadd.f32 0.0, %v1941
  %v1943 = vpop.f32.mrb[0].mxu0
  %1944 = vmatprep.mubr.f32.mxu0 0.0
  %1945 = vmatmul.mubr.f32.gmra.mrb[0].mxu0 %v1610
  %v1946 = vpop.f32.mrb[0].mxu0
  %v1947 = vadd.f32 0.0, %v1946
  %v1948 = vpop.f32.mrb[0].mxu0
  %1949 = vmatprep.mubr.f32.mxu0 0.0
  %1950 = vmatmul.mubr.f32.gmra.mrb[0].mxu0 %v1613
  %v1951 = vpop.f32.mrb[0].mxu0
  %v1952 = vadd.f32 0.0, %v1951
  %v1953 = vpop.f32.mrb[0].mxu0
  %1954 = vmatprep.mubr.f32.mxu0 0.0
  %1955 = vmatmul.mubr.f32.gmra.mrb[0].mxu0 %v1616
  %v1956 = vpop.f32.mrb[0].mxu0
  %v1957 = vadd.f32 0.0, %v1956
  %v1958 = vpop.f32.mrb[0].mxu0
  %1959 = vmatprep.mubr.f32.mxu0 0.0
  %1960 = vmatmul.mubr.f32.gmra.mrb[0].mxu0 %v1619
  %v1961 = vpop.f32.mrb[0].mxu0
  %v1962 = vadd.f32 0.0, %v1961
  %v1963 = vpop.f32.mrb[0].mxu0
  %1964 = vmatprep.mubr.f32.mxu0 0.0
  %1965 = vmatmul.mubr.f32.gmra.mrb[0].mxu0 %v1622
  %v1966 = vpop.f32.mrb[0].mxu0
  %v1967 = vadd.f32 0.0, %v1966
  %v1968 = vpop.f32.mrb[0].mxu0
  %1969 = vmatprep.mubr.f32.mxu0 0.0
  %1970 = vmatmul.mubr.f32.gmra.mrb[0].mxu0 %v1625
  %v1971 = vpop.f32.mrb[0].mxu0
  %v1972 = vadd.f32 0.0, %v1971
  %v1973 = vpop.f32.mrb[0].mxu0
  %1974 = vdwg.mxu0
  %1975 = vst [vmem:[#allocation2] sm:$0xff] %v1694
  %1976 = vst [vmem:[#allocation2 + $0x8] sm:$0xff] %v1696
  %1977 = vst [vmem:[#allocation2 + $0x10] sm:$0xff] %v1813
  %1978 = vst [vmem:[#allocation2 + $0x18] sm:$0xff] %v1815
  %1979 = vst.msk [vmem:[#allocation2 + $0x20] sm:$0xff] %vm798, %v1932
  %1980 = vst [vmem:[#allocation2 + $0x28] sm:$0xff] %v1700
  %1981 = vst [vmem:[#allocation2 + $0x30] sm:$0xff] %v1702
  %1982 = vst [vmem:[#allocation2 + $0x38] sm:$0xff] %v1819
  %1983 = vst [vmem:[#allocation2 + $0x40] sm:$0xff] %v1821
  %1984 = vst.msk [vmem:[#allocation2 + $0x48] sm:$0xff] %vm798, %v1937
  %1985 = vst [vmem:[#allocation2 + $0x50] sm:$0xff] %v1706
  %1986 = vst [vmem:[#allocation2 + $0x58] sm:$0xff] %v1708
  %1987 = vst [vmem:[#allocation2 + $0x60] sm:$0xff] %v1825
  %1988 = vst [vmem:[#allocation2 + $0x68] sm:$0xff] %v1827
  %1989 = vst.msk [vmem:[#allocation2 + $0x70] sm:$0xff] %vm798, %v1942
  %1990 = vst [vmem:[#allocation2 + $0x78] sm:$0xff] %v1712
  %1991 = vst [vmem:[#allocation2 + $0x80] sm:$0xff] %v1714
  %1992 = vst [vmem:[#allocation2 + $0x88] sm:$0xff] %v1831
  %1993 = vst [vmem:[#allocation2 + $0x90] sm:$0xff] %v1833
  %1994 = vst.msk [vmem:[#allocation2 + $0x98] sm:$0xff] %vm798, %v1947
  %1995 = vst [vmem:[#allocation2 + $0xa0] sm:$0xff] %v1718
  %1996 = vst [vmem:[#allocation2 + $0xa8] sm:$0xff] %v1720
  %1997 = vst [vmem:[#allocation2 + $0xb0] sm:$0xff] %v1837
  %1998 = vst [vmem:[#allocation2 + $0xb8] sm:$0xff] %v1839
  %1999 = vst.msk [vmem:[#allocation2 + $0xc0] sm:$0xff] %vm798, %v1952
  %2000 = vst [vmem:[#allocation2 + $0xc8] sm:$0xff] %v1724
  %2001 = vst [vmem:[#allocation2 + $0xd0] sm:$0xff] %v1726
  %2002 = vst [vmem:[#allocation2 + $0xd8] sm:$0xff] %v1843
  %2003 = vst [vmem:[#allocation2 + $0xe0] sm:$0xff] %v1845
  %2004 = vst.msk [vmem:[#allocation2 + $0xe8] sm:$0xff] %vm798, %v1957
  %2005 = vst [vmem:[#allocation2 + $0xf0] sm:$0xff] %v1730
  %2006 = vst [vmem:[#allocation2 + $0xf8] sm:$0xff] %v1732
  %2007 = vst [vmem:[#allocation2 + $0x100] sm:$0xff] %v1849
  %2008 = vst [vmem:[#allocation2 + $0x108] sm:$0xff] %v1851
  %2009 = vst.msk [vmem:[#allocation2 + $0x110] sm:$0xff] %vm798, %v1962
  %2010 = vst [vmem:[#allocation2 + $0x118] sm:$0xff] %v1736
  %2011 = vst [vmem:[#allocation2 + $0x120] sm:$0xff] %v1738
  %2012 = vst [vmem:[#allocation2 + $0x128] sm:$0xff] %v1855
  %2013 = vst [vmem:[#allocation2 + $0x130] sm:$0xff] %v1857
  %2014 = vst.msk [vmem:[#allocation2 + $0x138] sm:$0xff] %vm798, %v1967
  %2015 = vst [vmem:[#allocation2 + $0x140] sm:$0xff] %v1742
  %2016 = vst [vmem:[#allocation2 + $0x148] sm:$0xff] %v1744
  %2017 = vst [vmem:[#allocation2 + $0x150] sm:$0xff] %v1861
  %2018 = vst [vmem:[#allocation2 + $0x158] sm:$0xff] %v1863
  %2019 = vst.msk [vmem:[#allocation2 + $0x160] sm:$0xff] %vm798, %v1972
  %v2020 = vld [vmem:[#allocation2] sm:$0xff]
  %v2021 = vld [vmem:[#allocation2 + $0x8] sm:$0xff]
  %v2022 = vld [vmem:[#allocation2 + $0x10] sm:$0xff]
  %v2023 = vld [vmem:[#allocation2 + $0x18] sm:$0xff]
  %v2024 = vld [vmem:[#allocation2 + $0x20] sm:$0xff]
  %v2025 = vld [vmem:[#allocation2 + $0x28] sm:$0xff]
  %v2026 = vld [vmem:[#allocation2 + $0x30] sm:$0xff]
  %v2027 = vld [vmem:[#allocation2 + $0x38] sm:$0xff]
  %v2028 = vld [vmem:[#allocation2 + $0x40] sm:$0xff]
  %v2029 = vld [vmem:[#allocation2 + $0x48] sm:$0xff]
  %v2030 = vld [vmem:[#allocation2 + $0x50] sm:$0xff]
  %v2031 = vld [vmem:[#allocation2 + $0x58] sm:$0xff]
  %v2032 = vld [vmem:[#allocation2 + $0x60] sm:$0xff]
  %v2033 = vld [vmem:[#allocation2 + $0x68] sm:$0xff]
  %v2034 = vld [vmem:[#allocation2 + $0x70] sm:$0xff]
  %v2035 = vmul.f32 %v1575, %v2020
  %v2036 = vmul.f32 %v1576, %v2021
  %v2037 = vmul.f32 %v1577, %v2022
  %v2038 = vmul.f32 %v1578, %v2023
  %v2039 = vmul.f32 %v1579, %v2024
  %v2040 = vmul.f32 %v1580, %v2025
  %v2041 = vmul.f32 %v1581, %v2026
  %v2042 = vmul.f32 %v1582, %v2027
  %v2043 = vmul.f32 %v1583, %v2028
  %v2044 = vmul.f32 %v1584, %v2029
  %v2045 = vmul.f32 %v1585, %v2030
  %v2046 = vmul.f32 %v1586, %v2031
  %v2047 = vmul.f32 %v1587, %v2032
  %v2048 = vmul.f32 %v1588, %v2033
  %v2049 = vmul.f32 %v1589, %v2034
  %v2050 = vadd.f32 %v2035, %v2040
  %v2051 = vadd.f32 %v2050, %v2045
  %v2052 = vrot.slane %v2051, 4
  %v2053 = vadd.f32 %v2051, %v2052
  %v2054 = vrot.slane %v2053, 2
  %v2055 = vadd.f32 %v2053, %v2054
  %v2056 = vrot.slane %v2055, 1
  %v2057 = vadd.f32 %v2055, %v2056
  %v2058 = vadd.f32 %v2036, %v2041
  %v2059 = vadd.f32 %v2058, %v2046
  %v2060 = vrot.slane %v2059, 4
  %v2061 = vadd.f32 %v2059, %v2060
  %v2062 = vrot.slane %v2061, 2
  %v2063 = vadd.f32 %v2061, %v2062
  %v2064 = vrot.slane %v2063, 1
  %v2065 = vadd.f32 %v2063, %v2064
  %v2066 = vadd.f32 %v2037, %v2042
  %v2067 = vadd.f32 %v2066, %v2047
  %v2068 = vrot.slane %v2067, 4
  %v2069 = vadd.f32 %v2067, %v2068
  %v2070 = vrot.slane %v2069, 2
  %v2071 = vadd.f32 %v2069, %v2070
  %v2072 = vrot.slane %v2071, 1
  %v2073 = vadd.f32 %v2071, %v2072
  %v2074 = vadd.f32 %v2038, %v2043
  %v2075 = vadd.f32 %v2074, %v2048
  %v2076 = vrot.slane %v2075, 4
  %v2077 = vadd.f32 %v2075, %v2076
  %v2078 = vrot.slane %v2077, 2
  %v2079 = vadd.f32 %v2077, %v2078
  %v2080 = vrot.slane %v2079, 1
  %v2081 = vadd.f32 %v2079, %v2080
  %v2082 = vsel %vm798, %v2039, 0.0
  %v2083 = vsel %vm798, %v2044, 0.0
  %v2084 = vadd.f32 %v2082, %v2083
  %v2085 = vsel %vm798, %v2049, 0.0
  %v2086 = vadd.f32 %v2084, %v2085
  %v2087 = vrot.slane %v2086, 4
  %v2088 = vadd.f32 %v2086, %v2087
  %v2089 = vrot.slane %v2088, 2
  %v2090 = vadd.f32 %v2088, %v2089
  %v2091 = vrot.slane %v2090, 1
  %v2092 = vadd.f32 %v2090, %v2091
  %v2098 = vcombine.low %v2057, %v2065
  %v2099 = vcombine.low %v2073, %v2081
  %v2101 = vunpack.c.l.s4 1966171168
  %v2102 = vunpack.c.0.s8 %v2101
  %v2103 = vlaneseq
  %v2104 = vshrl.u32 %v2103, 7
  %v2105 = vsub.s32 %v2102, %v2104
  %v2106 = vrot.slane %v2098, %v2105
  %v2108 = vunpack.c.l.s4 1966171168
  %v2109 = vunpack.c.0.s8 %v2108
  %v2110 = vlaneseq
  %v2111 = vshrl.u32 %v2110, 7
  %v2112 = vsub.s32 %v2109, %v2111
  %v2113 = vrot.slane %v2099, %v2112
  %v2115 = vunpack.c.l.s4 1966171168
  %v2116 = vunpack.c.0.s8 %v2115
  %v2117 = vlaneseq
  %v2118 = vshrl.u32 %v2117, 7
  %v2119 = vsub.s32 %v2116, %v2118
  %v2120 = vrot.slane %v2092, %v2119
  %v2121 = vcombine.low %v2106, %v2113
  %v2123 = vunpack.c.l.s4 1966171168
  %v2124 = vunpack.c.0.s8 %v2123
  %v2125 = vlaneseq
  %v2126 = vshrl.u32 %v2125, 7
  %v2127 = vsub.s32 %v2124, %v2126
  %v2128 = vrot.slane %v2121, %v2127
  %v2130 = vunpack.c.l.s4 1966171168
  %v2131 = vunpack.c.0.s8 %v2130
  %v2132 = vlaneseq
  %v2133 = vshrl.u32 %v2132, 7
  %v2134 = vsub.s32 %v2131, %v2133
  %v2135 = vrot.slane %v2120, %v2134
  %v2136 = vcombine.low %v2128, %v2135
  %s2138 = scalar_lea.vmem %s3, 3
  %2139 = vst.msk [vmem:[%s2138] ss:$8 sm:$0xf] %vm961, %v2136
  %2140 = vst.msk [vmem:[%s2138] ss:$8 sm:$0x10] %vm961, %v2136
  %v2141 = vld [vmem:[#allocation2 + $0x78] sm:$0xff]
  %v2142 = vld [vmem:[#allocation2 + $0x80] sm:$0xff]
  %v2143 = vld [vmem:[#allocation2 + $0x88] sm:$0xff]
  %v2144 = vld [vmem:[#allocation2 + $0x90] sm:$0xff]
  %v2145 = vld [vmem:[#allocation2 + $0x98] sm:$0xff]
  %v2146 = vld [vmem:[#allocation2 + $0xa0] sm:$0xff]
  %v2147 = vld [vmem:[#allocation2 + $0xa8] sm:$0xff]
  %v2148 = vld [vmem:[#allocation2 + $0xb0] sm:$0xff]
  %v2149 = vld [vmem:[#allocation2 + $0xb8] sm:$0xff]
  %v2150 = vld [vmem:[#allocation2 + $0xc0] sm:$0xff]
  %v2151 = vld [vmem:[#allocation2 + $0xc8] sm:$0xff]
  %v2152 = vld [vmem:[#allocation2 + $0xd0] sm:$0xff]
  %v2153 = vld [vmem:[#allocation2 + $0xd8] sm:$0xff]
  %v2154 = vld [vmem:[#allocation2 + $0xe0] sm:$0xff]
  %v2155 = vld [vmem:[#allocation2 + $0xe8] sm:$0xff]
  %v2156 = vmul.f32 %v1575, %v2141
  %v2157 = vmul.f32 %v1576, %v2142
  %v2158 = vmul.f32 %v1577, %v2143
  %v2159 = vmul.f32 %v1578, %v2144
  %v2160 = vmul.f32 %v1579, %v2145
  %v2161 = vmul.f32 %v1580, %v2146
  %v2162 = vmul.f32 %v1581, %v2147
  %v2163 = vmul.f32 %v1582, %v2148
  %v2164 = vmul.f32 %v1583, %v2149
  %v2165 = vmul.f32 %v1584, %v2150
  %v2166 = vmul.f32 %v1585, %v2151
  %v2167 = vmul.f32 %v1586, %v2152
  %v2168 = vmul.f32 %v1587, %v2153
  %v2169 = vmul.f32 %v1588, %v2154
  %v2170 = vmul.f32 %v1589, %v2155
  %v2171 = vadd.f32 %v2156, %v2161
  %v2172 = vadd.f32 %v2171, %v2166
  %v2173 = vrot.slane %v2172, 4
  %v2174 = vadd.f32 %v2172, %v2173
  %v2175 = vrot.slane %v2174, 2
  %v2176 = vadd.f32 %v2174, %v2175
  %v2177 = vrot.slane %v2176, 1
  %v2178 = vadd.f32 %v2176, %v2177
  %v2179 = vadd.f32 %v2157, %v2162
  %v2180 = vadd.f32 %v2179, %v2167
  %v2181 = vrot.slane %v2180, 4
  %v2182 = vadd.f32 %v2180, %v2181
  %v2183 = vrot.slane %v2182, 2
  %v2184 = vadd.f32 %v2182, %v2183
  %v2185 = vrot.slane %v2184, 1
  %v2186 = vadd.f32 %v2184, %v2185
  %v2187 = vadd.f32 %v2158, %v2163
  %v2188 = vadd.f32 %v2187, %v2168
  %v2189 = vrot.slane %v2188, 4
  %v2190 = vadd.f32 %v2188, %v2189
  %v2191 = vrot.slane %v2190, 2
  %v2192 = vadd.f32 %v2190, %v2191
  %v2193 = vrot.slane %v2192, 1
  %v2194 = vadd.f32 %v2192, %v2193
  %v2195 = vadd.f32 %v2159, %v2164
  %v2196 = vadd.f32 %v2195, %v2169
  %v2197 = vrot.slane %v2196, 4
  %v2198 = vadd.f32 %v2196, %v2197
  %v2199 = vrot.slane %v2198, 2
  %v2200 = vadd.f32 %v2198, %v2199
  %v2201 = vrot.slane %v2200, 1
  %v2202 = vadd.f32 %v2200, %v2201
  %v2203 = vsel %vm798, %v2160, 0.0
  %v2204 = vsel %vm798, %v2165, 0.0
  %v2205 = vadd.f32 %v2203, %v2204
  %v2206 = vsel %vm798, %v2170, 0.0
  %v2207 = vadd.f32 %v2205, %v2206
  %v2208 = vrot.slane %v2207, 4
  %v2209 = vadd.f32 %v2207, %v2208
  %v2210 = vrot.slane %v2209, 2
  %v2211 = vadd.f32 %v2209, %v2210
  %v2212 = vrot.slane %v2211, 1
  %v2213 = vadd.f32 %v2211, %v2212
  %v2219 = vcombine.low %v2178, %v2186
  %v2220 = vcombine.low %v2194, %v2202
  %v2222 = vunpack.c.l.s4 1966171168
  %v2223 = vunpack.c.0.s8 %v2222
  %v2224 = vlaneseq
  %v2225 = vshrl.u32 %v2224, 7
  %v2226 = vsub.s32 %v2223, %v2225
  %v2227 = vrot.slane %v2219, %v2226
  %v2229 = vunpack.c.l.s4 1966171168
  %v2230 = vunpack.c.0.s8 %v2229
  %v2231 = vlaneseq
  %v2232 = vshrl.u32 %v2231, 7
  %v2233 = vsub.s32 %v2230, %v2232
  %v2234 = vrot.slane %v2220, %v2233
  %v2236 = vunpack.c.l.s4 1966171168
  %v2237 = vunpack.c.0.s8 %v2236
  %v2238 = vlaneseq
  %v2239 = vshrl.u32 %v2238, 7
  %v2240 = vsub.s32 %v2237, %v2239
  %v2241 = vrot.slane %v2213, %v2240
  %v2242 = vcombine.low %v2227, %v2234
  %v2244 = vunpack.c.l.s4 1966171168
  %v2245 = vunpack.c.0.s8 %v2244
  %v2246 = vlaneseq
  %v2247 = vshrl.u32 %v2246, 7
  %v2248 = vsub.s32 %v2245, %v2247
  %v2249 = vrot.slane %v2242, %v2248
  %v2251 = vunpack.c.l.s4 1966171168
  %v2252 = vunpack.c.0.s8 %v2251
  %v2253 = vlaneseq
  %v2254 = vshrl.u32 %v2253, 7
  %v2255 = vsub.s32 %v2252, %v2254
  %v2256 = vrot.slane %v2241, %v2255
  %v2257 = vcombine.low %v2249, %v2256
  %s2259 = scalar_lea.vmem %s3, 4
  %2260 = vst.msk [vmem:[%s2259] ss:$8 sm:$0xf] %vm961, %v2257
  %2261 = vst.msk [vmem:[%s2259] ss:$8 sm:$0x10] %vm961, %v2257
  %v2262 = vld [vmem:[#allocation2 + $0xf0] sm:$0xff]
  %v2263 = vld [vmem:[#allocation2 + $0xf8] sm:$0xff]
  %v2264 = vld [vmem:[#allocation2 + $0x100] sm:$0xff]
  %v2265 = vld [vmem:[#allocation2 + $0x108] sm:$0xff]
  %v2266 = vld [vmem:[#allocation2 + $0x110] sm:$0xff]
  %v2267 = vld [vmem:[#allocation2 + $0x118] sm:$0xff]
  %v2268 = vld [vmem:[#allocation2 + $0x120] sm:$0xff]
  %v2269 = vld [vmem:[#allocation2 + $0x128] sm:$0xff]
  %v2270 = vld [vmem:[#allocation2 + $0x130] sm:$0xff]
  %v2271 = vld [vmem:[#allocation2 + $0x138] sm:$0xff]
  %v2272 = vld [vmem:[#allocation2 + $0x140] sm:$0xff]
  %v2273 = vld [vmem:[#allocation2 + $0x148] sm:$0xff]
  %v2274 = vld [vmem:[#allocation2 + $0x150] sm:$0xff]
  %v2275 = vld [vmem:[#allocation2 + $0x158] sm:$0xff]
  %v2276 = vld [vmem:[#allocation2 + $0x160] sm:$0xff]
  %v2277 = vmul.f32 %v1575, %v2262
  %v2278 = vmul.f32 %v1576, %v2263
  %v2279 = vmul.f32 %v1577, %v2264
  %v2280 = vmul.f32 %v1578, %v2265
  %v2281 = vmul.f32 %v1579, %v2266
  %v2282 = vmul.f32 %v1580, %v2267
  %v2283 = vmul.f32 %v1581, %v2268
  %v2284 = vmul.f32 %v1582, %v2269
  %v2285 = vmul.f32 %v1583, %v2270
  %v2286 = vmul.f32 %v1584, %v2271
  %v2287 = vmul.f32 %v1585, %v2272
  %v2288 = vmul.f32 %v1586, %v2273
  %v2289 = vmul.f32 %v1587, %v2274
  %v2290 = vmul.f32 %v1588, %v2275
  %v2291 = vmul.f32 %v1589, %v2276
  %v2292 = vadd.f32 %v2277, %v2282
  %v2293 = vadd.f32 %v2292, %v2287
  %v2294 = vrot.slane %v2293, 4
  %v2295 = vadd.f32 %v2293, %v2294
  %v2296 = vrot.slane %v2295, 2
  %v2297 = vadd.f32 %v2295, %v2296
  %v2298 = vrot.slane %v2297, 1
  %v2299 = vadd.f32 %v2297, %v2298
  %v2300 = vadd.f32 %v2278, %v2283
  %v2301 = vadd.f32 %v2300, %v2288
  %v2302 = vrot.slane %v2301, 4
  %v2303 = vadd.f32 %v2301, %v2302
  %v2304 = vrot.slane %v2303, 2
  %v2305 = vadd.f32 %v2303, %v2304
  %v2306 = vrot.slane %v2305, 1
  %v2307 = vadd.f32 %v2305, %v2306
  %v2308 = vadd.f32 %v2279, %v2284
  %v2309 = vadd.f32 %v2308, %v2289
  %v2310 = vrot.slane %v2309, 4
  %v2311 = vadd.f32 %v2309, %v2310
  %v2312 = vrot.slane %v2311, 2
  %v2313 = vadd.f32 %v2311, %v2312
  %v2314 = vrot.slane %v2313, 1
  %v2315 = vadd.f32 %v2313, %v2314
  %v2316 = vadd.f32 %v2280, %v2285
  %v2317 = vadd.f32 %v2316, %v2290
  %v2318 = vrot.slane %v2317, 4
  %v2319 = vadd.f32 %v2317, %v2318
  %v2320 = vrot.slane %v2319, 2
  %v2321 = vadd.f32 %v2319, %v2320
  %v2322 = vrot.slane %v2321, 1
  %v2323 = vadd.f32 %v2321, %v2322
  %v2324 = vsel %vm798, %v2281, 0.0
  %v2325 = vsel %vm798, %v2286, 0.0
  %v2326 = vadd.f32 %v2324, %v2325
  %v2327 = vsel %vm798, %v2291, 0.0
  %v2328 = vadd.f32 %v2326, %v2327
  %v2329 = vrot.slane %v2328, 4
  %v2330 = vadd.f32 %v2328, %v2329
  %v2331 = vrot.slane %v2330, 2
  %v2332 = vadd.f32 %v2330, %v2331
  %v2333 = vrot.slane %v2332, 1
  %v2334 = vadd.f32 %v2332, %v2333
  %v2340 = vcombine.low %v2299, %v2307
  %v2341 = vcombine.low %v2315, %v2323
  %v2343 = vunpack.c.l.s4 1966171168
  %v2344 = vunpack.c.0.s8 %v2343
  %v2345 = vlaneseq
  %v2346 = vshrl.u32 %v2345, 7
  %v2347 = vsub.s32 %v2344, %v2346
  %v2348 = vrot.slane %v2340, %v2347
  %v2350 = vunpack.c.l.s4 1966171168
  %v2351 = vunpack.c.0.s8 %v2350
  %v2352 = vlaneseq
  %v2353 = vshrl.u32 %v2352, 7
  %v2354 = vsub.s32 %v2351, %v2353
  %v2355 = vrot.slane %v2341, %v2354
  %v2357 = vunpack.c.l.s4 1966171168
  %v2358 = vunpack.c.0.s8 %v2357
  %v2359 = vlaneseq
  %v2360 = vshrl.u32 %v2359, 7
  %v2361 = vsub.s32 %v2358, %v2360
  %v2362 = vrot.slane %v2334, %v2361
  %v2363 = vcombine.low %v2348, %v2355
  %v2365 = vunpack.c.l.s4 1966171168
  %v2366 = vunpack.c.0.s8 %v2365
  %v2367 = vlaneseq
  %v2368 = vshrl.u32 %v2367, 7
  %v2369 = vsub.s32 %v2366, %v2368
  %v2370 = vrot.slane %v2363, %v2369
  %v2372 = vunpack.c.l.s4 1966171168
  %v2373 = vunpack.c.0.s8 %v2372
  %v2374 = vlaneseq
  %v2375 = vshrl.u32 %v2374, 7
  %v2376 = vsub.s32 %v2373, %v2375
  %v2377 = vrot.slane %v2362, %v2376
  %v2378 = vcombine.low %v2370, %v2377
  %s2380 = scalar_lea.vmem %s3, 5
  %2381 = vst.msk [vmem:[%s2380] ss:$8 sm:$0xf] %vm961, %v2378
  %2382 = vst.msk [vmem:[%s2380] ss:$8 sm:$0x10] %vm961, %v2378
  // Predicated region
  $region10: #{stn_forward.5} parent=0 // pred_check
    _
  $region11: #{stn_forward.5} parent=0 // pred_check_branch
    %2384 = sbr.rel (0) target = $region13
  $region12: #{stn_forward.5} parent=0 // pred_region
    _
  $region13: #{stn_forward.5} parent=0 // pred_fallthru
    _
  // Predicated region
  $region14: #{stn_forward.5} parent=0 // pred_check
    _
  $region15: #{stn_forward.5} parent=0 // pred_check_branch
    %2386 = sbr.rel (0) target = $region17
  $region16: #{stn_forward.5} parent=0 // pred_region
    _
  $region17: #{stn_forward.5} parent=0 // pred_fallthru
    _

</llo_original>
